<compile_context>
chip_gen: v5e
topology: v5e:2x2
jax: 0.10.0
libtpu: 0.0.40
codegen_flags: <defaults>
</compile_context>

<pallas_src>
import jax
import jax.numpy as jnp
import numpy as np
from jax import lax
from jax.experimental import pallas as pl
from jax.experimental.pallas import tpu as pltpu

# ---- static model geometry -------------------------------------------------
# Chosen so the flattened feature size equals 2016, matching nn.Linear(2016, 3)
# in the PyTorch module:  16 * (H - 63) * (W / 32) = 2016  with H=126, W=64.
B = 2            # batch
H = 126          # electrode axis (conv "height")
W = 64           # time axis (conv "width")
F1 = 8           # block1 out channels
KT1 = 64         # block1 temporal taps, kernel (1, 64), pad (31, 32)
F2 = 16          # block2/3 out channels
KH2 = 64         # block2 spatial taps, kernel (64, 1)
H2 = H - KH2 + 1             # 63
H2P = 64                     # H2 padded to a sublane-aligned 64
POOL2 = 4
W2 = W // POOL2              # 16
KT3 = 16                     # block3 depthwise temporal taps, pad (7, 8)
POOL3 = 8
W3 = W2 // POOL3             # 2
NCLASS = 3
FEAT = F2 * H2 * W3          # 2016
EPS = 1e-5                   # BatchNorm2d eps


# ---- fused Pallas kernel ----------------------------------------------------
def _eegnet_kernel(x_ref, t2s_ref, t1x_ref, bz_ref, k23_ref, b3w_ref,
                   p3w_ref, wl_ref, lb_ref, o_ref, a_sc):
    # x_ref:   (1, H, W)              one input sample
    # t2s_ref: (F2*H2P, H)            block2 Toeplitz (conv(64,1)+BN2 scale),
    #                                 16 stacked 64-row blocks (row 63 = 0)
    # t1x_ref: (F2, W, W)             block1 Toeplitz (pad+conv(1,64)+BN1), dup per pair
    # bz_ref:  (F2, H2P, 1)           fused bias  b1*rowsum(T2) + b2
    # k23_ref: (F2, W, F2*W2)         AvgPool(1,4)+depthwise(1,16)+pointwise+BN3 scale
    # b3w_ref: (1, F2*W2)             block3 folded BN bias (broadcast over time)
    # p3w_ref: (F2*W2, F2*W3)         block3 AvgPool(1,8), block diagonal
    # wl_ref:  (NCLASS, H2P, F2*W3)   linear weights permuted/padded to kernel layout
    # lb_ref:  (1, 1, NCLASS)         linear bias
    # o_ref:   (1, 1, NCLASS)
    # a_sc:    (F2*H2P, W)            VMEM scratch for the block_2 result
    f32 = jnp.float32
    x = x_ref[0]                                               # (126, 64)

    def elu(v):  # ELU(alpha=1); clamp keeps exp finite on the unselected lanes
        return jnp.where(v > 0.0, v, jnp.exp(jnp.minimum(v, 0.0)) - 1.0)

    # block_2 spatial conv (contraction over H=126) for ALL 16 output channels
    # as a single MXU matmul: (1024, 126) @ (126, 64).
    a_sc[...] = jnp.dot(t2s_ref[...], x, preferred_element_type=f32)

    u = jnp.zeros((H2P, F2 * W2), f32)                         # (64, 256)
    for oc in range(F2):
        ablk = a_sc[oc * H2P:(oc + 1) * H2P, :]                # aligned (64, 64)
        # block_1 temporal conv (pad + conv(1,64) + BN1) applied after block_2
        # by associativity; bias = b1*rowsum(T2) + b2 (BN2 folded).  Then ELU.
        z = elu(jnp.dot(ablk, t1x_ref[oc], preferred_element_type=f32)
                + bz_ref[oc])                                  # (64, 64)
        # AvgPool(1,4) + block_3 depthwise(1,16) + pointwise 1x1 + BN3 scale,
        # pre-fused into one (64, 256) matrix per channel; accumulate over oc.
        u = u + jnp.dot(z, k23_ref[oc], preferred_element_type=f32)
    u = elu(u + b3w_ref[...])                                  # BN3 bias + ELU, (64, 256)
    y3 = jnp.dot(u, p3w_ref[...], preferred_element_type=f32)  # AvgPool(1,8) -> (64, 32)

    # flatten + Linear(2016, 3): weights pre-permuted to (o, h', c*W3+p), row 63 = 0.
    logits = (y3[None, :, :] * wl_ref[...]).sum(axis=2).sum(axis=1)   # (3,)
    o_ref[...] = logits.reshape(1, 1, NCLASS) + lb_ref[...]


def eegnet_forward(x, prep):
    batch = x.shape[0]
    xs = x[:, 0]                                              # (B, H, W)
    out = pl.pallas_call(
        _eegnet_kernel,
        out_shape=jax.ShapeDtypeStruct((batch, 1, NCLASS), jnp.float32),
        grid=(batch,),
        in_specs=[
            pl.BlockSpec((1, H, W), lambda i: (i, 0, 0)),
            pl.BlockSpec((F2 * H2P, H), lambda i: (0, 0)),
            pl.BlockSpec((F2, W, W), lambda i: (0, 0, 0)),
            pl.BlockSpec((F2, H2P, 1), lambda i: (0, 0, 0)),
            pl.BlockSpec((F2, W, F2 * W2), lambda i: (0, 0, 0)),
            pl.BlockSpec((1, F2 * W2), lambda i: (0, 0)),
            pl.BlockSpec((F2 * W2, F2 * W3), lambda i: (0, 0)),
            pl.BlockSpec((NCLASS, H2P, F2 * W3), lambda i: (0, 0, 0)),
            pl.BlockSpec((1, 1, NCLASS), lambda i: (0, 0, 0)),
        ],
        out_specs=pl.BlockSpec((1, 1, NCLASS), lambda i: (i, 0, 0)),
        scratch_shapes=[pltpu.VMEM((F2 * H2P, W), jnp.float32)],
        compiler_params=pltpu.CompilerParams(
            dimension_semantics=("parallel",)),
    )(xs, prep["t2s"], prep["t1x"], prep["bz"], prep["k23"],
      prep["b3w"], prep["p3w"], prep["wl"], prep["lb"])
    return out.reshape(batch, NCLASS)


# ---- one-time weight preparation (hoisted out of the jitted forward) --------
def prepare_params(p):
    f32 = np.float32
    g = lambda k: np.asarray(p[k], f32)

    # fold inference-mode BatchNorm into the preceding convs
    s1 = g("g1") / np.sqrt(g("rv1") + EPS)
    b1 = g("bt1") - g("rm1") * s1
    w1f = g("w1")[:, 0, 0, :] * s1[:, None]                       # (F1, 64)

    s2 = g("g2") / np.sqrt(g("rv2") + EPS)
    b2 = g("bt2") - g("rm2") * s2
    w2f = g("w2")[:, 0, :, 0] * s2[:, None]                       # (F2, 64)

    s3 = g("g3") / np.sqrt(g("rv3") + EPS)
    b3 = g("bt3") - g("rm3") * s3
    w3d = g("w3d")[:, 0, 0, :]                                    # (F2, 16)
    wp3f = g("w3p")[:, :, 0, 0] * s3[:, None]                     # (F2, F2)

    # block_1: ZeroPad2d((31,32)) + conv(1,64) + BN1 scale as a (W, W) Toeplitz
    # per channel, duplicated per block_2 output channel (groups=8 -> 2 per input)
    t = np.arange(W)
    k1 = t[:, None] - t[None, :] + 31                             # (t_in, t_out)
    T1 = np.where((k1 >= 0) & (k1 < KT1),
                  w1f[:, np.clip(k1, 0, KT1 - 1)], 0.0).astype(f32)   # (F1, W, W)
    T1X = np.ascontiguousarray(T1[np.repeat(np.arange(F1), 2)])   # (F2, W, W)

    # block_2: conv(64,1) + BN2 scale as a (H2, H) Toeplitz per output channel,
    # zero-padded to 64 rows and stacked into one (1024, 126) matrix.
    h = np.arange(H)
    hp = np.arange(H2)
    j2 = h[None, :] - hp[:, None]                                 # (h', h)
    T2 = np.where((j2 >= 0) & (j2 < KH2),
                  w2f[:, np.clip(j2, 0, KH2 - 1)], 0.0).astype(f32)   # (F2, H2, H)
    T2S = np.zeros((F2, H2P, H), f32)
    T2S[:, :H2, :] = T2
    T2S = T2S.reshape(F2 * H2P, H)                                # (1024, 126)

    # bias after reordering  z = (T2 @ x) @ T1 + b1*rowsum(T2) + b2   (row 63 = 0)
    bz = np.zeros((F2, H2P, 1), f32)
    bz[:, :H2, 0] = np.repeat(b1, 2)[:, None] * T2.sum(axis=2) + b2[:, None]

    # AvgPool(1,4) + block_3 ZeroPad((7,8)) + depthwise(1,16) + pointwise(1,1)
    # + BN3 scale, fused into one (W, F2*W2) map per block_3 input channel.
    q = np.arange(W2)
    k3 = q[:, None] - q[None, :] + 7                              # (q, t')
    T3 = np.where((k3 >= 0) & (k3 < KT3),
                  w3d[:, np.clip(k3, 0, KT3 - 1)], 0.0).astype(f32)   # (F2, W2, W2)
    P2 = ((np.arange(W)[:, None] // POOL2) == q[None, :]).astype(f32) / POOL2  # (W, W2)
    PT3 = np.einsum("tq,cqu->ctu", P2, T3)                        # (F2, W, W2)
    K23 = np.einsum("ctu,oc->ctou", PT3, wp3f).reshape(F2, W, F2 * W2)  # (16,64,256)

    b3w = np.repeat(b3, W2)[None, :].astype(f32)                  # (1, 256)

    # block_3 AvgPool(1,8): block-diagonal pooling matrix (256, 32)
    P3 = ((q[:, None] // POOL3) == np.arange(W3)[None, :]).astype(f32) / POOL3
    P3w = np.kron(np.eye(F2, dtype=f32), P3)                      # (256, 32)

    # final Linear(2016, 3): weights permuted to (o, h', c*W3+p), padded row 63 = 0
    WL = (g("lw").reshape(NCLASS, F2, H2, W3)
          .transpose(0, 2, 1, 3).reshape(NCLASS, H2, F2 * W3))    # (3, 63, 32)
    WLP = np.zeros((NCLASS, H2P, F2 * W3), f32)
    WLP[:, :H2, :] = WL
    lb = g("lb").reshape(1, 1, NCLASS)

    to = lambda a: jnp.asarray(a, jnp.float32)
    return dict(t2s=to(T2S), t1x=to(T1X), bz=to(bz), k23=to(K23),
                b3w=to(b3w), p3w=to(P3w), wl=to(WLP), lb=to(lb))


# ---- deterministic parameter init (shapes from the PyTorch __init__) --------
def init_params(key):
    ks = jax.random.split(key, 18)
    p = {}
    p["w1"] = 0.1 * jax.random.normal(ks[0], (F1, 1, 1, KT1), jnp.float32)
    p["g1"] = 1.0 + 0.1 * jax.random.normal(ks[1], (F1,), jnp.float32)
    p["bt1"] = 0.1 * jax.random.normal(ks[2], (F1,), jnp.float32)
    p["rm1"] = 0.1 * jax.random.normal(ks[3], (F1,), jnp.float32)
    p["rv1"] = jax.random.uniform(ks[4], (F1,), jnp.float32, 0.8, 1.2)
    p["w2"] = 0.1 * jax.random.normal(ks[5], (F2, 1, KH2, 1), jnp.float32)
    p["g2"] = 1.0 + 0.1 * jax.random.normal(ks[6], (F2,), jnp.float32)
    p["bt2"] = 0.1 * jax.random.normal(ks[7], (F2,), jnp.float32)
    p["rm2"] = 0.1 * jax.random.normal(ks[8], (F2,), jnp.float32)
    p["rv2"] = jax.random.uniform(ks[9], (F2,), jnp.float32, 0.8, 1.2)
    p["w3d"] = 0.2 * jax.random.normal(ks[10], (F2, 1, 1, KT3), jnp.float32)
    p["w3p"] = 0.2 * jax.random.normal(ks[11], (F2, F2, 1, 1), jnp.float32)
    p["g3"] = 1.0 + 0.1 * jax.random.normal(ks[12], (F2,), jnp.float32)
    p["bt3"] = 0.1 * jax.random.normal(ks[13], (F2,), jnp.float32)
    p["rm3"] = 0.1 * jax.random.normal(ks[14], (F2,), jnp.float32)
    p["rv3"] = jax.random.uniform(ks[15], (F2,), jnp.float32, 0.8, 1.2)
    p["lw"] = 0.1 * jax.random.normal(ks[16], (NCLASS, FEAT), jnp.float32)
    p["lb"] = 0.1 * jax.random.normal(ks[17], (NCLASS,), jnp.float32)
    return p


# ---- pure-JAX reference (independent of the kernel) -------------------------
def reference_forward(x, p):
    dn = ("NCHW", "OIHW", "NCHW")
    hi = lax.Precision.HIGHEST

    def bn(y, g, bt, rm, rv):
        sh = (1, -1, 1, 1)
        return ((y - rm.reshape(sh)) / jnp.sqrt(rv.reshape(sh) + EPS)
                * g.reshape(sh) + bt.reshape(sh))

    def elu(y):
        return jnp.where(y > 0.0, y, jnp.exp(y) - 1.0)

    y = lax.conv_general_dilated(x, p["w1"], (1, 1), ((0, 0), (31, 32)),
                                 dimension_numbers=dn, precision=hi)
    y = bn(y, p["g1"], p["bt1"], p["rm1"], p["rv1"])
    y = lax.conv_general_dilated(y, p["w2"], (1, 1), ((0, 0), (0, 0)),
                                 dimension_numbers=dn, feature_group_count=8,
                                 precision=hi)
    y = elu(bn(y, p["g2"], p["bt2"], p["rm2"], p["rv2"]))
    y = y.reshape(B, F2, H2, W2, POOL2).mean(-1)
    y = lax.conv_general_dilated(y, p["w3d"], (1, 1), ((0, 0), (7, 8)),
                                 dimension_numbers=dn, feature_group_count=16,
                                 precision=hi)
    y = lax.conv_general_dilated(y, p["w3p"], (1, 1), ((0, 0), (0, 0)),
                                 dimension_numbers=dn, precision=hi)
    y = elu(bn(y, p["g3"], p["bt3"], p["rm3"], p["rv3"]))
    y = y.reshape(B, F2, H2, W3, POOL3).mean(-1)
    return y.reshape(B, FEAT) @ p["lw"].T + p["lb"]


if __name__ == "__main__":
    key = jax.random.PRNGKey(0)
    kx, kp = jax.random.split(key)
    params = init_params(kp)
    x = jax.random.normal(kx, (B, 1, H, W), dtype=jnp.float32)

    prep = prepare_params(params)          # one-time, outside the jitted path
    fwd = jax.jit(eegnet_forward)
    out = jax.block_until_ready(fwd(x, prep))

    ref = reference_forward(x, params)
    np.testing.assert_allclose(np.asarray(out), np.asarray(ref),
                               rtol=2e-2, atol=2e-2)
    print("KERNEL_OK")
</pallas_src>

<mosaic_0001>
module attributes {stable_mosaic.version = 11 : i64} {
  func.func @_eegnet_kernel(%arg0: i32, %arg1: memref<1x126x64xf32, #tpu.memory_space<vmem>>, %arg2: memref<1024x126xf32, #tpu.memory_space<vmem>>, %arg3: memref<16x64x64xf32, #tpu.memory_space<vmem>>, %arg4: memref<16x64x1xf32, #tpu.memory_space<vmem>>, %arg5: memref<16x64x256xf32, #tpu.memory_space<vmem>>, %arg6: memref<1x256xf32, #tpu.memory_space<vmem>>, %arg7: memref<256x32xf32, #tpu.memory_space<vmem>>, %arg8: memref<3x64x32xf32, #tpu.memory_space<vmem>>, %arg9: memref<1x1x3xf32, #tpu.memory_space<vmem>>, %arg10: memref<1x1x3xf32, #tpu.memory_space<vmem>>, %arg11: memref<1024x64xf32, #tpu.memory_space<vmem>>) attributes {dimension_semantics = [#tpu.dimension_semantics<parallel>], iteration_bounds = array<i64: 2>, scalar_prefetch = 0 : i64, scratch_operands = 1 : i64, tpu.core_type = #tpu.core_type<tc>, window_params = [{transform_indices = @transform_0, window_bounds = array<i64: 1, 126, 64>}, {pipeline_mode = #tpu.pipeline_mode<synchronous>, transform_indices = @transform_1, window_bounds = array<i64: 1024, 126>}, {pipeline_mode = #tpu.pipeline_mode<synchronous>, transform_indices = @transform_2, window_bounds = array<i64: 16, 64, 64>}, {pipeline_mode = #tpu.pipeline_mode<synchronous>, transform_indices = @transform_3, window_bounds = array<i64: 16, 64, 1>}, {pipeline_mode = #tpu.pipeline_mode<synchronous>, transform_indices = @transform_4, window_bounds = array<i64: 16, 64, 256>}, {pipeline_mode = #tpu.pipeline_mode<synchronous>, transform_indices = @transform_5, window_bounds = array<i64: 1, 256>}, {pipeline_mode = #tpu.pipeline_mode<synchronous>, transform_indices = @transform_6, window_bounds = array<i64: 256, 32>}, {pipeline_mode = #tpu.pipeline_mode<synchronous>, transform_indices = @transform_7, window_bounds = array<i64: 3, 64, 32>}, {pipeline_mode = #tpu.pipeline_mode<synchronous>, transform_indices = @transform_8, window_bounds = array<i64: 1, 1, 3>}, {transform_indices = @transform_9, window_bounds = array<i64: 1, 1, 3>}]} {
    %c0 = arith.constant 0 : index
    %c0_0 = arith.constant 0 : index
    %c0_1 = arith.constant 0 : index
    %0 = vector.load %arg1[%c0, %c0_0, %c0_1] : memref<1x126x64xf32, #tpu.memory_space<vmem>>, vector<1x126x64xf32>
    %1 = vector.shape_cast %0 : vector<1x126x64xf32> to vector<126x64xf32>
    %c0_2 = arith.constant 0 : index
    %c0_3 = arith.constant 0 : index
    %2 = vector.load %arg2[%c0_2, %c0_3] : memref<1024x126xf32, #tpu.memory_space<vmem>>, vector<1024x126xf32>
    %cst = arith.constant dense<0.000000e+00> : vector<1024x64xf32>
    %3 = tpu.matmul %2, %1, %cst {dimension_numbers = #tpu.dot_dimension_numbers<[1], [0], [0], [1], [0, 0, 1, 1], [], []>} : vector<1024x126xf32>, vector<126x64xf32>, vector<1024x64xf32> -> vector<1024x64xf32>
    %c0_4 = arith.constant 0 : index
    %c0_5 = arith.constant 0 : index
    %4 = vector.load %arg11[%c0_4, %c0_5] : memref<1024x64xf32, #tpu.memory_space<vmem>>, vector<1024x64xf32>
    tpu.vector_store %arg11[%c0_4, %c0_5], %3 {strides = array<i32>} : memref<1024x64xf32, #tpu.memory_space<vmem>>, vector<1024x64xf32>,
    %cst_6 = arith.constant 0.000000e+00 : f32
    %5 = vector.broadcast %cst_6 : f32 to vector<64x256xf32>
    %c0_7 = arith.constant 0 : index
    %c0_8 = arith.constant 0 : index
    %6 = vector.load %arg11[%c0_7, %c0_8] : memref<1024x64xf32, #tpu.memory_space<vmem>>, vector<64x64xf32>
    %c0_9 = arith.constant 0 : index
    %c0_10 = arith.constant 0 : index
    %c0_11 = arith.constant 0 : index
    %7 = vector.load %arg3[%c0_9, %c0_10, %c0_11] : memref<16x64x64xf32, #tpu.memory_space<vmem>>, vector<1x64x64xf32>
    %8 = vector.shape_cast %7 : vector<1x64x64xf32> to vector<64x64xf32>
    %cst_12 = arith.constant dense<0.000000e+00> : vector<64x64xf32>
    %9 = tpu.matmul %6, %8, %cst_12 {dimension_numbers = #tpu.dot_dimension_numbers<[1], [0], [0], [1], [0, 0, 1, 1], [], []>} : vector<64x64xf32>, vector<64x64xf32>, vector<64x64xf32> -> vector<64x64xf32>
    %c0_13 = arith.constant 0 : index
    %c0_14 = arith.constant 0 : index
    %c0_15 = arith.constant 0 : index
    %10 = vector.load %arg4[%c0_13, %c0_14, %c0_15] : memref<16x64x1xf32, #tpu.memory_space<vmem>>, vector<1x64x1xf32>
    %11 = vector.shape_cast %10 : vector<1x64x1xf32> to vector<64x1xf32>
    %12 = vector.broadcast %11 : vector<64x1xf32> to vector<64x64xf32>
    %13 = arith.addf %9, %12 : vector<64x64xf32>
    %cst_16 = arith.constant 0.000000e+00 : f32
    %14 = vector.broadcast %cst_16 : f32 to vector<64x64xf32>
    %15 = arith.cmpf ogt, %13, %14 : vector<64x64xf32>
    %cst_17 = arith.constant 0.000000e+00 : f32
    %16 = vector.broadcast %cst_17 : f32 to vector<64x64xf32>
    %17 = arith.minimumf %13, %16 : vector<64x64xf32>
    %18 = math.exp %17 : vector<64x64xf32>
    %cst_18 = arith.constant 1.000000e+00 : f32
    %19 = vector.broadcast %cst_18 : f32 to vector<64x64xf32>
    %20 = arith.subf %18, %19 : vector<64x64xf32>
    %21 = arith.select %15, %13, %20 : vector<64x64xi1>, vector<64x64xf32>
    %c0_19 = arith.constant 0 : index
    %c0_20 = arith.constant 0 : index
    %c0_21 = arith.constant 0 : index
    %22 = vector.load %arg5[%c0_19, %c0_20, %c0_21] : memref<16x64x256xf32, #tpu.memory_space<vmem>>, vector<1x64x256xf32>
    %23 = vector.shape_cast %22 : vector<1x64x256xf32> to vector<64x256xf32>
    %cst_22 = arith.constant dense<0.000000e+00> : vector<64x256xf32>
    %24 = tpu.matmul %21, %23, %cst_22 {dimension_numbers = #tpu.dot_dimension_numbers<[1], [0], [0], [1], [0, 0, 1, 1], [], []>} : vector<64x64xf32>, vector<64x256xf32>, vector<64x256xf32> -> vector<64x256xf32>
    %25 = arith.addf %5, %24 : vector<64x256xf32>
    %c64 = arith.constant 64 : index
    %c0_23 = arith.constant 0 : index
    %26 = vector.load %arg11[%c64, %c0_23] : memref<1024x64xf32, #tpu.memory_space<vmem>>, vector<64x64xf32>
    %c1 = arith.constant 1 : index
    %c0_24 = arith.constant 0 : index
    %c0_25 = arith.constant 0 : index
    %27 = vector.load %arg3[%c1, %c0_24, %c0_25] : memref<16x64x64xf32, #tpu.memory_space<vmem>>, vector<1x64x64xf32>
    %28 = vector.shape_cast %27 : vector<1x64x64xf32> to vector<64x64xf32>
    %cst_26 = arith.constant dense<0.000000e+00> : vector<64x64xf32>
    %29 = tpu.matmul %26, %28, %cst_26 {dimension_numbers = #tpu.dot_dimension_numbers<[1], [0], [0], [1], [0, 0, 1, 1], [], []>} : vector<64x64xf32>, vector<64x64xf32>, vector<64x64xf32> -> vector<64x64xf32>
    %c1_27 = arith.constant 1 : index
    %c0_28 = arith.constant 0 : index
    %c0_29 = arith.constant 0 : index
    %30 = vector.load %arg4[%c1_27, %c0_28, %c0_29] : memref<16x64x1xf32, #tpu.memory_space<vmem>>, vector<1x64x1xf32>
    %31 = vector.shape_cast %30 : vector<1x64x1xf32> to vector<64x1xf32>
    %32 = vector.broadcast %31 : vector<64x1xf32> to vector<64x64xf32>
    %33 = arith.addf %29, %32 : vector<64x64xf32>
    %cst_30 = arith.constant 0.000000e+00 : f32
    %34 = vector.broadcast %cst_30 : f32 to vector<64x64xf32>
    %35 = arith.cmpf ogt, %33, %34 : vector<64x64xf32>
    %cst_31 = arith.constant 0.000000e+00 : f32
    %36 = vector.broadcast %cst_31 : f32 to vector<64x64xf32>
    %37 = arith.minimumf %33, %36 : vector<64x64xf32>
    %38 = math.exp %37 : vector<64x64xf32>
    %cst_32 = arith.constant 1.000000e+00 : f32
    %39 = vector.broadcast %cst_32 : f32 to vector<64x64xf32>
    %40 = arith.subf %38, %39 : vector<64x64xf32>
    %41 = arith.select %35, %33, %40 : vector<64x64xi1>, vector<64x64xf32>
    %c1_33 = arith.constant 1 : index
    %c0_34 = arith.constant 0 : index
    %c0_35 = arith.constant 0 : index
    %42 = vector.load %arg5[%c1_33, %c0_34, %c0_35] : memref<16x64x256xf32, #tpu.memory_space<vmem>>, vector<1x64x256xf32>
    %43 = vector.shape_cast %42 : vector<1x64x256xf32> to vector<64x256xf32>
    %cst_36 = arith.constant dense<0.000000e+00> : vector<64x256xf32>
    %44 = tpu.matmul %41, %43, %cst_36 {dimension_numbers = #tpu.dot_dimension_numbers<[1], [0], [0], [1], [0, 0, 1, 1], [], []>} : vector<64x64xf32>, vector<64x256xf32>, vector<64x256xf32> -> vector<64x256xf32>
    %45 = arith.addf %25, %44 : vector<64x256xf32>
    %c128 = arith.constant 128 : index
    %c0_37 = arith.constant 0 : index
    %46 = vector.load %arg11[%c128, %c0_37] : memref<1024x64xf32, #tpu.memory_space<vmem>>, vector<64x64xf32>
    %c2 = arith.constant 2 : index
    %c0_38 = arith.constant 0 : index
    %c0_39 = arith.constant 0 : index
    %47 = vector.load %arg3[%c2, %c0_38, %c0_39] : memref<16x64x64xf32, #tpu.memory_space<vmem>>, vector<1x64x64xf32>
    %48 = vector.shape_cast %47 : vector<1x64x64xf32> to vector<64x64xf32>
    %cst_40 = arith.constant dense<0.000000e+00> : vector<64x64xf32>
    %49 = tpu.matmul %46, %48, %cst_40 {dimension_numbers = #tpu.dot_dimension_numbers<[1], [0], [0], [1], [0, 0, 1, 1], [], []>} : vector<64x64xf32>, vector<64x64xf32>, vector<64x64xf32> -> vector<64x64xf32>
    %c2_41 = arith.constant 2 : index
    %c0_42 = arith.constant 0 : index
    %c0_43 = arith.constant 0 : index
    %50 = vector.load %arg4[%c2_41, %c0_42, %c0_43] : memref<16x64x1xf32, #tpu.memory_space<vmem>>, vector<1x64x1xf32>
    %51 = vector.shape_cast %50 : vector<1x64x1xf32> to vector<64x1xf32>
    %52 = vector.broadcast %51 : vector<64x1xf32> to vector<64x64xf32>
    %53 = arith.addf %49, %52 : vector<64x64xf32>
    %cst_44 = arith.constant 0.000000e+00 : f32
    %54 = vector.broadcast %cst_44 : f32 to vector<64x64xf32>
    %55 = arith.cmpf ogt, %53, %54 : vector<64x64xf32>
    %cst_45 = arith.constant 0.000000e+00 : f32
    %56 = vector.broadcast %cst_45 : f32 to vector<64x64xf32>
    %57 = arith.minimumf %53, %56 : vector<64x64xf32>
    %58 = math.exp %57 : vector<64x64xf32>
    %cst_46 = arith.constant 1.000000e+00 : f32
    %59 = vector.broadcast %cst_46 : f32 to vector<64x64xf32>
    %60 = arith.subf %58, %59 : vector<64x64xf32>
    %61 = arith.select %55, %53, %60 : vector<64x64xi1>, vector<64x64xf32>
    %c2_47 = arith.constant 2 : index
    %c0_48 = arith.constant 0 : index
    %c0_49 = arith.constant 0 : index
    %62 = vector.load %arg5[%c2_47, %c0_48, %c0_49] : memref<16x64x256xf32, #tpu.memory_space<vmem>>, vector<1x64x256xf32>
    %63 = vector.shape_cast %62 : vector<1x64x256xf32> to vector<64x256xf32>
    %cst_50 = arith.constant dense<0.000000e+00> : vector<64x256xf32>
    %64 = tpu.matmul %61, %63, %cst_50 {dimension_numbers = #tpu.dot_dimension_numbers<[1], [0], [0], [1], [0, 0, 1, 1], [], []>} : vector<64x64xf32>, vector<64x256xf32>, vector<64x256xf32> -> vector<64x256xf32>
    %65 = arith.addf %45, %64 : vector<64x256xf32>
    %c192 = arith.constant 192 : index
    %c0_51 = arith.constant 0 : index
    %66 = vector.load %arg11[%c192, %c0_51] : memref<1024x64xf32, #tpu.memory_space<vmem>>, vector<64x64xf32>
    %c3 = arith.constant 3 : index
    %c0_52 = arith.constant 0 : index
    %c0_53 = arith.constant 0 : index
    %67 = vector.load %arg3[%c3, %c0_52, %c0_53] : memref<16x64x64xf32, #tpu.memory_space<vmem>>, vector<1x64x64xf32>
    %68 = vector.shape_cast %67 : vector<1x64x64xf32> to vector<64x64xf32>
    %cst_54 = arith.constant dense<0.000000e+00> : vector<64x64xf32>
    %69 = tpu.matmul %66, %68, %cst_54 {dimension_numbers = #tpu.dot_dimension_numbers<[1], [0], [0], [1], [0, 0, 1, 1], [], []>} : vector<64x64xf32>, vector<64x64xf32>, vector<64x64xf32> -> vector<64x64xf32>
    %c3_55 = arith.constant 3 : index
    %c0_56 = arith.constant 0 : index
    %c0_57 = arith.constant 0 : index
    %70 = vector.load %arg4[%c3_55, %c0_56, %c0_57] : memref<16x64x1xf32, #tpu.memory_space<vmem>>, vector<1x64x1xf32>
    %71 = vector.shape_cast %70 : vector<1x64x1xf32> to vector<64x1xf32>
    %72 = vector.broadcast %71 : vector<64x1xf32> to vector<64x64xf32>
    %73 = arith.addf %69, %72 : vector<64x64xf32>
    %cst_58 = arith.constant 0.000000e+00 : f32
    %74 = vector.broadcast %cst_58 : f32 to vector<64x64xf32>
    %75 = arith.cmpf ogt, %73, %74 : vector<64x64xf32>
    %cst_59 = arith.constant 0.000000e+00 : f32
    %76 = vector.broadcast %cst_59 : f32 to vector<64x64xf32>
    %77 = arith.minimumf %73, %76 : vector<64x64xf32>
    %78 = math.exp %77 : vector<64x64xf32>
    %cst_60 = arith.constant 1.000000e+00 : f32
    %79 = vector.broadcast %cst_60 : f32 to vector<64x64xf32>
    %80 = arith.subf %78, %79 : vector<64x64xf32>
    %81 = arith.select %75, %73, %80 : vector<64x64xi1>, vector<64x64xf32>
    %c3_61 = arith.constant 3 : index
    %c0_62 = arith.constant 0 : index
    %c0_63 = arith.constant 0 : index
    %82 = vector.load %arg5[%c3_61, %c0_62, %c0_63] : memref<16x64x256xf32, #tpu.memory_space<vmem>>, vector<1x64x256xf32>
    %83 = vector.shape_cast %82 : vector<1x64x256xf32> to vector<64x256xf32>
    %cst_64 = arith.constant dense<0.000000e+00> : vector<64x256xf32>
    %84 = tpu.matmul %81, %83, %cst_64 {dimension_numbers = #tpu.dot_dimension_numbers<[1], [0], [0], [1], [0, 0, 1, 1], [], []>} : vector<64x64xf32>, vector<64x256xf32>, vector<64x256xf32> -> vector<64x256xf32>
    %85 = arith.addf %65, %84 : vector<64x256xf32>
    %c256 = arith.constant 256 : index
    %c0_65 = arith.constant 0 : index
    %86 = vector.load %arg11[%c256, %c0_65] : memref<1024x64xf32, #tpu.memory_space<vmem>>, vector<64x64xf32>
    %c4 = arith.constant 4 : index
    %c0_66 = arith.constant 0 : index
    %c0_67 = arith.constant 0 : index
    %87 = vector.load %arg3[%c4, %c0_66, %c0_67] : memref<16x64x64xf32, #tpu.memory_space<vmem>>, vector<1x64x64xf32>
    %88 = vector.shape_cast %87 : vector<1x64x64xf32> to vector<64x64xf32>
    %cst_68 = arith.constant dense<0.000000e+00> : vector<64x64xf32>
    %89 = tpu.matmul %86, %88, %cst_68 {dimension_numbers = #tpu.dot_dimension_numbers<[1], [0], [0], [1], [0, 0, 1, 1], [], []>} : vector<64x64xf32>, vector<64x64xf32>, vector<64x64xf32> -> vector<64x64xf32>
    %c4_69 = arith.constant 4 : index
    %c0_70 = arith.constant 0 : index
    %c0_71 = arith.constant 0 : index
    %90 = vector.load %arg4[%c4_69, %c0_70, %c0_71] : memref<16x64x1xf32, #tpu.memory_space<vmem>>, vector<1x64x1xf32>
    %91 = vector.shape_cast %90 : vector<1x64x1xf32> to vector<64x1xf32>
    %92 = vector.broadcast %91 : vector<64x1xf32> to vector<64x64xf32>
    %93 = arith.addf %89, %92 : vector<64x64xf32>
    %cst_72 = arith.constant 0.000000e+00 : f32
    %94 = vector.broadcast %cst_72 : f32 to vector<64x64xf32>
    %95 = arith.cmpf ogt, %93, %94 : vector<64x64xf32>
    %cst_73 = arith.constant 0.000000e+00 : f32
    %96 = vector.broadcast %cst_73 : f32 to vector<64x64xf32>
    %97 = arith.minimumf %93, %96 : vector<64x64xf32>
    %98 = math.exp %97 : vector<64x64xf32>
    %cst_74 = arith.constant 1.000000e+00 : f32
    %99 = vector.broadcast %cst_74 : f32 to vector<64x64xf32>
    %100 = arith.subf %98, %99 : vector<64x64xf32>
    %101 = arith.select %95, %93, %100 : vector<64x64xi1>, vector<64x64xf32>
    %c4_75 = arith.constant 4 : index
    %c0_76 = arith.constant 0 : index
    %c0_77 = arith.constant 0 : index
    %102 = vector.load %arg5[%c4_75, %c0_76, %c0_77] : memref<16x64x256xf32, #tpu.memory_space<vmem>>, vector<1x64x256xf32>
    %103 = vector.shape_cast %102 : vector<1x64x256xf32> to vector<64x256xf32>
    %cst_78 = arith.constant dense<0.000000e+00> : vector<64x256xf32>
    %104 = tpu.matmul %101, %103, %cst_78 {dimension_numbers = #tpu.dot_dimension_numbers<[1], [0], [0], [1], [0, 0, 1, 1], [], []>} : vector<64x64xf32>, vector<64x256xf32>, vector<64x256xf32> -> vector<64x256xf32>
    %105 = arith.addf %85, %104 : vector<64x256xf32>
    %c320 = arith.constant 320 : index
    %c0_79 = arith.constant 0 : index
    %106 = vector.load %arg11[%c320, %c0_79] : memref<1024x64xf32, #tpu.memory_space<vmem>>, vector<64x64xf32>
    %c5 = arith.constant 5 : index
    %c0_80 = arith.constant 0 : index
    %c0_81 = arith.constant 0 : index
    %107 = vector.load %arg3[%c5, %c0_80, %c0_81] : memref<16x64x64xf32, #tpu.memory_space<vmem>>, vector<1x64x64xf32>
    %108 = vector.shape_cast %107 : vector<1x64x64xf32> to vector<64x64xf32>
    %cst_82 = arith.constant dense<0.000000e+00> : vector<64x64xf32>
    %109 = tpu.matmul %106, %108, %cst_82 {dimension_numbers = #tpu.dot_dimension_numbers<[1], [0], [0], [1], [0, 0, 1, 1], [], []>} : vector<64x64xf32>, vector<64x64xf32>, vector<64x64xf32> -> vector<64x64xf32>
    %c5_83 = arith.constant 5 : index
    %c0_84 = arith.constant 0 : index
    %c0_85 = arith.constant 0 : index
    %110 = vector.load %arg4[%c5_83, %c0_84, %c0_85] : memref<16x64x1xf32, #tpu.memory_space<vmem>>, vector<1x64x1xf32>
    %111 = vector.shape_cast %110 : vector<1x64x1xf32> to vector<64x1xf32>
    %112 = vector.broadcast %111 : vector<64x1xf32> to vector<64x64xf32>
    %113 = arith.addf %109, %112 : vector<64x64xf32>
    %cst_86 = arith.constant 0.000000e+00 : f32
    %114 = vector.broadcast %cst_86 : f32 to vector<64x64xf32>
    %115 = arith.cmpf ogt, %113, %114 : vector<64x64xf32>
    %cst_87 = arith.constant 0.000000e+00 : f32
    %116 = vector.broadcast %cst_87 : f32 to vector<64x64xf32>
    %117 = arith.minimumf %113, %116 : vector<64x64xf32>
    %118 = math.exp %117 : vector<64x64xf32>
    %cst_88 = arith.constant 1.000000e+00 : f32
    %119 = vector.broadcast %cst_88 : f32 to vector<64x64xf32>
    %120 = arith.subf %118, %119 : vector<64x64xf32>
    %121 = arith.select %115, %113, %120 : vector<64x64xi1>, vector<64x64xf32>
    %c5_89 = arith.constant 5 : index
    %c0_90 = arith.constant 0 : index
    %c0_91 = arith.constant 0 : index
    %122 = vector.load %arg5[%c5_89, %c0_90, %c0_91] : memref<16x64x256xf32, #tpu.memory_space<vmem>>, vector<1x64x256xf32>
    %123 = vector.shape_cast %122 : vector<1x64x256xf32> to vector<64x256xf32>
    %cst_92 = arith.constant dense<0.000000e+00> : vector<64x256xf32>
    %124 = tpu.matmul %121, %123, %cst_92 {dimension_numbers = #tpu.dot_dimension_numbers<[1], [0], [0], [1], [0, 0, 1, 1], [], []>} : vector<64x64xf32>, vector<64x256xf32>, vector<64x256xf32> -> vector<64x256xf32>
    %125 = arith.addf %105, %124 : vector<64x256xf32>
    %c384 = arith.constant 384 : index
    %c0_93 = arith.constant 0 : index
    %126 = vector.load %arg11[%c384, %c0_93] : memref<1024x64xf32, #tpu.memory_space<vmem>>, vector<64x64xf32>
    %c6 = arith.constant 6 : index
    %c0_94 = arith.constant 0 : index
    %c0_95 = arith.constant 0 : index
    %127 = vector.load %arg3[%c6, %c0_94, %c0_95] : memref<16x64x64xf32, #tpu.memory_space<vmem>>, vector<1x64x64xf32>
    %128 = vector.shape_cast %127 : vector<1x64x64xf32> to vector<64x64xf32>
    %cst_96 = arith.constant dense<0.000000e+00> : vector<64x64xf32>
    %129 = tpu.matmul %126, %128, %cst_96 {dimension_numbers = #tpu.dot_dimension_numbers<[1], [0], [0], [1], [0, 0, 1, 1], [], []>} : vector<64x64xf32>, vector<64x64xf32>, vector<64x64xf32> -> vector<64x64xf32>
    %c6_97 = arith.constant 6 : index
    %c0_98 = arith.constant 0 : index
    %c0_99 = arith.constant 0 : index
    %130 = vector.load %arg4[%c6_97, %c0_98, %c0_99] : memref<16x64x1xf32, #tpu.memory_space<vmem>>, vector<1x64x1xf32>
    %131 = vector.shape_cast %130 : vector<1x64x1xf32> to vector<64x1xf32>
    %132 = vector.broadcast %131 : vector<64x1xf32> to vector<64x64xf32>
    %133 = arith.addf %129, %132 : vector<64x64xf32>
    %cst_100 = arith.constant 0.000000e+00 : f32
    %134 = vector.broadcast %cst_100 : f32 to vector<64x64xf32>
    %135 = arith.cmpf ogt, %133, %134 : vector<64x64xf32>
    %cst_101 = arith.constant 0.000000e+00 : f32
    %136 = vector.broadcast %cst_101 : f32 to vector<64x64xf32>
    %137 = arith.minimumf %133, %136 : vector<64x64xf32>
    %138 = math.exp %137 : vector<64x64xf32>
    %cst_102 = arith.constant 1.000000e+00 : f32
    %139 = vector.broadcast %cst_102 : f32 to vector<64x64xf32>
    %140 = arith.subf %138, %139 : vector<64x64xf32>
    %141 = arith.select %135, %133, %140 : vector<64x64xi1>, vector<64x64xf32>
    %c6_103 = arith.constant 6 : index
    %c0_104 = arith.constant 0 : index
    %c0_105 = arith.constant 0 : index
    %142 = vector.load %arg5[%c6_103, %c0_104, %c0_105] : memref<16x64x256xf32, #tpu.memory_space<vmem>>, vector<1x64x256xf32>
    %143 = vector.shape_cast %142 : vector<1x64x256xf32> to vector<64x256xf32>
    %cst_106 = arith.constant dense<0.000000e+00> : vector<64x256xf32>
    %144 = tpu.matmul %141, %143, %cst_106 {dimension_numbers = #tpu.dot_dimension_numbers<[1], [0], [0], [1], [0, 0, 1, 1], [], []>} : vector<64x64xf32>, vector<64x256xf32>, vector<64x256xf32> -> vector<64x256xf32>
    %145 = arith.addf %125, %144 : vector<64x256xf32>
    %c448 = arith.constant 448 : index
    %c0_107 = arith.constant 0 : index
    %146 = vector.load %arg11[%c448, %c0_107] : memref<1024x64xf32, #tpu.memory_space<vmem>>, vector<64x64xf32>
    %c7 = arith.constant 7 : index
    %c0_108 = arith.constant 0 : index
    %c0_109 = arith.constant 0 : index
    %147 = vector.load %arg3[%c7, %c0_108, %c0_109] : memref<16x64x64xf32, #tpu.memory_space<vmem>>, vector<1x64x64xf32>
    %148 = vector.shape_cast %147 : vector<1x64x64xf32> to vector<64x64xf32>
    %cst_110 = arith.constant dense<0.000000e+00> : vector<64x64xf32>
    %149 = tpu.matmul %146, %148, %cst_110 {dimension_numbers = #tpu.dot_dimension_numbers<[1], [0], [0], [1], [0, 0, 1, 1], [], []>} : vector<64x64xf32>, vector<64x64xf32>, vector<64x64xf32> -> vector<64x64xf32>
    %c7_111 = arith.constant 7 : index
    %c0_112 = arith.constant 0 : index
    %c0_113 = arith.constant 0 : index
    %150 = vector.load %arg4[%c7_111, %c0_112, %c0_113] : memref<16x64x1xf32, #tpu.memory_space<vmem>>, vector<1x64x1xf32>
    %151 = vector.shape_cast %150 : vector<1x64x1xf32> to vector<64x1xf32>
    %152 = vector.broadcast %151 : vector<64x1xf32> to vector<64x64xf32>
    %153 = arith.addf %149, %152 : vector<64x64xf32>
    %cst_114 = arith.constant 0.000000e+00 : f32
    %154 = vector.broadcast %cst_114 : f32 to vector<64x64xf32>
    %155 = arith.cmpf ogt, %153, %154 : vector<64x64xf32>
    %cst_115 = arith.constant 0.000000e+00 : f32
    %156 = vector.broadcast %cst_115 : f32 to vector<64x64xf32>
    %157 = arith.minimumf %153, %156 : vector<64x64xf32>
    %158 = math.exp %157 : vector<64x64xf32>
    %cst_116 = arith.constant 1.000000e+00 : f32
    %159 = vector.broadcast %cst_116 : f32 to vector<64x64xf32>
    %160 = arith.subf %158, %159 : vector<64x64xf32>
    %161 = arith.select %155, %153, %160 : vector<64x64xi1>, vector<64x64xf32>
    %c7_117 = arith.constant 7 : index
    %c0_118 = arith.constant 0 : index
    %c0_119 = arith.constant 0 : index
    %162 = vector.load %arg5[%c7_117, %c0_118, %c0_119] : memref<16x64x256xf32, #tpu.memory_space<vmem>>, vector<1x64x256xf32>
    %163 = vector.shape_cast %162 : vector<1x64x256xf32> to vector<64x256xf32>
    %cst_120 = arith.constant dense<0.000000e+00> : vector<64x256xf32>
    %164 = tpu.matmul %161, %163, %cst_120 {dimension_numbers = #tpu.dot_dimension_numbers<[1], [0], [0], [1], [0, 0, 1, 1], [], []>} : vector<64x64xf32>, vector<64x256xf32>, vector<64x256xf32> -> vector<64x256xf32>
    %165 = arith.addf %145, %164 : vector<64x256xf32>
    %c512 = arith.constant 512 : index
    %c0_121 = arith.constant 0 : index
    %166 = vector.load %arg11[%c512, %c0_121] : memref<1024x64xf32, #tpu.memory_space<vmem>>, vector<64x64xf32>
    %c8 = arith.constant 8 : index
    %c0_122 = arith.constant 0 : index
    %c0_123 = arith.constant 0 : index
    %167 = vector.load %arg3[%c8, %c0_122, %c0_123] : memref<16x64x64xf32, #tpu.memory_space<vmem>>, vector<1x64x64xf32>
    %168 = vector.shape_cast %167 : vector<1x64x64xf32> to vector<64x64xf32>
    %cst_124 = arith.constant dense<0.000000e+00> : vector<64x64xf32>
    %169 = tpu.matmul %166, %168, %cst_124 {dimension_numbers = #tpu.dot_dimension_numbers<[1], [0], [0], [1], [0, 0, 1, 1], [], []>} : vector<64x64xf32>, vector<64x64xf32>, vector<64x64xf32> -> vector<64x64xf32>
    %c8_125 = arith.constant 8 : index
    %c0_126 = arith.constant 0 : index
    %c0_127 = arith.constant 0 : index
    %170 = vector.load %arg4[%c8_125, %c0_126, %c0_127] : memref<16x64x1xf32, #tpu.memory_space<vmem>>, vector<1x64x1xf32>
    %171 = vector.shape_cast %170 : vector<1x64x1xf32> to vector<64x1xf32>
    %172 = vector.broadcast %171 : vector<64x1xf32> to vector<64x64xf32>
    %173 = arith.addf %169, %172 : vector<64x64xf32>
    %cst_128 = arith.constant 0.000000e+00 : f32
    %174 = vector.broadcast %cst_128 : f32 to vector<64x64xf32>
    %175 = arith.cmpf ogt, %173, %174 : vector<64x64xf32>
    %cst_129 = arith.constant 0.000000e+00 : f32
    %176 = vector.broadcast %cst_129 : f32 to vector<64x64xf32>
    %177 = arith.minimumf %173, %176 : vector<64x64xf32>
    %178 = math.exp %177 : vector<64x64xf32>
    %cst_130 = arith.constant 1.000000e+00 : f32
    %179 = vector.broadcast %cst_130 : f32 to vector<64x64xf32>
    %180 = arith.subf %178, %179 : vector<64x64xf32>
    %181 = arith.select %175, %173, %180 : vector<64x64xi1>, vector<64x64xf32>
    %c8_131 = arith.constant 8 : index
    %c0_132 = arith.constant 0 : index
    %c0_133 = arith.constant 0 : index
    %182 = vector.load %arg5[%c8_131, %c0_132, %c0_133] : memref<16x64x256xf32, #tpu.memory_space<vmem>>, vector<1x64x256xf32>
    %183 = vector.shape_cast %182 : vector<1x64x256xf32> to vector<64x256xf32>
    %cst_134 = arith.constant dense<0.000000e+00> : vector<64x256xf32>
    %184 = tpu.matmul %181, %183, %cst_134 {dimension_numbers = #tpu.dot_dimension_numbers<[1], [0], [0], [1], [0, 0, 1, 1], [], []>} : vector<64x64xf32>, vector<64x256xf32>, vector<64x256xf32> -> vector<64x256xf32>
    %185 = arith.addf %165, %184 : vector<64x256xf32>
    %c576 = arith.constant 576 : index
    %c0_135 = arith.constant 0 : index
    %186 = vector.load %arg11[%c576, %c0_135] : memref<1024x64xf32, #tpu.memory_space<vmem>>, vector<64x64xf32>
    %c9 = arith.constant 9 : index
    %c0_136 = arith.constant 0 : index
    %c0_137 = arith.constant 0 : index
    %187 = vector.load %arg3[%c9, %c0_136, %c0_137] : memref<16x64x64xf32, #tpu.memory_space<vmem>>, vector<1x64x64xf32>
    %188 = vector.shape_cast %187 : vector<1x64x64xf32> to vector<64x64xf32>
    %cst_138 = arith.constant dense<0.000000e+00> : vector<64x64xf32>
    %189 = tpu.matmul %186, %188, %cst_138 {dimension_numbers = #tpu.dot_dimension_numbers<[1], [0], [0], [1], [0, 0, 1, 1], [], []>} : vector<64x64xf32>, vector<64x64xf32>, vector<64x64xf32> -> vector<64x64xf32>
    %c9_139 = arith.constant 9 : index
    %c0_140 = arith.constant 0 : index
    %c0_141 = arith.constant 0 : index
    %190 = vector.load %arg4[%c9_139, %c0_140, %c0_141] : memref<16x64x1xf32, #tpu.memory_space<vmem>>, vector<1x64x1xf32>
    %191 = vector.shape_cast %190 : vector<1x64x1xf32> to vector<64x1xf32>
    %192 = vector.broadcast %191 : vector<64x1xf32> to vector<64x64xf32>
    %193 = arith.addf %189, %192 : vector<64x64xf32>
    %cst_142 = arith.constant 0.000000e+00 : f32
    %194 = vector.broadcast %cst_142 : f32 to vector<64x64xf32>
    %195 = arith.cmpf ogt, %193, %194 : vector<64x64xf32>
    %cst_143 = arith.constant 0.000000e+00 : f32
    %196 = vector.broadcast %cst_143 : f32 to vector<64x64xf32>
    %197 = arith.minimumf %193, %196 : vector<64x64xf32>
    %198 = math.exp %197 : vector<64x64xf32>
    %cst_144 = arith.constant 1.000000e+00 : f32
    %199 = vector.broadcast %cst_144 : f32 to vector<64x64xf32>
    %200 = arith.subf %198, %199 : vector<64x64xf32>
    %201 = arith.select %195, %193, %200 : vector<64x64xi1>, vector<64x64xf32>
    %c9_145 = arith.constant 9 : index
    %c0_146 = arith.constant 0 : index
    %c0_147 = arith.constant 0 : index
    %202 = vector.load %arg5[%c9_145, %c0_146, %c0_147] : memref<16x64x256xf32, #tpu.memory_space<vmem>>, vector<1x64x256xf32>
    %203 = vector.shape_cast %202 : vector<1x64x256xf32> to vector<64x256xf32>
    %cst_148 = arith.constant dense<0.000000e+00> : vector<64x256xf32>
    %204 = tpu.matmul %201, %203, %cst_148 {dimension_numbers = #tpu.dot_dimension_numbers<[1], [0], [0], [1], [0, 0, 1, 1], [], []>} : vector<64x64xf32>, vector<64x256xf32>, vector<64x256xf32> -> vector<64x256xf32>
    %205 = arith.addf %185, %204 : vector<64x256xf32>
    %c640 = arith.constant 640 : index
    %c0_149 = arith.constant 0 : index
    %206 = vector.load %arg11[%c640, %c0_149] : memref<1024x64xf32, #tpu.memory_space<vmem>>, vector<64x64xf32>
    %c10 = arith.constant 10 : index
    %c0_150 = arith.constant 0 : index
    %c0_151 = arith.constant 0 : index
    %207 = vector.load %arg3[%c10, %c0_150, %c0_151] : memref<16x64x64xf32, #tpu.memory_space<vmem>>, vector<1x64x64xf32>
    %208 = vector.shape_cast %207 : vector<1x64x64xf32> to vector<64x64xf32>
    %cst_152 = arith.constant dense<0.000000e+00> : vector<64x64xf32>
    %209 = tpu.matmul %206, %208, %cst_152 {dimension_numbers = #tpu.dot_dimension_numbers<[1], [0], [0], [1], [0, 0, 1, 1], [], []>} : vector<64x64xf32>, vector<64x64xf32>, vector<64x64xf32> -> vector<64x64xf32>
    %c10_153 = arith.constant 10 : index
    %c0_154 = arith.constant 0 : index
    %c0_155 = arith.constant 0 : index
    %210 = vector.load %arg4[%c10_153, %c0_154, %c0_155] : memref<16x64x1xf32, #tpu.memory_space<vmem>>, vector<1x64x1xf32>
    %211 = vector.shape_cast %210 : vector<1x64x1xf32> to vector<64x1xf32>
    %212 = vector.broadcast %211 : vector<64x1xf32> to vector<64x64xf32>
    %213 = arith.addf %209, %212 : vector<64x64xf32>
    %cst_156 = arith.constant 0.000000e+00 : f32
    %214 = vector.broadcast %cst_156 : f32 to vector<64x64xf32>
    %215 = arith.cmpf ogt, %213, %214 : vector<64x64xf32>
    %cst_157 = arith.constant 0.000000e+00 : f32
    %216 = vector.broadcast %cst_157 : f32 to vector<64x64xf32>
    %217 = arith.minimumf %213, %216 : vector<64x64xf32>
    %218 = math.exp %217 : vector<64x64xf32>
    %cst_158 = arith.constant 1.000000e+00 : f32
    %219 = vector.broadcast %cst_158 : f32 to vector<64x64xf32>
    %220 = arith.subf %218, %219 : vector<64x64xf32>
    %221 = arith.select %215, %213, %220 : vector<64x64xi1>, vector<64x64xf32>
    %c10_159 = arith.constant 10 : index
    %c0_160 = arith.constant 0 : index
    %c0_161 = arith.constant 0 : index
    %222 = vector.load %arg5[%c10_159, %c0_160, %c0_161] : memref<16x64x256xf32, #tpu.memory_space<vmem>>, vector<1x64x256xf32>
    %223 = vector.shape_cast %222 : vector<1x64x256xf32> to vector<64x256xf32>
    %cst_162 = arith.constant dense<0.000000e+00> : vector<64x256xf32>
    %224 = tpu.matmul %221, %223, %cst_162 {dimension_numbers = #tpu.dot_dimension_numbers<[1], [0], [0], [1], [0, 0, 1, 1], [], []>} : vector<64x64xf32>, vector<64x256xf32>, vector<64x256xf32> -> vector<64x256xf32>
    %225 = arith.addf %205, %224 : vector<64x256xf32>
    %c704 = arith.constant 704 : index
    %c0_163 = arith.constant 0 : index
    %226 = vector.load %arg11[%c704, %c0_163] : memref<1024x64xf32, #tpu.memory_space<vmem>>, vector<64x64xf32>
    %c11 = arith.constant 11 : index
    %c0_164 = arith.constant 0 : index
    %c0_165 = arith.constant 0 : index
    %227 = vector.load %arg3[%c11, %c0_164, %c0_165] : memref<16x64x64xf32, #tpu.memory_space<vmem>>, vector<1x64x64xf32>
    %228 = vector.shape_cast %227 : vector<1x64x64xf32> to vector<64x64xf32>
    %cst_166 = arith.constant dense<0.000000e+00> : vector<64x64xf32>
    %229 = tpu.matmul %226, %228, %cst_166 {dimension_numbers = #tpu.dot_dimension_numbers<[1], [0], [0], [1], [0, 0, 1, 1], [], []>} : vector<64x64xf32>, vector<64x64xf32>, vector<64x64xf32> -> vector<64x64xf32>
    %c11_167 = arith.constant 11 : index
    %c0_168 = arith.constant 0 : index
    %c0_169 = arith.constant 0 : index
    %230 = vector.load %arg4[%c11_167, %c0_168, %c0_169] : memref<16x64x1xf32, #tpu.memory_space<vmem>>, vector<1x64x1xf32>
    %231 = vector.shape_cast %230 : vector<1x64x1xf32> to vector<64x1xf32>
    %232 = vector.broadcast %231 : vector<64x1xf32> to vector<64x64xf32>
    %233 = arith.addf %229, %232 : vector<64x64xf32>
    %cst_170 = arith.constant 0.000000e+00 : f32
    %234 = vector.broadcast %cst_170 : f32 to vector<64x64xf32>
    %235 = arith.cmpf ogt, %233, %234 : vector<64x64xf32>
    %cst_171 = arith.constant 0.000000e+00 : f32
    %236 = vector.broadcast %cst_171 : f32 to vector<64x64xf32>
    %237 = arith.minimumf %233, %236 : vector<64x64xf32>
    %238 = math.exp %237 : vector<64x64xf32>
    %cst_172 = arith.constant 1.000000e+00 : f32
    %239 = vector.broadcast %cst_172 : f32 to vector<64x64xf32>
    %240 = arith.subf %238, %239 : vector<64x64xf32>
    %241 = arith.select %235, %233, %240 : vector<64x64xi1>, vector<64x64xf32>
    %c11_173 = arith.constant 11 : index
    %c0_174 = arith.constant 0 : index
    %c0_175 = arith.constant 0 : index
    %242 = vector.load %arg5[%c11_173, %c0_174, %c0_175] : memref<16x64x256xf32, #tpu.memory_space<vmem>>, vector<1x64x256xf32>
    %243 = vector.shape_cast %242 : vector<1x64x256xf32> to vector<64x256xf32>
    %cst_176 = arith.constant dense<0.000000e+00> : vector<64x256xf32>
    %244 = tpu.matmul %241, %243, %cst_176 {dimension_numbers = #tpu.dot_dimension_numbers<[1], [0], [0], [1], [0, 0, 1, 1], [], []>} : vector<64x64xf32>, vector<64x256xf32>, vector<64x256xf32> -> vector<64x256xf32>
    %245 = arith.addf %225, %244 : vector<64x256xf32>
    %c768 = arith.constant 768 : index
    %c0_177 = arith.constant 0 : index
    %246 = vector.load %arg11[%c768, %c0_177] : memref<1024x64xf32, #tpu.memory_space<vmem>>, vector<64x64xf32>
    %c12 = arith.constant 12 : index
    %c0_178 = arith.constant 0 : index
    %c0_179 = arith.constant 0 : index
    %247 = vector.load %arg3[%c12, %c0_178, %c0_179] : memref<16x64x64xf32, #tpu.memory_space<vmem>>, vector<1x64x64xf32>
    %248 = vector.shape_cast %247 : vector<1x64x64xf32> to vector<64x64xf32>
    %cst_180 = arith.constant dense<0.000000e+00> : vector<64x64xf32>
    %249 = tpu.matmul %246, %248, %cst_180 {dimension_numbers = #tpu.dot_dimension_numbers<[1], [0], [0], [1], [0, 0, 1, 1], [], []>} : vector<64x64xf32>, vector<64x64xf32>, vector<64x64xf32> -> vector<64x64xf32>
    %c12_181 = arith.constant 12 : index
    %c0_182 = arith.constant 0 : index
    %c0_183 = arith.constant 0 : index
    %250 = vector.load %arg4[%c12_181, %c0_182, %c0_183] : memref<16x64x1xf32, #tpu.memory_space<vmem>>, vector<1x64x1xf32>
    %251 = vector.shape_cast %250 : vector<1x64x1xf32> to vector<64x1xf32>
    %252 = vector.broadcast %251 : vector<64x1xf32> to vector<64x64xf32>
    %253 = arith.addf %249, %252 : vector<64x64xf32>
    %cst_184 = arith.constant 0.000000e+00 : f32
    %254 = vector.broadcast %cst_184 : f32 to vector<64x64xf32>
    %255 = arith.cmpf ogt, %253, %254 : vector<64x64xf32>
    %cst_185 = arith.constant 0.000000e+00 : f32
    %256 = vector.broadcast %cst_185 : f32 to vector<64x64xf32>
    %257 = arith.minimumf %253, %256 : vector<64x64xf32>
    %258 = math.exp %257 : vector<64x64xf32>
    %cst_186 = arith.constant 1.000000e+00 : f32
    %259 = vector.broadcast %cst_186 : f32 to vector<64x64xf32>
    %260 = arith.subf %258, %259 : vector<64x64xf32>
    %261 = arith.select %255, %253, %260 : vector<64x64xi1>, vector<64x64xf32>
    %c12_187 = arith.constant 12 : index
    %c0_188 = arith.constant 0 : index
    %c0_189 = arith.constant 0 : index
    %262 = vector.load %arg5[%c12_187, %c0_188, %c0_189] : memref<16x64x256xf32, #tpu.memory_space<vmem>>, vector<1x64x256xf32>
    %263 = vector.shape_cast %262 : vector<1x64x256xf32> to vector<64x256xf32>
    %cst_190 = arith.constant dense<0.000000e+00> : vector<64x256xf32>
    %264 = tpu.matmul %261, %263, %cst_190 {dimension_numbers = #tpu.dot_dimension_numbers<[1], [0], [0], [1], [0, 0, 1, 1], [], []>} : vector<64x64xf32>, vector<64x256xf32>, vector<64x256xf32> -> vector<64x256xf32>
    %265 = arith.addf %245, %264 : vector<64x256xf32>
    %c832 = arith.constant 832 : index
    %c0_191 = arith.constant 0 : index
    %266 = vector.load %arg11[%c832, %c0_191] : memref<1024x64xf32, #tpu.memory_space<vmem>>, vector<64x64xf32>
    %c13 = arith.constant 13 : index
    %c0_192 = arith.constant 0 : index
    %c0_193 = arith.constant 0 : index
    %267 = vector.load %arg3[%c13, %c0_192, %c0_193] : memref<16x64x64xf32, #tpu.memory_space<vmem>>, vector<1x64x64xf32>
    %268 = vector.shape_cast %267 : vector<1x64x64xf32> to vector<64x64xf32>
    %cst_194 = arith.constant dense<0.000000e+00> : vector<64x64xf32>
    %269 = tpu.matmul %266, %268, %cst_194 {dimension_numbers = #tpu.dot_dimension_numbers<[1], [0], [0], [1], [0, 0, 1, 1], [], []>} : vector<64x64xf32>, vector<64x64xf32>, vector<64x64xf32> -> vector<64x64xf32>
    %c13_195 = arith.constant 13 : index
    %c0_196 = arith.constant 0 : index
    %c0_197 = arith.constant 0 : index
    %270 = vector.load %arg4[%c13_195, %c0_196, %c0_197] : memref<16x64x1xf32, #tpu.memory_space<vmem>>, vector<1x64x1xf32>
    %271 = vector.shape_cast %270 : vector<1x64x1xf32> to vector<64x1xf32>
    %272 = vector.broadcast %271 : vector<64x1xf32> to vector<64x64xf32>
    %273 = arith.addf %269, %272 : vector<64x64xf32>
    %cst_198 = arith.constant 0.000000e+00 : f32
    %274 = vector.broadcast %cst_198 : f32 to vector<64x64xf32>
    %275 = arith.cmpf ogt, %273, %274 : vector<64x64xf32>
    %cst_199 = arith.constant 0.000000e+00 : f32
    %276 = vector.broadcast %cst_199 : f32 to vector<64x64xf32>
    %277 = arith.minimumf %273, %276 : vector<64x64xf32>
    %278 = math.exp %277 : vector<64x64xf32>
    %cst_200 = arith.constant 1.000000e+00 : f32
    %279 = vector.broadcast %cst_200 : f32 to vector<64x64xf32>
    %280 = arith.subf %278, %279 : vector<64x64xf32>
    %281 = arith.select %275, %273, %280 : vector<64x64xi1>, vector<64x64xf32>
    %c13_201 = arith.constant 13 : index
    %c0_202 = arith.constant 0 : index
    %c0_203 = arith.constant 0 : index
    %282 = vector.load %arg5[%c13_201, %c0_202, %c0_203] : memref<16x64x256xf32, #tpu.memory_space<vmem>>, vector<1x64x256xf32>
    %283 = vector.shape_cast %282 : vector<1x64x256xf32> to vector<64x256xf32>
    %cst_204 = arith.constant dense<0.000000e+00> : vector<64x256xf32>
    %284 = tpu.matmul %281, %283, %cst_204 {dimension_numbers = #tpu.dot_dimension_numbers<[1], [0], [0], [1], [0, 0, 1, 1], [], []>} : vector<64x64xf32>, vector<64x256xf32>, vector<64x256xf32> -> vector<64x256xf32>
    %285 = arith.addf %265, %284 : vector<64x256xf32>
    %c896 = arith.constant 896 : index
    %c0_205 = arith.constant 0 : index
    %286 = vector.load %arg11[%c896, %c0_205] : memref<1024x64xf32, #tpu.memory_space<vmem>>, vector<64x64xf32>
    %c14 = arith.constant 14 : index
    %c0_206 = arith.constant 0 : index
    %c0_207 = arith.constant 0 : index
    %287 = vector.load %arg3[%c14, %c0_206, %c0_207] : memref<16x64x64xf32, #tpu.memory_space<vmem>>, vector<1x64x64xf32>
    %288 = vector.shape_cast %287 : vector<1x64x64xf32> to vector<64x64xf32>
    %cst_208 = arith.constant dense<0.000000e+00> : vector<64x64xf32>
    %289 = tpu.matmul %286, %288, %cst_208 {dimension_numbers = #tpu.dot_dimension_numbers<[1], [0], [0], [1], [0, 0, 1, 1], [], []>} : vector<64x64xf32>, vector<64x64xf32>, vector<64x64xf32> -> vector<64x64xf32>
    %c14_209 = arith.constant 14 : index
    %c0_210 = arith.constant 0 : index
    %c0_211 = arith.constant 0 : index
    %290 = vector.load %arg4[%c14_209, %c0_210, %c0_211] : memref<16x64x1xf32, #tpu.memory_space<vmem>>, vector<1x64x1xf32>
    %291 = vector.shape_cast %290 : vector<1x64x1xf32> to vector<64x1xf32>
    %292 = vector.broadcast %291 : vector<64x1xf32> to vector<64x64xf32>
    %293 = arith.addf %289, %292 : vector<64x64xf32>
    %cst_212 = arith.constant 0.000000e+00 : f32
    %294 = vector.broadcast %cst_212 : f32 to vector<64x64xf32>
    %295 = arith.cmpf ogt, %293, %294 : vector<64x64xf32>
    %cst_213 = arith.constant 0.000000e+00 : f32
    %296 = vector.broadcast %cst_213 : f32 to vector<64x64xf32>
    %297 = arith.minimumf %293, %296 : vector<64x64xf32>
    %298 = math.exp %297 : vector<64x64xf32>
    %cst_214 = arith.constant 1.000000e+00 : f32
    %299 = vector.broadcast %cst_214 : f32 to vector<64x64xf32>
    %300 = arith.subf %298, %299 : vector<64x64xf32>
    %301 = arith.select %295, %293, %300 : vector<64x64xi1>, vector<64x64xf32>
    %c14_215 = arith.constant 14 : index
    %c0_216 = arith.constant 0 : index
    %c0_217 = arith.constant 0 : index
    %302 = vector.load %arg5[%c14_215, %c0_216, %c0_217] : memref<16x64x256xf32, #tpu.memory_space<vmem>>, vector<1x64x256xf32>
    %303 = vector.shape_cast %302 : vector<1x64x256xf32> to vector<64x256xf32>
    %cst_218 = arith.constant dense<0.000000e+00> : vector<64x256xf32>
    %304 = tpu.matmul %301, %303, %cst_218 {dimension_numbers = #tpu.dot_dimension_numbers<[1], [0], [0], [1], [0, 0, 1, 1], [], []>} : vector<64x64xf32>, vector<64x256xf32>, vector<64x256xf32> -> vector<64x256xf32>
    %305 = arith.addf %285, %304 : vector<64x256xf32>
    %c960 = arith.constant 960 : index
    %c0_219 = arith.constant 0 : index
    %306 = vector.load %arg11[%c960, %c0_219] : memref<1024x64xf32, #tpu.memory_space<vmem>>, vector<64x64xf32>
    %c15 = arith.constant 15 : index
    %c0_220 = arith.constant 0 : index
    %c0_221 = arith.constant 0 : index
    %307 = vector.load %arg3[%c15, %c0_220, %c0_221] : memref<16x64x64xf32, #tpu.memory_space<vmem>>, vector<1x64x64xf32>
    %308 = vector.shape_cast %307 : vector<1x64x64xf32> to vector<64x64xf32>
    %cst_222 = arith.constant dense<0.000000e+00> : vector<64x64xf32>
    %309 = tpu.matmul %306, %308, %cst_222 {dimension_numbers = #tpu.dot_dimension_numbers<[1], [0], [0], [1], [0, 0, 1, 1], [], []>} : vector<64x64xf32>, vector<64x64xf32>, vector<64x64xf32> -> vector<64x64xf32>
    %c15_223 = arith.constant 15 : index
    %c0_224 = arith.constant 0 : index
    %c0_225 = arith.constant 0 : index
    %310 = vector.load %arg4[%c15_223, %c0_224, %c0_225] : memref<16x64x1xf32, #tpu.memory_space<vmem>>, vector<1x64x1xf32>
    %311 = vector.shape_cast %310 : vector<1x64x1xf32> to vector<64x1xf32>
    %312 = vector.broadcast %311 : vector<64x1xf32> to vector<64x64xf32>
    %313 = arith.addf %309, %312 : vector<64x64xf32>
    %cst_226 = arith.constant 0.000000e+00 : f32
    %314 = vector.broadcast %cst_226 : f32 to vector<64x64xf32>
    %315 = arith.cmpf ogt, %313, %314 : vector<64x64xf32>
    %cst_227 = arith.constant 0.000000e+00 : f32
    %316 = vector.broadcast %cst_227 : f32 to vector<64x64xf32>
    %317 = arith.minimumf %313, %316 : vector<64x64xf32>
    %318 = math.exp %317 : vector<64x64xf32>
    %cst_228 = arith.constant 1.000000e+00 : f32
    %319 = vector.broadcast %cst_228 : f32 to vector<64x64xf32>
    %320 = arith.subf %318, %319 : vector<64x64xf32>
    %321 = arith.select %315, %313, %320 : vector<64x64xi1>, vector<64x64xf32>
    %c15_229 = arith.constant 15 : index
    %c0_230 = arith.constant 0 : index
    %c0_231 = arith.constant 0 : index
    %322 = vector.load %arg5[%c15_229, %c0_230, %c0_231] : memref<16x64x256xf32, #tpu.memory_space<vmem>>, vector<1x64x256xf32>
    %323 = vector.shape_cast %322 : vector<1x64x256xf32> to vector<64x256xf32>
    %cst_232 = arith.constant dense<0.000000e+00> : vector<64x256xf32>
    %324 = tpu.matmul %321, %323, %cst_232 {dimension_numbers = #tpu.dot_dimension_numbers<[1], [0], [0], [1], [0, 0, 1, 1], [], []>} : vector<64x64xf32>, vector<64x256xf32>, vector<64x256xf32> -> vector<64x256xf32>
    %325 = arith.addf %305, %324 : vector<64x256xf32>
    %c0_233 = arith.constant 0 : index
    %c0_234 = arith.constant 0 : index
    %326 = vector.load %arg6[%c0_233, %c0_234] : memref<1x256xf32, #tpu.memory_space<vmem>>, vector<1x256xf32>
    %327 = vector.broadcast %326 : vector<1x256xf32> to vector<64x256xf32>
    %328 = arith.addf %325, %327 : vector<64x256xf32>
    %cst_235 = arith.constant 0.000000e+00 : f32
    %329 = vector.broadcast %cst_235 : f32 to vector<64x256xf32>
    %330 = arith.cmpf ogt, %328, %329 : vector<64x256xf32>
    %cst_236 = arith.constant 0.000000e+00 : f32
    %331 = vector.broadcast %cst_236 : f32 to vector<64x256xf32>
    %332 = arith.minimumf %328, %331 : vector<64x256xf32>
    %333 = math.exp %332 : vector<64x256xf32>
    %cst_237 = arith.constant 1.000000e+00 : f32
    %334 = vector.broadcast %cst_237 : f32 to vector<64x256xf32>
    %335 = arith.subf %333, %334 : vector<64x256xf32>
    %336 = arith.select %330, %328, %335 : vector<64x256xi1>, vector<64x256xf32>
    %c0_238 = arith.constant 0 : index
    %c0_239 = arith.constant 0 : index
    %337 = vector.load %arg7[%c0_238, %c0_239] : memref<256x32xf32, #tpu.memory_space<vmem>>, vector<256x32xf32>
    %cst_240 = arith.constant dense<0.000000e+00> : vector<64x32xf32>
    %338 = tpu.matmul %336, %337, %cst_240 {dimension_numbers = #tpu.dot_dimension_numbers<[1], [0], [0], [1], [0, 0, 1, 1], [], []>} : vector<64x256xf32>, vector<256x32xf32>, vector<64x32xf32> -> vector<64x32xf32>
    %339 = vector.shape_cast %338 : vector<64x32xf32> to vector<1x64x32xf32>
    %c0_241 = arith.constant 0 : index
    %c0_242 = arith.constant 0 : index
    %c0_243 = arith.constant 0 : index
    %340 = vector.load %arg8[%c0_241, %c0_242, %c0_243] : memref<3x64x32xf32, #tpu.memory_space<vmem>>, vector<3x64x32xf32>
    %341 = vector.broadcast %339 : vector<1x64x32xf32> to vector<3x64x32xf32>
    %342 = arith.mulf %341, %340 : vector<3x64x32xf32>
    %cst_244 = arith.constant dense<0.000000e+00> : vector<3x64xf32>
    %343 = vector.multi_reduction <add>, %342, %cst_244 [2] : vector<3x64x32xf32> to vector<3x64xf32>
    %cst_245 = arith.constant dense<0.000000e+00> : vector<3xf32>
    %344 = vector.multi_reduction <add>, %343, %cst_245 [1] : vector<3x64xf32> to vector<3xf32>
    %345 = vector.shape_cast %344 : vector<3xf32> to vector<1x1x3xf32>
    %c0_246 = arith.constant 0 : index
    %c0_247 = arith.constant 0 : index
    %c0_248 = arith.constant 0 : index
    %346 = vector.load %arg9[%c0_246, %c0_247, %c0_248] : memref<1x1x3xf32, #tpu.memory_space<vmem>>, vector<1x1x3xf32>
    %347 = arith.addf %345, %346 : vector<1x1x3xf32>
    %c0_249 = arith.constant 0 : index
    %c0_250 = arith.constant 0 : index
    %c0_251 = arith.constant 0 : index
    %348 = vector.load %arg10[%c0_249, %c0_250, %c0_251] : memref<1x1x3xf32, #tpu.memory_space<vmem>>, vector<1x1x3xf32>
    tpu.vector_store %arg10[%c0_249, %c0_250, %c0_251], %347 {strides = array<i32>} : memref<1x1x3xf32, #tpu.memory_space<vmem>>, vector<1x1x3xf32>,
    return
  }
  func.func @transform_0(%arg0: i32) -> (i32, i32, i32) {
    %c0_i32 = arith.constant 0 : i32
    %c0_i32_0 = arith.constant 0 : i32
    %c0_i32_1 = arith.constant 0 : i32
    return %arg0, %c0_i32, %c0_i32_0 : i32, i32, i32
  }
  func.func @transform_1(%arg0: i32) -> (i32, i32) {
    %c0_i32 = arith.constant 0 : i32
    %c0_i32_0 = arith.constant 0 : i32
    %c0_i32_1 = arith.constant 0 : i32
    return %c0_i32, %c0_i32_0 : i32, i32
  }
  func.func @transform_2(%arg0: i32) -> (i32, i32, i32) {
    %c0_i32 = arith.constant 0 : i32
    %c0_i32_0 = arith.constant 0 : i32
    %c0_i32_1 = arith.constant 0 : i32
    %c0_i32_2 = arith.constant 0 : i32
    return %c0_i32, %c0_i32_0, %c0_i32_1 : i32, i32, i32
  }
  func.func @transform_3(%arg0: i32) -> (i32, i32, i32) {
    %c0_i32 = arith.constant 0 : i32
    %c0_i32_0 = arith.constant 0 : i32
    %c0_i32_1 = arith.constant 0 : i32
    %c0_i32_2 = arith.constant 0 : i32
    return %c0_i32, %c0_i32_0, %c0_i32_1 : i32, i32, i32
  }
  func.func @transform_4(%arg0: i32) -> (i32, i32, i32) {
    %c0_i32 = arith.constant 0 : i32
    %c0_i32_0 = arith.constant 0 : i32
    %c0_i32_1 = arith.constant 0 : i32
    %c0_i32_2 = arith.constant 0 : i32
    return %c0_i32, %c0_i32_0, %c0_i32_1 : i32, i32, i32
  }
  func.func @transform_5(%arg0: i32) -> (i32, i32) {
    %c0_i32 = arith.constant 0 : i32
    %c0_i32_0 = arith.constant 0 : i32
    %c0_i32_1 = arith.constant 0 : i32
    return %c0_i32, %c0_i32_0 : i32, i32
  }
  func.func @transform_6(%arg0: i32) -> (i32, i32) {
    %c0_i32 = arith.constant 0 : i32
    %c0_i32_0 = arith.constant 0 : i32
    %c0_i32_1 = arith.constant 0 : i32
    return %c0_i32, %c0_i32_0 : i32, i32
  }
  func.func @transform_7(%arg0: i32) -> (i32, i32, i32) {
    %c0_i32 = arith.constant 0 : i32
    %c0_i32_0 = arith.constant 0 : i32
    %c0_i32_1 = arith.constant 0 : i32
    %c0_i32_2 = arith.constant 0 : i32
    return %c0_i32, %c0_i32_0, %c0_i32_1 : i32, i32, i32
  }
  func.func @transform_8(%arg0: i32) -> (i32, i32, i32) {
    %c0_i32 = arith.constant 0 : i32
    %c0_i32_0 = arith.constant 0 : i32
    %c0_i32_1 = arith.constant 0 : i32
    %c0_i32_2 = arith.constant 0 : i32
    return %c0_i32, %c0_i32_0, %c0_i32_1 : i32, i32, i32
  }
  func.func @transform_9(%arg0: i32) -> (i32, i32, i32) {
    %c0_i32 = arith.constant 0 : i32
    %c0_i32_0 = arith.constant 0 : i32
    %c0_i32_1 = arith.constant 0 : i32
    return %arg0, %c0_i32, %c0_i32_0 : i32, i32, i32
  }
}

</mosaic_0001>

<llo_original>
// kernel: eegnet_forward.1
$region0: #{eegnet_forward.1}
  #allocation0 [shape = 'u32[]', space=smem, size = 0x4, offset = 0x4, fixed_abs, tag = 'smem constant byte address 0x4 - core index']
  #allocation1 [shape = 'u32[72,128]{1,0:T(1,128)}', space=vmem, size = 0x9000, scoped, tag = 'internal scratch']
  #allocation2 [shape = 'f32[1024,64]{1,0:T(8,128)}', space=vmem, size = 0x80000, scoped, tag = 'scratch operand']
  %s0 = inlined_call_operand.vmem [shape: f32[2,126,64], index: 0, kind: input, shape index: {}]
  %s1 = inlined_call_operand.vmem [shape: f32[1024,126], index: 1, kind: input, shape index: {}]
  %s2 = inlined_call_operand.hbm [shape: f32[16,64,64], index: 2, kind: input, shape index: {}]
  %s3 = inlined_call_operand.vmem [shape: f32[16,64,1], index: 3, kind: input, shape index: {}]
  %s4 = inlined_call_operand.hbm [shape: f32[16,64,256], index: 4, kind: input, shape index: {}]
  %s5 = inlined_call_operand.vmem [shape: f32[1,256], index: 5, kind: input, shape index: {}]
  %s6 = inlined_call_operand.vmem [shape: f32[256,32], index: 6, kind: input, shape index: {}]
  %s7 = inlined_call_operand.vmem [shape: f32[3,64,32], index: 7, kind: input, shape index: {}]
  %s8 = inlined_call_operand.vmem [shape: f32[1,1,3], index: 8, kind: input, shape index: {}]
  %s9 = inlined_call_operand.hbm [shape: f32[2,1,3], index: 9, kind: output, shape index: {}]
  %s10 = sld [smem:[#allocation0]]
  $region77: #{eegnet_forward.1} parent=0
    _
  %s12 = ssub.s32 1, %s10
  %s13 = scalar_select 0, %s12, %s10
  $region1: #{eegnet_forward.1} parent=0
    #allocation3 [shape = 'u8[524288]{0}', space=vmem, size = 0x80000, scoped, tag = 'input window, operand 2, single buffered']
    #allocation4 [shape = 's32[2]{0}', space=sflag, size = 0x8, scoped, tag = 'scoped memory for eegnet_forward.1']
    #allocation5 [shape = 's32[2]{0}', space=sflag, size = 0x8, scoped, tag = 'scoped memory for eegnet_forward.1']
    #allocation6 [shape = 'u8[1048576]{0}', space=vmem, size = 0x100000, scoped, tag = 'input window, operand 4, single buffered']
    #allocation7 [shape = 's32[1]{0}', space=sflag, size = 0x4, scoped, tag = 'scoped memory for eegnet_forward.1']
    #allocation8 [shape = 'u8[1024]{0}', space=vmem, size = 0x400, scoped, tag = 'output window, operand 0']
    %14 = vsyncpa [#allocation4], 0
    %15 = vsyncpa [#allocation7], 0
    %16 = vsyncpa [#allocation5], 0
    %s17 = scalar_lea.sflag [#allocation5], 1
    %18 = vsyncpa %s17, 0
    loop: start=0, step=1, limit=4
    $region2: #{eegnet_forward.1} parent=1 // loop_pre_header
      _
    $region3: #{eegnet_forward.1} parent=1 // loop_header
      %s20 = sphi 0, %s24
      %p21 = scmp.ge.s32.totalorder %s20, 4
      %s30 = sphi 0, %s32
      %s33 = sphi 0, %s30
      %s34 = sphi 0, %s33
      %s50 = sphi 0, %s34
      %s54 = sphi 0, %s54
      %s56 = sphi 0, %s54
      %s57 = sphi 0, %s56
      %s71 = sphi 0, %s57
      %s75 = sphi 0, %s75
      %s77 = sphi 0, %s75
      %s78 = sphi 0, %s77
      %s92 = sphi 0, %s78
      %s96 = sphi 0, %s96
      %s98 = sphi 0, %s96
      %s99 = sphi 0, %s98
      %s113 = sphi 0, %s99
      %s117 = sphi 0, %s117
      %s119 = sphi 0, %s117
      %s120 = sphi 0, %s119
      %s134 = sphi 0, %s120
      %s138 = sphi 0, %s138
      %s140 = sphi 0, %s138
      %s141 = sphi 0, %s140
      %s155 = sphi 0, %s141
      %s159 = sphi 0, %s159
      %s161 = sphi 0, %s159
      %s162 = sphi 0, %s161
      %s176 = sphi 0, %s162
      %s180 = sphi 0, %s180
      %s182 = sphi 0, %s180
      %s183 = sphi 0, %s182
      %s197 = sphi 0, %s183
      %s201 = sphi 0, %s201
      %s203 = sphi 0, %s201
      %s204 = sphi 0, %s203
      %s218 = sphi 0, %s204
      %s224 = sphi 0, %s226
      %s227 = sphi 0, %s224
      %s228 = sphi 0, %s227
      %s244 = sphi 0, %s228
    $region4: #{eegnet_forward.1} parent=1 // loop_header_branch
      %23 = sbr.rel (%p21) target = $region8
    $region5: #{eegnet_forward.1} parent=1 // loop_body
      %s25 = ssub.s32 %s20, 1
      %s26 = ssub.s32 %s20, 2
      %s27 = sadd.s32 %s20, 1
      %s28 = ssub.s32 %s20, %s27
      %p29 = scmp.eq.s32.totalorder %s28, 0
      %s31 = sadd.s32 %s30, 1
      %s32 = scalar_select %p29, %s30, %s31
      %p35 = pneg %p29
      %p36 = scmp.eq.s32.totalorder %s20, 1
      %p37 = por %p35, %p36
      %p38 = scmp.ne.s32.totalorder %s30, %s33
      %p39 = scmp.eq.s32.totalorder %s20, 0
      %p40 = por %p38, %p39
      %p41 = scmp.ne.s32.totalorder %s30, %s33
      %p42 = scmp.eq.s32.totalorder %s25, 1
      %p43 = por %p41, %p42
      %p44 = scmp.ne.s32.totalorder %s33, %s34
      %p45 = scmp.eq.s32.totalorder %s25, 0
      %p46 = por %p44, %p45
      %p47 = scmp.ne.s32.totalorder %s33, %s34
      %p48 = scmp.eq.s32.totalorder %s26, 1
      %p49 = por %p47, %p48
      %p51 = scmp.ne.s32.totalorder %s34, %s50
      %p52 = scmp.eq.s32.totalorder %s26, 0
      %p53 = por %p51, %p52
      %s55 = sadd.s32 %s54, 1
      %p58 = scmp.eq.s32.totalorder %s20, 1
      %p59 = scmp.ne.s32.totalorder %s54, %s56
      %p60 = scmp.eq.s32.totalorder %s20, 0
      %p61 = por %p59, %p60
      %p62 = scmp.ne.s32.totalorder %s54, %s56
      %p63 = scmp.eq.s32.totalorder %s25, 1
      %p64 = por %p62, %p63
      %p65 = scmp.ne.s32.totalorder %s56, %s57
      %p66 = scmp.eq.s32.totalorder %s25, 0
      %p67 = por %p65, %p66
      %p68 = scmp.ne.s32.totalorder %s56, %s57
      %p69 = scmp.eq.s32.totalorder %s26, 1
      %p70 = por %p68, %p69
      %p72 = scmp.ne.s32.totalorder %s57, %s71
      %p73 = scmp.eq.s32.totalorder %s26, 0
      %p74 = por %p72, %p73
      %s76 = sadd.s32 %s75, 1
      %p79 = scmp.eq.s32.totalorder %s20, 1
      %p80 = scmp.ne.s32.totalorder %s75, %s77
      %p81 = scmp.eq.s32.totalorder %s20, 0
      %p82 = por %p80, %p81
      %p83 = scmp.ne.s32.totalorder %s75, %s77
      %p84 = scmp.eq.s32.totalorder %s25, 1
      %p85 = por %p83, %p84
      %p86 = scmp.ne.s32.totalorder %s77, %s78
      %p87 = scmp.eq.s32.totalorder %s25, 0
      %p88 = por %p86, %p87
      %p89 = scmp.ne.s32.totalorder %s77, %s78
      %p90 = scmp.eq.s32.totalorder %s26, 1
      %p91 = por %p89, %p90
      %p93 = scmp.ne.s32.totalorder %s78, %s92
      %p94 = scmp.eq.s32.totalorder %s26, 0
      %p95 = por %p93, %p94
      %s97 = sadd.s32 %s96, 1
      %p100 = scmp.eq.s32.totalorder %s20, 1
      %p101 = scmp.ne.s32.totalorder %s96, %s98
      %p102 = scmp.eq.s32.totalorder %s20, 0
      %p103 = por %p101, %p102
      %p104 = scmp.ne.s32.totalorder %s96, %s98
      %p105 = scmp.eq.s32.totalorder %s25, 1
      %p106 = por %p104, %p105
      %p107 = scmp.ne.s32.totalorder %s98, %s99
      %p108 = scmp.eq.s32.totalorder %s25, 0
      %p109 = por %p107, %p108
      %p110 = scmp.ne.s32.totalorder %s98, %s99
      %p111 = scmp.eq.s32.totalorder %s26, 1
      %p112 = por %p110, %p111
      %p114 = scmp.ne.s32.totalorder %s99, %s113
      %p115 = scmp.eq.s32.totalorder %s26, 0
      %p116 = por %p114, %p115
      %s118 = sadd.s32 %s117, 1
      %p121 = scmp.eq.s32.totalorder %s20, 1
      %p122 = scmp.ne.s32.totalorder %s117, %s119
      %p123 = scmp.eq.s32.totalorder %s20, 0
      %p124 = por %p122, %p123
      %p125 = scmp.ne.s32.totalorder %s117, %s119
      %p126 = scmp.eq.s32.totalorder %s25, 1
      %p127 = por %p125, %p126
      %p128 = scmp.ne.s32.totalorder %s119, %s120
      %p129 = scmp.eq.s32.totalorder %s25, 0
      %p130 = por %p128, %p129
      %p131 = scmp.ne.s32.totalorder %s119, %s120
      %p132 = scmp.eq.s32.totalorder %s26, 1
      %p133 = por %p131, %p132
      %p135 = scmp.ne.s32.totalorder %s120, %s134
      %p136 = scmp.eq.s32.totalorder %s26, 0
      %p137 = por %p135, %p136
      %s139 = sadd.s32 %s138, 1
      %p142 = scmp.eq.s32.totalorder %s20, 1
      %p143 = scmp.ne.s32.totalorder %s138, %s140
      %p144 = scmp.eq.s32.totalorder %s20, 0
      %p145 = por %p143, %p144
      %p146 = scmp.ne.s32.totalorder %s138, %s140
      %p147 = scmp.eq.s32.totalorder %s25, 1
      %p148 = por %p146, %p147
      %p149 = scmp.ne.s32.totalorder %s140, %s141
      %p150 = scmp.eq.s32.totalorder %s25, 0
      %p151 = por %p149, %p150
      %p152 = scmp.ne.s32.totalorder %s140, %s141
      %p153 = scmp.eq.s32.totalorder %s26, 1
      %p154 = por %p152, %p153
      %p156 = scmp.ne.s32.totalorder %s141, %s155
      %p157 = scmp.eq.s32.totalorder %s26, 0
      %p158 = por %p156, %p157
      %s160 = sadd.s32 %s159, 1
      %p163 = scmp.eq.s32.totalorder %s20, 1
      %p164 = scmp.ne.s32.totalorder %s159, %s161
      %p165 = scmp.eq.s32.totalorder %s20, 0
      %p166 = por %p164, %p165
      %p167 = scmp.ne.s32.totalorder %s159, %s161
      %p168 = scmp.eq.s32.totalorder %s25, 1
      %p169 = por %p167, %p168
      %p170 = scmp.ne.s32.totalorder %s161, %s162
      %p171 = scmp.eq.s32.totalorder %s25, 0
      %p172 = por %p170, %p171
      %p173 = scmp.ne.s32.totalorder %s161, %s162
      %p174 = scmp.eq.s32.totalorder %s26, 1
      %p175 = por %p173, %p174
      %p177 = scmp.ne.s32.totalorder %s162, %s176
      %p178 = scmp.eq.s32.totalorder %s26, 0
      %p179 = por %p177, %p178
      %s181 = sadd.s32 %s180, 1
      %p184 = scmp.eq.s32.totalorder %s20, 1
      %p185 = scmp.ne.s32.totalorder %s180, %s182
      %p186 = scmp.eq.s32.totalorder %s20, 0
      %p187 = por %p185, %p186
      %p188 = scmp.ne.s32.totalorder %s180, %s182
      %p189 = scmp.eq.s32.totalorder %s25, 1
      %p190 = por %p188, %p189
      %p191 = scmp.ne.s32.totalorder %s182, %s183
      %p192 = scmp.eq.s32.totalorder %s25, 0
      %p193 = por %p191, %p192
      %p194 = scmp.ne.s32.totalorder %s182, %s183
      %p195 = scmp.eq.s32.totalorder %s26, 1
      %p196 = por %p194, %p195
      %p198 = scmp.ne.s32.totalorder %s183, %s197
      %p199 = scmp.eq.s32.totalorder %s26, 0
      %p200 = por %p198, %p199
      %s202 = sadd.s32 %s201, 1
      %p205 = scmp.eq.s32.totalorder %s20, 1
      %p206 = scmp.ne.s32.totalorder %s201, %s203
      %p207 = scmp.eq.s32.totalorder %s20, 0
      %p208 = por %p206, %p207
      %p209 = scmp.ne.s32.totalorder %s201, %s203
      %p210 = scmp.eq.s32.totalorder %s25, 1
      %p211 = por %p209, %p210
      %p212 = scmp.ne.s32.totalorder %s203, %s204
      %p213 = scmp.eq.s32.totalorder %s25, 0
      %p214 = por %p212, %p213
      %p215 = scmp.ne.s32.totalorder %s203, %s204
      %p216 = scmp.eq.s32.totalorder %s26, 1
      %p217 = por %p215, %p216
      %p219 = scmp.ne.s32.totalorder %s204, %s218
      %p220 = scmp.eq.s32.totalorder %s26, 0
      %p221 = por %p219, %p220
      %s222 = ssub.s32 %s20, %s27
      %p223 = scmp.eq.s32.totalorder %s222, 0
      %s225 = sadd.s32 %s224, 1
      %s226 = scalar_select %p223, %s224, %s225
      %p229 = pneg %p223
      %p230 = scmp.eq.s32.totalorder %s20, 1
      %p231 = por %p229, %p230
      %p232 = scmp.ne.s32.totalorder %s224, %s227
      %p233 = scmp.eq.s32.totalorder %s20, 0
      %p234 = por %p232, %p233
      %p235 = scmp.ne.s32.totalorder %s224, %s227
      %p236 = scmp.eq.s32.totalorder %s25, 1
      %p237 = por %p235, %p236
      %p238 = scmp.ne.s32.totalorder %s227, %s228
      %p239 = scmp.eq.s32.totalorder %s25, 0
      %p240 = por %p238, %p239
      %p241 = scmp.ne.s32.totalorder %s227, %s228
      %p242 = scmp.eq.s32.totalorder %s26, 1
      %p243 = por %p241, %p242
      %p245 = scmp.ne.s32.totalorder %s228, %s244
      %p246 = scmp.eq.s32.totalorder %s26, 0
      %p247 = por %p245, %p246
      %p248 = scmp.le.s32.totalorder 1, %s20
      %p249 = scmp.lt.s32.totalorder %s20, 3
      %p250 = pnand %p248, %p249
      %p251 = pneg %p250
      // Predicated region
      $region9: #{eegnet_forward.1} parent=5 // pred_check
        _
      $region10: #{eegnet_forward.1} parent=5 // pred_check_branch
        %253 = sbr.rel (%p250) target = $region12
      $region11: #{eegnet_forward.1} parent=5 // pred_region
        %s254 = ssub.s32 %s20, 1
        // Predicated region
        $region13: #{eegnet_forward.1} parent=11 // pred_check
          %p255 = pneg %p67
        $region14: #{eegnet_forward.1} parent=11 // pred_check_branch
          %257 = sbr.rel (%p255) target = $region16
        $region15: #{eegnet_forward.1} parent=11 // pred_region
          _
        $region16: #{eegnet_forward.1} parent=11 // pred_fallthru
          _
        // Predicated region
        $region17: #{eegnet_forward.1} parent=11 // pred_check
          %p258 = pneg %p88
        $region18: #{eegnet_forward.1} parent=11 // pred_check_branch
          %260 = sbr.rel (%p258) target = $region20
        $region19: #{eegnet_forward.1} parent=11 // pred_region
          %262 = vsyncadd [#allocation4], 0
          %s263 = sshll.u32 %s2, 4
          %s264 = int_to_ptr.hbm [resolvable:$true] %s263
          %s265 = sshll.u32 [#allocation3], 4
          %s266 = int_to_ptr.vmem [resolvable:$true] %s265
          %271 = dma.hbm_to_vmem [thread:$0]  %s264, 16384, %s266, [#allocation4], 128, 128, 8
        $region20: #{eegnet_forward.1} parent=11 // pred_fallthru
          _
        // Predicated region
        $region21: #{eegnet_forward.1} parent=11 // pred_check
          %p272 = pneg %p109
        $region22: #{eegnet_forward.1} parent=11 // pred_check_branch
          %274 = sbr.rel (%p272) target = $region24
        $region23: #{eegnet_forward.1} parent=11 // pred_region
          _
        $region24: #{eegnet_forward.1} parent=11 // pred_fallthru
          _
        // Predicated region
        $region25: #{eegnet_forward.1} parent=11 // pred_check
          %p275 = pneg %p130
        $region26: #{eegnet_forward.1} parent=11 // pred_check_branch
          %277 = sbr.rel (%p275) target = $region28
        $region27: #{eegnet_forward.1} parent=11 // pred_region
          %279 = vsyncadd [#allocation7], 0
          %s280 = sshll.u32 %s4, 4
          %s281 = int_to_ptr.hbm [resolvable:$true] %s280
          %s282 = sshll.u32 [#allocation6], 4
          %s283 = int_to_ptr.vmem [resolvable:$true] %s282
          %288 = dma.hbm_to_vmem [thread:$0]  %s281, 32768, %s283, [#allocation7], 256, 256, 16
        $region28: #{eegnet_forward.1} parent=11 // pred_fallthru
          _
        // Predicated region
        $region29: #{eegnet_forward.1} parent=11 // pred_check
          %p289 = pneg %p151
        $region30: #{eegnet_forward.1} parent=11 // pred_check_branch
          %291 = sbr.rel (%p289) target = $region32
        $region31: #{eegnet_forward.1} parent=11 // pred_region
          _
        $region32: #{eegnet_forward.1} parent=11 // pred_fallthru
          _
        // Predicated region
        $region33: #{eegnet_forward.1} parent=11 // pred_check
          %p292 = pneg %p172
        $region34: #{eegnet_forward.1} parent=11 // pred_check_branch
          %294 = sbr.rel (%p292) target = $region36
        $region35: #{eegnet_forward.1} parent=11 // pred_region
          _
        $region36: #{eegnet_forward.1} parent=11 // pred_fallthru
          _
        // Predicated region
        $region37: #{eegnet_forward.1} parent=11 // pred_check
          %p295 = pneg %p193
        $region38: #{eegnet_forward.1} parent=11 // pred_check_branch
          %297 = sbr.rel (%p295) target = $region40
        $region39: #{eegnet_forward.1} parent=11 // pred_region
          _
        $region40: #{eegnet_forward.1} parent=11 // pred_fallthru
          _
        // Predicated region
        $region41: #{eegnet_forward.1} parent=11 // pred_check
          %p298 = pneg %p214
        $region42: #{eegnet_forward.1} parent=11 // pred_check_branch
          %300 = sbr.rel (%p298) target = $region44
        $region43: #{eegnet_forward.1} parent=11 // pred_region
          _
        $region44: #{eegnet_forward.1} parent=11 // pred_fallthru
          _
      $region12: #{eegnet_forward.1} parent=5 // pred_fallthru
        _
      %p301 = scmp.lt.s32.totalorder %s20, 2
      // Predicated region
      $region45: #{eegnet_forward.1} parent=5 // pred_check
        %p302 = pneg %p301
      $region46: #{eegnet_forward.1} parent=5 // pred_check_branch
        %304 = sbr.rel (%p302) target = $region48
      $region47: #{eegnet_forward.1} parent=5 // pred_region
        // Predicated region
        $region49: #{eegnet_forward.1} parent=47 // pred_check
          %p305 = pneg %p40
        $region50: #{eegnet_forward.1} parent=47 // pred_check_branch
          %307 = sbr.rel (%p305) target = $region52
        $region51: #{eegnet_forward.1} parent=47 // pred_region
          %p308 = scmp.lt.s32.totalorder %s20, 1
          %s309 = scalar_select %p308, %s20, 1
          %s310 = smul.addr %s309, 16
          %s311 = smul.addr %s310, 8
          %s312 = scalar_lea.vmem %s0, %s311
        $region52: #{eegnet_forward.1} parent=47 // pred_fallthru
          _
      $region48: #{eegnet_forward.1} parent=5 // pred_fallthru
        _
      %p313 = scmp.le.s32.totalorder 1, %s20
      %p314 = scmp.lt.s32.totalorder %s20, 3
      %p315 = pnand %p313, %p314
      %p316 = pneg %p315
      // Predicated region
      $region53: #{eegnet_forward.1} parent=5 // pred_check
        _
      $region54: #{eegnet_forward.1} parent=5 // pred_check_branch
        %318 = sbr.rel (%p315) target = $region56
      $region55: #{eegnet_forward.1} parent=5 // pred_region
        %s319 = ssub.s32 %s20, 1
        // Predicated region
        $region57: #{eegnet_forward.1} parent=55 // pred_check
          %p320 = pneg %p88
        $region58: #{eegnet_forward.1} parent=55 // pred_check_branch
          %322 = sbr.rel (%p320) target = $region60
        $region59: #{eegnet_forward.1} parent=55 // pred_region
          %324 = dma.done [#allocation4], 16384
        $region60: #{eegnet_forward.1} parent=55 // pred_fallthru
          _
        // Predicated region
        $region61: #{eegnet_forward.1} parent=55 // pred_check
          %p325 = pneg %p130
        $region62: #{eegnet_forward.1} parent=55 // pred_check_branch
          %327 = sbr.rel (%p325) target = $region64
        $region63: #{eegnet_forward.1} parent=55 // pred_region
          %329 = dma.done [#allocation7], 32768
        $region64: #{eegnet_forward.1} parent=55 // pred_fallthru
          _
        %p330 = scmp.lt.s32.totalorder %s25, 1
        %s331 = scalar_select %p330, %s25, 1
        %s332 = smul.addr %s331, 16
        %s333 = smul.addr %s332, 8
        %s334 = scalar_lea.vmem %s0, %s333
        %p335 = pneg %p46
        %p336 = pneg %p43
        %p337 = pneg %p67
        %p338 = pneg %p64
        %p339 = pneg %p88
        %p340 = pneg %p85
        %p341 = pneg %p109
        %p342 = pneg %p106
        %p343 = pneg %p130
        %p344 = pneg %p127
        %p345 = pneg %p151
        %p346 = pneg %p148
        %p347 = pneg %p172
        %p348 = pneg %p169
        %p349 = pneg %p193
        %p350 = pneg %p190
        %p351 = pneg %p214
        %p352 = pneg %p211
        %p353 = pneg %p240
        %p354 = pneg %p237
        %s355 = sand.u32 %s227, 1
        %s356 = scalar_lea.sflag [#allocation5], %s355
        %s357 = sand.u32 %s227, 1
        %s358 = scalar_lea.vmem [#allocation8], %s357
        %p359 = scmp.lt.s32.totalorder %s25, 1
        %s360 = scalar_select %p359, %s25, 1
        %s361 = smul.addr %s360, 16
        %s362 = smul.addr %s361, 8
        %s363 = scalar_lea.vmem %s0, %s362
        %v364 = vld [vmem:[%s363] sm:$0xff]
        %v365 = vld [vmem:[%s363 + $0x8] sm:$0xff]
        %v366 = vld [vmem:[%s363 + $0x10] sm:$0xff]
        %v367 = vld [vmem:[%s363 + $0x18] sm:$0xff]
        %v368 = vld [vmem:[%s363 + $0x20] sm:$0xff]
        %v369 = vld [vmem:[%s363 + $0x28] sm:$0xff]
        %v370 = vld [vmem:[%s363 + $0x30] sm:$0xff]
        %v371 = vld [vmem:[%s363 + $0x38] sm:$0xff]
        %v372 = vld [vmem:[%s363 + $0x40] sm:$0xff]
        %v373 = vld [vmem:[%s363 + $0x48] sm:$0xff]
        %v374 = vld [vmem:[%s363 + $0x50] sm:$0xff]
        %v375 = vld [vmem:[%s363 + $0x58] sm:$0xff]
        %v376 = vld [vmem:[%s363 + $0x60] sm:$0xff]
        %v377 = vld [vmem:[%s363 + $0x68] sm:$0xff]
        %v378 = vld [vmem:[%s363 + $0x70] sm:$0xff]
        %v379 = vld [vmem:[%s363 + $0x78] sm:$0x3f]
        %v380 = vld [vmem:[%s1] sm:$0xff]
        %v381 = vld [vmem:[%s1 + $0x8] sm:$0xff]
        %v382 = vld [vmem:[%s1 + $0x10] sm:$0xff]
        %v383 = vld [vmem:[%s1 + $0x18] sm:$0xff]
        %v384 = vld [vmem:[%s1 + $0x20] sm:$0xff]
        %v385 = vld [vmem:[%s1 + $0x28] sm:$0xff]
        %v386 = vld [vmem:[%s1 + $0x30] sm:$0xff]
        %v387 = vld [vmem:[%s1 + $0x38] sm:$0xff]
        %v388 = vld [vmem:[%s1 + $0x40] sm:$0xff]
        %v389 = vld [vmem:[%s1 + $0x48] sm:$0xff]
        %v390 = vld [vmem:[%s1 + $0x50] sm:$0xff]
        %v391 = vld [vmem:[%s1 + $0x58] sm:$0xff]
        %v392 = vld [vmem:[%s1 + $0x60] sm:$0xff]
        %v393 = vld [vmem:[%s1 + $0x68] sm:$0xff]
        %v394 = vld [vmem:[%s1 + $0x70] sm:$0xff]
        %v395 = vld [vmem:[%s1 + $0x78] sm:$0xff]
        %v396 = vld [vmem:[%s1 + $0x80] sm:$0xff]
        %v397 = vld [vmem:[%s1 + $0x88] sm:$0xff]
        %v398 = vld [vmem:[%s1 + $0x90] sm:$0xff]
        %v399 = vld [vmem:[%s1 + $0x98] sm:$0xff]
        %v400 = vld [vmem:[%s1 + $0xa0] sm:$0xff]
        %v401 = vld [vmem:[%s1 + $0xa8] sm:$0xff]
        %v402 = vld [vmem:[%s1 + $0xb0] sm:$0xff]
        %v403 = vld [vmem:[%s1 + $0xb8] sm:$0xff]
        %v404 = vld [vmem:[%s1 + $0xc0] sm:$0xff]
        %v405 = vld [vmem:[%s1 + $0xc8] sm:$0xff]
        %v406 = vld [vmem:[%s1 + $0xd0] sm:$0xff]
        %v407 = vld [vmem:[%s1 + $0xd8] sm:$0xff]
        %v408 = vld [vmem:[%s1 + $0xe0] sm:$0xff]
        %v409 = vld [vmem:[%s1 + $0xe8] sm:$0xff]
        %v410 = vld [vmem:[%s1 + $0xf0] sm:$0xff]
        %v411 = vld [vmem:[%s1 + $0xf8] sm:$0xff]
        %v412 = vld [vmem:[%s1 + $0x100] sm:$0xff]
        %v413 = vld [vmem:[%s1 + $0x108] sm:$0xff]
        %v414 = vld [vmem:[%s1 + $0x110] sm:$0xff]
        %v415 = vld [vmem:[%s1 + $0x118] sm:$0xff]
        %v416 = vld [vmem:[%s1 + $0x120] sm:$0xff]
        %v417 = vld [vmem:[%s1 + $0x128] sm:$0xff]
        %v418 = vld [vmem:[%s1 + $0x130] sm:$0xff]
        %v419 = vld [vmem:[%s1 + $0x138] sm:$0xff]
        %v420 = vld [vmem:[%s1 + $0x140] sm:$0xff]
        %v421 = vld [vmem:[%s1 + $0x148] sm:$0xff]
        %v422 = vld [vmem:[%s1 + $0x150] sm:$0xff]
        %v423 = vld [vmem:[%s1 + $0x158] sm:$0xff]
        %v424 = vld [vmem:[%s1 + $0x160] sm:$0xff]
        %v425 = vld [vmem:[%s1 + $0x168] sm:$0xff]
        %v426 = vld [vmem:[%s1 + $0x170] sm:$0xff]
        %v427 = vld [vmem:[%s1 + $0x178] sm:$0xff]
        %v428 = vld [vmem:[%s1 + $0x180] sm:$0xff]
        %v429 = vld [vmem:[%s1 + $0x188] sm:$0xff]
        %v430 = vld [vmem:[%s1 + $0x190] sm:$0xff]
        %v431 = vld [vmem:[%s1 + $0x198] sm:$0xff]
        %v432 = vld [vmem:[%s1 + $0x1a0] sm:$0xff]
        %v433 = vld [vmem:[%s1 + $0x1a8] sm:$0xff]
        %v434 = vld [vmem:[%s1 + $0x1b0] sm:$0xff]
        %v435 = vld [vmem:[%s1 + $0x1b8] sm:$0xff]
        %v436 = vld [vmem:[%s1 + $0x1c0] sm:$0xff]
        %v437 = vld [vmem:[%s1 + $0x1c8] sm:$0xff]
        %v438 = vld [vmem:[%s1 + $0x1d0] sm:$0xff]
        %v439 = vld [vmem:[%s1 + $0x1d8] sm:$0xff]
        %v440 = vld [vmem:[%s1 + $0x1e0] sm:$0xff]
        %v441 = vld [vmem:[%s1 + $0x1e8] sm:$0xff]
        %v442 = vld [vmem:[%s1 + $0x1f0] sm:$0xff]
        %v443 = vld [vmem:[%s1 + $0x1f8] sm:$0xff]
        %v444 = vld [vmem:[%s1 + $0x200] sm:$0xff]
        %v445 = vld [vmem:[%s1 + $0x208] sm:$0xff]
        %v446 = vld [vmem:[%s1 + $0x210] sm:$0xff]
        %v447 = vld [vmem:[%s1 + $0x218] sm:$0xff]
        %v448 = vld [vmem:[%s1 + $0x220] sm:$0xff]
        %v449 = vld [vmem:[%s1 + $0x228] sm:$0xff]
        %v450 = vld [vmem:[%s1 + $0x230] sm:$0xff]
        %v451 = vld [vmem:[%s1 + $0x238] sm:$0xff]
        %v452 = vld [vmem:[%s1 + $0x240] sm:$0xff]
        %v453 = vld [vmem:[%s1 + $0x248] sm:$0xff]
        %v454 = vld [vmem:[%s1 + $0x250] sm:$0xff]
        %v455 = vld [vmem:[%s1 + $0x258] sm:$0xff]
        %v456 = vld [vmem:[%s1 + $0x260] sm:$0xff]
        %v457 = vld [vmem:[%s1 + $0x268] sm:$0xff]
        %v458 = vld [vmem:[%s1 + $0x270] sm:$0xff]
        %v459 = vld [vmem:[%s1 + $0x278] sm:$0xff]
        %v460 = vld [vmem:[%s1 + $0x280] sm:$0xff]
        %v461 = vld [vmem:[%s1 + $0x288] sm:$0xff]
        %v462 = vld [vmem:[%s1 + $0x290] sm:$0xff]
        %v463 = vld [vmem:[%s1 + $0x298] sm:$0xff]
        %v464 = vld [vmem:[%s1 + $0x2a0] sm:$0xff]
        %v465 = vld [vmem:[%s1 + $0x2a8] sm:$0xff]
        %v466 = vld [vmem:[%s1 + $0x2b0] sm:$0xff]
        %v467 = vld [vmem:[%s1 + $0x2b8] sm:$0xff]
        %v468 = vld [vmem:[%s1 + $0x2c0] sm:$0xff]
        %v469 = vld [vmem:[%s1 + $0x2c8] sm:$0xff]
        %v470 = vld [vmem:[%s1 + $0x2d0] sm:$0xff]
        %v471 = vld [vmem:[%s1 + $0x2d8] sm:$0xff]
        %v472 = vld [vmem:[%s1 + $0x2e0] sm:$0xff]
        %v473 = vld [vmem:[%s1 + $0x2e8] sm:$0xff]
        %v474 = vld [vmem:[%s1 + $0x2f0] sm:$0xff]
        %v475 = vld [vmem:[%s1 + $0x2f8] sm:$0xff]
        %v476 = vld [vmem:[%s1 + $0x300] sm:$0xff]
        %v477 = vld [vmem:[%s1 + $0x308] sm:$0xff]
        %v478 = vld [vmem:[%s1 + $0x310] sm:$0xff]
        %v479 = vld [vmem:[%s1 + $0x318] sm:$0xff]
        %v480 = vld [vmem:[%s1 + $0x320] sm:$0xff]
        %v481 = vld [vmem:[%s1 + $0x328] sm:$0xff]
        %v482 = vld [vmem:[%s1 + $0x330] sm:$0xff]
        %v483 = vld [vmem:[%s1 + $0x338] sm:$0xff]
        %v484 = vld [vmem:[%s1 + $0x340] sm:$0xff]
        %v485 = vld [vmem:[%s1 + $0x348] sm:$0xff]
        %v486 = vld [vmem:[%s1 + $0x350] sm:$0xff]
        %v487 = vld [vmem:[%s1 + $0x358] sm:$0xff]
        %v488 = vld [vmem:[%s1 + $0x360] sm:$0xff]
        %v489 = vld [vmem:[%s1 + $0x368] sm:$0xff]
        %v490 = vld [vmem:[%s1 + $0x370] sm:$0xff]
        %v491 = vld [vmem:[%s1 + $0x378] sm:$0xff]
        %v492 = vld [vmem:[%s1 + $0x380] sm:$0xff]
        %v493 = vld [vmem:[%s1 + $0x388] sm:$0xff]
        %v494 = vld [vmem:[%s1 + $0x390] sm:$0xff]
        %v495 = vld [vmem:[%s1 + $0x398] sm:$0xff]
        %v496 = vld [vmem:[%s1 + $0x3a0] sm:$0xff]
        %v497 = vld [vmem:[%s1 + $0x3a8] sm:$0xff]
        %v498 = vld [vmem:[%s1 + $0x3b0] sm:$0xff]
        %v499 = vld [vmem:[%s1 + $0x3b8] sm:$0xff]
        %v500 = vld [vmem:[%s1 + $0x3c0] sm:$0xff]
        %v501 = vld [vmem:[%s1 + $0x3c8] sm:$0xff]
        %v502 = vld [vmem:[%s1 + $0x3d0] sm:$0xff]
        %v503 = vld [vmem:[%s1 + $0x3d8] sm:$0xff]
        %v504 = vld [vmem:[%s1 + $0x3e0] sm:$0xff]
        %v505 = vld [vmem:[%s1 + $0x3e8] sm:$0xff]
        %v506 = vld [vmem:[%s1 + $0x3f0] sm:$0xff]
        %v507 = vld [vmem:[%s1 + $0x3f8] sm:$0xff]
        %vm508 = vcmask 1031168
        %v510 = vsel %vm508, %v380, 0
        %v513 = vsel %vm508, %v381, 0
        %v516 = vsel %vm508, %v382, 0
        %v519 = vsel %vm508, %v383, 0
        %v522 = vsel %vm508, %v384, 0
        %v525 = vsel %vm508, %v385, 0
        %v528 = vsel %vm508, %v386, 0
        %v531 = vsel %vm508, %v387, 0
        %v534 = vsel %vm508, %v388, 0
        %v537 = vsel %vm508, %v389, 0
        %v540 = vsel %vm508, %v390, 0
        %v543 = vsel %vm508, %v391, 0
        %v546 = vsel %vm508, %v392, 0
        %v549 = vsel %vm508, %v393, 0
        %v552 = vsel %vm508, %v394, 0
        %v555 = vsel %vm508, %v395, 0
        %v558 = vsel %vm508, %v396, 0
        %v561 = vsel %vm508, %v397, 0
        %v564 = vsel %vm508, %v398, 0
        %v567 = vsel %vm508, %v399, 0
        %v570 = vsel %vm508, %v400, 0
        %v573 = vsel %vm508, %v401, 0
        %v576 = vsel %vm508, %v402, 0
        %v579 = vsel %vm508, %v403, 0
        %v582 = vsel %vm508, %v404, 0
        %v585 = vsel %vm508, %v405, 0
        %v588 = vsel %vm508, %v406, 0
        %v591 = vsel %vm508, %v407, 0
        %v594 = vsel %vm508, %v408, 0
        %v597 = vsel %vm508, %v409, 0
        %v600 = vsel %vm508, %v410, 0
        %v603 = vsel %vm508, %v411, 0
        %v606 = vsel %vm508, %v412, 0
        %v609 = vsel %vm508, %v413, 0
        %v612 = vsel %vm508, %v414, 0
        %v615 = vsel %vm508, %v415, 0
        %v618 = vsel %vm508, %v416, 0
        %v621 = vsel %vm508, %v417, 0
        %v624 = vsel %vm508, %v418, 0
        %v627 = vsel %vm508, %v419, 0
        %v630 = vsel %vm508, %v420, 0
        %v633 = vsel %vm508, %v421, 0
        %v636 = vsel %vm508, %v422, 0
        %v639 = vsel %vm508, %v423, 0
        %v642 = vsel %vm508, %v424, 0
        %v645 = vsel %vm508, %v425, 0
        %v648 = vsel %vm508, %v426, 0
        %v651 = vsel %vm508, %v427, 0
        %v654 = vsel %vm508, %v428, 0
        %v657 = vsel %vm508, %v429, 0
        %v660 = vsel %vm508, %v430, 0
        %v663 = vsel %vm508, %v431, 0
        %v666 = vsel %vm508, %v432, 0
        %v669 = vsel %vm508, %v433, 0
        %v672 = vsel %vm508, %v434, 0
        %v675 = vsel %vm508, %v435, 0
        %v678 = vsel %vm508, %v436, 0
        %v681 = vsel %vm508, %v437, 0
        %v684 = vsel %vm508, %v438, 0
        %v687 = vsel %vm508, %v439, 0
        %v690 = vsel %vm508, %v440, 0
        %v693 = vsel %vm508, %v441, 0
        %v696 = vsel %vm508, %v442, 0
        %v699 = vsel %vm508, %v443, 0
        %v702 = vsel %vm508, %v444, 0
        %v705 = vsel %vm508, %v445, 0
        %v708 = vsel %vm508, %v446, 0
        %v711 = vsel %vm508, %v447, 0
        %v714 = vsel %vm508, %v448, 0
        %v717 = vsel %vm508, %v449, 0
        %v720 = vsel %vm508, %v450, 0
        %v723 = vsel %vm508, %v451, 0
        %v726 = vsel %vm508, %v452, 0
        %v729 = vsel %vm508, %v453, 0
        %v732 = vsel %vm508, %v454, 0
        %v735 = vsel %vm508, %v455, 0
        %v738 = vsel %vm508, %v456, 0
        %v741 = vsel %vm508, %v457, 0
        %v744 = vsel %vm508, %v458, 0
        %v747 = vsel %vm508, %v459, 0
        %v750 = vsel %vm508, %v460, 0
        %v753 = vsel %vm508, %v461, 0
        %v756 = vsel %vm508, %v462, 0
        %v759 = vsel %vm508, %v463, 0
        %v762 = vsel %vm508, %v464, 0
        %v765 = vsel %vm508, %v465, 0
        %v768 = vsel %vm508, %v466, 0
        %v771 = vsel %vm508, %v467, 0
        %v774 = vsel %vm508, %v468, 0
        %v777 = vsel %vm508, %v469, 0
        %v780 = vsel %vm508, %v470, 0
        %v783 = vsel %vm508, %v471, 0
        %v786 = vsel %vm508, %v472, 0
        %v789 = vsel %vm508, %v473, 0
        %v792 = vsel %vm508, %v474, 0
        %v795 = vsel %vm508, %v475, 0
        %v798 = vsel %vm508, %v476, 0
        %v801 = vsel %vm508, %v477, 0
        %v804 = vsel %vm508, %v478, 0
        %v807 = vsel %vm508, %v479, 0
        %v810 = vsel %vm508, %v480, 0
        %v813 = vsel %vm508, %v481, 0
        %v816 = vsel %vm508, %v482, 0
        %v819 = vsel %vm508, %v483, 0
        %v822 = vsel %vm508, %v484, 0
        %v825 = vsel %vm508, %v485, 0
        %v828 = vsel %vm508, %v486, 0
        %v831 = vsel %vm508, %v487, 0
        %v834 = vsel %vm508, %v488, 0
        %v837 = vsel %vm508, %v489, 0
        %v840 = vsel %vm508, %v490, 0
        %v843 = vsel %vm508, %v491, 0
        %v846 = vsel %vm508, %v492, 0
        %v849 = vsel %vm508, %v493, 0
        %v852 = vsel %vm508, %v494, 0
        %v855 = vsel %vm508, %v495, 0
        %v858 = vsel %vm508, %v496, 0
        %v861 = vsel %vm508, %v497, 0
        %v864 = vsel %vm508, %v498, 0
        %v867 = vsel %vm508, %v499, 0
        %v870 = vsel %vm508, %v500, 0
        %v873 = vsel %vm508, %v501, 0
        %v876 = vsel %vm508, %v502, 0
        %v879 = vsel %vm508, %v503, 0
        %v882 = vsel %vm508, %v504, 0
        %v885 = vsel %vm508, %v505, 0
        %v888 = vsel %vm508, %v506, 0
        %v891 = vsel %vm508, %v507, 0
        %vm893 = vcmask 1045504
        %v895 = vsel %vm893, %v379, 0
        %897 = vmatpush.msra.mxu0 %v895
        %898 = vmatpush.msra.mxu0 %v378
        %899 = vmatpush.msra.mxu0 %v377
        %900 = vmatpush.msra.mxu0 %v376
        %901 = vmatpush.msra.mxu0 %v375
        %902 = vmatpush.msra.mxu0 %v374
        %903 = vmatpush.msra.mxu0 %v373
        %904 = vmatpush.msra.mxu0 %v372
        %905 = vmatpush.msra.mxu0 %v371
        %906 = vmatpush.msra.mxu0 %v370
        %907 = vmatpush.msra.mxu0 %v369
        %908 = vmatpush.msra.mxu0 %v368
        %909 = vmatpush.msra.mxu0 %v367
        %910 = vmatpush.msra.mxu0 %v366
        %911 = vmatpush.msra.mxu0 %v365
        %912 = vmatpush.msra.mxu0 %v364
        %913 = vmatmul.f32.gmra.mxu0 %v510
        %v914 = vpop.f32.mrf.mxu0
        %v915 = vadd.f32 0.0, %v914
        %916 = vmatmul.f32.gmra.mxu0 %v513
        %v917 = vpop.f32.mrf.mxu0
        %v918 = vadd.f32 0.0, %v917
        %919 = vmatmul.f32.gmra.mxu0 %v516
        %v920 = vpop.f32.mrf.mxu0
        %v921 = vadd.f32 0.0, %v920
        %922 = vmatmul.f32.gmra.mxu0 %v519
        %v923 = vpop.f32.mrf.mxu0
        %v924 = vadd.f32 0.0, %v923
        %925 = vmatmul.f32.gmra.mxu0 %v522
        %v926 = vpop.f32.mrf.mxu0
        %v927 = vadd.f32 0.0, %v926
        %928 = vmatmul.f32.gmra.mxu0 %v525
        %v929 = vpop.f32.mrf.mxu0
        %v930 = vadd.f32 0.0, %v929
        %931 = vmatmul.f32.gmra.mxu0 %v528
        %v932 = vpop.f32.mrf.mxu0
        %v933 = vadd.f32 0.0, %v932
        %934 = vmatmul.f32.gmra.mxu0 %v531
        %v935 = vpop.f32.mrf.mxu0
        %v936 = vadd.f32 0.0, %v935
        %937 = vmatmul.f32.gmra.mxu0 %v534
        %v938 = vpop.f32.mrf.mxu0
        %v939 = vadd.f32 0.0, %v938
        %940 = vmatmul.f32.gmra.mxu0 %v537
        %v941 = vpop.f32.mrf.mxu0
        %v942 = vadd.f32 0.0, %v941
        %943 = vmatmul.f32.gmra.mxu0 %v540
        %v944 = vpop.f32.mrf.mxu0
        %v945 = vadd.f32 0.0, %v944
        %946 = vmatmul.f32.gmra.mxu0 %v543
        %v947 = vpop.f32.mrf.mxu0
        %v948 = vadd.f32 0.0, %v947
        %949 = vmatmul.f32.gmra.mxu0 %v546
        %v950 = vpop.f32.mrf.mxu0
        %v951 = vadd.f32 0.0, %v950
        %952 = vmatmul.f32.gmra.mxu0 %v549
        %v953 = vpop.f32.mrf.mxu0
        %v954 = vadd.f32 0.0, %v953
        %955 = vmatmul.f32.gmra.mxu0 %v552
        %v956 = vpop.f32.mrf.mxu0
        %v957 = vadd.f32 0.0, %v956
        %958 = vmatmul.f32.gmra.mxu0 %v555
        %v959 = vpop.f32.mrf.mxu0
        %v960 = vadd.f32 0.0, %v959
        %961 = vmatmul.f32.gmra.mxu0 %v558
        %v962 = vpop.f32.mrf.mxu0
        %v963 = vadd.f32 0.0, %v962
        %964 = vmatmul.f32.gmra.mxu0 %v561
        %v965 = vpop.f32.mrf.mxu0
        %v966 = vadd.f32 0.0, %v965
        %967 = vmatmul.f32.gmra.mxu0 %v564
        %v968 = vpop.f32.mrf.mxu0
        %v969 = vadd.f32 0.0, %v968
        %970 = vmatmul.f32.gmra.mxu0 %v567
        %v971 = vpop.f32.mrf.mxu0
        %v972 = vadd.f32 0.0, %v971
        %973 = vmatmul.f32.gmra.mxu0 %v570
        %v974 = vpop.f32.mrf.mxu0
        %v975 = vadd.f32 0.0, %v974
        %976 = vmatmul.f32.gmra.mxu0 %v573
        %v977 = vpop.f32.mrf.mxu0
        %v978 = vadd.f32 0.0, %v977
        %979 = vmatmul.f32.gmra.mxu0 %v576
        %v980 = vpop.f32.mrf.mxu0
        %v981 = vadd.f32 0.0, %v980
        %982 = vmatmul.f32.gmra.mxu0 %v579
        %v983 = vpop.f32.mrf.mxu0
        %v984 = vadd.f32 0.0, %v983
        %985 = vmatmul.f32.gmra.mxu0 %v582
        %v986 = vpop.f32.mrf.mxu0
        %v987 = vadd.f32 0.0, %v986
        %988 = vmatmul.f32.gmra.mxu0 %v585
        %v989 = vpop.f32.mrf.mxu0
        %v990 = vadd.f32 0.0, %v989
        %991 = vmatmul.f32.gmra.mxu0 %v588
        %v992 = vpop.f32.mrf.mxu0
        %v993 = vadd.f32 0.0, %v992
        %994 = vmatmul.f32.gmra.mxu0 %v591
        %v995 = vpop.f32.mrf.mxu0
        %v996 = vadd.f32 0.0, %v995
        %997 = vmatmul.f32.gmra.mxu0 %v594
        %v998 = vpop.f32.mrf.mxu0
        %v999 = vadd.f32 0.0, %v998
        %1000 = vmatmul.f32.gmra.mxu0 %v597
        %v1001 = vpop.f32.mrf.mxu0
        %v1002 = vadd.f32 0.0, %v1001
        %1003 = vmatmul.f32.gmra.mxu0 %v600
        %v1004 = vpop.f32.mrf.mxu0
        %v1005 = vadd.f32 0.0, %v1004
        %1006 = vmatmul.f32.gmra.mxu0 %v603
        %v1007 = vpop.f32.mrf.mxu0
        %v1008 = vadd.f32 0.0, %v1007
        %1009 = vmatmul.f32.gmra.mxu0 %v606
        %v1010 = vpop.f32.mrf.mxu0
        %v1011 = vadd.f32 0.0, %v1010
        %1012 = vmatmul.f32.gmra.mxu0 %v609
        %v1013 = vpop.f32.mrf.mxu0
        %v1014 = vadd.f32 0.0, %v1013
        %1015 = vmatmul.f32.gmra.mxu0 %v612
        %v1016 = vpop.f32.mrf.mxu0
        %v1017 = vadd.f32 0.0, %v1016
        %1018 = vmatmul.f32.gmra.mxu0 %v615
        %v1019 = vpop.f32.mrf.mxu0
        %v1020 = vadd.f32 0.0, %v1019
        %1021 = vmatmul.f32.gmra.mxu0 %v618
        %v1022 = vpop.f32.mrf.mxu0
        %v1023 = vadd.f32 0.0, %v1022
        %1024 = vmatmul.f32.gmra.mxu0 %v621
        %v1025 = vpop.f32.mrf.mxu0
        %v1026 = vadd.f32 0.0, %v1025
        %1027 = vmatmul.f32.gmra.mxu0 %v624
        %v1028 = vpop.f32.mrf.mxu0
        %v1029 = vadd.f32 0.0, %v1028
        %1030 = vmatmul.f32.gmra.mxu0 %v627
        %v1031 = vpop.f32.mrf.mxu0
        %v1032 = vadd.f32 0.0, %v1031
        %1033 = vmatmul.f32.gmra.mxu0 %v630
        %v1034 = vpop.f32.mrf.mxu0
        %v1035 = vadd.f32 0.0, %v1034
        %1036 = vmatmul.f32.gmra.mxu0 %v633
        %v1037 = vpop.f32.mrf.mxu0
        %v1038 = vadd.f32 0.0, %v1037
        %1039 = vmatmul.f32.gmra.mxu0 %v636
        %v1040 = vpop.f32.mrf.mxu0
        %v1041 = vadd.f32 0.0, %v1040
        %1042 = vmatmul.f32.gmra.mxu0 %v639
        %v1043 = vpop.f32.mrf.mxu0
        %v1044 = vadd.f32 0.0, %v1043
        %1045 = vmatmul.f32.gmra.mxu0 %v642
        %v1046 = vpop.f32.mrf.mxu0
        %v1047 = vadd.f32 0.0, %v1046
        %1048 = vmatmul.f32.gmra.mxu0 %v645
        %v1049 = vpop.f32.mrf.mxu0
        %v1050 = vadd.f32 0.0, %v1049
        %1051 = vmatmul.f32.gmra.mxu0 %v648
        %v1052 = vpop.f32.mrf.mxu0
        %v1053 = vadd.f32 0.0, %v1052
        %1054 = vmatmul.f32.gmra.mxu0 %v651
        %v1055 = vpop.f32.mrf.mxu0
        %v1056 = vadd.f32 0.0, %v1055
        %1057 = vmatmul.f32.gmra.mxu0 %v654
        %v1058 = vpop.f32.mrf.mxu0
        %v1059 = vadd.f32 0.0, %v1058
        %1060 = vmatmul.f32.gmra.mxu0 %v657
        %v1061 = vpop.f32.mrf.mxu0
        %v1062 = vadd.f32 0.0, %v1061
        %1063 = vmatmul.f32.gmra.mxu0 %v660
        %v1064 = vpop.f32.mrf.mxu0
        %v1065 = vadd.f32 0.0, %v1064
        %1066 = vmatmul.f32.gmra.mxu0 %v663
        %v1067 = vpop.f32.mrf.mxu0
        %v1068 = vadd.f32 0.0, %v1067
        %1069 = vmatmul.f32.gmra.mxu0 %v666
        %v1070 = vpop.f32.mrf.mxu0
        %v1071 = vadd.f32 0.0, %v1070
        %1072 = vmatmul.f32.gmra.mxu0 %v669
        %v1073 = vpop.f32.mrf.mxu0
        %v1074 = vadd.f32 0.0, %v1073
        %1075 = vmatmul.f32.gmra.mxu0 %v672
        %v1076 = vpop.f32.mrf.mxu0
        %v1077 = vadd.f32 0.0, %v1076
        %1078 = vmatmul.f32.gmra.mxu0 %v675
        %v1079 = vpop.f32.mrf.mxu0
        %v1080 = vadd.f32 0.0, %v1079
        %1081 = vmatmul.f32.gmra.mxu0 %v678
        %v1082 = vpop.f32.mrf.mxu0
        %v1083 = vadd.f32 0.0, %v1082
        %1084 = vmatmul.f32.gmra.mxu0 %v681
        %v1085 = vpop.f32.mrf.mxu0
        %v1086 = vadd.f32 0.0, %v1085
        %1087 = vmatmul.f32.gmra.mxu0 %v684
        %v1088 = vpop.f32.mrf.mxu0
        %v1089 = vadd.f32 0.0, %v1088
        %1090 = vmatmul.f32.gmra.mxu0 %v687
        %v1091 = vpop.f32.mrf.mxu0
        %v1092 = vadd.f32 0.0, %v1091
        %1093 = vmatmul.f32.gmra.mxu0 %v690
        %v1094 = vpop.f32.mrf.mxu0
        %v1095 = vadd.f32 0.0, %v1094
        %1096 = vmatmul.f32.gmra.mxu0 %v693
        %v1097 = vpop.f32.mrf.mxu0
        %v1098 = vadd.f32 0.0, %v1097
        %1099 = vmatmul.f32.gmra.mxu0 %v696
        %v1100 = vpop.f32.mrf.mxu0
        %v1101 = vadd.f32 0.0, %v1100
        %1102 = vmatmul.f32.gmra.mxu0 %v699
        %v1103 = vpop.f32.mrf.mxu0
        %v1104 = vadd.f32 0.0, %v1103
        %1105 = vmatmul.f32.gmra.mxu0 %v702
        %v1106 = vpop.f32.mrf.mxu0
        %v1107 = vadd.f32 0.0, %v1106
        %1108 = vmatmul.f32.gmra.mxu0 %v705
        %v1109 = vpop.f32.mrf.mxu0
        %v1110 = vadd.f32 0.0, %v1109
        %1111 = vmatmul.f32.gmra.mxu0 %v708
        %v1112 = vpop.f32.mrf.mxu0
        %v1113 = vadd.f32 0.0, %v1112
        %1114 = vmatmul.f32.gmra.mxu0 %v711
        %v1115 = vpop.f32.mrf.mxu0
        %v1116 = vadd.f32 0.0, %v1115
        %1117 = vmatmul.f32.gmra.mxu0 %v714
        %v1118 = vpop.f32.mrf.mxu0
        %v1119 = vadd.f32 0.0, %v1118
        %1120 = vmatmul.f32.gmra.mxu0 %v717
        %v1121 = vpop.f32.mrf.mxu0
        %v1122 = vadd.f32 0.0, %v1121
        %1123 = vmatmul.f32.gmra.mxu0 %v720
        %v1124 = vpop.f32.mrf.mxu0
        %v1125 = vadd.f32 0.0, %v1124
        %1126 = vmatmul.f32.gmra.mxu0 %v723
        %v1127 = vpop.f32.mrf.mxu0
        %v1128 = vadd.f32 0.0, %v1127
        %1129 = vmatmul.f32.gmra.mxu0 %v726
        %v1130 = vpop.f32.mrf.mxu0
        %v1131 = vadd.f32 0.0, %v1130
        %1132 = vmatmul.f32.gmra.mxu0 %v729
        %v1133 = vpop.f32.mrf.mxu0
        %v1134 = vadd.f32 0.0, %v1133
        %1135 = vmatmul.f32.gmra.mxu0 %v732
        %v1136 = vpop.f32.mrf.mxu0
        %v1137 = vadd.f32 0.0, %v1136
        %1138 = vmatmul.f32.gmra.mxu0 %v735
        %v1139 = vpop.f32.mrf.mxu0
        %v1140 = vadd.f32 0.0, %v1139
        %1141 = vmatmul.f32.gmra.mxu0 %v738
        %v1142 = vpop.f32.mrf.mxu0
        %v1143 = vadd.f32 0.0, %v1142
        %1144 = vmatmul.f32.gmra.mxu0 %v741
        %v1145 = vpop.f32.mrf.mxu0
        %v1146 = vadd.f32 0.0, %v1145
        %1147 = vmatmul.f32.gmra.mxu0 %v744
        %v1148 = vpop.f32.mrf.mxu0
        %v1149 = vadd.f32 0.0, %v1148
        %1150 = vmatmul.f32.gmra.mxu0 %v747
        %v1151 = vpop.f32.mrf.mxu0
        %v1152 = vadd.f32 0.0, %v1151
        %1153 = vmatmul.f32.gmra.mxu0 %v750
        %v1154 = vpop.f32.mrf.mxu0
        %v1155 = vadd.f32 0.0, %v1154
        %1156 = vmatmul.f32.gmra.mxu0 %v753
        %v1157 = vpop.f32.mrf.mxu0
        %v1158 = vadd.f32 0.0, %v1157
        %1159 = vmatmul.f32.gmra.mxu0 %v756
        %v1160 = vpop.f32.mrf.mxu0
        %v1161 = vadd.f32 0.0, %v1160
        %1162 = vmatmul.f32.gmra.mxu0 %v759
        %v1163 = vpop.f32.mrf.mxu0
        %v1164 = vadd.f32 0.0, %v1163
        %1165 = vmatmul.f32.gmra.mxu0 %v762
        %v1166 = vpop.f32.mrf.mxu0
        %v1167 = vadd.f32 0.0, %v1166
        %1168 = vmatmul.f32.gmra.mxu0 %v765
        %v1169 = vpop.f32.mrf.mxu0
        %v1170 = vadd.f32 0.0, %v1169
        %1171 = vmatmul.f32.gmra.mxu0 %v768
        %v1172 = vpop.f32.mrf.mxu0
        %v1173 = vadd.f32 0.0, %v1172
        %1174 = vmatmul.f32.gmra.mxu0 %v771
        %v1175 = vpop.f32.mrf.mxu0
        %v1176 = vadd.f32 0.0, %v1175
        %1177 = vmatmul.f32.gmra.mxu0 %v774
        %v1178 = vpop.f32.mrf.mxu0
        %v1179 = vadd.f32 0.0, %v1178
        %1180 = vmatmul.f32.gmra.mxu0 %v777
        %v1181 = vpop.f32.mrf.mxu0
        %v1182 = vadd.f32 0.0, %v1181
        %1183 = vmatmul.f32.gmra.mxu0 %v780
        %v1184 = vpop.f32.mrf.mxu0
        %v1185 = vadd.f32 0.0, %v1184
        %1186 = vmatmul.f32.gmra.mxu0 %v783
        %v1187 = vpop.f32.mrf.mxu0
        %v1188 = vadd.f32 0.0, %v1187
        %1189 = vmatmul.f32.gmra.mxu0 %v786
        %v1190 = vpop.f32.mrf.mxu0
        %v1191 = vadd.f32 0.0, %v1190
        %1192 = vmatmul.f32.gmra.mxu0 %v789
        %v1193 = vpop.f32.mrf.mxu0
        %v1194 = vadd.f32 0.0, %v1193
        %1195 = vmatmul.f32.gmra.mxu0 %v792
        %v1196 = vpop.f32.mrf.mxu0
        %v1197 = vadd.f32 0.0, %v1196
        %1198 = vmatmul.f32.gmra.mxu0 %v795
        %v1199 = vpop.f32.mrf.mxu0
        %v1200 = vadd.f32 0.0, %v1199
        %1201 = vmatmul.f32.gmra.mxu0 %v798
        %v1202 = vpop.f32.mrf.mxu0
        %v1203 = vadd.f32 0.0, %v1202
        %1204 = vmatmul.f32.gmra.mxu0 %v801
        %v1205 = vpop.f32.mrf.mxu0
        %v1206 = vadd.f32 0.0, %v1205
        %1207 = vmatmul.f32.gmra.mxu0 %v804
        %v1208 = vpop.f32.mrf.mxu0
        %v1209 = vadd.f32 0.0, %v1208
        %1210 = vmatmul.f32.gmra.mxu0 %v807
        %v1211 = vpop.f32.mrf.mxu0
        %v1212 = vadd.f32 0.0, %v1211
        %1213 = vmatmul.f32.gmra.mxu0 %v810
        %v1214 = vpop.f32.mrf.mxu0
        %v1215 = vadd.f32 0.0, %v1214
        %1216 = vmatmul.f32.gmra.mxu0 %v813
        %v1217 = vpop.f32.mrf.mxu0
        %v1218 = vadd.f32 0.0, %v1217
        %1219 = vmatmul.f32.gmra.mxu0 %v816
        %v1220 = vpop.f32.mrf.mxu0
        %v1221 = vadd.f32 0.0, %v1220
        %1222 = vmatmul.f32.gmra.mxu0 %v819
        %v1223 = vpop.f32.mrf.mxu0
        %v1224 = vadd.f32 0.0, %v1223
        %1225 = vmatmul.f32.gmra.mxu0 %v822
        %v1226 = vpop.f32.mrf.mxu0
        %v1227 = vadd.f32 0.0, %v1226
        %1228 = vmatmul.f32.gmra.mxu0 %v825
        %v1229 = vpop.f32.mrf.mxu0
        %v1230 = vadd.f32 0.0, %v1229
        %1231 = vmatmul.f32.gmra.mxu0 %v828
        %v1232 = vpop.f32.mrf.mxu0
        %v1233 = vadd.f32 0.0, %v1232
        %1234 = vmatmul.f32.gmra.mxu0 %v831
        %v1235 = vpop.f32.mrf.mxu0
        %v1236 = vadd.f32 0.0, %v1235
        %1237 = vmatmul.f32.gmra.mxu0 %v834
        %v1238 = vpop.f32.mrf.mxu0
        %v1239 = vadd.f32 0.0, %v1238
        %1240 = vmatmul.f32.gmra.mxu0 %v837
        %v1241 = vpop.f32.mrf.mxu0
        %v1242 = vadd.f32 0.0, %v1241
        %1243 = vmatmul.f32.gmra.mxu0 %v840
        %v1244 = vpop.f32.mrf.mxu0
        %v1245 = vadd.f32 0.0, %v1244
        %1246 = vmatmul.f32.gmra.mxu0 %v843
        %v1247 = vpop.f32.mrf.mxu0
        %v1248 = vadd.f32 0.0, %v1247
        %1249 = vmatmul.f32.gmra.mxu0 %v846
        %v1250 = vpop.f32.mrf.mxu0
        %v1251 = vadd.f32 0.0, %v1250
        %1252 = vmatmul.f32.gmra.mxu0 %v849
        %v1253 = vpop.f32.mrf.mxu0
        %v1254 = vadd.f32 0.0, %v1253
        %1255 = vmatmul.f32.gmra.mxu0 %v852
        %v1256 = vpop.f32.mrf.mxu0
        %v1257 = vadd.f32 0.0, %v1256
        %1258 = vmatmul.f32.gmra.mxu0 %v855
        %v1259 = vpop.f32.mrf.mxu0
        %v1260 = vadd.f32 0.0, %v1259
        %1261 = vmatmul.f32.gmra.mxu0 %v858
        %v1262 = vpop.f32.mrf.mxu0
        %v1263 = vadd.f32 0.0, %v1262
        %1264 = vmatmul.f32.gmra.mxu0 %v861
        %v1265 = vpop.f32.mrf.mxu0
        %v1266 = vadd.f32 0.0, %v1265
        %1267 = vmatmul.f32.gmra.mxu0 %v864
        %v1268 = vpop.f32.mrf.mxu0
        %v1269 = vadd.f32 0.0, %v1268
        %1270 = vmatmul.f32.gmra.mxu0 %v867
        %v1271 = vpop.f32.mrf.mxu0
        %v1272 = vadd.f32 0.0, %v1271
        %1273 = vmatmul.f32.gmra.mxu0 %v870
        %v1274 = vpop.f32.mrf.mxu0
        %v1275 = vadd.f32 0.0, %v1274
        %1276 = vmatmul.f32.gmra.mxu0 %v873
        %v1277 = vpop.f32.mrf.mxu0
        %v1278 = vadd.f32 0.0, %v1277
        %1279 = vmatmul.f32.gmra.mxu0 %v876
        %v1280 = vpop.f32.mrf.mxu0
        %v1281 = vadd.f32 0.0, %v1280
        %1282 = vmatmul.f32.gmra.mxu0 %v879
        %v1283 = vpop.f32.mrf.mxu0
        %v1284 = vadd.f32 0.0, %v1283
        %1285 = vmatmul.f32.gmra.mxu0 %v882
        %v1286 = vpop.f32.mrf.mxu0
        %v1287 = vadd.f32 0.0, %v1286
        %1288 = vmatmul.f32.gmra.mxu0 %v885
        %v1289 = vpop.f32.mrf.mxu0
        %v1290 = vadd.f32 0.0, %v1289
        %1291 = vmatmul.f32.gmra.mxu0 %v888
        %v1292 = vpop.f32.mrf.mxu0
        %v1293 = vadd.f32 0.0, %v1292
        %1294 = vmatmul.f32.gmra.mxu0 %v891
        %v1295 = vpop.f32.mrf.mxu0
        %v1296 = vadd.f32 0.0, %v1295
        %1297 = vdwg.mxu0
        %vm1298 = vcmask 523264
        %1299 = vst.msk [vmem:[#allocation2] sm:$0xff] %vm1298, %v915
        %1300 = vst.msk [vmem:[#allocation2 + $0x8] sm:$0xff] %vm1298, %v918
        %1301 = vst.msk [vmem:[#allocation2 + $0x10] sm:$0xff] %vm1298, %v921
        %1302 = vst.msk [vmem:[#allocation2 + $0x18] sm:$0xff] %vm1298, %v924
        %1303 = vst.msk [vmem:[#allocation2 + $0x20] sm:$0xff] %vm1298, %v927
        %1304 = vst.msk [vmem:[#allocation2 + $0x28] sm:$0xff] %vm1298, %v930
        %1305 = vst.msk [vmem:[#allocation2 + $0x30] sm:$0xff] %vm1298, %v933
        %1306 = vst.msk [vmem:[#allocation2 + $0x38] sm:$0xff] %vm1298, %v936
        %1307 = vst.msk [vmem:[#allocation2 + $0x40] sm:$0xff] %vm1298, %v939
        %1308 = vst.msk [vmem:[#allocation2 + $0x48] sm:$0xff] %vm1298, %v942
        %1309 = vst.msk [vmem:[#allocation2 + $0x50] sm:$0xff] %vm1298, %v945
        %1310 = vst.msk [vmem:[#allocation2 + $0x58] sm:$0xff] %vm1298, %v948
        %1311 = vst.msk [vmem:[#allocation2 + $0x60] sm:$0xff] %vm1298, %v951
        %1312 = vst.msk [vmem:[#allocation2 + $0x68] sm:$0xff] %vm1298, %v954
        %1313 = vst.msk [vmem:[#allocation2 + $0x70] sm:$0xff] %vm1298, %v957
        %1314 = vst.msk [vmem:[#allocation2 + $0x78] sm:$0xff] %vm1298, %v960
        %1315 = vst.msk [vmem:[#allocation2 + $0x80] sm:$0xff] %vm1298, %v963
        %1316 = vst.msk [vmem:[#allocation2 + $0x88] sm:$0xff] %vm1298, %v966
        %1317 = vst.msk [vmem:[#allocation2 + $0x90] sm:$0xff] %vm1298, %v969
        %1318 = vst.msk [vmem:[#allocation2 + $0x98] sm:$0xff] %vm1298, %v972
        %1319 = vst.msk [vmem:[#allocation2 + $0xa0] sm:$0xff] %vm1298, %v975
        %1320 = vst.msk [vmem:[#allocation2 + $0xa8] sm:$0xff] %vm1298, %v978
        %1321 = vst.msk [vmem:[#allocation2 + $0xb0] sm:$0xff] %vm1298, %v981
        %1322 = vst.msk [vmem:[#allocation2 + $0xb8] sm:$0xff] %vm1298, %v984
        %1323 = vst.msk [vmem:[#allocation2 + $0xc0] sm:$0xff] %vm1298, %v987
        %1324 = vst.msk [vmem:[#allocation2 + $0xc8] sm:$0xff] %vm1298, %v990
        %1325 = vst.msk [vmem:[#allocation2 + $0xd0] sm:$0xff] %vm1298, %v993
        %1326 = vst.msk [vmem:[#allocation2 + $0xd8] sm:$0xff] %vm1298, %v996
        %1327 = vst.msk [vmem:[#allocation2 + $0xe0] sm:$0xff] %vm1298, %v999
        %1328 = vst.msk [vmem:[#allocation2 + $0xe8] sm:$0xff] %vm1298, %v1002
        %1329 = vst.msk [vmem:[#allocation2 + $0xf0] sm:$0xff] %vm1298, %v1005
        %1330 = vst.msk [vmem:[#allocation2 + $0xf8] sm:$0xff] %vm1298, %v1008
        %1331 = vst.msk [vmem:[#allocation2 + $0x100] sm:$0xff] %vm1298, %v1011
        %1332 = vst.msk [vmem:[#allocation2 + $0x108] sm:$0xff] %vm1298, %v1014
        %1333 = vst.msk [vmem:[#allocation2 + $0x110] sm:$0xff] %vm1298, %v1017
        %1334 = vst.msk [vmem:[#allocation2 + $0x118] sm:$0xff] %vm1298, %v1020
        %1335 = vst.msk [vmem:[#allocation2 + $0x120] sm:$0xff] %vm1298, %v1023
        %1336 = vst.msk [vmem:[#allocation2 + $0x128] sm:$0xff] %vm1298, %v1026
        %1337 = vst.msk [vmem:[#allocation2 + $0x130] sm:$0xff] %vm1298, %v1029
        %1338 = vst.msk [vmem:[#allocation2 + $0x138] sm:$0xff] %vm1298, %v1032
        %1339 = vst.msk [vmem:[#allocation2 + $0x140] sm:$0xff] %vm1298, %v1035
        %1340 = vst.msk [vmem:[#allocation2 + $0x148] sm:$0xff] %vm1298, %v1038
        %1341 = vst.msk [vmem:[#allocation2 + $0x150] sm:$0xff] %vm1298, %v1041
        %1342 = vst.msk [vmem:[#allocation2 + $0x158] sm:$0xff] %vm1298, %v1044
        %1343 = vst.msk [vmem:[#allocation2 + $0x160] sm:$0xff] %vm1298, %v1047
        %1344 = vst.msk [vmem:[#allocation2 + $0x168] sm:$0xff] %vm1298, %v1050
        %1345 = vst.msk [vmem:[#allocation2 + $0x170] sm:$0xff] %vm1298, %v1053
        %1346 = vst.msk [vmem:[#allocation2 + $0x178] sm:$0xff] %vm1298, %v1056
        %1347 = vst.msk [vmem:[#allocation2 + $0x180] sm:$0xff] %vm1298, %v1059
        %1348 = vst.msk [vmem:[#allocation2 + $0x188] sm:$0xff] %vm1298, %v1062
        %1349 = vst.msk [vmem:[#allocation2 + $0x190] sm:$0xff] %vm1298, %v1065
        %1350 = vst.msk [vmem:[#allocation2 + $0x198] sm:$0xff] %vm1298, %v1068
        %1351 = vst.msk [vmem:[#allocation2 + $0x1a0] sm:$0xff] %vm1298, %v1071
        %1352 = vst.msk [vmem:[#allocation2 + $0x1a8] sm:$0xff] %vm1298, %v1074
        %1353 = vst.msk [vmem:[#allocation2 + $0x1b0] sm:$0xff] %vm1298, %v1077
        %1354 = vst.msk [vmem:[#allocation2 + $0x1b8] sm:$0xff] %vm1298, %v1080
        %1355 = vst.msk [vmem:[#allocation2 + $0x1c0] sm:$0xff] %vm1298, %v1083
        %1356 = vst.msk [vmem:[#allocation2 + $0x1c8] sm:$0xff] %vm1298, %v1086
        %1357 = vst.msk [vmem:[#allocation2 + $0x1d0] sm:$0xff] %vm1298, %v1089
        %1358 = vst.msk [vmem:[#allocation2 + $0x1d8] sm:$0xff] %vm1298, %v1092
        %1359 = vst.msk [vmem:[#allocation2 + $0x1e0] sm:$0xff] %vm1298, %v1095
        %1360 = vst.msk [vmem:[#allocation2 + $0x1e8] sm:$0xff] %vm1298, %v1098
        %1361 = vst.msk [vmem:[#allocation2 + $0x1f0] sm:$0xff] %vm1298, %v1101
        %1362 = vst.msk [vmem:[#allocation2 + $0x1f8] sm:$0xff] %vm1298, %v1104
        %1363 = vst.msk [vmem:[#allocation2 + $0x200] sm:$0xff] %vm1298, %v1107
        %1364 = vst.msk [vmem:[#allocation2 + $0x208] sm:$0xff] %vm1298, %v1110
        %1365 = vst.msk [vmem:[#allocation2 + $0x210] sm:$0xff] %vm1298, %v1113
        %1366 = vst.msk [vmem:[#allocation2 + $0x218] sm:$0xff] %vm1298, %v1116
        %1367 = vst.msk [vmem:[#allocation2 + $0x220] sm:$0xff] %vm1298, %v1119
        %1368 = vst.msk [vmem:[#allocation2 + $0x228] sm:$0xff] %vm1298, %v1122
        %1369 = vst.msk [vmem:[#allocation2 + $0x230] sm:$0xff] %vm1298, %v1125
        %1370 = vst.msk [vmem:[#allocation2 + $0x238] sm:$0xff] %vm1298, %v1128
        %1371 = vst.msk [vmem:[#allocation2 + $0x240] sm:$0xff] %vm1298, %v1131
        %1372 = vst.msk [vmem:[#allocation2 + $0x248] sm:$0xff] %vm1298, %v1134
        %1373 = vst.msk [vmem:[#allocation2 + $0x250] sm:$0xff] %vm1298, %v1137
        %1374 = vst.msk [vmem:[#allocation2 + $0x258] sm:$0xff] %vm1298, %v1140
        %1375 = vst.msk [vmem:[#allocation2 + $0x260] sm:$0xff] %vm1298, %v1143
        %1376 = vst.msk [vmem:[#allocation2 + $0x268] sm:$0xff] %vm1298, %v1146
        %1377 = vst.msk [vmem:[#allocation2 + $0x270] sm:$0xff] %vm1298, %v1149
        %1378 = vst.msk [vmem:[#allocation2 + $0x278] sm:$0xff] %vm1298, %v1152
        %1379 = vst.msk [vmem:[#allocation2 + $0x280] sm:$0xff] %vm1298, %v1155
        %1380 = vst.msk [vmem:[#allocation2 + $0x288] sm:$0xff] %vm1298, %v1158
        %1381 = vst.msk [vmem:[#allocation2 + $0x290] sm:$0xff] %vm1298, %v1161
        %1382 = vst.msk [vmem:[#allocation2 + $0x298] sm:$0xff] %vm1298, %v1164
        %1383 = vst.msk [vmem:[#allocation2 + $0x2a0] sm:$0xff] %vm1298, %v1167
        %1384 = vst.msk [vmem:[#allocation2 + $0x2a8] sm:$0xff] %vm1298, %v1170
        %1385 = vst.msk [vmem:[#allocation2 + $0x2b0] sm:$0xff] %vm1298, %v1173
        %1386 = vst.msk [vmem:[#allocation2 + $0x2b8] sm:$0xff] %vm1298, %v1176
        %1387 = vst.msk [vmem:[#allocation2 + $0x2c0] sm:$0xff] %vm1298, %v1179
        %1388 = vst.msk [vmem:[#allocation2 + $0x2c8] sm:$0xff] %vm1298, %v1182
        %1389 = vst.msk [vmem:[#allocation2 + $0x2d0] sm:$0xff] %vm1298, %v1185
        %1390 = vst.msk [vmem:[#allocation2 + $0x2d8] sm:$0xff] %vm1298, %v1188
        %1391 = vst.msk [vmem:[#allocation2 + $0x2e0] sm:$0xff] %vm1298, %v1191
        %1392 = vst.msk [vmem:[#allocation2 + $0x2e8] sm:$0xff] %vm1298, %v1194
        %1393 = vst.msk [vmem:[#allocation2 + $0x2f0] sm:$0xff] %vm1298, %v1197
        %1394 = vst.msk [vmem:[#allocation2 + $0x2f8] sm:$0xff] %vm1298, %v1200
        %1395 = vst.msk [vmem:[#allocation2 + $0x300] sm:$0xff] %vm1298, %v1203
        %1396 = vst.msk [vmem:[#allocation2 + $0x308] sm:$0xff] %vm1298, %v1206
        %1397 = vst.msk [vmem:[#allocation2 + $0x310] sm:$0xff] %vm1298, %v1209
        %1398 = vst.msk [vmem:[#allocation2 + $0x318] sm:$0xff] %vm1298, %v1212
        %1399 = vst.msk [vmem:[#allocation2 + $0x320] sm:$0xff] %vm1298, %v1215
        %1400 = vst.msk [vmem:[#allocation2 + $0x328] sm:$0xff] %vm1298, %v1218
        %1401 = vst.msk [vmem:[#allocation2 + $0x330] sm:$0xff] %vm1298, %v1221
        %1402 = vst.msk [vmem:[#allocation2 + $0x338] sm:$0xff] %vm1298, %v1224
        %1403 = vst.msk [vmem:[#allocation2 + $0x340] sm:$0xff] %vm1298, %v1227
        %1404 = vst.msk [vmem:[#allocation2 + $0x348] sm:$0xff] %vm1298, %v1230
        %1405 = vst.msk [vmem:[#allocation2 + $0x350] sm:$0xff] %vm1298, %v1233
        %1406 = vst.msk [vmem:[#allocation2 + $0x358] sm:$0xff] %vm1298, %v1236
        %1407 = vst.msk [vmem:[#allocation2 + $0x360] sm:$0xff] %vm1298, %v1239
        %1408 = vst.msk [vmem:[#allocation2 + $0x368] sm:$0xff] %vm1298, %v1242
        %1409 = vst.msk [vmem:[#allocation2 + $0x370] sm:$0xff] %vm1298, %v1245
        %1410 = vst.msk [vmem:[#allocation2 + $0x378] sm:$0xff] %vm1298, %v1248
        %1411 = vst.msk [vmem:[#allocation2 + $0x380] sm:$0xff] %vm1298, %v1251
        %1412 = vst.msk [vmem:[#allocation2 + $0x388] sm:$0xff] %vm1298, %v1254
        %1413 = vst.msk [vmem:[#allocation2 + $0x390] sm:$0xff] %vm1298, %v1257
        %1414 = vst.msk [vmem:[#allocation2 + $0x398] sm:$0xff] %vm1298, %v1260
        %1415 = vst.msk [vmem:[#allocation2 + $0x3a0] sm:$0xff] %vm1298, %v1263
        %1416 = vst.msk [vmem:[#allocation2 + $0x3a8] sm:$0xff] %vm1298, %v1266
        %1417 = vst.msk [vmem:[#allocation2 + $0x3b0] sm:$0xff] %vm1298, %v1269
        %1418 = vst.msk [vmem:[#allocation2 + $0x3b8] sm:$0xff] %vm1298, %v1272
        %1419 = vst.msk [vmem:[#allocation2 + $0x3c0] sm:$0xff] %vm1298, %v1275
        %1420 = vst.msk [vmem:[#allocation2 + $0x3c8] sm:$0xff] %vm1298, %v1278
        %1421 = vst.msk [vmem:[#allocation2 + $0x3d0] sm:$0xff] %vm1298, %v1281
        %1422 = vst.msk [vmem:[#allocation2 + $0x3d8] sm:$0xff] %vm1298, %v1284
        %1423 = vst.msk [vmem:[#allocation2 + $0x3e0] sm:$0xff] %vm1298, %v1287
        %1424 = vst.msk [vmem:[#allocation2 + $0x3e8] sm:$0xff] %vm1298, %v1290
        %1425 = vst.msk [vmem:[#allocation2 + $0x3f0] sm:$0xff] %vm1298, %v1293
        %1426 = vst.msk [vmem:[#allocation2 + $0x3f8] sm:$0xff] %vm1298, %v1296
        %v1427 = vld [vmem:[#allocation2] sm:$0xff]
        %v1428 = vld [vmem:[#allocation2 + $0x8] sm:$0xff]
        %v1429 = vld [vmem:[#allocation2 + $0x10] sm:$0xff]
        %v1430 = vld [vmem:[#allocation2 + $0x18] sm:$0xff]
        %v1431 = vld [vmem:[#allocation2 + $0x20] sm:$0xff]
        %v1432 = vld [vmem:[#allocation2 + $0x28] sm:$0xff]
        %v1433 = vld [vmem:[#allocation2 + $0x30] sm:$0xff]
        %v1434 = vld [vmem:[#allocation2 + $0x38] sm:$0xff]
        %v1435 = vld [vmem:[#allocation3] sm:$0xff]
        %v1436 = vld [vmem:[#allocation3 + $0x8] sm:$0xff]
        %v1437 = vld [vmem:[#allocation3 + $0x10] sm:$0xff]
        %v1438 = vld [vmem:[#allocation3 + $0x18] sm:$0xff]
        %v1439 = vld [vmem:[#allocation3 + $0x20] sm:$0xff]
        %v1440 = vld [vmem:[#allocation3 + $0x28] sm:$0xff]
        %v1441 = vld [vmem:[#allocation3 + $0x30] sm:$0xff]
        %v1442 = vld [vmem:[#allocation3 + $0x38] sm:$0xff]
        %v1443 = vld [vmem:[%s3] sm:$0xff]
        %v1444 = vld [vmem:[%s3 + $0x8] sm:$0xff]
        %v1445 = vld [vmem:[%s3 + $0x10] sm:$0xff]
        %v1446 = vld [vmem:[%s3 + $0x18] sm:$0xff]
        %v1447 = vld [vmem:[%s3 + $0x20] sm:$0xff]
        %v1448 = vld [vmem:[%s3 + $0x28] sm:$0xff]
        %v1449 = vld [vmem:[%s3 + $0x30] sm:$0xff]
        %v1450 = vld [vmem:[%s3 + $0x38] sm:$0xff]
        %1452 = vset.pattern.permute.xlu0 0
        %1453 = vperm.xlu0 %1452, %v1443
        %v1454 = vpop.permute.xlu0 %1453
        %1457 = vset.pattern.permute.xlu0 0
        %1458 = vperm.xlu0 %1457, %v1444
        %v1459 = vpop.permute.xlu0 %1458
        %1462 = vset.pattern.permute.xlu0 0
        %1463 = vperm.xlu0 %1462, %v1445
        %v1464 = vpop.permute.xlu0 %1463
        %1467 = vset.pattern.permute.xlu0 0
        %1468 = vperm.xlu0 %1467, %v1446
        %v1469 = vpop.permute.xlu0 %1468
        %1472 = vset.pattern.permute.xlu0 0
        %1473 = vperm.xlu0 %1472, %v1447
        %v1474 = vpop.permute.xlu0 %1473
        %1477 = vset.pattern.permute.xlu0 0
        %1478 = vperm.xlu0 %1477, %v1448
        %v1479 = vpop.permute.xlu0 %1478
        %1482 = vset.pattern.permute.xlu0 0
        %1483 = vperm.xlu0 %1482, %v1449
        %v1484 = vpop.permute.xlu0 %1483
        %1487 = vset.pattern.permute.xlu0 0
        %1488 = vperm.xlu0 %1487, %v1450
        %v1489 = vpop.permute.xlu0 %1488
        %v1492 = vsel %vm1298, %v1427, 0
        %v1495 = vsel %vm1298, %v1428, 0
        %v1498 = vsel %vm1298, %v1429, 0
        %v1501 = vsel %vm1298, %v1430, 0
        %v1504 = vsel %vm1298, %v1431, 0
        %v1507 = vsel %vm1298, %v1432, 0
        %v1510 = vsel %vm1298, %v1433, 0
        %v1513 = vsel %vm1298, %v1434, 0
        %1515 = vmatpush.msra.mxu0 0.0
        %1516 = vmatpush.msra.mxu0 0.0
        %1517 = vmatpush.msra.mxu0 0.0
        %1518 = vmatpush.msra.mxu0 0.0
        %1519 = vmatpush.msra.mxu0 0.0
        %1520 = vmatpush.msra.mxu0 0.0
        %1521 = vmatpush.msra.mxu0 0.0
        %1522 = vmatpush.msra.mxu0 0.0
        %1523 = vmatpush.msra.mxu0 %v1442
        %1524 = vmatpush.msra.mxu0 %v1441
        %1525 = vmatpush.msra.mxu0 %v1440
        %1526 = vmatpush.msra.mxu0 %v1439
        %1527 = vmatpush.msra.mxu0 %v1438
        %1528 = vmatpush.msra.mxu0 %v1437
        %1529 = vmatpush.msra.mxu0 %v1436
        %1530 = vmatpush.msra.mxu0 %v1435
        %1531 = vmatmul.f32.gmra.mxu0 %v1492
        %v1532 = vpop.f32.mrf.mxu0
        %v1533 = vadd.f32 %v1454, %v1532
        %1534 = vmatmul.f32.gmra.mxu0 %v1495
        %v1535 = vpop.f32.mrf.mxu0
        %v1536 = vadd.f32 %v1459, %v1535
        %1537 = vmatmul.f32.gmra.mxu0 %v1498
        %v1538 = vpop.f32.mrf.mxu0
        %v1539 = vadd.f32 %v1464, %v1538
        %1540 = vmatmul.f32.gmra.mxu0 %v1501
        %v1541 = vpop.f32.mrf.mxu0
        %v1542 = vadd.f32 %v1469, %v1541
        %1543 = vmatmul.f32.gmra.mxu0 %v1504
        %v1544 = vpop.f32.mrf.mxu0
        %v1545 = vadd.f32 %v1474, %v1544
        %1546 = vmatmul.f32.gmra.mxu0 %v1507
        %v1547 = vpop.f32.mrf.mxu0
        %v1548 = vadd.f32 %v1479, %v1547
        %1549 = vmatmul.f32.gmra.mxu0 %v1510
        %v1550 = vpop.f32.mrf.mxu0
        %v1551 = vadd.f32 %v1484, %v1550
        %1552 = vmatmul.f32.gmra.mxu0 %v1513
        %v1553 = vpop.f32.mrf.mxu0
        %v1554 = vadd.f32 %v1489, %v1553
        %1555 = vdwg.mxu0
        %vm1556 = vcmp.gt.f32.partialorder %v1533, 0.0
        %vm1557 = vcmp.gt.f32.partialorder %v1536, 0.0
        %vm1558 = vcmp.gt.f32.partialorder %v1539, 0.0
        %vm1559 = vcmp.gt.f32.partialorder %v1542, 0.0
        %vm1560 = vcmp.gt.f32.partialorder %v1545, 0.0
        %vm1561 = vcmp.gt.f32.partialorder %v1548, 0.0
        %vm1562 = vcmp.gt.f32.partialorder %v1551, 0.0
        %vm1563 = vcmp.gt.f32.partialorder %v1554, 0.0
        %v1564 = vmin.f32 %v1533, 0.0
        %v1565 = vmin.f32 %v1536, 0.0
        %v1566 = vmin.f32 %v1539, 0.0
        %v1567 = vmin.f32 %v1542, 0.0
        %v1568 = vmin.f32 %v1545, 0.0
        %v1569 = vmin.f32 %v1548, 0.0
        %v1570 = vmin.f32 %v1551, 0.0
        %v1571 = vmin.f32 %v1554, 0.0
        %v1572 = vmul.f32 %v1564, 1.442695
        %v1573 = vpow.pop %v1572
        %v1574 = vmul.f32 %v1565, 1.442695
        %v1575 = vpow.pop %v1574
        %v1576 = vmul.f32 %v1566, 1.442695
        %v1577 = vpow.pop %v1576
        %v1578 = vmul.f32 %v1567, 1.442695
        %v1579 = vpow.pop %v1578
        %v1580 = vmul.f32 %v1568, 1.442695
        %v1581 = vpow.pop %v1580
        %v1582 = vmul.f32 %v1569, 1.442695
        %v1583 = vpow.pop %v1582
        %v1584 = vmul.f32 %v1570, 1.442695
        %v1585 = vpow.pop %v1584
        %v1586 = vmul.f32 %v1571, 1.442695
        %v1587 = vpow.pop %v1586
        %v1588 = vsub.f32 %v1573, 1.0
        %v1589 = vsub.f32 %v1575, 1.0
        %v1590 = vsub.f32 %v1577, 1.0
        %v1591 = vsub.f32 %v1579, 1.0
        %v1592 = vsub.f32 %v1581, 1.0
        %v1593 = vsub.f32 %v1583, 1.0
        %v1594 = vsub.f32 %v1585, 1.0
        %v1595 = vsub.f32 %v1587, 1.0
        %v1596 = vsel %vm1556, %v1533, %v1588
        %v1597 = vsel %vm1557, %v1536, %v1589
        %v1598 = vsel %vm1558, %v1539, %v1590
        %v1599 = vsel %vm1559, %v1542, %v1591
        %v1600 = vsel %vm1560, %v1545, %v1592
        %v1601 = vsel %vm1561, %v1548, %v1593
        %v1602 = vsel %vm1562, %v1551, %v1594
        %v1603 = vsel %vm1563, %v1554, %v1595
        %v1604 = vld [vmem:[#allocation6] sm:$0xff]
        %v1605 = vld [vmem:[#allocation6 + $0x8] sm:$0xff]
        %v1606 = vld [vmem:[#allocation6 + $0x10] sm:$0xff]
        %v1607 = vld [vmem:[#allocation6 + $0x18] sm:$0xff]
        %v1608 = vld [vmem:[#allocation6 + $0x20] sm:$0xff]
        %v1609 = vld [vmem:[#allocation6 + $0x28] sm:$0xff]
        %v1610 = vld [vmem:[#allocation6 + $0x30] sm:$0xff]
        %v1611 = vld [vmem:[#allocation6 + $0x38] sm:$0xff]
        %v1612 = vld [vmem:[#allocation6 + $0x40] sm:$0xff]
        %v1613 = vld [vmem:[#allocation6 + $0x48] sm:$0xff]
        %v1614 = vld [vmem:[#allocation6 + $0x50] sm:$0xff]
        %v1615 = vld [vmem:[#allocation6 + $0x58] sm:$0xff]
        %v1616 = vld [vmem:[#allocation6 + $0x60] sm:$0xff]
        %v1617 = vld [vmem:[#allocation6 + $0x68] sm:$0xff]
        %v1618 = vld [vmem:[#allocation6 + $0x70] sm:$0xff]
        %v1619 = vld [vmem:[#allocation6 + $0x78] sm:$0xff]
        %v1620 = vld [vmem:[#allocation2 + $0x40] sm:$0xff]
        %v1621 = vld [vmem:[#allocation2 + $0x48] sm:$0xff]
        %v1622 = vld [vmem:[#allocation2 + $0x50] sm:$0xff]
        %v1623 = vld [vmem:[#allocation2 + $0x58] sm:$0xff]
        %v1624 = vld [vmem:[#allocation2 + $0x60] sm:$0xff]
        %v1625 = vld [vmem:[#allocation2 + $0x68] sm:$0xff]
        %v1626 = vld [vmem:[#allocation2 + $0x70] sm:$0xff]
        %v1627 = vld [vmem:[#allocation2 + $0x78] sm:$0xff]
        %s1628 = scalar_lea.vmem [#allocation3], 64
        %v1629 = vld [vmem:[%s1628] sm:$0xff]
        %v1630 = vld [vmem:[%s1628 + $0x8] sm:$0xff]
        %v1631 = vld [vmem:[%s1628 + $0x10] sm:$0xff]
        %v1632 = vld [vmem:[%s1628 + $0x18] sm:$0xff]
        %v1633 = vld [vmem:[%s1628 + $0x20] sm:$0xff]
        %v1634 = vld [vmem:[%s1628 + $0x28] sm:$0xff]
        %v1635 = vld [vmem:[%s1628 + $0x30] sm:$0xff]
        %v1636 = vld [vmem:[%s1628 + $0x38] sm:$0xff]
        %s1637 = scalar_lea.vmem %s3, 64
        %v1638 = vld [vmem:[%s1637] sm:$0xff]
        %v1639 = vld [vmem:[%s1637 + $0x8] sm:$0xff]
        %v1640 = vld [vmem:[%s1637 + $0x10] sm:$0xff]
        %v1641 = vld [vmem:[%s1637 + $0x18] sm:$0xff]
        %v1642 = vld [vmem:[%s1637 + $0x20] sm:$0xff]
        %v1643 = vld [vmem:[%s1637 + $0x28] sm:$0xff]
        %v1644 = vld [vmem:[%s1637 + $0x30] sm:$0xff]
        %v1645 = vld [vmem:[%s1637 + $0x38] sm:$0xff]
        %1647 = vset.pattern.permute.xlu0 0
        %1648 = vperm.xlu0 %1647, %v1638
        %v1649 = vpop.permute.xlu0 %1648
        %1652 = vset.pattern.permute.xlu0 0
        %1653 = vperm.xlu0 %1652, %v1639
        %v1654 = vpop.permute.xlu0 %1653
        %1657 = vset.pattern.permute.xlu0 0
        %1658 = vperm.xlu0 %1657, %v1640
        %v1659 = vpop.permute.xlu0 %1658
        %1662 = vset.pattern.permute.xlu0 0
        %1663 = vperm.xlu0 %1662, %v1641
        %v1664 = vpop.permute.xlu0 %1663
        %1667 = vset.pattern.permute.xlu0 0
        %1668 = vperm.xlu0 %1667, %v1642
        %v1669 = vpop.permute.xlu0 %1668
        %1672 = vset.pattern.permute.xlu0 0
        %1673 = vperm.xlu0 %1672, %v1643
        %v1674 = vpop.permute.xlu0 %1673
        %1677 = vset.pattern.permute.xlu0 0
        %1678 = vperm.xlu0 %1677, %v1644
        %v1679 = vpop.permute.xlu0 %1678
        %1682 = vset.pattern.permute.xlu0 0
        %1683 = vperm.xlu0 %1682, %v1645
        %v1684 = vpop.permute.xlu0 %1683
        %v1687 = vsel %vm1298, %v1620, 0
        %v1690 = vsel %vm1298, %v1621, 0
        %v1693 = vsel %vm1298, %v1622, 0
        %v1696 = vsel %vm1298, %v1623, 0
        %v1699 = vsel %vm1298, %v1624, 0
        %v1702 = vsel %vm1298, %v1625, 0
        %v1705 = vsel %vm1298, %v1626, 0
        %v1708 = vsel %vm1298, %v1627, 0
        %1710 = vmatpush.msra.mxu0 0.0
        %1711 = vmatpush.msra.mxu0 0.0
        %1712 = vmatpush.msra.mxu0 0.0
        %1713 = vmatpush.msra.mxu0 0.0
        %1714 = vmatpush.msra.mxu0 0.0
        %1715 = vmatpush.msra.mxu0 0.0
        %1716 = vmatpush.msra.mxu0 0.0
        %1717 = vmatpush.msra.mxu0 0.0
        %1718 = vmatpush.msra.mxu0 %v1636
        %1719 = vmatpush.msra.mxu0 %v1635
        %1720 = vmatpush.msra.mxu0 %v1634
        %1721 = vmatpush.msra.mxu0 %v1633
        %1722 = vmatpush.msra.mxu0 %v1632
        %1723 = vmatpush.msra.mxu0 %v1631
        %1724 = vmatpush.msra.mxu0 %v1630
        %1725 = vmatpush.msra.mxu0 %v1629
        %1726 = vmatmul.f32.gmra.mxu0 %v1687
        %v1727 = vpop.f32.mrf.mxu0
        %v1728 = vadd.f32 %v1649, %v1727
        %1729 = vmatmul.f32.gmra.mxu0 %v1690
        %v1730 = vpop.f32.mrf.mxu0
        %v1731 = vadd.f32 %v1654, %v1730
        %1732 = vmatmul.f32.gmra.mxu0 %v1693
        %v1733 = vpop.f32.mrf.mxu0
        %v1734 = vadd.f32 %v1659, %v1733
        %1735 = vmatmul.f32.gmra.mxu0 %v1696
        %v1736 = vpop.f32.mrf.mxu0
        %v1737 = vadd.f32 %v1664, %v1736
        %1738 = vmatmul.f32.gmra.mxu0 %v1699
        %v1739 = vpop.f32.mrf.mxu0
        %v1740 = vadd.f32 %v1669, %v1739
        %1741 = vmatmul.f32.gmra.mxu0 %v1702
        %v1742 = vpop.f32.mrf.mxu0
        %v1743 = vadd.f32 %v1674, %v1742
        %1744 = vmatmul.f32.gmra.mxu0 %v1705
        %v1745 = vpop.f32.mrf.mxu0
        %v1746 = vadd.f32 %v1679, %v1745
        %1747 = vmatmul.f32.gmra.mxu0 %v1708
        %v1748 = vpop.f32.mrf.mxu0
        %v1749 = vadd.f32 %v1684, %v1748
        %1750 = vdwg.mxu0
        %vm1751 = vcmp.gt.f32.partialorder %v1728, 0.0
        %vm1752 = vcmp.gt.f32.partialorder %v1731, 0.0
        %vm1753 = vcmp.gt.f32.partialorder %v1734, 0.0
        %vm1754 = vcmp.gt.f32.partialorder %v1737, 0.0
        %vm1755 = vcmp.gt.f32.partialorder %v1740, 0.0
        %vm1756 = vcmp.gt.f32.partialorder %v1743, 0.0
        %vm1757 = vcmp.gt.f32.partialorder %v1746, 0.0
        %vm1758 = vcmp.gt.f32.partialorder %v1749, 0.0
        %v1759 = vmin.f32 %v1728, 0.0
        %v1760 = vmin.f32 %v1731, 0.0
        %v1761 = vmin.f32 %v1734, 0.0
        %v1762 = vmin.f32 %v1737, 0.0
        %v1763 = vmin.f32 %v1740, 0.0
        %v1764 = vmin.f32 %v1743, 0.0
        %v1765 = vmin.f32 %v1746, 0.0
        %v1766 = vmin.f32 %v1749, 0.0
        %v1767 = vmul.f32 %v1759, 1.442695
        %v1768 = vpow.pop %v1767
        %v1769 = vmul.f32 %v1760, 1.442695
        %v1770 = vpow.pop %v1769
        %v1771 = vmul.f32 %v1761, 1.442695
        %v1772 = vpow.pop %v1771
        %v1773 = vmul.f32 %v1762, 1.442695
        %v1774 = vpow.pop %v1773
        %v1775 = vmul.f32 %v1763, 1.442695
        %v1776 = vpow.pop %v1775
        %v1777 = vmul.f32 %v1764, 1.442695
        %v1778 = vpow.pop %v1777
        %v1779 = vmul.f32 %v1765, 1.442695
        %v1780 = vpow.pop %v1779
        %v1781 = vmul.f32 %v1766, 1.442695
        %v1782 = vpow.pop %v1781
        %v1783 = vsub.f32 %v1768, 1.0
        %v1784 = vsub.f32 %v1770, 1.0
        %v1785 = vsub.f32 %v1772, 1.0
        %v1786 = vsub.f32 %v1774, 1.0
        %v1787 = vsub.f32 %v1776, 1.0
        %v1788 = vsub.f32 %v1778, 1.0
        %v1789 = vsub.f32 %v1780, 1.0
        %v1790 = vsub.f32 %v1782, 1.0
        %v1791 = vsel %vm1751, %v1728, %v1783
        %v1792 = vsel %vm1752, %v1731, %v1784
        %v1793 = vsel %vm1753, %v1734, %v1785
        %v1794 = vsel %vm1754, %v1737, %v1786
        %v1795 = vsel %vm1755, %v1740, %v1787
        %v1796 = vsel %vm1756, %v1743, %v1788
        %v1797 = vsel %vm1757, %v1746, %v1789
        %v1798 = vsel %vm1758, %v1749, %v1790
        %s1799 = scalar_lea.vmem [#allocation6], 128
        %v1800 = vld [vmem:[%s1799] sm:$0xff]
        %v1801 = vld [vmem:[%s1799 + $0x8] sm:$0xff]
        %v1802 = vld [vmem:[%s1799 + $0x10] sm:$0xff]
        %v1803 = vld [vmem:[%s1799 + $0x18] sm:$0xff]
        %v1804 = vld [vmem:[%s1799 + $0x20] sm:$0xff]
        %v1805 = vld [vmem:[%s1799 + $0x28] sm:$0xff]
        %v1806 = vld [vmem:[%s1799 + $0x30] sm:$0xff]
        %v1807 = vld [vmem:[%s1799 + $0x38] sm:$0xff]
        %v1808 = vld [vmem:[%s1799 + $0x40] sm:$0xff]
        %v1809 = vld [vmem:[%s1799 + $0x48] sm:$0xff]
        %v1810 = vld [vmem:[%s1799 + $0x50] sm:$0xff]
        %v1811 = vld [vmem:[%s1799 + $0x58] sm:$0xff]
        %v1812 = vld [vmem:[%s1799 + $0x60] sm:$0xff]
        %v1813 = vld [vmem:[%s1799 + $0x68] sm:$0xff]
        %v1814 = vld [vmem:[%s1799 + $0x70] sm:$0xff]
        %v1815 = vld [vmem:[%s1799 + $0x78] sm:$0xff]
        %v1817 = vsel %vm1298, %v1791, 0
        %v1820 = vsel %vm1298, %v1792, 0
        %v1823 = vsel %vm1298, %v1793, 0
        %v1826 = vsel %vm1298, %v1794, 0
        %v1829 = vsel %vm1298, %v1795, 0
        %v1832 = vsel %vm1298, %v1796, 0
        %v1835 = vsel %vm1298, %v1797, 0
        %v1838 = vsel %vm1298, %v1798, 0
        %1840 = vmatpush.msra.mxu0 0.0
        %1841 = vmatpush.msra.mxu0 0.0
        %1842 = vmatpush.msra.mxu0 0.0
        %1843 = vmatpush.msra.mxu0 0.0
        %1844 = vmatpush.msra.mxu0 0.0
        %1845 = vmatpush.msra.mxu0 0.0
        %1846 = vmatpush.msra.mxu0 0.0
        %1847 = vmatpush.msra.mxu0 0.0
        %1848 = vmatpush.msra.mxu0 %v1814
        %1849 = vmatpush.msra.mxu0 %v1812
        %1850 = vmatpush.msra.mxu0 %v1810
        %1851 = vmatpush.msra.mxu0 %v1808
        %1852 = vmatpush.msra.mxu0 %v1806
        %1853 = vmatpush.msra.mxu0 %v1804
        %1854 = vmatpush.msra.mxu0 %v1802
        %1855 = vmatpush.msra.mxu0 %v1800
        %1856 = vmatmul.f32.gmra.mxu0 %v1817
        %v1857 = vpop.f32.mrf.mxu0
        %v1858 = vadd.f32 0.0, %v1857
        %1859 = vmatmul.f32.gmra.mxu0 %v1820
        %v1860 = vpop.f32.mrf.mxu0
        %v1861 = vadd.f32 0.0, %v1860
        %1862 = vmatmul.f32.gmra.mxu0 %v1823
        %v1863 = vpop.f32.mrf.mxu0
        %v1864 = vadd.f32 0.0, %v1863
        %1865 = vmatmul.f32.gmra.mxu0 %v1826
        %v1866 = vpop.f32.mrf.mxu0
        %v1867 = vadd.f32 0.0, %v1866
        %1868 = vmatmul.f32.gmra.mxu0 %v1829
        %v1869 = vpop.f32.mrf.mxu0
        %v1870 = vadd.f32 0.0, %v1869
        %1871 = vmatmul.f32.gmra.mxu0 %v1832
        %v1872 = vpop.f32.mrf.mxu0
        %v1873 = vadd.f32 0.0, %v1872
        %1874 = vmatmul.f32.gmra.mxu0 %v1835
        %v1875 = vpop.f32.mrf.mxu0
        %v1876 = vadd.f32 0.0, %v1875
        %1877 = vmatmul.f32.gmra.mxu0 %v1838
        %v1878 = vpop.f32.mrf.mxu0
        %v1879 = vadd.f32 0.0, %v1878
        %1880 = vdwg.mxu0
        %1881 = vmatpush.msra.mxu0 0.0
        %1882 = vmatpush.msra.mxu0 0.0
        %1883 = vmatpush.msra.mxu0 0.0
        %1884 = vmatpush.msra.mxu0 0.0
        %1885 = vmatpush.msra.mxu0 0.0
        %1886 = vmatpush.msra.mxu0 0.0
        %1887 = vmatpush.msra.mxu0 0.0
        %1888 = vmatpush.msra.mxu0 0.0
        %1889 = vmatpush.msra.mxu0 %v1815
        %1890 = vmatpush.msra.mxu0 %v1813
        %1891 = vmatpush.msra.mxu0 %v1811
        %1892 = vmatpush.msra.mxu0 %v1809
        %1893 = vmatpush.msra.mxu0 %v1807
        %1894 = vmatpush.msra.mxu0 %v1805
        %1895 = vmatpush.msra.mxu0 %v1803
        %1896 = vmatpush.msra.mxu0 %v1801
        %1897 = vmatmul.f32.gmra.mxu0 %v1817
        %v1898 = vpop.f32.mrf.mxu0
        %v1899 = vadd.f32 0.0, %v1898
        %1900 = vmatmul.f32.gmra.mxu0 %v1820
        %v1901 = vpop.f32.mrf.mxu0
        %v1902 = vadd.f32 0.0, %v1901
        %1903 = vmatmul.f32.gmra.mxu0 %v1823
        %v1904 = vpop.f32.mrf.mxu0
        %v1905 = vadd.f32 0.0, %v1904
        %1906 = vmatmul.f32.gmra.mxu0 %v1826
        %v1907 = vpop.f32.mrf.mxu0
        %v1908 = vadd.f32 0.0, %v1907
        %1909 = vmatmul.f32.gmra.mxu0 %v1829
        %v1910 = vpop.f32.mrf.mxu0
        %v1911 = vadd.f32 0.0, %v1910
        %1912 = vmatmul.f32.gmra.mxu0 %v1832
        %v1913 = vpop.f32.mrf.mxu0
        %v1914 = vadd.f32 0.0, %v1913
        %1915 = vmatmul.f32.gmra.mxu0 %v1835
        %v1916 = vpop.f32.mrf.mxu0
        %v1917 = vadd.f32 0.0, %v1916
        %1918 = vmatmul.f32.gmra.mxu0 %v1838
        %v1919 = vpop.f32.mrf.mxu0
        %v1920 = vadd.f32 0.0, %v1919
        %1921 = vdwg.mxu0
        %v1923 = vsel %vm1298, %v1596, 0
        %v1926 = vsel %vm1298, %v1597, 0
        %v1929 = vsel %vm1298, %v1598, 0
        %v1932 = vsel %vm1298, %v1599, 0
        %v1935 = vsel %vm1298, %v1600, 0
        %v1938 = vsel %vm1298, %v1601, 0
        %v1941 = vsel %vm1298, %v1602, 0
        %v1944 = vsel %vm1298, %v1603, 0
        %1946 = vmatpush.msra.mxu0 0.0
        %1947 = vmatpush.msra.mxu0 0.0
        %1948 = vmatpush.msra.mxu0 0.0
        %1949 = vmatpush.msra.mxu0 0.0
        %1950 = vmatpush.msra.mxu0 0.0
        %1951 = vmatpush.msra.mxu0 0.0
        %1952 = vmatpush.msra.mxu0 0.0
        %1953 = vmatpush.msra.mxu0 0.0
        %1954 = vmatpush.msra.mxu0 %v1618
        %1955 = vmatpush.msra.mxu0 %v1616
        %1956 = vmatpush.msra.mxu0 %v1614
        %1957 = vmatpush.msra.mxu0 %v1612
        %1958 = vmatpush.msra.mxu0 %v1610
        %1959 = vmatpush.msra.mxu0 %v1608
        %1960 = vmatpush.msra.mxu0 %v1606
        %1961 = vmatpush.msra.mxu0 %v1604
        %1962 = vmatmul.f32.gmra.mxu0 %v1923
        %v1963 = vpop.f32.mrf.mxu0
        %v1964 = vadd.f32 %v1858, %v1963
        %1965 = vmatmul.f32.gmra.mxu0 %v1926
        %v1966 = vpop.f32.mrf.mxu0
        %v1967 = vadd.f32 %v1861, %v1966
        %1968 = vmatmul.f32.gmra.mxu0 %v1929
        %v1969 = vpop.f32.mrf.mxu0
        %v1970 = vadd.f32 %v1864, %v1969
        %1971 = vmatmul.f32.gmra.mxu0 %v1932
        %v1972 = vpop.f32.mrf.mxu0
        %v1973 = vadd.f32 %v1867, %v1972
        %1974 = vmatmul.f32.gmra.mxu0 %v1935
        %v1975 = vpop.f32.mrf.mxu0
        %v1976 = vadd.f32 %v1870, %v1975
        %1977 = vmatmul.f32.gmra.mxu0 %v1938
        %v1978 = vpop.f32.mrf.mxu0
        %v1979 = vadd.f32 %v1873, %v1978
        %1980 = vmatmul.f32.gmra.mxu0 %v1941
        %v1981 = vpop.f32.mrf.mxu0
        %v1982 = vadd.f32 %v1876, %v1981
        %1983 = vmatmul.f32.gmra.mxu0 %v1944
        %v1984 = vpop.f32.mrf.mxu0
        %v1985 = vadd.f32 %v1879, %v1984
        %1986 = vdwg.mxu0
        %1987 = vmatpush.msra.mxu0 0.0
        %1988 = vmatpush.msra.mxu0 0.0
        %1989 = vmatpush.msra.mxu0 0.0
        %1990 = vmatpush.msra.mxu0 0.0
        %1991 = vmatpush.msra.mxu0 0.0
        %1992 = vmatpush.msra.mxu0 0.0
        %1993 = vmatpush.msra.mxu0 0.0
        %1994 = vmatpush.msra.mxu0 0.0
        %1995 = vmatpush.msra.mxu0 %v1619
        %1996 = vmatpush.msra.mxu0 %v1617
        %1997 = vmatpush.msra.mxu0 %v1615
        %1998 = vmatpush.msra.mxu0 %v1613
        %1999 = vmatpush.msra.mxu0 %v1611
        %2000 = vmatpush.msra.mxu0 %v1609
        %2001 = vmatpush.msra.mxu0 %v1607
        %2002 = vmatpush.msra.mxu0 %v1605
        %2003 = vmatmul.f32.gmra.mxu0 %v1923
        %v2004 = vpop.f32.mrf.mxu0
        %v2005 = vadd.f32 %v1899, %v2004
        %2006 = vmatmul.f32.gmra.mxu0 %v1926
        %v2007 = vpop.f32.mrf.mxu0
        %v2008 = vadd.f32 %v1902, %v2007
        %2009 = vmatmul.f32.gmra.mxu0 %v1929
        %v2010 = vpop.f32.mrf.mxu0
        %v2011 = vadd.f32 %v1905, %v2010
        %2012 = vmatmul.f32.gmra.mxu0 %v1932
        %v2013 = vpop.f32.mrf.mxu0
        %v2014 = vadd.f32 %v1908, %v2013
        %2015 = vmatmul.f32.gmra.mxu0 %v1935
        %v2016 = vpop.f32.mrf.mxu0
        %v2017 = vadd.f32 %v1911, %v2016
        %2018 = vmatmul.f32.gmra.mxu0 %v1938
        %v2019 = vpop.f32.mrf.mxu0
        %v2020 = vadd.f32 %v1914, %v2019
        %2021 = vmatmul.f32.gmra.mxu0 %v1941
        %v2022 = vpop.f32.mrf.mxu0
        %v2023 = vadd.f32 %v1917, %v2022
        %2024 = vmatmul.f32.gmra.mxu0 %v1944
        %v2025 = vpop.f32.mrf.mxu0
        %v2026 = vadd.f32 %v1920, %v2025
        %2027 = vdwg.mxu0
        %v2028 = vld [vmem:[#allocation2 + $0x80] sm:$0xff]
        %v2029 = vld [vmem:[#allocation2 + $0x88] sm:$0xff]
        %v2030 = vld [vmem:[#allocation2 + $0x90] sm:$0xff]
        %v2031 = vld [vmem:[#allocation2 + $0x98] sm:$0xff]
        %v2032 = vld [vmem:[#allocation2 + $0xa0] sm:$0xff]
        %v2033 = vld [vmem:[#allocation2 + $0xa8] sm:$0xff]
        %v2034 = vld [vmem:[#allocation2 + $0xb0] sm:$0xff]
        %v2035 = vld [vmem:[#allocation2 + $0xb8] sm:$0xff]
        %s2036 = scalar_lea.vmem [#allocation3], 128
        %v2037 = vld [vmem:[%s2036] sm:$0xff]
        %v2038 = vld [vmem:[%s2036 + $0x8] sm:$0xff]
        %v2039 = vld [vmem:[%s2036 + $0x10] sm:$0xff]
        %v2040 = vld [vmem:[%s2036 + $0x18] sm:$0xff]
        %v2041 = vld [vmem:[%s2036 + $0x20] sm:$0xff]
        %v2042 = vld [vmem:[%s2036 + $0x28] sm:$0xff]
        %v2043 = vld [vmem:[%s2036 + $0x30] sm:$0xff]
        %v2044 = vld [vmem:[%s2036 + $0x38] sm:$0xff]
        %s2045 = scalar_lea.vmem %s3, 128
        %v2046 = vld [vmem:[%s2045] sm:$0xff]
        %v2047 = vld [vmem:[%s2045 + $0x8] sm:$0xff]
        %v2048 = vld [vmem:[%s2045 + $0x10] sm:$0xff]
        %v2049 = vld [vmem:[%s2045 + $0x18] sm:$0xff]
        %v2050 = vld [vmem:[%s2045 + $0x20] sm:$0xff]
        %v2051 = vld [vmem:[%s2045 + $0x28] sm:$0xff]
        %v2052 = vld [vmem:[%s2045 + $0x30] sm:$0xff]
        %v2053 = vld [vmem:[%s2045 + $0x38] sm:$0xff]
        %2055 = vset.pattern.permute.xlu0 0
        %2056 = vperm.xlu0 %2055, %v2046
        %v2057 = vpop.permute.xlu0 %2056
        %2060 = vset.pattern.permute.xlu0 0
        %2061 = vperm.xlu0 %2060, %v2047
        %v2062 = vpop.permute.xlu0 %2061
        %2065 = vset.pattern.permute.xlu0 0
        %2066 = vperm.xlu0 %2065, %v2048
        %v2067 = vpop.permute.xlu0 %2066
        %2070 = vset.pattern.permute.xlu0 0
        %2071 = vperm.xlu0 %2070, %v2049
        %v2072 = vpop.permute.xlu0 %2071
        %2075 = vset.pattern.permute.xlu0 0
        %2076 = vperm.xlu0 %2075, %v2050
        %v2077 = vpop.permute.xlu0 %2076
        %2080 = vset.pattern.permute.xlu0 0
        %2081 = vperm.xlu0 %2080, %v2051
        %v2082 = vpop.permute.xlu0 %2081
        %2085 = vset.pattern.permute.xlu0 0
        %2086 = vperm.xlu0 %2085, %v2052
        %v2087 = vpop.permute.xlu0 %2086
        %2090 = vset.pattern.permute.xlu0 0
        %2091 = vperm.xlu0 %2090, %v2053
        %v2092 = vpop.permute.xlu0 %2091
        %v2095 = vsel %vm1298, %v2028, 0
        %v2098 = vsel %vm1298, %v2029, 0
        %v2101 = vsel %vm1298, %v2030, 0
        %v2104 = vsel %vm1298, %v2031, 0
        %v2107 = vsel %vm1298, %v2032, 0
        %v2110 = vsel %vm1298, %v2033, 0
        %v2113 = vsel %vm1298, %v2034, 0
        %v2116 = vsel %vm1298, %v2035, 0
        %2118 = vmatpush.msra.mxu0 0.0
        %2119 = vmatpush.msra.mxu0 0.0
        %2120 = vmatpush.msra.mxu0 0.0
        %2121 = vmatpush.msra.mxu0 0.0
        %2122 = vmatpush.msra.mxu0 0.0
        %2123 = vmatpush.msra.mxu0 0.0
        %2124 = vmatpush.msra.mxu0 0.0
        %2125 = vmatpush.msra.mxu0 0.0
        %2126 = vmatpush.msra.mxu0 %v2044
        %2127 = vmatpush.msra.mxu0 %v2043
        %2128 = vmatpush.msra.mxu0 %v2042
        %2129 = vmatpush.msra.mxu0 %v2041
        %2130 = vmatpush.msra.mxu0 %v2040
        %2131 = vmatpush.msra.mxu0 %v2039
        %2132 = vmatpush.msra.mxu0 %v2038
        %2133 = vmatpush.msra.mxu0 %v2037
        %2134 = vmatmul.f32.gmra.mxu0 %v2095
        %v2135 = vpop.f32.mrf.mxu0
        %v2136 = vadd.f32 %v2057, %v2135
        %2137 = vmatmul.f32.gmra.mxu0 %v2098
        %v2138 = vpop.f32.mrf.mxu0
        %v2139 = vadd.f32 %v2062, %v2138
        %2140 = vmatmul.f32.gmra.mxu0 %v2101
        %v2141 = vpop.f32.mrf.mxu0
        %v2142 = vadd.f32 %v2067, %v2141
        %2143 = vmatmul.f32.gmra.mxu0 %v2104
        %v2144 = vpop.f32.mrf.mxu0
        %v2145 = vadd.f32 %v2072, %v2144
        %2146 = vmatmul.f32.gmra.mxu0 %v2107
        %v2147 = vpop.f32.mrf.mxu0
        %v2148 = vadd.f32 %v2077, %v2147
        %2149 = vmatmul.f32.gmra.mxu0 %v2110
        %v2150 = vpop.f32.mrf.mxu0
        %v2151 = vadd.f32 %v2082, %v2150
        %2152 = vmatmul.f32.gmra.mxu0 %v2113
        %v2153 = vpop.f32.mrf.mxu0
        %v2154 = vadd.f32 %v2087, %v2153
        %2155 = vmatmul.f32.gmra.mxu0 %v2116
        %v2156 = vpop.f32.mrf.mxu0
        %v2157 = vadd.f32 %v2092, %v2156
        %2158 = vdwg.mxu0
        %vm2159 = vcmp.gt.f32.partialorder %v2136, 0.0
        %vm2160 = vcmp.gt.f32.partialorder %v2139, 0.0
        %vm2161 = vcmp.gt.f32.partialorder %v2142, 0.0
        %vm2162 = vcmp.gt.f32.partialorder %v2145, 0.0
        %vm2163 = vcmp.gt.f32.partialorder %v2148, 0.0
        %vm2164 = vcmp.gt.f32.partialorder %v2151, 0.0
        %vm2165 = vcmp.gt.f32.partialorder %v2154, 0.0
        %vm2166 = vcmp.gt.f32.partialorder %v2157, 0.0
        %v2167 = vmin.f32 %v2136, 0.0
        %v2168 = vmin.f32 %v2139, 0.0
        %v2169 = vmin.f32 %v2142, 0.0
        %v2170 = vmin.f32 %v2145, 0.0
        %v2171 = vmin.f32 %v2148, 0.0
        %v2172 = vmin.f32 %v2151, 0.0
        %v2173 = vmin.f32 %v2154, 0.0
        %v2174 = vmin.f32 %v2157, 0.0
        %v2175 = vmul.f32 %v2167, 1.442695
        %v2176 = vpow.pop %v2175
        %v2177 = vmul.f32 %v2168, 1.442695
        %v2178 = vpow.pop %v2177
        %v2179 = vmul.f32 %v2169, 1.442695
        %v2180 = vpow.pop %v2179
        %v2181 = vmul.f32 %v2170, 1.442695
        %v2182 = vpow.pop %v2181
        %v2183 = vmul.f32 %v2171, 1.442695
        %v2184 = vpow.pop %v2183
        %v2185 = vmul.f32 %v2172, 1.442695
        %v2186 = vpow.pop %v2185
        %v2187 = vmul.f32 %v2173, 1.442695
        %v2188 = vpow.pop %v2187
        %v2189 = vmul.f32 %v2174, 1.442695
        %v2190 = vpow.pop %v2189
        %v2191 = vsub.f32 %v2176, 1.0
        %v2192 = vsub.f32 %v2178, 1.0
        %v2193 = vsub.f32 %v2180, 1.0
        %v2194 = vsub.f32 %v2182, 1.0
        %v2195 = vsub.f32 %v2184, 1.0
        %v2196 = vsub.f32 %v2186, 1.0
        %v2197 = vsub.f32 %v2188, 1.0
        %v2198 = vsub.f32 %v2190, 1.0
        %v2199 = vsel %vm2159, %v2136, %v2191
        %v2200 = vsel %vm2160, %v2139, %v2192
        %v2201 = vsel %vm2161, %v2142, %v2193
        %v2202 = vsel %vm2162, %v2145, %v2194
        %v2203 = vsel %vm2163, %v2148, %v2195
        %v2204 = vsel %vm2164, %v2151, %v2196
        %v2205 = vsel %vm2165, %v2154, %v2197
        %v2206 = vsel %vm2166, %v2157, %v2198
        %s2207 = scalar_lea.vmem [#allocation6], 256
        %v2208 = vld [vmem:[%s2207] sm:$0xff]
        %v2209 = vld [vmem:[%s2207 + $0x8] sm:$0xff]
        %v2210 = vld [vmem:[%s2207 + $0x10] sm:$0xff]
        %v2211 = vld [vmem:[%s2207 + $0x18] sm:$0xff]
        %v2212 = vld [vmem:[%s2207 + $0x20] sm:$0xff]
        %v2213 = vld [vmem:[%s2207 + $0x28] sm:$0xff]
        %v2214 = vld [vmem:[%s2207 + $0x30] sm:$0xff]
        %v2215 = vld [vmem:[%s2207 + $0x38] sm:$0xff]
        %v2216 = vld [vmem:[%s2207 + $0x40] sm:$0xff]
        %v2217 = vld [vmem:[%s2207 + $0x48] sm:$0xff]
        %v2218 = vld [vmem:[%s2207 + $0x50] sm:$0xff]
        %v2219 = vld [vmem:[%s2207 + $0x58] sm:$0xff]
        %v2220 = vld [vmem:[%s2207 + $0x60] sm:$0xff]
        %v2221 = vld [vmem:[%s2207 + $0x68] sm:$0xff]
        %v2222 = vld [vmem:[%s2207 + $0x70] sm:$0xff]
        %v2223 = vld [vmem:[%s2207 + $0x78] sm:$0xff]
        %v2225 = vsel %vm1298, %v2199, 0
        %v2228 = vsel %vm1298, %v2200, 0
        %v2231 = vsel %vm1298, %v2201, 0
        %v2234 = vsel %vm1298, %v2202, 0
        %v2237 = vsel %vm1298, %v2203, 0
        %v2240 = vsel %vm1298, %v2204, 0
        %v2243 = vsel %vm1298, %v2205, 0
        %v2246 = vsel %vm1298, %v2206, 0
        %2248 = vmatpush.msra.mxu0 0.0
        %2249 = vmatpush.msra.mxu0 0.0
        %2250 = vmatpush.msra.mxu0 0.0
        %2251 = vmatpush.msra.mxu0 0.0
        %2252 = vmatpush.msra.mxu0 0.0
        %2253 = vmatpush.msra.mxu0 0.0
        %2254 = vmatpush.msra.mxu0 0.0
        %2255 = vmatpush.msra.mxu0 0.0
        %2256 = vmatpush.msra.mxu0 %v2222
        %2257 = vmatpush.msra.mxu0 %v2220
        %2258 = vmatpush.msra.mxu0 %v2218
        %2259 = vmatpush.msra.mxu0 %v2216
        %2260 = vmatpush.msra.mxu0 %v2214
        %2261 = vmatpush.msra.mxu0 %v2212
        %2262 = vmatpush.msra.mxu0 %v2210
        %2263 = vmatpush.msra.mxu0 %v2208
        %2264 = vmatmul.f32.gmra.mxu0 %v2225
        %v2265 = vpop.f32.mrf.mxu0
        %v2266 = vadd.f32 0.0, %v2265
        %2267 = vmatmul.f32.gmra.mxu0 %v2228
        %v2268 = vpop.f32.mrf.mxu0
        %v2269 = vadd.f32 0.0, %v2268
        %2270 = vmatmul.f32.gmra.mxu0 %v2231
        %v2271 = vpop.f32.mrf.mxu0
        %v2272 = vadd.f32 0.0, %v2271
        %2273 = vmatmul.f32.gmra.mxu0 %v2234
        %v2274 = vpop.f32.mrf.mxu0
        %v2275 = vadd.f32 0.0, %v2274
        %2276 = vmatmul.f32.gmra.mxu0 %v2237
        %v2277 = vpop.f32.mrf.mxu0
        %v2278 = vadd.f32 0.0, %v2277
        %2279 = vmatmul.f32.gmra.mxu0 %v2240
        %v2280 = vpop.f32.mrf.mxu0
        %v2281 = vadd.f32 0.0, %v2280
        %2282 = vmatmul.f32.gmra.mxu0 %v2243
        %v2283 = vpop.f32.mrf.mxu0
        %v2284 = vadd.f32 0.0, %v2283
        %2285 = vmatmul.f32.gmra.mxu0 %v2246
        %v2286 = vpop.f32.mrf.mxu0
        %v2287 = vadd.f32 0.0, %v2286
        %2288 = vdwg.mxu0
        %2289 = vmatpush.msra.mxu0 0.0
        %2290 = vmatpush.msra.mxu0 0.0
        %2291 = vmatpush.msra.mxu0 0.0
        %2292 = vmatpush.msra.mxu0 0.0
        %2293 = vmatpush.msra.mxu0 0.0
        %2294 = vmatpush.msra.mxu0 0.0
        %2295 = vmatpush.msra.mxu0 0.0
        %2296 = vmatpush.msra.mxu0 0.0
        %2297 = vmatpush.msra.mxu0 %v2223
        %2298 = vmatpush.msra.mxu0 %v2221
        %2299 = vmatpush.msra.mxu0 %v2219
        %2300 = vmatpush.msra.mxu0 %v2217
        %2301 = vmatpush.msra.mxu0 %v2215
        %2302 = vmatpush.msra.mxu0 %v2213
        %2303 = vmatpush.msra.mxu0 %v2211
        %2304 = vmatpush.msra.mxu0 %v2209
        %2305 = vmatmul.f32.gmra.mxu0 %v2225
        %v2306 = vpop.f32.mrf.mxu0
        %v2307 = vadd.f32 0.0, %v2306
        %2308 = vmatmul.f32.gmra.mxu0 %v2228
        %v2309 = vpop.f32.mrf.mxu0
        %v2310 = vadd.f32 0.0, %v2309
        %2311 = vmatmul.f32.gmra.mxu0 %v2231
        %v2312 = vpop.f32.mrf.mxu0
        %v2313 = vadd.f32 0.0, %v2312
        %2314 = vmatmul.f32.gmra.mxu0 %v2234
        %v2315 = vpop.f32.mrf.mxu0
        %v2316 = vadd.f32 0.0, %v2315
        %2317 = vmatmul.f32.gmra.mxu0 %v2237
        %v2318 = vpop.f32.mrf.mxu0
        %v2319 = vadd.f32 0.0, %v2318
        %2320 = vmatmul.f32.gmra.mxu0 %v2240
        %v2321 = vpop.f32.mrf.mxu0
        %v2322 = vadd.f32 0.0, %v2321
        %2323 = vmatmul.f32.gmra.mxu0 %v2243
        %v2324 = vpop.f32.mrf.mxu0
        %v2325 = vadd.f32 0.0, %v2324
        %2326 = vmatmul.f32.gmra.mxu0 %v2246
        %v2327 = vpop.f32.mrf.mxu0
        %v2328 = vadd.f32 0.0, %v2327
        %2329 = vdwg.mxu0
        %v2330 = vadd.f32 %v1964, %v2266
        %v2331 = vadd.f32 %v2005, %v2307
        %v2332 = vadd.f32 %v1967, %v2269
        %v2333 = vadd.f32 %v2008, %v2310
        %v2334 = vadd.f32 %v1970, %v2272
        %v2335 = vadd.f32 %v2011, %v2313
        %v2336 = vadd.f32 %v1973, %v2275
        %v2337 = vadd.f32 %v2014, %v2316
        %v2338 = vadd.f32 %v1976, %v2278
        %v2339 = vadd.f32 %v2017, %v2319
        %v2340 = vadd.f32 %v1979, %v2281
        %v2341 = vadd.f32 %v2020, %v2322
        %v2342 = vadd.f32 %v1982, %v2284
        %v2343 = vadd.f32 %v2023, %v2325
        %v2344 = vadd.f32 %v1985, %v2287
        %v2345 = vadd.f32 %v2026, %v2328
        %v2346 = vld [vmem:[#allocation2 + $0xc0] sm:$0xff]
        %v2347 = vld [vmem:[#allocation2 + $0xc8] sm:$0xff]
        %v2348 = vld [vmem:[#allocation2 + $0xd0] sm:$0xff]
        %v2349 = vld [vmem:[#allocation2 + $0xd8] sm:$0xff]
        %v2350 = vld [vmem:[#allocation2 + $0xe0] sm:$0xff]
        %v2351 = vld [vmem:[#allocation2 + $0xe8] sm:$0xff]
        %v2352 = vld [vmem:[#allocation2 + $0xf0] sm:$0xff]
        %v2353 = vld [vmem:[#allocation2 + $0xf8] sm:$0xff]
        %s2354 = scalar_lea.vmem [#allocation3], 192
        %v2355 = vld [vmem:[%s2354] sm:$0xff]
        %v2356 = vld [vmem:[%s2354 + $0x8] sm:$0xff]
        %v2357 = vld [vmem:[%s2354 + $0x10] sm:$0xff]
        %v2358 = vld [vmem:[%s2354 + $0x18] sm:$0xff]
        %v2359 = vld [vmem:[%s2354 + $0x20] sm:$0xff]
        %v2360 = vld [vmem:[%s2354 + $0x28] sm:$0xff]
        %v2361 = vld [vmem:[%s2354 + $0x30] sm:$0xff]
        %v2362 = vld [vmem:[%s2354 + $0x38] sm:$0xff]
        %s2363 = scalar_lea.vmem %s3, 192
        %v2364 = vld [vmem:[%s2363] sm:$0xff]
        %v2365 = vld [vmem:[%s2363 + $0x8] sm:$0xff]
        %v2366 = vld [vmem:[%s2363 + $0x10] sm:$0xff]
        %v2367 = vld [vmem:[%s2363 + $0x18] sm:$0xff]
        %v2368 = vld [vmem:[%s2363 + $0x20] sm:$0xff]
        %v2369 = vld [vmem:[%s2363 + $0x28] sm:$0xff]
        %v2370 = vld [vmem:[%s2363 + $0x30] sm:$0xff]
        %v2371 = vld [vmem:[%s2363 + $0x38] sm:$0xff]
        %2373 = vset.pattern.permute.xlu0 0
        %2374 = vperm.xlu0 %2373, %v2364
        %v2375 = vpop.permute.xlu0 %2374
        %2378 = vset.pattern.permute.xlu0 0
        %2379 = vperm.xlu0 %2378, %v2365
        %v2380 = vpop.permute.xlu0 %2379
        %2383 = vset.pattern.permute.xlu0 0
        %2384 = vperm.xlu0 %2383, %v2366
        %v2385 = vpop.permute.xlu0 %2384
        %2388 = vset.pattern.permute.xlu0 0
        %2389 = vperm.xlu0 %2388, %v2367
        %v2390 = vpop.permute.xlu0 %2389
        %2393 = vset.pattern.permute.xlu0 0
        %2394 = vperm.xlu0 %2393, %v2368
        %v2395 = vpop.permute.xlu0 %2394
        %2398 = vset.pattern.permute.xlu0 0
        %2399 = vperm.xlu0 %2398, %v2369
        %v2400 = vpop.permute.xlu0 %2399
        %2403 = vset.pattern.permute.xlu0 0
        %2404 = vperm.xlu0 %2403, %v2370
        %v2405 = vpop.permute.xlu0 %2404
        %2408 = vset.pattern.permute.xlu0 0
        %2409 = vperm.xlu0 %2408, %v2371
        %v2410 = vpop.permute.xlu0 %2409
        %v2413 = vsel %vm1298, %v2346, 0
        %v2416 = vsel %vm1298, %v2347, 0
        %v2419 = vsel %vm1298, %v2348, 0
        %v2422 = vsel %vm1298, %v2349, 0
        %v2425 = vsel %vm1298, %v2350, 0
        %v2428 = vsel %vm1298, %v2351, 0
        %v2431 = vsel %vm1298, %v2352, 0
        %v2434 = vsel %vm1298, %v2353, 0
        %2436 = vmatpush.msra.mxu0 0.0
        %2437 = vmatpush.msra.mxu0 0.0
        %2438 = vmatpush.msra.mxu0 0.0
        %2439 = vmatpush.msra.mxu0 0.0
        %2440 = vmatpush.msra.mxu0 0.0
        %2441 = vmatpush.msra.mxu0 0.0
        %2442 = vmatpush.msra.mxu0 0.0
        %2443 = vmatpush.msra.mxu0 0.0
        %2444 = vmatpush.msra.mxu0 %v2362
        %2445 = vmatpush.msra.mxu0 %v2361
        %2446 = vmatpush.msra.mxu0 %v2360
        %2447 = vmatpush.msra.mxu0 %v2359
        %2448 = vmatpush.msra.mxu0 %v2358
        %2449 = vmatpush.msra.mxu0 %v2357
        %2450 = vmatpush.msra.mxu0 %v2356
        %2451 = vmatpush.msra.mxu0 %v2355
        %2452 = vmatmul.f32.gmra.mxu0 %v2413
        %v2453 = vpop.f32.mrf.mxu0
        %v2454 = vadd.f32 %v2375, %v2453
        %2455 = vmatmul.f32.gmra.mxu0 %v2416
        %v2456 = vpop.f32.mrf.mxu0
        %v2457 = vadd.f32 %v2380, %v2456
        %2458 = vmatmul.f32.gmra.mxu0 %v2419
        %v2459 = vpop.f32.mrf.mxu0
        %v2460 = vadd.f32 %v2385, %v2459
        %2461 = vmatmul.f32.gmra.mxu0 %v2422
        %v2462 = vpop.f32.mrf.mxu0
        %v2463 = vadd.f32 %v2390, %v2462
        %2464 = vmatmul.f32.gmra.mxu0 %v2425
        %v2465 = vpop.f32.mrf.mxu0
        %v2466 = vadd.f32 %v2395, %v2465
        %2467 = vmatmul.f32.gmra.mxu0 %v2428
        %v2468 = vpop.f32.mrf.mxu0
        %v2469 = vadd.f32 %v2400, %v2468
        %2470 = vmatmul.f32.gmra.mxu0 %v2431
        %v2471 = vpop.f32.mrf.mxu0
        %v2472 = vadd.f32 %v2405, %v2471
        %2473 = vmatmul.f32.gmra.mxu0 %v2434
        %v2474 = vpop.f32.mrf.mxu0
        %v2475 = vadd.f32 %v2410, %v2474
        %2476 = vdwg.mxu0
        %vm2477 = vcmp.gt.f32.partialorder %v2454, 0.0
        %vm2478 = vcmp.gt.f32.partialorder %v2457, 0.0
        %vm2479 = vcmp.gt.f32.partialorder %v2460, 0.0
        %vm2480 = vcmp.gt.f32.partialorder %v2463, 0.0
        %vm2481 = vcmp.gt.f32.partialorder %v2466, 0.0
        %vm2482 = vcmp.gt.f32.partialorder %v2469, 0.0
        %vm2483 = vcmp.gt.f32.partialorder %v2472, 0.0
        %vm2484 = vcmp.gt.f32.partialorder %v2475, 0.0
        %v2485 = vmin.f32 %v2454, 0.0
        %v2486 = vmin.f32 %v2457, 0.0
        %v2487 = vmin.f32 %v2460, 0.0
        %v2488 = vmin.f32 %v2463, 0.0
        %v2489 = vmin.f32 %v2466, 0.0
        %v2490 = vmin.f32 %v2469, 0.0
        %v2491 = vmin.f32 %v2472, 0.0
        %v2492 = vmin.f32 %v2475, 0.0
        %v2493 = vmul.f32 %v2485, 1.442695
        %v2494 = vpow.pop %v2493
        %v2495 = vmul.f32 %v2486, 1.442695
        %v2496 = vpow.pop %v2495
        %v2497 = vmul.f32 %v2487, 1.442695
        %v2498 = vpow.pop %v2497
        %v2499 = vmul.f32 %v2488, 1.442695
        %v2500 = vpow.pop %v2499
        %v2501 = vmul.f32 %v2489, 1.442695
        %v2502 = vpow.pop %v2501
        %v2503 = vmul.f32 %v2490, 1.442695
        %v2504 = vpow.pop %v2503
        %v2505 = vmul.f32 %v2491, 1.442695
        %v2506 = vpow.pop %v2505
        %v2507 = vmul.f32 %v2492, 1.442695
        %v2508 = vpow.pop %v2507
        %v2509 = vsub.f32 %v2494, 1.0
        %v2510 = vsub.f32 %v2496, 1.0
        %v2511 = vsub.f32 %v2498, 1.0
        %v2512 = vsub.f32 %v2500, 1.0
        %v2513 = vsub.f32 %v2502, 1.0
        %v2514 = vsub.f32 %v2504, 1.0
        %v2515 = vsub.f32 %v2506, 1.0
        %v2516 = vsub.f32 %v2508, 1.0
        %v2517 = vsel %vm2477, %v2454, %v2509
        %v2518 = vsel %vm2478, %v2457, %v2510
        %v2519 = vsel %vm2479, %v2460, %v2511
        %v2520 = vsel %vm2480, %v2463, %v2512
        %v2521 = vsel %vm2481, %v2466, %v2513
        %v2522 = vsel %vm2482, %v2469, %v2514
        %v2523 = vsel %vm2483, %v2472, %v2515
        %v2524 = vsel %vm2484, %v2475, %v2516
        %s2525 = scalar_lea.vmem [#allocation6], 384
        %v2526 = vld [vmem:[%s2525] sm:$0xff]
        %v2527 = vld [vmem:[%s2525 + $0x8] sm:$0xff]
        %v2528 = vld [vmem:[%s2525 + $0x10] sm:$0xff]
        %v2529 = vld [vmem:[%s2525 + $0x18] sm:$0xff]
        %v2530 = vld [vmem:[%s2525 + $0x20] sm:$0xff]
        %v2531 = vld [vmem:[%s2525 + $0x28] sm:$0xff]
        %v2532 = vld [vmem:[%s2525 + $0x30] sm:$0xff]
        %v2533 = vld [vmem:[%s2525 + $0x38] sm:$0xff]
        %v2534 = vld [vmem:[%s2525 + $0x40] sm:$0xff]
        %v2535 = vld [vmem:[%s2525 + $0x48] sm:$0xff]
        %v2536 = vld [vmem:[%s2525 + $0x50] sm:$0xff]
        %v2537 = vld [vmem:[%s2525 + $0x58] sm:$0xff]
        %v2538 = vld [vmem:[%s2525 + $0x60] sm:$0xff]
        %v2539 = vld [vmem:[%s2525 + $0x68] sm:$0xff]
        %v2540 = vld [vmem:[%s2525 + $0x70] sm:$0xff]
        %v2541 = vld [vmem:[%s2525 + $0x78] sm:$0xff]
        %v2543 = vsel %vm1298, %v2517, 0
        %v2546 = vsel %vm1298, %v2518, 0
        %v2549 = vsel %vm1298, %v2519, 0
        %v2552 = vsel %vm1298, %v2520, 0
        %v2555 = vsel %vm1298, %v2521, 0
        %v2558 = vsel %vm1298, %v2522, 0
        %v2561 = vsel %vm1298, %v2523, 0
        %v2564 = vsel %vm1298, %v2524, 0
        %2566 = vmatpush.msra.mxu0 0.0
        %2567 = vmatpush.msra.mxu0 0.0
        %2568 = vmatpush.msra.mxu0 0.0
        %2569 = vmatpush.msra.mxu0 0.0
        %2570 = vmatpush.msra.mxu0 0.0
        %2571 = vmatpush.msra.mxu0 0.0
        %2572 = vmatpush.msra.mxu0 0.0
        %2573 = vmatpush.msra.mxu0 0.0
        %2574 = vmatpush.msra.mxu0 %v2540
        %2575 = vmatpush.msra.mxu0 %v2538
        %2576 = vmatpush.msra.mxu0 %v2536
        %2577 = vmatpush.msra.mxu0 %v2534
        %2578 = vmatpush.msra.mxu0 %v2532
        %2579 = vmatpush.msra.mxu0 %v2530
        %2580 = vmatpush.msra.mxu0 %v2528
        %2581 = vmatpush.msra.mxu0 %v2526
        %2582 = vmatmul.f32.gmra.mxu0 %v2543
        %v2583 = vpop.f32.mrf.mxu0
        %v2584 = vadd.f32 0.0, %v2583
        %2585 = vmatmul.f32.gmra.mxu0 %v2546
        %v2586 = vpop.f32.mrf.mxu0
        %v2587 = vadd.f32 0.0, %v2586
        %2588 = vmatmul.f32.gmra.mxu0 %v2549
        %v2589 = vpop.f32.mrf.mxu0
        %v2590 = vadd.f32 0.0, %v2589
        %2591 = vmatmul.f32.gmra.mxu0 %v2552
        %v2592 = vpop.f32.mrf.mxu0
        %v2593 = vadd.f32 0.0, %v2592
        %2594 = vmatmul.f32.gmra.mxu0 %v2555
        %v2595 = vpop.f32.mrf.mxu0
        %v2596 = vadd.f32 0.0, %v2595
        %2597 = vmatmul.f32.gmra.mxu0 %v2558
        %v2598 = vpop.f32.mrf.mxu0
        %v2599 = vadd.f32 0.0, %v2598
        %2600 = vmatmul.f32.gmra.mxu0 %v2561
        %v2601 = vpop.f32.mrf.mxu0
        %v2602 = vadd.f32 0.0, %v2601
        %2603 = vmatmul.f32.gmra.mxu0 %v2564
        %v2604 = vpop.f32.mrf.mxu0
        %v2605 = vadd.f32 0.0, %v2604
        %2606 = vdwg.mxu0
        %2607 = vmatpush.msra.mxu0 0.0
        %2608 = vmatpush.msra.mxu0 0.0
        %2609 = vmatpush.msra.mxu0 0.0
        %2610 = vmatpush.msra.mxu0 0.0
        %2611 = vmatpush.msra.mxu0 0.0
        %2612 = vmatpush.msra.mxu0 0.0
        %2613 = vmatpush.msra.mxu0 0.0
        %2614 = vmatpush.msra.mxu0 0.0
        %2615 = vmatpush.msra.mxu0 %v2541
        %2616 = vmatpush.msra.mxu0 %v2539
        %2617 = vmatpush.msra.mxu0 %v2537
        %2618 = vmatpush.msra.mxu0 %v2535
        %2619 = vmatpush.msra.mxu0 %v2533
        %2620 = vmatpush.msra.mxu0 %v2531
        %2621 = vmatpush.msra.mxu0 %v2529
        %2622 = vmatpush.msra.mxu0 %v2527
        %2623 = vmatmul.f32.gmra.mxu0 %v2543
        %v2624 = vpop.f32.mrf.mxu0
        %v2625 = vadd.f32 0.0, %v2624
        %2626 = vmatmul.f32.gmra.mxu0 %v2546
        %v2627 = vpop.f32.mrf.mxu0
        %v2628 = vadd.f32 0.0, %v2627
        %2629 = vmatmul.f32.gmra.mxu0 %v2549
        %v2630 = vpop.f32.mrf.mxu0
        %v2631 = vadd.f32 0.0, %v2630
        %2632 = vmatmul.f32.gmra.mxu0 %v2552
        %v2633 = vpop.f32.mrf.mxu0
        %v2634 = vadd.f32 0.0, %v2633
        %2635 = vmatmul.f32.gmra.mxu0 %v2555
        %v2636 = vpop.f32.mrf.mxu0
        %v2637 = vadd.f32 0.0, %v2636
        %2638 = vmatmul.f32.gmra.mxu0 %v2558
        %v2639 = vpop.f32.mrf.mxu0
        %v2640 = vadd.f32 0.0, %v2639
        %2641 = vmatmul.f32.gmra.mxu0 %v2561
        %v2642 = vpop.f32.mrf.mxu0
        %v2643 = vadd.f32 0.0, %v2642
        %2644 = vmatmul.f32.gmra.mxu0 %v2564
        %v2645 = vpop.f32.mrf.mxu0
        %v2646 = vadd.f32 0.0, %v2645
        %2647 = vdwg.mxu0
        %v2648 = vadd.f32 %v2330, %v2584
        %v2649 = vadd.f32 %v2331, %v2625
        %v2650 = vadd.f32 %v2332, %v2587
        %v2651 = vadd.f32 %v2333, %v2628
        %v2652 = vadd.f32 %v2334, %v2590
        %v2653 = vadd.f32 %v2335, %v2631
        %v2654 = vadd.f32 %v2336, %v2593
        %v2655 = vadd.f32 %v2337, %v2634
        %v2656 = vadd.f32 %v2338, %v2596
        %v2657 = vadd.f32 %v2339, %v2637
        %v2658 = vadd.f32 %v2340, %v2599
        %v2659 = vadd.f32 %v2341, %v2640
        %v2660 = vadd.f32 %v2342, %v2602
        %v2661 = vadd.f32 %v2343, %v2643
        %v2662 = vadd.f32 %v2344, %v2605
        %v2663 = vadd.f32 %v2345, %v2646
        %v2664 = vld [vmem:[#allocation2 + $0x100] sm:$0xff]
        %v2665 = vld [vmem:[#allocation2 + $0x108] sm:$0xff]
        %v2666 = vld [vmem:[#allocation2 + $0x110] sm:$0xff]
        %v2667 = vld [vmem:[#allocation2 + $0x118] sm:$0xff]
        %v2668 = vld [vmem:[#allocation2 + $0x120] sm:$0xff]
        %v2669 = vld [vmem:[#allocation2 + $0x128] sm:$0xff]
        %v2670 = vld [vmem:[#allocation2 + $0x130] sm:$0xff]
        %v2671 = vld [vmem:[#allocation2 + $0x138] sm:$0xff]
        %s2672 = scalar_lea.vmem [#allocation3], 256
        %v2673 = vld [vmem:[%s2672] sm:$0xff]
        %v2674 = vld [vmem:[%s2672 + $0x8] sm:$0xff]
        %v2675 = vld [vmem:[%s2672 + $0x10] sm:$0xff]
        %v2676 = vld [vmem:[%s2672 + $0x18] sm:$0xff]
        %v2677 = vld [vmem:[%s2672 + $0x20] sm:$0xff]
        %v2678 = vld [vmem:[%s2672 + $0x28] sm:$0xff]
        %v2679 = vld [vmem:[%s2672 + $0x30] sm:$0xff]
        %v2680 = vld [vmem:[%s2672 + $0x38] sm:$0xff]
        %s2681 = scalar_lea.vmem %s3, 256
        %v2682 = vld [vmem:[%s2681] sm:$0xff]
        %v2683 = vld [vmem:[%s2681 + $0x8] sm:$0xff]
        %v2684 = vld [vmem:[%s2681 + $0x10] sm:$0xff]
        %v2685 = vld [vmem:[%s2681 + $0x18] sm:$0xff]
        %v2686 = vld [vmem:[%s2681 + $0x20] sm:$0xff]
        %v2687 = vld [vmem:[%s2681 + $0x28] sm:$0xff]
        %v2688 = vld [vmem:[%s2681 + $0x30] sm:$0xff]
        %v2689 = vld [vmem:[%s2681 + $0x38] sm:$0xff]
        %2691 = vset.pattern.permute.xlu0 0
        %2692 = vperm.xlu0 %2691, %v2682
        %v2693 = vpop.permute.xlu0 %2692
        %2696 = vset.pattern.permute.xlu0 0
        %2697 = vperm.xlu0 %2696, %v2683
        %v2698 = vpop.permute.xlu0 %2697
        %2701 = vset.pattern.permute.xlu0 0
        %2702 = vperm.xlu0 %2701, %v2684
        %v2703 = vpop.permute.xlu0 %2702
        %2706 = vset.pattern.permute.xlu0 0
        %2707 = vperm.xlu0 %2706, %v2685
        %v2708 = vpop.permute.xlu0 %2707
        %2711 = vset.pattern.permute.xlu0 0
        %2712 = vperm.xlu0 %2711, %v2686
        %v2713 = vpop.permute.xlu0 %2712
        %2716 = vset.pattern.permute.xlu0 0
        %2717 = vperm.xlu0 %2716, %v2687
        %v2718 = vpop.permute.xlu0 %2717
        %2721 = vset.pattern.permute.xlu0 0
        %2722 = vperm.xlu0 %2721, %v2688
        %v2723 = vpop.permute.xlu0 %2722
        %2726 = vset.pattern.permute.xlu0 0
        %2727 = vperm.xlu0 %2726, %v2689
        %v2728 = vpop.permute.xlu0 %2727
        %v2731 = vsel %vm1298, %v2664, 0
        %v2734 = vsel %vm1298, %v2665, 0
        %v2737 = vsel %vm1298, %v2666, 0
        %v2740 = vsel %vm1298, %v2667, 0
        %v2743 = vsel %vm1298, %v2668, 0
        %v2746 = vsel %vm1298, %v2669, 0
        %v2749 = vsel %vm1298, %v2670, 0
        %v2752 = vsel %vm1298, %v2671, 0
        %2754 = vmatpush.msra.mxu0 0.0
        %2755 = vmatpush.msra.mxu0 0.0
        %2756 = vmatpush.msra.mxu0 0.0
        %2757 = vmatpush.msra.mxu0 0.0
        %2758 = vmatpush.msra.mxu0 0.0
        %2759 = vmatpush.msra.mxu0 0.0
        %2760 = vmatpush.msra.mxu0 0.0
        %2761 = vmatpush.msra.mxu0 0.0
        %2762 = vmatpush.msra.mxu0 %v2680
        %2763 = vmatpush.msra.mxu0 %v2679
        %2764 = vmatpush.msra.mxu0 %v2678
        %2765 = vmatpush.msra.mxu0 %v2677
        %2766 = vmatpush.msra.mxu0 %v2676
        %2767 = vmatpush.msra.mxu0 %v2675
        %2768 = vmatpush.msra.mxu0 %v2674
        %2769 = vmatpush.msra.mxu0 %v2673
        %2770 = vmatmul.f32.gmra.mxu0 %v2731
        %v2771 = vpop.f32.mrf.mxu0
        %v2772 = vadd.f32 %v2693, %v2771
        %2773 = vmatmul.f32.gmra.mxu0 %v2734
        %v2774 = vpop.f32.mrf.mxu0
        %v2775 = vadd.f32 %v2698, %v2774
        %2776 = vmatmul.f32.gmra.mxu0 %v2737
        %v2777 = vpop.f32.mrf.mxu0
        %v2778 = vadd.f32 %v2703, %v2777
        %2779 = vmatmul.f32.gmra.mxu0 %v2740
        %v2780 = vpop.f32.mrf.mxu0
        %v2781 = vadd.f32 %v2708, %v2780
        %2782 = vmatmul.f32.gmra.mxu0 %v2743
        %v2783 = vpop.f32.mrf.mxu0
        %v2784 = vadd.f32 %v2713, %v2783
        %2785 = vmatmul.f32.gmra.mxu0 %v2746
        %v2786 = vpop.f32.mrf.mxu0
        %v2787 = vadd.f32 %v2718, %v2786
        %2788 = vmatmul.f32.gmra.mxu0 %v2749
        %v2789 = vpop.f32.mrf.mxu0
        %v2790 = vadd.f32 %v2723, %v2789
        %2791 = vmatmul.f32.gmra.mxu0 %v2752
        %v2792 = vpop.f32.mrf.mxu0
        %v2793 = vadd.f32 %v2728, %v2792
        %2794 = vdwg.mxu0
        %vm2795 = vcmp.gt.f32.partialorder %v2772, 0.0
        %vm2796 = vcmp.gt.f32.partialorder %v2775, 0.0
        %vm2797 = vcmp.gt.f32.partialorder %v2778, 0.0
        %vm2798 = vcmp.gt.f32.partialorder %v2781, 0.0
        %vm2799 = vcmp.gt.f32.partialorder %v2784, 0.0
        %vm2800 = vcmp.gt.f32.partialorder %v2787, 0.0
        %vm2801 = vcmp.gt.f32.partialorder %v2790, 0.0
        %vm2802 = vcmp.gt.f32.partialorder %v2793, 0.0
        %v2803 = vmin.f32 %v2772, 0.0
        %v2804 = vmin.f32 %v2775, 0.0
        %v2805 = vmin.f32 %v2778, 0.0
        %v2806 = vmin.f32 %v2781, 0.0
        %v2807 = vmin.f32 %v2784, 0.0
        %v2808 = vmin.f32 %v2787, 0.0
        %v2809 = vmin.f32 %v2790, 0.0
        %v2810 = vmin.f32 %v2793, 0.0
        %v2811 = vmul.f32 %v2803, 1.442695
        %v2812 = vpow.pop %v2811
        %v2813 = vmul.f32 %v2804, 1.442695
        %v2814 = vpow.pop %v2813
        %v2815 = vmul.f32 %v2805, 1.442695
        %v2816 = vpow.pop %v2815
        %v2817 = vmul.f32 %v2806, 1.442695
        %v2818 = vpow.pop %v2817
        %v2819 = vmul.f32 %v2807, 1.442695
        %v2820 = vpow.pop %v2819
        %v2821 = vmul.f32 %v2808, 1.442695
        %v2822 = vpow.pop %v2821
        %v2823 = vmul.f32 %v2809, 1.442695
        %v2824 = vpow.pop %v2823
        %v2825 = vmul.f32 %v2810, 1.442695
        %v2826 = vpow.pop %v2825
        %v2827 = vsub.f32 %v2812, 1.0
        %v2828 = vsub.f32 %v2814, 1.0
        %v2829 = vsub.f32 %v2816, 1.0
        %v2830 = vsub.f32 %v2818, 1.0
        %v2831 = vsub.f32 %v2820, 1.0
        %v2832 = vsub.f32 %v2822, 1.0
        %v2833 = vsub.f32 %v2824, 1.0
        %v2834 = vsub.f32 %v2826, 1.0
        %v2835 = vsel %vm2795, %v2772, %v2827
        %v2836 = vsel %vm2796, %v2775, %v2828
        %v2837 = vsel %vm2797, %v2778, %v2829
        %v2838 = vsel %vm2798, %v2781, %v2830
        %v2839 = vsel %vm2799, %v2784, %v2831
        %v2840 = vsel %vm2800, %v2787, %v2832
        %v2841 = vsel %vm2801, %v2790, %v2833
        %v2842 = vsel %vm2802, %v2793, %v2834
        %s2843 = scalar_lea.vmem [#allocation6], 512
        %v2844 = vld [vmem:[%s2843] sm:$0xff]
        %v2845 = vld [vmem:[%s2843 + $0x8] sm:$0xff]
        %v2846 = vld [vmem:[%s2843 + $0x10] sm:$0xff]
        %v2847 = vld [vmem:[%s2843 + $0x18] sm:$0xff]
        %v2848 = vld [vmem:[%s2843 + $0x20] sm:$0xff]
        %v2849 = vld [vmem:[%s2843 + $0x28] sm:$0xff]
        %v2850 = vld [vmem:[%s2843 + $0x30] sm:$0xff]
        %v2851 = vld [vmem:[%s2843 + $0x38] sm:$0xff]
        %v2852 = vld [vmem:[%s2843 + $0x40] sm:$0xff]
        %v2853 = vld [vmem:[%s2843 + $0x48] sm:$0xff]
        %v2854 = vld [vmem:[%s2843 + $0x50] sm:$0xff]
        %v2855 = vld [vmem:[%s2843 + $0x58] sm:$0xff]
        %v2856 = vld [vmem:[%s2843 + $0x60] sm:$0xff]
        %v2857 = vld [vmem:[%s2843 + $0x68] sm:$0xff]
        %v2858 = vld [vmem:[%s2843 + $0x70] sm:$0xff]
        %v2859 = vld [vmem:[%s2843 + $0x78] sm:$0xff]
        %v2861 = vsel %vm1298, %v2835, 0
        %v2864 = vsel %vm1298, %v2836, 0
        %v2867 = vsel %vm1298, %v2837, 0
        %v2870 = vsel %vm1298, %v2838, 0
        %v2873 = vsel %vm1298, %v2839, 0
        %v2876 = vsel %vm1298, %v2840, 0
        %v2879 = vsel %vm1298, %v2841, 0
        %v2882 = vsel %vm1298, %v2842, 0
        %2884 = vmatpush.msra.mxu0 0.0
        %2885 = vmatpush.msra.mxu0 0.0
        %2886 = vmatpush.msra.mxu0 0.0
        %2887 = vmatpush.msra.mxu0 0.0
        %2888 = vmatpush.msra.mxu0 0.0
        %2889 = vmatpush.msra.mxu0 0.0
        %2890 = vmatpush.msra.mxu0 0.0
        %2891 = vmatpush.msra.mxu0 0.0
        %2892 = vmatpush.msra.mxu0 %v2858
        %2893 = vmatpush.msra.mxu0 %v2856
        %2894 = vmatpush.msra.mxu0 %v2854
        %2895 = vmatpush.msra.mxu0 %v2852
        %2896 = vmatpush.msra.mxu0 %v2850
        %2897 = vmatpush.msra.mxu0 %v2848
        %2898 = vmatpush.msra.mxu0 %v2846
        %2899 = vmatpush.msra.mxu0 %v2844
        %2900 = vmatmul.f32.gmra.mxu0 %v2861
        %v2901 = vpop.f32.mrf.mxu0
        %v2902 = vadd.f32 0.0, %v2901
        %2903 = vmatmul.f32.gmra.mxu0 %v2864
        %v2904 = vpop.f32.mrf.mxu0
        %v2905 = vadd.f32 0.0, %v2904
        %2906 = vmatmul.f32.gmra.mxu0 %v2867
        %v2907 = vpop.f32.mrf.mxu0
        %v2908 = vadd.f32 0.0, %v2907
        %2909 = vmatmul.f32.gmra.mxu0 %v2870
        %v2910 = vpop.f32.mrf.mxu0
        %v2911 = vadd.f32 0.0, %v2910
        %2912 = vmatmul.f32.gmra.mxu0 %v2873
        %v2913 = vpop.f32.mrf.mxu0
        %v2914 = vadd.f32 0.0, %v2913
        %2915 = vmatmul.f32.gmra.mxu0 %v2876
        %v2916 = vpop.f32.mrf.mxu0
        %v2917 = vadd.f32 0.0, %v2916
        %2918 = vmatmul.f32.gmra.mxu0 %v2879
        %v2919 = vpop.f32.mrf.mxu0
        %v2920 = vadd.f32 0.0, %v2919
        %2921 = vmatmul.f32.gmra.mxu0 %v2882
        %v2922 = vpop.f32.mrf.mxu0
        %v2923 = vadd.f32 0.0, %v2922
        %2924 = vdwg.mxu0
        %2925 = vmatpush.msra.mxu0 0.0
        %2926 = vmatpush.msra.mxu0 0.0
        %2927 = vmatpush.msra.mxu0 0.0
        %2928 = vmatpush.msra.mxu0 0.0
        %2929 = vmatpush.msra.mxu0 0.0
        %2930 = vmatpush.msra.mxu0 0.0
        %2931 = vmatpush.msra.mxu0 0.0
        %2932 = vmatpush.msra.mxu0 0.0
        %2933 = vmatpush.msra.mxu0 %v2859
        %2934 = vmatpush.msra.mxu0 %v2857
        %2935 = vmatpush.msra.mxu0 %v2855
        %2936 = vmatpush.msra.mxu0 %v2853
        %2937 = vmatpush.msra.mxu0 %v2851
        %2938 = vmatpush.msra.mxu0 %v2849
        %2939 = vmatpush.msra.mxu0 %v2847
        %2940 = vmatpush.msra.mxu0 %v2845
        %2941 = vmatmul.f32.gmra.mxu0 %v2861
        %v2942 = vpop.f32.mrf.mxu0
        %v2943 = vadd.f32 0.0, %v2942
        %2944 = vmatmul.f32.gmra.mxu0 %v2864
        %v2945 = vpop.f32.mrf.mxu0
        %v2946 = vadd.f32 0.0, %v2945
        %2947 = vmatmul.f32.gmra.mxu0 %v2867
        %v2948 = vpop.f32.mrf.mxu0
        %v2949 = vadd.f32 0.0, %v2948
        %2950 = vmatmul.f32.gmra.mxu0 %v2870
        %v2951 = vpop.f32.mrf.mxu0
        %v2952 = vadd.f32 0.0, %v2951
        %2953 = vmatmul.f32.gmra.mxu0 %v2873
        %v2954 = vpop.f32.mrf.mxu0
        %v2955 = vadd.f32 0.0, %v2954
        %2956 = vmatmul.f32.gmra.mxu0 %v2876
        %v2957 = vpop.f32.mrf.mxu0
        %v2958 = vadd.f32 0.0, %v2957
        %2959 = vmatmul.f32.gmra.mxu0 %v2879
        %v2960 = vpop.f32.mrf.mxu0
        %v2961 = vadd.f32 0.0, %v2960
        %2962 = vmatmul.f32.gmra.mxu0 %v2882
        %v2963 = vpop.f32.mrf.mxu0
        %v2964 = vadd.f32 0.0, %v2963
        %2965 = vdwg.mxu0
        %v2966 = vadd.f32 %v2648, %v2902
        %v2967 = vadd.f32 %v2649, %v2943
        %v2968 = vadd.f32 %v2650, %v2905
        %v2969 = vadd.f32 %v2651, %v2946
        %v2970 = vadd.f32 %v2652, %v2908
        %v2971 = vadd.f32 %v2653, %v2949
        %v2972 = vadd.f32 %v2654, %v2911
        %v2973 = vadd.f32 %v2655, %v2952
        %v2974 = vadd.f32 %v2656, %v2914
        %v2975 = vadd.f32 %v2657, %v2955
        %v2976 = vadd.f32 %v2658, %v2917
        %v2977 = vadd.f32 %v2659, %v2958
        %v2978 = vadd.f32 %v2660, %v2920
        %v2979 = vadd.f32 %v2661, %v2961
        %v2980 = vadd.f32 %v2662, %v2923
        %v2981 = vadd.f32 %v2663, %v2964
        %v2982 = vld [vmem:[#allocation2 + $0x140] sm:$0xff]
        %v2983 = vld [vmem:[#allocation2 + $0x148] sm:$0xff]
        %v2984 = vld [vmem:[#allocation2 + $0x150] sm:$0xff]
        %v2985 = vld [vmem:[#allocation2 + $0x158] sm:$0xff]
        %v2986 = vld [vmem:[#allocation2 + $0x160] sm:$0xff]
        %v2987 = vld [vmem:[#allocation2 + $0x168] sm:$0xff]
        %v2988 = vld [vmem:[#allocation2 + $0x170] sm:$0xff]
        %v2989 = vld [vmem:[#allocation2 + $0x178] sm:$0xff]
        %s2990 = scalar_lea.vmem [#allocation3], 320
        %v2991 = vld [vmem:[%s2990] sm:$0xff]
        %v2992 = vld [vmem:[%s2990 + $0x8] sm:$0xff]
        %v2993 = vld [vmem:[%s2990 + $0x10] sm:$0xff]
        %v2994 = vld [vmem:[%s2990 + $0x18] sm:$0xff]
        %v2995 = vld [vmem:[%s2990 + $0x20] sm:$0xff]
        %v2996 = vld [vmem:[%s2990 + $0x28] sm:$0xff]
        %v2997 = vld [vmem:[%s2990 + $0x30] sm:$0xff]
        %v2998 = vld [vmem:[%s2990 + $0x38] sm:$0xff]
        %s2999 = scalar_lea.vmem %s3, 320
        %v3000 = vld [vmem:[%s2999] sm:$0xff]
        %v3001 = vld [vmem:[%s2999 + $0x8] sm:$0xff]
        %v3002 = vld [vmem:[%s2999 + $0x10] sm:$0xff]
        %v3003 = vld [vmem:[%s2999 + $0x18] sm:$0xff]
        %v3004 = vld [vmem:[%s2999 + $0x20] sm:$0xff]
        %v3005 = vld [vmem:[%s2999 + $0x28] sm:$0xff]
        %v3006 = vld [vmem:[%s2999 + $0x30] sm:$0xff]
        %v3007 = vld [vmem:[%s2999 + $0x38] sm:$0xff]
        %3009 = vset.pattern.permute.xlu0 0
        %3010 = vperm.xlu0 %3009, %v3000
        %v3011 = vpop.permute.xlu0 %3010
        %3014 = vset.pattern.permute.xlu0 0
        %3015 = vperm.xlu0 %3014, %v3001
        %v3016 = vpop.permute.xlu0 %3015
        %3019 = vset.pattern.permute.xlu0 0
        %3020 = vperm.xlu0 %3019, %v3002
        %v3021 = vpop.permute.xlu0 %3020
        %3024 = vset.pattern.permute.xlu0 0
        %3025 = vperm.xlu0 %3024, %v3003
        %v3026 = vpop.permute.xlu0 %3025
        %3029 = vset.pattern.permute.xlu0 0
        %3030 = vperm.xlu0 %3029, %v3004
        %v3031 = vpop.permute.xlu0 %3030
        %3034 = vset.pattern.permute.xlu0 0
        %3035 = vperm.xlu0 %3034, %v3005
        %v3036 = vpop.permute.xlu0 %3035
        %3039 = vset.pattern.permute.xlu0 0
        %3040 = vperm.xlu0 %3039, %v3006
        %v3041 = vpop.permute.xlu0 %3040
        %3044 = vset.pattern.permute.xlu0 0
        %3045 = vperm.xlu0 %3044, %v3007
        %v3046 = vpop.permute.xlu0 %3045
        %v3049 = vsel %vm1298, %v2982, 0
        %v3052 = vsel %vm1298, %v2983, 0
        %v3055 = vsel %vm1298, %v2984, 0
        %v3058 = vsel %vm1298, %v2985, 0
        %v3061 = vsel %vm1298, %v2986, 0
        %v3064 = vsel %vm1298, %v2987, 0
        %v3067 = vsel %vm1298, %v2988, 0
        %v3070 = vsel %vm1298, %v2989, 0
        %3072 = vmatpush.msra.mxu0 0.0
        %3073 = vmatpush.msra.mxu0 0.0
        %3074 = vmatpush.msra.mxu0 0.0
        %3075 = vmatpush.msra.mxu0 0.0
        %3076 = vmatpush.msra.mxu0 0.0
        %3077 = vmatpush.msra.mxu0 0.0
        %3078 = vmatpush.msra.mxu0 0.0
        %3079 = vmatpush.msra.mxu0 0.0
        %3080 = vmatpush.msra.mxu0 %v2998
        %3081 = vmatpush.msra.mxu0 %v2997
        %3082 = vmatpush.msra.mxu0 %v2996
        %3083 = vmatpush.msra.mxu0 %v2995
        %3084 = vmatpush.msra.mxu0 %v2994
        %3085 = vmatpush.msra.mxu0 %v2993
        %3086 = vmatpush.msra.mxu0 %v2992
        %3087 = vmatpush.msra.mxu0 %v2991
        %3088 = vmatmul.f32.gmra.mxu0 %v3049
        %v3089 = vpop.f32.mrf.mxu0
        %v3090 = vadd.f32 %v3011, %v3089
        %3091 = vmatmul.f32.gmra.mxu0 %v3052
        %v3092 = vpop.f32.mrf.mxu0
        %v3093 = vadd.f32 %v3016, %v3092
        %3094 = vmatmul.f32.gmra.mxu0 %v3055
        %v3095 = vpop.f32.mrf.mxu0
        %v3096 = vadd.f32 %v3021, %v3095
        %3097 = vmatmul.f32.gmra.mxu0 %v3058
        %v3098 = vpop.f32.mrf.mxu0
        %v3099 = vadd.f32 %v3026, %v3098
        %3100 = vmatmul.f32.gmra.mxu0 %v3061
        %v3101 = vpop.f32.mrf.mxu0
        %v3102 = vadd.f32 %v3031, %v3101
        %3103 = vmatmul.f32.gmra.mxu0 %v3064
        %v3104 = vpop.f32.mrf.mxu0
        %v3105 = vadd.f32 %v3036, %v3104
        %3106 = vmatmul.f32.gmra.mxu0 %v3067
        %v3107 = vpop.f32.mrf.mxu0
        %v3108 = vadd.f32 %v3041, %v3107
        %3109 = vmatmul.f32.gmra.mxu0 %v3070
        %v3110 = vpop.f32.mrf.mxu0
        %v3111 = vadd.f32 %v3046, %v3110
        %3112 = vdwg.mxu0
        %vm3113 = vcmp.gt.f32.partialorder %v3090, 0.0
        %vm3114 = vcmp.gt.f32.partialorder %v3093, 0.0
        %vm3115 = vcmp.gt.f32.partialorder %v3096, 0.0
        %vm3116 = vcmp.gt.f32.partialorder %v3099, 0.0
        %vm3117 = vcmp.gt.f32.partialorder %v3102, 0.0
        %vm3118 = vcmp.gt.f32.partialorder %v3105, 0.0
        %vm3119 = vcmp.gt.f32.partialorder %v3108, 0.0
        %vm3120 = vcmp.gt.f32.partialorder %v3111, 0.0
        %v3121 = vmin.f32 %v3090, 0.0
        %v3122 = vmin.f32 %v3093, 0.0
        %v3123 = vmin.f32 %v3096, 0.0
        %v3124 = vmin.f32 %v3099, 0.0
        %v3125 = vmin.f32 %v3102, 0.0
        %v3126 = vmin.f32 %v3105, 0.0
        %v3127 = vmin.f32 %v3108, 0.0
        %v3128 = vmin.f32 %v3111, 0.0
        %v3129 = vmul.f32 %v3121, 1.442695
        %v3130 = vpow.pop %v3129
        %v3131 = vmul.f32 %v3122, 1.442695
        %v3132 = vpow.pop %v3131
        %v3133 = vmul.f32 %v3123, 1.442695
        %v3134 = vpow.pop %v3133
        %v3135 = vmul.f32 %v3124, 1.442695
        %v3136 = vpow.pop %v3135
        %v3137 = vmul.f32 %v3125, 1.442695
        %v3138 = vpow.pop %v3137
        %v3139 = vmul.f32 %v3126, 1.442695
        %v3140 = vpow.pop %v3139
        %v3141 = vmul.f32 %v3127, 1.442695
        %v3142 = vpow.pop %v3141
        %v3143 = vmul.f32 %v3128, 1.442695
        %v3144 = vpow.pop %v3143
        %v3145 = vsub.f32 %v3130, 1.0
        %v3146 = vsub.f32 %v3132, 1.0
        %v3147 = vsub.f32 %v3134, 1.0
        %v3148 = vsub.f32 %v3136, 1.0
        %v3149 = vsub.f32 %v3138, 1.0
        %v3150 = vsub.f32 %v3140, 1.0
        %v3151 = vsub.f32 %v3142, 1.0
        %v3152 = vsub.f32 %v3144, 1.0
        %v3153 = vsel %vm3113, %v3090, %v3145
        %v3154 = vsel %vm3114, %v3093, %v3146
        %v3155 = vsel %vm3115, %v3096, %v3147
        %v3156 = vsel %vm3116, %v3099, %v3148
        %v3157 = vsel %vm3117, %v3102, %v3149
        %v3158 = vsel %vm3118, %v3105, %v3150
        %v3159 = vsel %vm3119, %v3108, %v3151
        %v3160 = vsel %vm3120, %v3111, %v3152
        %s3161 = scalar_lea.vmem [#allocation6], 640
        %v3162 = vld [vmem:[%s3161] sm:$0xff]
        %v3163 = vld [vmem:[%s3161 + $0x8] sm:$0xff]
        %v3164 = vld [vmem:[%s3161 + $0x10] sm:$0xff]
        %v3165 = vld [vmem:[%s3161 + $0x18] sm:$0xff]
        %v3166 = vld [vmem:[%s3161 + $0x20] sm:$0xff]
        %v3167 = vld [vmem:[%s3161 + $0x28] sm:$0xff]
        %v3168 = vld [vmem:[%s3161 + $0x30] sm:$0xff]
        %v3169 = vld [vmem:[%s3161 + $0x38] sm:$0xff]
        %v3170 = vld [vmem:[%s3161 + $0x40] sm:$0xff]
        %v3171 = vld [vmem:[%s3161 + $0x48] sm:$0xff]
        %v3172 = vld [vmem:[%s3161 + $0x50] sm:$0xff]
        %v3173 = vld [vmem:[%s3161 + $0x58] sm:$0xff]
        %v3174 = vld [vmem:[%s3161 + $0x60] sm:$0xff]
        %v3175 = vld [vmem:[%s3161 + $0x68] sm:$0xff]
        %v3176 = vld [vmem:[%s3161 + $0x70] sm:$0xff]
        %v3177 = vld [vmem:[%s3161 + $0x78] sm:$0xff]
        %v3179 = vsel %vm1298, %v3153, 0
        %v3182 = vsel %vm1298, %v3154, 0
        %v3185 = vsel %vm1298, %v3155, 0
        %v3188 = vsel %vm1298, %v3156, 0
        %v3191 = vsel %vm1298, %v3157, 0
        %v3194 = vsel %vm1298, %v3158, 0
        %v3197 = vsel %vm1298, %v3159, 0
        %v3200 = vsel %vm1298, %v3160, 0
        %3202 = vmatpush.msra.mxu0 0.0
        %3203 = vmatpush.msra.mxu0 0.0
        %3204 = vmatpush.msra.mxu0 0.0
        %3205 = vmatpush.msra.mxu0 0.0
        %3206 = vmatpush.msra.mxu0 0.0
        %3207 = vmatpush.msra.mxu0 0.0
        %3208 = vmatpush.msra.mxu0 0.0
        %3209 = vmatpush.msra.mxu0 0.0
        %3210 = vmatpush.msra.mxu0 %v3176
        %3211 = vmatpush.msra.mxu0 %v3174
        %3212 = vmatpush.msra.mxu0 %v3172
        %3213 = vmatpush.msra.mxu0 %v3170
        %3214 = vmatpush.msra.mxu0 %v3168
        %3215 = vmatpush.msra.mxu0 %v3166
        %3216 = vmatpush.msra.mxu0 %v3164
        %3217 = vmatpush.msra.mxu0 %v3162
        %3218 = vmatmul.f32.gmra.mxu0 %v3179
        %v3219 = vpop.f32.mrf.mxu0
        %v3220 = vadd.f32 0.0, %v3219
        %3221 = vmatmul.f32.gmra.mxu0 %v3182
        %v3222 = vpop.f32.mrf.mxu0
        %v3223 = vadd.f32 0.0, %v3222
        %3224 = vmatmul.f32.gmra.mxu0 %v3185
        %v3225 = vpop.f32.mrf.mxu0
        %v3226 = vadd.f32 0.0, %v3225
        %3227 = vmatmul.f32.gmra.mxu0 %v3188
        %v3228 = vpop.f32.mrf.mxu0
        %v3229 = vadd.f32 0.0, %v3228
        %3230 = vmatmul.f32.gmra.mxu0 %v3191
        %v3231 = vpop.f32.mrf.mxu0
        %v3232 = vadd.f32 0.0, %v3231
        %3233 = vmatmul.f32.gmra.mxu0 %v3194
        %v3234 = vpop.f32.mrf.mxu0
        %v3235 = vadd.f32 0.0, %v3234
        %3236 = vmatmul.f32.gmra.mxu0 %v3197
        %v3237 = vpop.f32.mrf.mxu0
        %v3238 = vadd.f32 0.0, %v3237
        %3239 = vmatmul.f32.gmra.mxu0 %v3200
        %v3240 = vpop.f32.mrf.mxu0
        %v3241 = vadd.f32 0.0, %v3240
        %3242 = vdwg.mxu0
        %3243 = vmatpush.msra.mxu0 0.0
        %3244 = vmatpush.msra.mxu0 0.0
        %3245 = vmatpush.msra.mxu0 0.0
        %3246 = vmatpush.msra.mxu0 0.0
        %3247 = vmatpush.msra.mxu0 0.0
        %3248 = vmatpush.msra.mxu0 0.0
        %3249 = vmatpush.msra.mxu0 0.0
        %3250 = vmatpush.msra.mxu0 0.0
        %3251 = vmatpush.msra.mxu0 %v3177
        %3252 = vmatpush.msra.mxu0 %v3175
        %3253 = vmatpush.msra.mxu0 %v3173
        %3254 = vmatpush.msra.mxu0 %v3171
        %3255 = vmatpush.msra.mxu0 %v3169
        %3256 = vmatpush.msra.mxu0 %v3167
        %3257 = vmatpush.msra.mxu0 %v3165
        %3258 = vmatpush.msra.mxu0 %v3163
        %3259 = vmatmul.f32.gmra.mxu0 %v3179
        %v3260 = vpop.f32.mrf.mxu0
        %v3261 = vadd.f32 0.0, %v3260
        %3262 = vmatmul.f32.gmra.mxu0 %v3182
        %v3263 = vpop.f32.mrf.mxu0
        %v3264 = vadd.f32 0.0, %v3263
        %3265 = vmatmul.f32.gmra.mxu0 %v3185
        %v3266 = vpop.f32.mrf.mxu0
        %v3267 = vadd.f32 0.0, %v3266
        %3268 = vmatmul.f32.gmra.mxu0 %v3188
        %v3269 = vpop.f32.mrf.mxu0
        %v3270 = vadd.f32 0.0, %v3269
        %3271 = vmatmul.f32.gmra.mxu0 %v3191
        %v3272 = vpop.f32.mrf.mxu0
        %v3273 = vadd.f32 0.0, %v3272
        %3274 = vmatmul.f32.gmra.mxu0 %v3194
        %v3275 = vpop.f32.mrf.mxu0
        %v3276 = vadd.f32 0.0, %v3275
        %3277 = vmatmul.f32.gmra.mxu0 %v3197
        %v3278 = vpop.f32.mrf.mxu0
        %v3279 = vadd.f32 0.0, %v3278
        %3280 = vmatmul.f32.gmra.mxu0 %v3200
        %v3281 = vpop.f32.mrf.mxu0
        %v3282 = vadd.f32 0.0, %v3281
        %3283 = vdwg.mxu0
        %v3284 = vadd.f32 %v2966, %v3220
        %v3285 = vadd.f32 %v2967, %v3261
        %v3286 = vadd.f32 %v2968, %v3223
        %v3287 = vadd.f32 %v2969, %v3264
        %v3288 = vadd.f32 %v2970, %v3226
        %v3289 = vadd.f32 %v2971, %v3267
        %v3290 = vadd.f32 %v2972, %v3229
        %v3291 = vadd.f32 %v2973, %v3270
        %v3292 = vadd.f32 %v2974, %v3232
        %v3293 = vadd.f32 %v2975, %v3273
        %v3294 = vadd.f32 %v2976, %v3235
        %v3295 = vadd.f32 %v2977, %v3276
        %v3296 = vadd.f32 %v2978, %v3238
        %v3297 = vadd.f32 %v2979, %v3279
        %v3298 = vadd.f32 %v2980, %v3241
        %v3299 = vadd.f32 %v2981, %v3282
        %v3300 = vld [vmem:[#allocation2 + $0x180] sm:$0xff]
        %v3301 = vld [vmem:[#allocation2 + $0x188] sm:$0xff]
        %v3302 = vld [vmem:[#allocation2 + $0x190] sm:$0xff]
        %v3303 = vld [vmem:[#allocation2 + $0x198] sm:$0xff]
        %v3304 = vld [vmem:[#allocation2 + $0x1a0] sm:$0xff]
        %v3305 = vld [vmem:[#allocation2 + $0x1a8] sm:$0xff]
        %v3306 = vld [vmem:[#allocation2 + $0x1b0] sm:$0xff]
        %v3307 = vld [vmem:[#allocation2 + $0x1b8] sm:$0xff]
        %s3308 = scalar_lea.vmem [#allocation3], 384
        %v3309 = vld [vmem:[%s3308] sm:$0xff]
        %v3310 = vld [vmem:[%s3308 + $0x8] sm:$0xff]
        %v3311 = vld [vmem:[%s3308 + $0x10] sm:$0xff]
        %v3312 = vld [vmem:[%s3308 + $0x18] sm:$0xff]
        %v3313 = vld [vmem:[%s3308 + $0x20] sm:$0xff]
        %v3314 = vld [vmem:[%s3308 + $0x28] sm:$0xff]
        %v3315 = vld [vmem:[%s3308 + $0x30] sm:$0xff]
        %v3316 = vld [vmem:[%s3308 + $0x38] sm:$0xff]
        %s3317 = scalar_lea.vmem %s3, 384
        %v3318 = vld [vmem:[%s3317] sm:$0xff]
        %v3319 = vld [vmem:[%s3317 + $0x8] sm:$0xff]
        %v3320 = vld [vmem:[%s3317 + $0x10] sm:$0xff]
        %v3321 = vld [vmem:[%s3317 + $0x18] sm:$0xff]
        %v3322 = vld [vmem:[%s3317 + $0x20] sm:$0xff]
        %v3323 = vld [vmem:[%s3317 + $0x28] sm:$0xff]
        %v3324 = vld [vmem:[%s3317 + $0x30] sm:$0xff]
        %v3325 = vld [vmem:[%s3317 + $0x38] sm:$0xff]
        %3327 = vset.pattern.permute.xlu0 0
        %3328 = vperm.xlu0 %3327, %v3318
        %v3329 = vpop.permute.xlu0 %3328
        %3332 = vset.pattern.permute.xlu0 0
        %3333 = vperm.xlu0 %3332, %v3319
        %v3334 = vpop.permute.xlu0 %3333
        %3337 = vset.pattern.permute.xlu0 0
        %3338 = vperm.xlu0 %3337, %v3320
        %v3339 = vpop.permute.xlu0 %3338
        %3342 = vset.pattern.permute.xlu0 0
        %3343 = vperm.xlu0 %3342, %v3321
        %v3344 = vpop.permute.xlu0 %3343
        %3347 = vset.pattern.permute.xlu0 0
        %3348 = vperm.xlu0 %3347, %v3322
        %v3349 = vpop.permute.xlu0 %3348
        %3352 = vset.pattern.permute.xlu0 0
        %3353 = vperm.xlu0 %3352, %v3323
        %v3354 = vpop.permute.xlu0 %3353
        %3357 = vset.pattern.permute.xlu0 0
        %3358 = vperm.xlu0 %3357, %v3324
        %v3359 = vpop.permute.xlu0 %3358
        %3362 = vset.pattern.permute.xlu0 0
        %3363 = vperm.xlu0 %3362, %v3325
        %v3364 = vpop.permute.xlu0 %3363
        %v3367 = vsel %vm1298, %v3300, 0
        %v3370 = vsel %vm1298, %v3301, 0
        %v3373 = vsel %vm1298, %v3302, 0
        %v3376 = vsel %vm1298, %v3303, 0
        %v3379 = vsel %vm1298, %v3304, 0
        %v3382 = vsel %vm1298, %v3305, 0
        %v3385 = vsel %vm1298, %v3306, 0
        %v3388 = vsel %vm1298, %v3307, 0
        %3390 = vmatpush.msra.mxu0 0.0
        %3391 = vmatpush.msra.mxu0 0.0
        %3392 = vmatpush.msra.mxu0 0.0
        %3393 = vmatpush.msra.mxu0 0.0
        %3394 = vmatpush.msra.mxu0 0.0
        %3395 = vmatpush.msra.mxu0 0.0
        %3396 = vmatpush.msra.mxu0 0.0
        %3397 = vmatpush.msra.mxu0 0.0
        %3398 = vmatpush.msra.mxu0 %v3316
        %3399 = vmatpush.msra.mxu0 %v3315
        %3400 = vmatpush.msra.mxu0 %v3314
        %3401 = vmatpush.msra.mxu0 %v3313
        %3402 = vmatpush.msra.mxu0 %v3312
        %3403 = vmatpush.msra.mxu0 %v3311
        %3404 = vmatpush.msra.mxu0 %v3310
        %3405 = vmatpush.msra.mxu0 %v3309
        %3406 = vmatmul.f32.gmra.mxu0 %v3367
        %v3407 = vpop.f32.mrf.mxu0
        %v3408 = vadd.f32 %v3329, %v3407
        %3409 = vmatmul.f32.gmra.mxu0 %v3370
        %v3410 = vpop.f32.mrf.mxu0
        %v3411 = vadd.f32 %v3334, %v3410
        %3412 = vmatmul.f32.gmra.mxu0 %v3373
        %v3413 = vpop.f32.mrf.mxu0
        %v3414 = vadd.f32 %v3339, %v3413
        %3415 = vmatmul.f32.gmra.mxu0 %v3376
        %v3416 = vpop.f32.mrf.mxu0
        %v3417 = vadd.f32 %v3344, %v3416
        %3418 = vmatmul.f32.gmra.mxu0 %v3379
        %v3419 = vpop.f32.mrf.mxu0
        %v3420 = vadd.f32 %v3349, %v3419
        %3421 = vmatmul.f32.gmra.mxu0 %v3382
        %v3422 = vpop.f32.mrf.mxu0
        %v3423 = vadd.f32 %v3354, %v3422
        %3424 = vmatmul.f32.gmra.mxu0 %v3385
        %v3425 = vpop.f32.mrf.mxu0
        %v3426 = vadd.f32 %v3359, %v3425
        %3427 = vmatmul.f32.gmra.mxu0 %v3388
        %v3428 = vpop.f32.mrf.mxu0
        %v3429 = vadd.f32 %v3364, %v3428
        %3430 = vdwg.mxu0
        %vm3431 = vcmp.gt.f32.partialorder %v3408, 0.0
        %vm3432 = vcmp.gt.f32.partialorder %v3411, 0.0
        %vm3433 = vcmp.gt.f32.partialorder %v3414, 0.0
        %vm3434 = vcmp.gt.f32.partialorder %v3417, 0.0
        %vm3435 = vcmp.gt.f32.partialorder %v3420, 0.0
        %vm3436 = vcmp.gt.f32.partialorder %v3423, 0.0
        %vm3437 = vcmp.gt.f32.partialorder %v3426, 0.0
        %vm3438 = vcmp.gt.f32.partialorder %v3429, 0.0
        %v3439 = vmin.f32 %v3408, 0.0
        %v3440 = vmin.f32 %v3411, 0.0
        %v3441 = vmin.f32 %v3414, 0.0
        %v3442 = vmin.f32 %v3417, 0.0
        %v3443 = vmin.f32 %v3420, 0.0
        %v3444 = vmin.f32 %v3423, 0.0
        %v3445 = vmin.f32 %v3426, 0.0
        %v3446 = vmin.f32 %v3429, 0.0
        %v3447 = vmul.f32 %v3439, 1.442695
        %v3448 = vpow.pop %v3447
        %v3449 = vmul.f32 %v3440, 1.442695
        %v3450 = vpow.pop %v3449
        %v3451 = vmul.f32 %v3441, 1.442695
        %v3452 = vpow.pop %v3451
        %v3453 = vmul.f32 %v3442, 1.442695
        %v3454 = vpow.pop %v3453
        %v3455 = vmul.f32 %v3443, 1.442695
        %v3456 = vpow.pop %v3455
        %v3457 = vmul.f32 %v3444, 1.442695
        %v3458 = vpow.pop %v3457
        %v3459 = vmul.f32 %v3445, 1.442695
        %v3460 = vpow.pop %v3459
        %v3461 = vmul.f32 %v3446, 1.442695
        %v3462 = vpow.pop %v3461
        %v3463 = vsub.f32 %v3448, 1.0
        %v3464 = vsub.f32 %v3450, 1.0
        %v3465 = vsub.f32 %v3452, 1.0
        %v3466 = vsub.f32 %v3454, 1.0
        %v3467 = vsub.f32 %v3456, 1.0
        %v3468 = vsub.f32 %v3458, 1.0
        %v3469 = vsub.f32 %v3460, 1.0
        %v3470 = vsub.f32 %v3462, 1.0
        %v3471 = vsel %vm3431, %v3408, %v3463
        %v3472 = vsel %vm3432, %v3411, %v3464
        %v3473 = vsel %vm3433, %v3414, %v3465
        %v3474 = vsel %vm3434, %v3417, %v3466
        %v3475 = vsel %vm3435, %v3420, %v3467
        %v3476 = vsel %vm3436, %v3423, %v3468
        %v3477 = vsel %vm3437, %v3426, %v3469
        %v3478 = vsel %vm3438, %v3429, %v3470
        %s3479 = scalar_lea.vmem [#allocation6], 768
        %v3480 = vld [vmem:[%s3479] sm:$0xff]
        %v3481 = vld [vmem:[%s3479 + $0x8] sm:$0xff]
        %v3482 = vld [vmem:[%s3479 + $0x10] sm:$0xff]
        %v3483 = vld [vmem:[%s3479 + $0x18] sm:$0xff]
        %v3484 = vld [vmem:[%s3479 + $0x20] sm:$0xff]
        %v3485 = vld [vmem:[%s3479 + $0x28] sm:$0xff]
        %v3486 = vld [vmem:[%s3479 + $0x30] sm:$0xff]
        %v3487 = vld [vmem:[%s3479 + $0x38] sm:$0xff]
        %v3488 = vld [vmem:[%s3479 + $0x40] sm:$0xff]
        %v3489 = vld [vmem:[%s3479 + $0x48] sm:$0xff]
        %v3490 = vld [vmem:[%s3479 + $0x50] sm:$0xff]
        %v3491 = vld [vmem:[%s3479 + $0x58] sm:$0xff]
        %v3492 = vld [vmem:[%s3479 + $0x60] sm:$0xff]
        %v3493 = vld [vmem:[%s3479 + $0x68] sm:$0xff]
        %v3494 = vld [vmem:[%s3479 + $0x70] sm:$0xff]
        %v3495 = vld [vmem:[%s3479 + $0x78] sm:$0xff]
        %v3497 = vsel %vm1298, %v3471, 0
        %v3500 = vsel %vm1298, %v3472, 0
        %v3503 = vsel %vm1298, %v3473, 0
        %v3506 = vsel %vm1298, %v3474, 0
        %v3509 = vsel %vm1298, %v3475, 0
        %v3512 = vsel %vm1298, %v3476, 0
        %v3515 = vsel %vm1298, %v3477, 0
        %v3518 = vsel %vm1298, %v3478, 0
        %3520 = vmatpush.msra.mxu0 0.0
        %3521 = vmatpush.msra.mxu0 0.0
        %3522 = vmatpush.msra.mxu0 0.0
        %3523 = vmatpush.msra.mxu0 0.0
        %3524 = vmatpush.msra.mxu0 0.0
        %3525 = vmatpush.msra.mxu0 0.0
        %3526 = vmatpush.msra.mxu0 0.0
        %3527 = vmatpush.msra.mxu0 0.0
        %3528 = vmatpush.msra.mxu0 %v3494
        %3529 = vmatpush.msra.mxu0 %v3492
        %3530 = vmatpush.msra.mxu0 %v3490
        %3531 = vmatpush.msra.mxu0 %v3488
        %3532 = vmatpush.msra.mxu0 %v3486
        %3533 = vmatpush.msra.mxu0 %v3484
        %3534 = vmatpush.msra.mxu0 %v3482
        %3535 = vmatpush.msra.mxu0 %v3480
        %3536 = vmatmul.f32.gmra.mxu0 %v3497
        %v3537 = vpop.f32.mrf.mxu0
        %v3538 = vadd.f32 0.0, %v3537
        %3539 = vmatmul.f32.gmra.mxu0 %v3500
        %v3540 = vpop.f32.mrf.mxu0
        %v3541 = vadd.f32 0.0, %v3540
        %3542 = vmatmul.f32.gmra.mxu0 %v3503
        %v3543 = vpop.f32.mrf.mxu0
        %v3544 = vadd.f32 0.0, %v3543
        %3545 = vmatmul.f32.gmra.mxu0 %v3506
        %v3546 = vpop.f32.mrf.mxu0
        %v3547 = vadd.f32 0.0, %v3546
        %3548 = vmatmul.f32.gmra.mxu0 %v3509
        %v3549 = vpop.f32.mrf.mxu0
        %v3550 = vadd.f32 0.0, %v3549
        %3551 = vmatmul.f32.gmra.mxu0 %v3512
        %v3552 = vpop.f32.mrf.mxu0
        %v3553 = vadd.f32 0.0, %v3552
        %3554 = vmatmul.f32.gmra.mxu0 %v3515
        %v3555 = vpop.f32.mrf.mxu0
        %v3556 = vadd.f32 0.0, %v3555
        %3557 = vmatmul.f32.gmra.mxu0 %v3518
        %v3558 = vpop.f32.mrf.mxu0
        %v3559 = vadd.f32 0.0, %v3558
        %3560 = vdwg.mxu0
        %3561 = vmatpush.msra.mxu0 0.0
        %3562 = vmatpush.msra.mxu0 0.0
        %3563 = vmatpush.msra.mxu0 0.0
        %3564 = vmatpush.msra.mxu0 0.0
        %3565 = vmatpush.msra.mxu0 0.0
        %3566 = vmatpush.msra.mxu0 0.0
        %3567 = vmatpush.msra.mxu0 0.0
        %3568 = vmatpush.msra.mxu0 0.0
        %3569 = vmatpush.msra.mxu0 %v3495
        %3570 = vmatpush.msra.mxu0 %v3493
        %3571 = vmatpush.msra.mxu0 %v3491
        %3572 = vmatpush.msra.mxu0 %v3489
        %3573 = vmatpush.msra.mxu0 %v3487
        %3574 = vmatpush.msra.mxu0 %v3485
        %3575 = vmatpush.msra.mxu0 %v3483
        %3576 = vmatpush.msra.mxu0 %v3481
        %3577 = vmatmul.f32.gmra.mxu0 %v3497
        %v3578 = vpop.f32.mrf.mxu0
        %v3579 = vadd.f32 0.0, %v3578
        %3580 = vmatmul.f32.gmra.mxu0 %v3500
        %v3581 = vpop.f32.mrf.mxu0
        %v3582 = vadd.f32 0.0, %v3581
        %3583 = vmatmul.f32.gmra.mxu0 %v3503
        %v3584 = vpop.f32.mrf.mxu0
        %v3585 = vadd.f32 0.0, %v3584
        %3586 = vmatmul.f32.gmra.mxu0 %v3506
        %v3587 = vpop.f32.mrf.mxu0
        %v3588 = vadd.f32 0.0, %v3587
        %3589 = vmatmul.f32.gmra.mxu0 %v3509
        %v3590 = vpop.f32.mrf.mxu0
        %v3591 = vadd.f32 0.0, %v3590
        %3592 = vmatmul.f32.gmra.mxu0 %v3512
        %v3593 = vpop.f32.mrf.mxu0
        %v3594 = vadd.f32 0.0, %v3593
        %3595 = vmatmul.f32.gmra.mxu0 %v3515
        %v3596 = vpop.f32.mrf.mxu0
        %v3597 = vadd.f32 0.0, %v3596
        %3598 = vmatmul.f32.gmra.mxu0 %v3518
        %v3599 = vpop.f32.mrf.mxu0
        %v3600 = vadd.f32 0.0, %v3599
        %3601 = vdwg.mxu0
        %v3602 = vadd.f32 %v3284, %v3538
        %v3603 = vadd.f32 %v3285, %v3579
        %v3604 = vadd.f32 %v3286, %v3541
        %v3605 = vadd.f32 %v3287, %v3582
        %v3606 = vadd.f32 %v3288, %v3544
        %v3607 = vadd.f32 %v3289, %v3585
        %v3608 = vadd.f32 %v3290, %v3547
        %v3609 = vadd.f32 %v3291, %v3588
        %v3610 = vadd.f32 %v3292, %v3550
        %v3611 = vadd.f32 %v3293, %v3591
        %v3612 = vadd.f32 %v3294, %v3553
        %v3613 = vadd.f32 %v3295, %v3594
        %v3614 = vadd.f32 %v3296, %v3556
        %v3615 = vadd.f32 %v3297, %v3597
        %v3616 = vadd.f32 %v3298, %v3559
        %v3617 = vadd.f32 %v3299, %v3600
        %v3618 = vld [vmem:[#allocation2 + $0x1c0] sm:$0xff]
        %v3619 = vld [vmem:[#allocation2 + $0x1c8] sm:$0xff]
        %v3620 = vld [vmem:[#allocation2 + $0x1d0] sm:$0xff]
        %v3621 = vld [vmem:[#allocation2 + $0x1d8] sm:$0xff]
        %v3622 = vld [vmem:[#allocation2 + $0x1e0] sm:$0xff]
        %v3623 = vld [vmem:[#allocation2 + $0x1e8] sm:$0xff]
        %v3624 = vld [vmem:[#allocation2 + $0x1f0] sm:$0xff]
        %v3625 = vld [vmem:[#allocation2 + $0x1f8] sm:$0xff]
        %s3626 = scalar_lea.vmem [#allocation3], 448
        %v3627 = vld [vmem:[%s3626] sm:$0xff]
        %v3628 = vld [vmem:[%s3626 + $0x8] sm:$0xff]
        %v3629 = vld [vmem:[%s3626 + $0x10] sm:$0xff]
        %v3630 = vld [vmem:[%s3626 + $0x18] sm:$0xff]
        %v3631 = vld [vmem:[%s3626 + $0x20] sm:$0xff]
        %v3632 = vld [vmem:[%s3626 + $0x28] sm:$0xff]
        %v3633 = vld [vmem:[%s3626 + $0x30] sm:$0xff]
        %v3634 = vld [vmem:[%s3626 + $0x38] sm:$0xff]
        %s3635 = scalar_lea.vmem %s3, 448
        %v3636 = vld [vmem:[%s3635] sm:$0xff]
        %v3637 = vld [vmem:[%s3635 + $0x8] sm:$0xff]
        %v3638 = vld [vmem:[%s3635 + $0x10] sm:$0xff]
        %v3639 = vld [vmem:[%s3635 + $0x18] sm:$0xff]
        %v3640 = vld [vmem:[%s3635 + $0x20] sm:$0xff]
        %v3641 = vld [vmem:[%s3635 + $0x28] sm:$0xff]
        %v3642 = vld [vmem:[%s3635 + $0x30] sm:$0xff]
        %v3643 = vld [vmem:[%s3635 + $0x38] sm:$0xff]
        %3645 = vset.pattern.permute.xlu0 0
        %3646 = vperm.xlu0 %3645, %v3636
        %v3647 = vpop.permute.xlu0 %3646
        %3650 = vset.pattern.permute.xlu0 0
        %3651 = vperm.xlu0 %3650, %v3637
        %v3652 = vpop.permute.xlu0 %3651
        %3655 = vset.pattern.permute.xlu0 0
        %3656 = vperm.xlu0 %3655, %v3638
        %v3657 = vpop.permute.xlu0 %3656
        %3660 = vset.pattern.permute.xlu0 0
        %3661 = vperm.xlu0 %3660, %v3639
        %v3662 = vpop.permute.xlu0 %3661
        %3665 = vset.pattern.permute.xlu0 0
        %3666 = vperm.xlu0 %3665, %v3640
        %v3667 = vpop.permute.xlu0 %3666
        %3670 = vset.pattern.permute.xlu0 0
        %3671 = vperm.xlu0 %3670, %v3641
        %v3672 = vpop.permute.xlu0 %3671
        %3675 = vset.pattern.permute.xlu0 0
        %3676 = vperm.xlu0 %3675, %v3642
        %v3677 = vpop.permute.xlu0 %3676
        %3680 = vset.pattern.permute.xlu0 0
        %3681 = vperm.xlu0 %3680, %v3643
        %v3682 = vpop.permute.xlu0 %3681
        %v3685 = vsel %vm1298, %v3618, 0
        %v3688 = vsel %vm1298, %v3619, 0
        %v3691 = vsel %vm1298, %v3620, 0
        %v3694 = vsel %vm1298, %v3621, 0
        %v3697 = vsel %vm1298, %v3622, 0
        %v3700 = vsel %vm1298, %v3623, 0
        %v3703 = vsel %vm1298, %v3624, 0
        %v3706 = vsel %vm1298, %v3625, 0
        %3708 = vmatpush.msra.mxu0 0.0
        %3709 = vmatpush.msra.mxu0 0.0
        %3710 = vmatpush.msra.mxu0 0.0
        %3711 = vmatpush.msra.mxu0 0.0
        %3712 = vmatpush.msra.mxu0 0.0
        %3713 = vmatpush.msra.mxu0 0.0
        %3714 = vmatpush.msra.mxu0 0.0
        %3715 = vmatpush.msra.mxu0 0.0
        %3716 = vmatpush.msra.mxu0 %v3634
        %3717 = vmatpush.msra.mxu0 %v3633
        %3718 = vmatpush.msra.mxu0 %v3632
        %3719 = vmatpush.msra.mxu0 %v3631
        %3720 = vmatpush.msra.mxu0 %v3630
        %3721 = vmatpush.msra.mxu0 %v3629
        %3722 = vmatpush.msra.mxu0 %v3628
        %3723 = vmatpush.msra.mxu0 %v3627
        %3724 = vmatmul.f32.gmra.mxu0 %v3685
        %v3725 = vpop.f32.mrf.mxu0
        %v3726 = vadd.f32 %v3647, %v3725
        %3727 = vmatmul.f32.gmra.mxu0 %v3688
        %v3728 = vpop.f32.mrf.mxu0
        %v3729 = vadd.f32 %v3652, %v3728
        %3730 = vmatmul.f32.gmra.mxu0 %v3691
        %v3731 = vpop.f32.mrf.mxu0
        %v3732 = vadd.f32 %v3657, %v3731
        %3733 = vmatmul.f32.gmra.mxu0 %v3694
        %v3734 = vpop.f32.mrf.mxu0
        %v3735 = vadd.f32 %v3662, %v3734
        %3736 = vmatmul.f32.gmra.mxu0 %v3697
        %v3737 = vpop.f32.mrf.mxu0
        %v3738 = vadd.f32 %v3667, %v3737
        %3739 = vmatmul.f32.gmra.mxu0 %v3700
        %v3740 = vpop.f32.mrf.mxu0
        %v3741 = vadd.f32 %v3672, %v3740
        %3742 = vmatmul.f32.gmra.mxu0 %v3703
        %v3743 = vpop.f32.mrf.mxu0
        %v3744 = vadd.f32 %v3677, %v3743
        %3745 = vmatmul.f32.gmra.mxu0 %v3706
        %v3746 = vpop.f32.mrf.mxu0
        %v3747 = vadd.f32 %v3682, %v3746
        %3748 = vdwg.mxu0
        %vm3749 = vcmp.gt.f32.partialorder %v3726, 0.0
        %vm3750 = vcmp.gt.f32.partialorder %v3729, 0.0
        %vm3751 = vcmp.gt.f32.partialorder %v3732, 0.0
        %vm3752 = vcmp.gt.f32.partialorder %v3735, 0.0
        %vm3753 = vcmp.gt.f32.partialorder %v3738, 0.0
        %vm3754 = vcmp.gt.f32.partialorder %v3741, 0.0
        %vm3755 = vcmp.gt.f32.partialorder %v3744, 0.0
        %vm3756 = vcmp.gt.f32.partialorder %v3747, 0.0
        %v3757 = vmin.f32 %v3726, 0.0
        %v3758 = vmin.f32 %v3729, 0.0
        %v3759 = vmin.f32 %v3732, 0.0
        %v3760 = vmin.f32 %v3735, 0.0
        %v3761 = vmin.f32 %v3738, 0.0
        %v3762 = vmin.f32 %v3741, 0.0
        %v3763 = vmin.f32 %v3744, 0.0
        %v3764 = vmin.f32 %v3747, 0.0
        %v3765 = vmul.f32 %v3757, 1.442695
        %v3766 = vpow.pop %v3765
        %v3767 = vmul.f32 %v3758, 1.442695
        %v3768 = vpow.pop %v3767
        %v3769 = vmul.f32 %v3759, 1.442695
        %v3770 = vpow.pop %v3769
        %v3771 = vmul.f32 %v3760, 1.442695
        %v3772 = vpow.pop %v3771
        %v3773 = vmul.f32 %v3761, 1.442695
        %v3774 = vpow.pop %v3773
        %v3775 = vmul.f32 %v3762, 1.442695
        %v3776 = vpow.pop %v3775
        %v3777 = vmul.f32 %v3763, 1.442695
        %v3778 = vpow.pop %v3777
        %v3779 = vmul.f32 %v3764, 1.442695
        %v3780 = vpow.pop %v3779
        %v3781 = vsub.f32 %v3766, 1.0
        %v3782 = vsub.f32 %v3768, 1.0
        %v3783 = vsub.f32 %v3770, 1.0
        %v3784 = vsub.f32 %v3772, 1.0
        %v3785 = vsub.f32 %v3774, 1.0
        %v3786 = vsub.f32 %v3776, 1.0
        %v3787 = vsub.f32 %v3778, 1.0
        %v3788 = vsub.f32 %v3780, 1.0
        %v3789 = vsel %vm3749, %v3726, %v3781
        %v3790 = vsel %vm3750, %v3729, %v3782
        %v3791 = vsel %vm3751, %v3732, %v3783
        %v3792 = vsel %vm3752, %v3735, %v3784
        %v3793 = vsel %vm3753, %v3738, %v3785
        %v3794 = vsel %vm3754, %v3741, %v3786
        %v3795 = vsel %vm3755, %v3744, %v3787
        %v3796 = vsel %vm3756, %v3747, %v3788
        %s3797 = scalar_lea.vmem [#allocation6], 896
        %v3798 = vld [vmem:[%s3797] sm:$0xff]
        %v3799 = vld [vmem:[%s3797 + $0x8] sm:$0xff]
        %v3800 = vld [vmem:[%s3797 + $0x10] sm:$0xff]
        %v3801 = vld [vmem:[%s3797 + $0x18] sm:$0xff]
        %v3802 = vld [vmem:[%s3797 + $0x20] sm:$0xff]
        %v3803 = vld [vmem:[%s3797 + $0x28] sm:$0xff]
        %v3804 = vld [vmem:[%s3797 + $0x30] sm:$0xff]
        %v3805 = vld [vmem:[%s3797 + $0x38] sm:$0xff]
        %v3806 = vld [vmem:[%s3797 + $0x40] sm:$0xff]
        %v3807 = vld [vmem:[%s3797 + $0x48] sm:$0xff]
        %v3808 = vld [vmem:[%s3797 + $0x50] sm:$0xff]
        %v3809 = vld [vmem:[%s3797 + $0x58] sm:$0xff]
        %v3810 = vld [vmem:[%s3797 + $0x60] sm:$0xff]
        %v3811 = vld [vmem:[%s3797 + $0x68] sm:$0xff]
        %v3812 = vld [vmem:[%s3797 + $0x70] sm:$0xff]
        %v3813 = vld [vmem:[%s3797 + $0x78] sm:$0xff]
        %v3815 = vsel %vm1298, %v3789, 0
        %v3818 = vsel %vm1298, %v3790, 0
        %v3821 = vsel %vm1298, %v3791, 0
        %v3824 = vsel %vm1298, %v3792, 0
        %v3827 = vsel %vm1298, %v3793, 0
        %v3830 = vsel %vm1298, %v3794, 0
        %v3833 = vsel %vm1298, %v3795, 0
        %v3836 = vsel %vm1298, %v3796, 0
        %3838 = vmatpush.msra.mxu0 0.0
        %3839 = vmatpush.msra.mxu0 0.0
        %3840 = vmatpush.msra.mxu0 0.0
        %3841 = vmatpush.msra.mxu0 0.0
        %3842 = vmatpush.msra.mxu0 0.0
        %3843 = vmatpush.msra.mxu0 0.0
        %3844 = vmatpush.msra.mxu0 0.0
        %3845 = vmatpush.msra.mxu0 0.0
        %3846 = vmatpush.msra.mxu0 %v3812
        %3847 = vmatpush.msra.mxu0 %v3810
        %3848 = vmatpush.msra.mxu0 %v3808
        %3849 = vmatpush.msra.mxu0 %v3806
        %3850 = vmatpush.msra.mxu0 %v3804
        %3851 = vmatpush.msra.mxu0 %v3802
        %3852 = vmatpush.msra.mxu0 %v3800
        %3853 = vmatpush.msra.mxu0 %v3798
        %3854 = vmatmul.f32.gmra.mxu0 %v3815
        %v3855 = vpop.f32.mrf.mxu0
        %v3856 = vadd.f32 0.0, %v3855
        %3857 = vmatmul.f32.gmra.mxu0 %v3818
        %v3858 = vpop.f32.mrf.mxu0
        %v3859 = vadd.f32 0.0, %v3858
        %3860 = vmatmul.f32.gmra.mxu0 %v3821
        %v3861 = vpop.f32.mrf.mxu0
        %v3862 = vadd.f32 0.0, %v3861
        %3863 = vmatmul.f32.gmra.mxu0 %v3824
        %v3864 = vpop.f32.mrf.mxu0
        %v3865 = vadd.f32 0.0, %v3864
        %3866 = vmatmul.f32.gmra.mxu0 %v3827
        %v3867 = vpop.f32.mrf.mxu0
        %v3868 = vadd.f32 0.0, %v3867
        %3869 = vmatmul.f32.gmra.mxu0 %v3830
        %v3870 = vpop.f32.mrf.mxu0
        %v3871 = vadd.f32 0.0, %v3870
        %3872 = vmatmul.f32.gmra.mxu0 %v3833
        %v3873 = vpop.f32.mrf.mxu0
        %v3874 = vadd.f32 0.0, %v3873
        %3875 = vmatmul.f32.gmra.mxu0 %v3836
        %v3876 = vpop.f32.mrf.mxu0
        %v3877 = vadd.f32 0.0, %v3876
        %3878 = vdwg.mxu0
        %3879 = vmatpush.msra.mxu0 0.0
        %3880 = vmatpush.msra.mxu0 0.0
        %3881 = vmatpush.msra.mxu0 0.0
        %3882 = vmatpush.msra.mxu0 0.0
        %3883 = vmatpush.msra.mxu0 0.0
        %3884 = vmatpush.msra.mxu0 0.0
        %3885 = vmatpush.msra.mxu0 0.0
        %3886 = vmatpush.msra.mxu0 0.0
        %3887 = vmatpush.msra.mxu0 %v3813
        %3888 = vmatpush.msra.mxu0 %v3811
        %3889 = vmatpush.msra.mxu0 %v3809
        %3890 = vmatpush.msra.mxu0 %v3807
        %3891 = vmatpush.msra.mxu0 %v3805
        %3892 = vmatpush.msra.mxu0 %v3803
        %3893 = vmatpush.msra.mxu0 %v3801
        %3894 = vmatpush.msra.mxu0 %v3799
        %3895 = vmatmul.f32.gmra.mxu0 %v3815
        %v3896 = vpop.f32.mrf.mxu0
        %v3897 = vadd.f32 0.0, %v3896
        %3898 = vmatmul.f32.gmra.mxu0 %v3818
        %v3899 = vpop.f32.mrf.mxu0
        %v3900 = vadd.f32 0.0, %v3899
        %3901 = vmatmul.f32.gmra.mxu0 %v3821
        %v3902 = vpop.f32.mrf.mxu0
        %v3903 = vadd.f32 0.0, %v3902
        %3904 = vmatmul.f32.gmra.mxu0 %v3824
        %v3905 = vpop.f32.mrf.mxu0
        %v3906 = vadd.f32 0.0, %v3905
        %3907 = vmatmul.f32.gmra.mxu0 %v3827
        %v3908 = vpop.f32.mrf.mxu0
        %v3909 = vadd.f32 0.0, %v3908
        %3910 = vmatmul.f32.gmra.mxu0 %v3830
        %v3911 = vpop.f32.mrf.mxu0
        %v3912 = vadd.f32 0.0, %v3911
        %3913 = vmatmul.f32.gmra.mxu0 %v3833
        %v3914 = vpop.f32.mrf.mxu0
        %v3915 = vadd.f32 0.0, %v3914
        %3916 = vmatmul.f32.gmra.mxu0 %v3836
        %v3917 = vpop.f32.mrf.mxu0
        %v3918 = vadd.f32 0.0, %v3917
        %3919 = vdwg.mxu0
        %v3920 = vadd.f32 %v3602, %v3856
        %v3921 = vadd.f32 %v3603, %v3897
        %v3922 = vadd.f32 %v3604, %v3859
        %v3923 = vadd.f32 %v3605, %v3900
        %v3924 = vadd.f32 %v3606, %v3862
        %v3925 = vadd.f32 %v3607, %v3903
        %v3926 = vadd.f32 %v3608, %v3865
        %v3927 = vadd.f32 %v3609, %v3906
        %v3928 = vadd.f32 %v3610, %v3868
        %v3929 = vadd.f32 %v3611, %v3909
        %v3930 = vadd.f32 %v3612, %v3871
        %v3931 = vadd.f32 %v3613, %v3912
        %v3932 = vadd.f32 %v3614, %v3874
        %v3933 = vadd.f32 %v3615, %v3915
        %v3934 = vadd.f32 %v3616, %v3877
        %v3935 = vadd.f32 %v3617, %v3918
        %v3936 = vld [vmem:[#allocation2 + $0x200] sm:$0xff]
        %v3937 = vld [vmem:[#allocation2 + $0x208] sm:$0xff]
        %v3938 = vld [vmem:[#allocation2 + $0x210] sm:$0xff]
        %v3939 = vld [vmem:[#allocation2 + $0x218] sm:$0xff]
        %v3940 = vld [vmem:[#allocation2 + $0x220] sm:$0xff]
        %v3941 = vld [vmem:[#allocation2 + $0x228] sm:$0xff]
        %v3942 = vld [vmem:[#allocation2 + $0x230] sm:$0xff]
        %v3943 = vld [vmem:[#allocation2 + $0x238] sm:$0xff]
        %s3944 = scalar_lea.vmem [#allocation3], 512
        %v3945 = vld [vmem:[%s3944] sm:$0xff]
        %v3946 = vld [vmem:[%s3944 + $0x8] sm:$0xff]
        %v3947 = vld [vmem:[%s3944 + $0x10] sm:$0xff]
        %v3948 = vld [vmem:[%s3944 + $0x18] sm:$0xff]
        %v3949 = vld [vmem:[%s3944 + $0x20] sm:$0xff]
        %v3950 = vld [vmem:[%s3944 + $0x28] sm:$0xff]
        %v3951 = vld [vmem:[%s3944 + $0x30] sm:$0xff]
        %v3952 = vld [vmem:[%s3944 + $0x38] sm:$0xff]
        %s3953 = scalar_lea.vmem %s3, 512
        %v3954 = vld [vmem:[%s3953] sm:$0xff]
        %v3955 = vld [vmem:[%s3953 + $0x8] sm:$0xff]
        %v3956 = vld [vmem:[%s3953 + $0x10] sm:$0xff]
        %v3957 = vld [vmem:[%s3953 + $0x18] sm:$0xff]
        %v3958 = vld [vmem:[%s3953 + $0x20] sm:$0xff]
        %v3959 = vld [vmem:[%s3953 + $0x28] sm:$0xff]
        %v3960 = vld [vmem:[%s3953 + $0x30] sm:$0xff]
        %v3961 = vld [vmem:[%s3953 + $0x38] sm:$0xff]
        %3963 = vset.pattern.permute.xlu0 0
        %3964 = vperm.xlu0 %3963, %v3954
        %v3965 = vpop.permute.xlu0 %3964
        %3968 = vset.pattern.permute.xlu0 0
        %3969 = vperm.xlu0 %3968, %v3955
        %v3970 = vpop.permute.xlu0 %3969
        %3973 = vset.pattern.permute.xlu0 0
        %3974 = vperm.xlu0 %3973, %v3956
        %v3975 = vpop.permute.xlu0 %3974
        %3978 = vset.pattern.permute.xlu0 0
        %3979 = vperm.xlu0 %3978, %v3957
        %v3980 = vpop.permute.xlu0 %3979
        %3983 = vset.pattern.permute.xlu0 0
        %3984 = vperm.xlu0 %3983, %v3958
        %v3985 = vpop.permute.xlu0 %3984
        %3988 = vset.pattern.permute.xlu0 0
        %3989 = vperm.xlu0 %3988, %v3959
        %v3990 = vpop.permute.xlu0 %3989
        %3993 = vset.pattern.permute.xlu0 0
        %3994 = vperm.xlu0 %3993, %v3960
        %v3995 = vpop.permute.xlu0 %3994
        %3998 = vset.pattern.permute.xlu0 0
        %3999 = vperm.xlu0 %3998, %v3961
        %v4000 = vpop.permute.xlu0 %3999
        %v4003 = vsel %vm1298, %v3936, 0
        %v4006 = vsel %vm1298, %v3937, 0
        %v4009 = vsel %vm1298, %v3938, 0
        %v4012 = vsel %vm1298, %v3939, 0
        %v4015 = vsel %vm1298, %v3940, 0
        %v4018 = vsel %vm1298, %v3941, 0
        %v4021 = vsel %vm1298, %v3942, 0
        %v4024 = vsel %vm1298, %v3943, 0
        %4026 = vmatpush.msra.mxu0 0.0
        %4027 = vmatpush.msra.mxu0 0.0
        %4028 = vmatpush.msra.mxu0 0.0
        %4029 = vmatpush.msra.mxu0 0.0
        %4030 = vmatpush.msra.mxu0 0.0
        %4031 = vmatpush.msra.mxu0 0.0
        %4032 = vmatpush.msra.mxu0 0.0
        %4033 = vmatpush.msra.mxu0 0.0
        %4034 = vmatpush.msra.mxu0 %v3952
        %4035 = vmatpush.msra.mxu0 %v3951
        %4036 = vmatpush.msra.mxu0 %v3950
        %4037 = vmatpush.msra.mxu0 %v3949
        %4038 = vmatpush.msra.mxu0 %v3948
        %4039 = vmatpush.msra.mxu0 %v3947
        %4040 = vmatpush.msra.mxu0 %v3946
        %4041 = vmatpush.msra.mxu0 %v3945
        %4042 = vmatmul.f32.gmra.mxu0 %v4003
        %v4043 = vpop.f32.mrf.mxu0
        %v4044 = vadd.f32 %v3965, %v4043
        %4045 = vmatmul.f32.gmra.mxu0 %v4006
        %v4046 = vpop.f32.mrf.mxu0
        %v4047 = vadd.f32 %v3970, %v4046
        %4048 = vmatmul.f32.gmra.mxu0 %v4009
        %v4049 = vpop.f32.mrf.mxu0
        %v4050 = vadd.f32 %v3975, %v4049
        %4051 = vmatmul.f32.gmra.mxu0 %v4012
        %v4052 = vpop.f32.mrf.mxu0
        %v4053 = vadd.f32 %v3980, %v4052
        %4054 = vmatmul.f32.gmra.mxu0 %v4015
        %v4055 = vpop.f32.mrf.mxu0
        %v4056 = vadd.f32 %v3985, %v4055
        %4057 = vmatmul.f32.gmra.mxu0 %v4018
        %v4058 = vpop.f32.mrf.mxu0
        %v4059 = vadd.f32 %v3990, %v4058
        %4060 = vmatmul.f32.gmra.mxu0 %v4021
        %v4061 = vpop.f32.mrf.mxu0
        %v4062 = vadd.f32 %v3995, %v4061
        %4063 = vmatmul.f32.gmra.mxu0 %v4024
        %v4064 = vpop.f32.mrf.mxu0
        %v4065 = vadd.f32 %v4000, %v4064
        %4066 = vdwg.mxu0
        %vm4067 = vcmp.gt.f32.partialorder %v4044, 0.0
        %vm4068 = vcmp.gt.f32.partialorder %v4047, 0.0
        %vm4069 = vcmp.gt.f32.partialorder %v4050, 0.0
        %vm4070 = vcmp.gt.f32.partialorder %v4053, 0.0
        %vm4071 = vcmp.gt.f32.partialorder %v4056, 0.0
        %vm4072 = vcmp.gt.f32.partialorder %v4059, 0.0
        %vm4073 = vcmp.gt.f32.partialorder %v4062, 0.0
        %vm4074 = vcmp.gt.f32.partialorder %v4065, 0.0
        %v4075 = vmin.f32 %v4044, 0.0
        %v4076 = vmin.f32 %v4047, 0.0
        %v4077 = vmin.f32 %v4050, 0.0
        %v4078 = vmin.f32 %v4053, 0.0
        %v4079 = vmin.f32 %v4056, 0.0
        %v4080 = vmin.f32 %v4059, 0.0
        %v4081 = vmin.f32 %v4062, 0.0
        %v4082 = vmin.f32 %v4065, 0.0
        %v4083 = vmul.f32 %v4075, 1.442695
        %v4084 = vpow.pop %v4083
        %v4085 = vmul.f32 %v4076, 1.442695
        %v4086 = vpow.pop %v4085
        %v4087 = vmul.f32 %v4077, 1.442695
        %v4088 = vpow.pop %v4087
        %v4089 = vmul.f32 %v4078, 1.442695
        %v4090 = vpow.pop %v4089
        %v4091 = vmul.f32 %v4079, 1.442695
        %v4092 = vpow.pop %v4091
        %v4093 = vmul.f32 %v4080, 1.442695
        %v4094 = vpow.pop %v4093
        %v4095 = vmul.f32 %v4081, 1.442695
        %v4096 = vpow.pop %v4095
        %v4097 = vmul.f32 %v4082, 1.442695
        %v4098 = vpow.pop %v4097
        %v4099 = vsub.f32 %v4084, 1.0
        %v4100 = vsub.f32 %v4086, 1.0
        %v4101 = vsub.f32 %v4088, 1.0
        %v4102 = vsub.f32 %v4090, 1.0
        %v4103 = vsub.f32 %v4092, 1.0
        %v4104 = vsub.f32 %v4094, 1.0
        %v4105 = vsub.f32 %v4096, 1.0
        %v4106 = vsub.f32 %v4098, 1.0
        %v4107 = vsel %vm4067, %v4044, %v4099
        %v4108 = vsel %vm4068, %v4047, %v4100
        %v4109 = vsel %vm4069, %v4050, %v4101
        %v4110 = vsel %vm4070, %v4053, %v4102
        %v4111 = vsel %vm4071, %v4056, %v4103
        %v4112 = vsel %vm4072, %v4059, %v4104
        %v4113 = vsel %vm4073, %v4062, %v4105
        %v4114 = vsel %vm4074, %v4065, %v4106
        %s4115 = scalar_lea.vmem [#allocation6], 1024
        %v4116 = vld [vmem:[%s4115] sm:$0xff]
        %v4117 = vld [vmem:[%s4115 + $0x8] sm:$0xff]
        %v4118 = vld [vmem:[%s4115 + $0x10] sm:$0xff]
        %v4119 = vld [vmem:[%s4115 + $0x18] sm:$0xff]
        %v4120 = vld [vmem:[%s4115 + $0x20] sm:$0xff]
        %v4121 = vld [vmem:[%s4115 + $0x28] sm:$0xff]
        %v4122 = vld [vmem:[%s4115 + $0x30] sm:$0xff]
        %v4123 = vld [vmem:[%s4115 + $0x38] sm:$0xff]
        %v4124 = vld [vmem:[%s4115 + $0x40] sm:$0xff]
        %v4125 = vld [vmem:[%s4115 + $0x48] sm:$0xff]
        %v4126 = vld [vmem:[%s4115 + $0x50] sm:$0xff]
        %v4127 = vld [vmem:[%s4115 + $0x58] sm:$0xff]
        %v4128 = vld [vmem:[%s4115 + $0x60] sm:$0xff]
        %v4129 = vld [vmem:[%s4115 + $0x68] sm:$0xff]
        %v4130 = vld [vmem:[%s4115 + $0x70] sm:$0xff]
        %v4131 = vld [vmem:[%s4115 + $0x78] sm:$0xff]
        %v4133 = vsel %vm1298, %v4107, 0
        %v4136 = vsel %vm1298, %v4108, 0
        %v4139 = vsel %vm1298, %v4109, 0
        %v4142 = vsel %vm1298, %v4110, 0
        %v4145 = vsel %vm1298, %v4111, 0
        %v4148 = vsel %vm1298, %v4112, 0
        %v4151 = vsel %vm1298, %v4113, 0
        %v4154 = vsel %vm1298, %v4114, 0
        %4156 = vmatpush.msra.mxu0 0.0
        %4157 = vmatpush.msra.mxu0 0.0
        %4158 = vmatpush.msra.mxu0 0.0
        %4159 = vmatpush.msra.mxu0 0.0
        %4160 = vmatpush.msra.mxu0 0.0
        %4161 = vmatpush.msra.mxu0 0.0
        %4162 = vmatpush.msra.mxu0 0.0
        %4163 = vmatpush.msra.mxu0 0.0
        %4164 = vmatpush.msra.mxu0 %v4130
        %4165 = vmatpush.msra.mxu0 %v4128
        %4166 = vmatpush.msra.mxu0 %v4126
        %4167 = vmatpush.msra.mxu0 %v4124
        %4168 = vmatpush.msra.mxu0 %v4122
        %4169 = vmatpush.msra.mxu0 %v4120
        %4170 = vmatpush.msra.mxu0 %v4118
        %4171 = vmatpush.msra.mxu0 %v4116
        %4172 = vmatmul.f32.gmra.mxu0 %v4133
        %v4173 = vpop.f32.mrf.mxu0
        %v4174 = vadd.f32 0.0, %v4173
        %4175 = vmatmul.f32.gmra.mxu0 %v4136
        %v4176 = vpop.f32.mrf.mxu0
        %v4177 = vadd.f32 0.0, %v4176
        %4178 = vmatmul.f32.gmra.mxu0 %v4139
        %v4179 = vpop.f32.mrf.mxu0
        %v4180 = vadd.f32 0.0, %v4179
        %4181 = vmatmul.f32.gmra.mxu0 %v4142
        %v4182 = vpop.f32.mrf.mxu0
        %v4183 = vadd.f32 0.0, %v4182
        %4184 = vmatmul.f32.gmra.mxu0 %v4145
        %v4185 = vpop.f32.mrf.mxu0
        %v4186 = vadd.f32 0.0, %v4185
        %4187 = vmatmul.f32.gmra.mxu0 %v4148
        %v4188 = vpop.f32.mrf.mxu0
        %v4189 = vadd.f32 0.0, %v4188
        %4190 = vmatmul.f32.gmra.mxu0 %v4151
        %v4191 = vpop.f32.mrf.mxu0
        %v4192 = vadd.f32 0.0, %v4191
        %4193 = vmatmul.f32.gmra.mxu0 %v4154
        %v4194 = vpop.f32.mrf.mxu0
        %v4195 = vadd.f32 0.0, %v4194
        %4196 = vdwg.mxu0
        %4197 = vmatpush.msra.mxu0 0.0
        %4198 = vmatpush.msra.mxu0 0.0
        %4199 = vmatpush.msra.mxu0 0.0
        %4200 = vmatpush.msra.mxu0 0.0
        %4201 = vmatpush.msra.mxu0 0.0
        %4202 = vmatpush.msra.mxu0 0.0
        %4203 = vmatpush.msra.mxu0 0.0
        %4204 = vmatpush.msra.mxu0 0.0
        %4205 = vmatpush.msra.mxu0 %v4131
        %4206 = vmatpush.msra.mxu0 %v4129
        %4207 = vmatpush.msra.mxu0 %v4127
        %4208 = vmatpush.msra.mxu0 %v4125
        %4209 = vmatpush.msra.mxu0 %v4123
        %4210 = vmatpush.msra.mxu0 %v4121
        %4211 = vmatpush.msra.mxu0 %v4119
        %4212 = vmatpush.msra.mxu0 %v4117
        %4213 = vmatmul.f32.gmra.mxu0 %v4133
        %v4214 = vpop.f32.mrf.mxu0
        %v4215 = vadd.f32 0.0, %v4214
        %4216 = vmatmul.f32.gmra.mxu0 %v4136
        %v4217 = vpop.f32.mrf.mxu0
        %v4218 = vadd.f32 0.0, %v4217
        %4219 = vmatmul.f32.gmra.mxu0 %v4139
        %v4220 = vpop.f32.mrf.mxu0
        %v4221 = vadd.f32 0.0, %v4220
        %4222 = vmatmul.f32.gmra.mxu0 %v4142
        %v4223 = vpop.f32.mrf.mxu0
        %v4224 = vadd.f32 0.0, %v4223
        %4225 = vmatmul.f32.gmra.mxu0 %v4145
        %v4226 = vpop.f32.mrf.mxu0
        %v4227 = vadd.f32 0.0, %v4226
        %4228 = vmatmul.f32.gmra.mxu0 %v4148
        %v4229 = vpop.f32.mrf.mxu0
        %v4230 = vadd.f32 0.0, %v4229
        %4231 = vmatmul.f32.gmra.mxu0 %v4151
        %v4232 = vpop.f32.mrf.mxu0
        %v4233 = vadd.f32 0.0, %v4232
        %4234 = vmatmul.f32.gmra.mxu0 %v4154
        %v4235 = vpop.f32.mrf.mxu0
        %v4236 = vadd.f32 0.0, %v4235
        %4237 = vdwg.mxu0
        %v4238 = vadd.f32 %v3920, %v4174
        %v4239 = vadd.f32 %v3921, %v4215
        %v4240 = vadd.f32 %v3922, %v4177
        %v4241 = vadd.f32 %v3923, %v4218
        %v4242 = vadd.f32 %v3924, %v4180
        %v4243 = vadd.f32 %v3925, %v4221
        %v4244 = vadd.f32 %v3926, %v4183
        %v4245 = vadd.f32 %v3927, %v4224
        %v4246 = vadd.f32 %v3928, %v4186
        %v4247 = vadd.f32 %v3929, %v4227
        %v4248 = vadd.f32 %v3930, %v4189
        %v4249 = vadd.f32 %v3931, %v4230
        %v4250 = vadd.f32 %v3932, %v4192
        %v4251 = vadd.f32 %v3933, %v4233
        %v4252 = vadd.f32 %v3934, %v4195
        %v4253 = vadd.f32 %v3935, %v4236
        %v4254 = vld [vmem:[#allocation2 + $0x240] sm:$0xff]
        %v4255 = vld [vmem:[#allocation2 + $0x248] sm:$0xff]
        %v4256 = vld [vmem:[#allocation2 + $0x250] sm:$0xff]
        %v4257 = vld [vmem:[#allocation2 + $0x258] sm:$0xff]
        %v4258 = vld [vmem:[#allocation2 + $0x260] sm:$0xff]
        %v4259 = vld [vmem:[#allocation2 + $0x268] sm:$0xff]
        %v4260 = vld [vmem:[#allocation2 + $0x270] sm:$0xff]
        %v4261 = vld [vmem:[#allocation2 + $0x278] sm:$0xff]
        %s4262 = scalar_lea.vmem [#allocation3], 576
        %v4263 = vld [vmem:[%s4262] sm:$0xff]
        %v4264 = vld [vmem:[%s4262 + $0x8] sm:$0xff]
        %v4265 = vld [vmem:[%s4262 + $0x10] sm:$0xff]
        %v4266 = vld [vmem:[%s4262 + $0x18] sm:$0xff]
        %v4267 = vld [vmem:[%s4262 + $0x20] sm:$0xff]
        %v4268 = vld [vmem:[%s4262 + $0x28] sm:$0xff]
        %v4269 = vld [vmem:[%s4262 + $0x30] sm:$0xff]
        %v4270 = vld [vmem:[%s4262 + $0x38] sm:$0xff]
        %s4271 = scalar_lea.vmem %s3, 576
        %v4272 = vld [vmem:[%s4271] sm:$0xff]
        %v4273 = vld [vmem:[%s4271 + $0x8] sm:$0xff]
        %v4274 = vld [vmem:[%s4271 + $0x10] sm:$0xff]
        %v4275 = vld [vmem:[%s4271 + $0x18] sm:$0xff]
        %v4276 = vld [vmem:[%s4271 + $0x20] sm:$0xff]
        %v4277 = vld [vmem:[%s4271 + $0x28] sm:$0xff]
        %v4278 = vld [vmem:[%s4271 + $0x30] sm:$0xff]
        %v4279 = vld [vmem:[%s4271 + $0x38] sm:$0xff]
        %4281 = vset.pattern.permute.xlu0 0
        %4282 = vperm.xlu0 %4281, %v4272
        %v4283 = vpop.permute.xlu0 %4282
        %4286 = vset.pattern.permute.xlu0 0
        %4287 = vperm.xlu0 %4286, %v4273
        %v4288 = vpop.permute.xlu0 %4287
        %4291 = vset.pattern.permute.xlu0 0
        %4292 = vperm.xlu0 %4291, %v4274
        %v4293 = vpop.permute.xlu0 %4292
        %4296 = vset.pattern.permute.xlu0 0
        %4297 = vperm.xlu0 %4296, %v4275
        %v4298 = vpop.permute.xlu0 %4297
        %4301 = vset.pattern.permute.xlu0 0
        %4302 = vperm.xlu0 %4301, %v4276
        %v4303 = vpop.permute.xlu0 %4302
        %4306 = vset.pattern.permute.xlu0 0
        %4307 = vperm.xlu0 %4306, %v4277
        %v4308 = vpop.permute.xlu0 %4307
        %4311 = vset.pattern.permute.xlu0 0
        %4312 = vperm.xlu0 %4311, %v4278
        %v4313 = vpop.permute.xlu0 %4312
        %4316 = vset.pattern.permute.xlu0 0
        %4317 = vperm.xlu0 %4316, %v4279
        %v4318 = vpop.permute.xlu0 %4317
        %v4321 = vsel %vm1298, %v4254, 0
        %v4324 = vsel %vm1298, %v4255, 0
        %v4327 = vsel %vm1298, %v4256, 0
        %v4330 = vsel %vm1298, %v4257, 0
        %v4333 = vsel %vm1298, %v4258, 0
        %v4336 = vsel %vm1298, %v4259, 0
        %v4339 = vsel %vm1298, %v4260, 0
        %v4342 = vsel %vm1298, %v4261, 0
        %4344 = vmatpush.msra.mxu0 0.0
        %4345 = vmatpush.msra.mxu0 0.0
        %4346 = vmatpush.msra.mxu0 0.0
        %4347 = vmatpush.msra.mxu0 0.0
        %4348 = vmatpush.msra.mxu0 0.0
        %4349 = vmatpush.msra.mxu0 0.0
        %4350 = vmatpush.msra.mxu0 0.0
        %4351 = vmatpush.msra.mxu0 0.0
        %4352 = vmatpush.msra.mxu0 %v4270
        %4353 = vmatpush.msra.mxu0 %v4269
        %4354 = vmatpush.msra.mxu0 %v4268
        %4355 = vmatpush.msra.mxu0 %v4267
        %4356 = vmatpush.msra.mxu0 %v4266
        %4357 = vmatpush.msra.mxu0 %v4265
        %4358 = vmatpush.msra.mxu0 %v4264
        %4359 = vmatpush.msra.mxu0 %v4263
        %4360 = vmatmul.f32.gmra.mxu0 %v4321
        %v4361 = vpop.f32.mrf.mxu0
        %v4362 = vadd.f32 %v4283, %v4361
        %4363 = vmatmul.f32.gmra.mxu0 %v4324
        %v4364 = vpop.f32.mrf.mxu0
        %v4365 = vadd.f32 %v4288, %v4364
        %4366 = vmatmul.f32.gmra.mxu0 %v4327
        %v4367 = vpop.f32.mrf.mxu0
        %v4368 = vadd.f32 %v4293, %v4367
        %4369 = vmatmul.f32.gmra.mxu0 %v4330
        %v4370 = vpop.f32.mrf.mxu0
        %v4371 = vadd.f32 %v4298, %v4370
        %4372 = vmatmul.f32.gmra.mxu0 %v4333
        %v4373 = vpop.f32.mrf.mxu0
        %v4374 = vadd.f32 %v4303, %v4373
        %4375 = vmatmul.f32.gmra.mxu0 %v4336
        %v4376 = vpop.f32.mrf.mxu0
        %v4377 = vadd.f32 %v4308, %v4376
        %4378 = vmatmul.f32.gmra.mxu0 %v4339
        %v4379 = vpop.f32.mrf.mxu0
        %v4380 = vadd.f32 %v4313, %v4379
        %4381 = vmatmul.f32.gmra.mxu0 %v4342
        %v4382 = vpop.f32.mrf.mxu0
        %v4383 = vadd.f32 %v4318, %v4382
        %4384 = vdwg.mxu0
        %vm4385 = vcmp.gt.f32.partialorder %v4362, 0.0
        %vm4386 = vcmp.gt.f32.partialorder %v4365, 0.0
        %vm4387 = vcmp.gt.f32.partialorder %v4368, 0.0
        %vm4388 = vcmp.gt.f32.partialorder %v4371, 0.0
        %vm4389 = vcmp.gt.f32.partialorder %v4374, 0.0
        %vm4390 = vcmp.gt.f32.partialorder %v4377, 0.0
        %vm4391 = vcmp.gt.f32.partialorder %v4380, 0.0
        %vm4392 = vcmp.gt.f32.partialorder %v4383, 0.0
        %v4393 = vmin.f32 %v4362, 0.0
        %v4394 = vmin.f32 %v4365, 0.0
        %v4395 = vmin.f32 %v4368, 0.0
        %v4396 = vmin.f32 %v4371, 0.0
        %v4397 = vmin.f32 %v4374, 0.0
        %v4398 = vmin.f32 %v4377, 0.0
        %v4399 = vmin.f32 %v4380, 0.0
        %v4400 = vmin.f32 %v4383, 0.0
        %v4401 = vmul.f32 %v4393, 1.442695
        %v4402 = vpow.pop %v4401
        %v4403 = vmul.f32 %v4394, 1.442695
        %v4404 = vpow.pop %v4403
        %v4405 = vmul.f32 %v4395, 1.442695
        %v4406 = vpow.pop %v4405
        %v4407 = vmul.f32 %v4396, 1.442695
        %v4408 = vpow.pop %v4407
        %v4409 = vmul.f32 %v4397, 1.442695
        %v4410 = vpow.pop %v4409
        %v4411 = vmul.f32 %v4398, 1.442695
        %v4412 = vpow.pop %v4411
        %v4413 = vmul.f32 %v4399, 1.442695
        %v4414 = vpow.pop %v4413
        %v4415 = vmul.f32 %v4400, 1.442695
        %v4416 = vpow.pop %v4415
        %v4417 = vsub.f32 %v4402, 1.0
        %v4418 = vsub.f32 %v4404, 1.0
        %v4419 = vsub.f32 %v4406, 1.0
        %v4420 = vsub.f32 %v4408, 1.0
        %v4421 = vsub.f32 %v4410, 1.0
        %v4422 = vsub.f32 %v4412, 1.0
        %v4423 = vsub.f32 %v4414, 1.0
        %v4424 = vsub.f32 %v4416, 1.0
        %v4425 = vsel %vm4385, %v4362, %v4417
        %v4426 = vsel %vm4386, %v4365, %v4418
        %v4427 = vsel %vm4387, %v4368, %v4419
        %v4428 = vsel %vm4388, %v4371, %v4420
        %v4429 = vsel %vm4389, %v4374, %v4421
        %v4430 = vsel %vm4390, %v4377, %v4422
        %v4431 = vsel %vm4391, %v4380, %v4423
        %v4432 = vsel %vm4392, %v4383, %v4424
        %s4433 = scalar_lea.vmem [#allocation6], 1152
        %v4434 = vld [vmem:[%s4433] sm:$0xff]
        %v4435 = vld [vmem:[%s4433 + $0x8] sm:$0xff]
        %v4436 = vld [vmem:[%s4433 + $0x10] sm:$0xff]
        %v4437 = vld [vmem:[%s4433 + $0x18] sm:$0xff]
        %v4438 = vld [vmem:[%s4433 + $0x20] sm:$0xff]
        %v4439 = vld [vmem:[%s4433 + $0x28] sm:$0xff]
        %v4440 = vld [vmem:[%s4433 + $0x30] sm:$0xff]
        %v4441 = vld [vmem:[%s4433 + $0x38] sm:$0xff]
        %v4442 = vld [vmem:[%s4433 + $0x40] sm:$0xff]
        %v4443 = vld [vmem:[%s4433 + $0x48] sm:$0xff]
        %v4444 = vld [vmem:[%s4433 + $0x50] sm:$0xff]
        %v4445 = vld [vmem:[%s4433 + $0x58] sm:$0xff]
        %v4446 = vld [vmem:[%s4433 + $0x60] sm:$0xff]
        %v4447 = vld [vmem:[%s4433 + $0x68] sm:$0xff]
        %v4448 = vld [vmem:[%s4433 + $0x70] sm:$0xff]
        %v4449 = vld [vmem:[%s4433 + $0x78] sm:$0xff]
        %v4451 = vsel %vm1298, %v4425, 0
        %v4454 = vsel %vm1298, %v4426, 0
        %v4457 = vsel %vm1298, %v4427, 0
        %v4460 = vsel %vm1298, %v4428, 0
        %v4463 = vsel %vm1298, %v4429, 0
        %v4466 = vsel %vm1298, %v4430, 0
        %v4469 = vsel %vm1298, %v4431, 0
        %v4472 = vsel %vm1298, %v4432, 0
        %4474 = vmatpush.msra.mxu0 0.0
        %4475 = vmatpush.msra.mxu0 0.0
        %4476 = vmatpush.msra.mxu0 0.0
        %4477 = vmatpush.msra.mxu0 0.0
        %4478 = vmatpush.msra.mxu0 0.0
        %4479 = vmatpush.msra.mxu0 0.0
        %4480 = vmatpush.msra.mxu0 0.0
        %4481 = vmatpush.msra.mxu0 0.0
        %4482 = vmatpush.msra.mxu0 %v4448
        %4483 = vmatpush.msra.mxu0 %v4446
        %4484 = vmatpush.msra.mxu0 %v4444
        %4485 = vmatpush.msra.mxu0 %v4442
        %4486 = vmatpush.msra.mxu0 %v4440
        %4487 = vmatpush.msra.mxu0 %v4438
        %4488 = vmatpush.msra.mxu0 %v4436
        %4489 = vmatpush.msra.mxu0 %v4434
        %4490 = vmatmul.f32.gmra.mxu0 %v4451
        %v4491 = vpop.f32.mrf.mxu0
        %v4492 = vadd.f32 0.0, %v4491
        %4493 = vmatmul.f32.gmra.mxu0 %v4454
        %v4494 = vpop.f32.mrf.mxu0
        %v4495 = vadd.f32 0.0, %v4494
        %4496 = vmatmul.f32.gmra.mxu0 %v4457
        %v4497 = vpop.f32.mrf.mxu0
        %v4498 = vadd.f32 0.0, %v4497
        %4499 = vmatmul.f32.gmra.mxu0 %v4460
        %v4500 = vpop.f32.mrf.mxu0
        %v4501 = vadd.f32 0.0, %v4500
        %4502 = vmatmul.f32.gmra.mxu0 %v4463
        %v4503 = vpop.f32.mrf.mxu0
        %v4504 = vadd.f32 0.0, %v4503
        %4505 = vmatmul.f32.gmra.mxu0 %v4466
        %v4506 = vpop.f32.mrf.mxu0
        %v4507 = vadd.f32 0.0, %v4506
        %4508 = vmatmul.f32.gmra.mxu0 %v4469
        %v4509 = vpop.f32.mrf.mxu0
        %v4510 = vadd.f32 0.0, %v4509
        %4511 = vmatmul.f32.gmra.mxu0 %v4472
        %v4512 = vpop.f32.mrf.mxu0
        %v4513 = vadd.f32 0.0, %v4512
        %4514 = vdwg.mxu0
        %4515 = vmatpush.msra.mxu0 0.0
        %4516 = vmatpush.msra.mxu0 0.0
        %4517 = vmatpush.msra.mxu0 0.0
        %4518 = vmatpush.msra.mxu0 0.0
        %4519 = vmatpush.msra.mxu0 0.0
        %4520 = vmatpush.msra.mxu0 0.0
        %4521 = vmatpush.msra.mxu0 0.0
        %4522 = vmatpush.msra.mxu0 0.0
        %4523 = vmatpush.msra.mxu0 %v4449
        %4524 = vmatpush.msra.mxu0 %v4447
        %4525 = vmatpush.msra.mxu0 %v4445
        %4526 = vmatpush.msra.mxu0 %v4443
        %4527 = vmatpush.msra.mxu0 %v4441
        %4528 = vmatpush.msra.mxu0 %v4439
        %4529 = vmatpush.msra.mxu0 %v4437
        %4530 = vmatpush.msra.mxu0 %v4435
        %4531 = vmatmul.f32.gmra.mxu0 %v4451
        %v4532 = vpop.f32.mrf.mxu0
        %v4533 = vadd.f32 0.0, %v4532
        %4534 = vmatmul.f32.gmra.mxu0 %v4454
        %v4535 = vpop.f32.mrf.mxu0
        %v4536 = vadd.f32 0.0, %v4535
        %4537 = vmatmul.f32.gmra.mxu0 %v4457
        %v4538 = vpop.f32.mrf.mxu0
        %v4539 = vadd.f32 0.0, %v4538
        %4540 = vmatmul.f32.gmra.mxu0 %v4460
        %v4541 = vpop.f32.mrf.mxu0
        %v4542 = vadd.f32 0.0, %v4541
        %4543 = vmatmul.f32.gmra.mxu0 %v4463
        %v4544 = vpop.f32.mrf.mxu0
        %v4545 = vadd.f32 0.0, %v4544
        %4546 = vmatmul.f32.gmra.mxu0 %v4466
        %v4547 = vpop.f32.mrf.mxu0
        %v4548 = vadd.f32 0.0, %v4547
        %4549 = vmatmul.f32.gmra.mxu0 %v4469
        %v4550 = vpop.f32.mrf.mxu0
        %v4551 = vadd.f32 0.0, %v4550
        %4552 = vmatmul.f32.gmra.mxu0 %v4472
        %v4553 = vpop.f32.mrf.mxu0
        %v4554 = vadd.f32 0.0, %v4553
        %4555 = vdwg.mxu0
        %v4556 = vadd.f32 %v4238, %v4492
        %v4557 = vadd.f32 %v4239, %v4533
        %v4558 = vadd.f32 %v4240, %v4495
        %v4559 = vadd.f32 %v4241, %v4536
        %v4560 = vadd.f32 %v4242, %v4498
        %v4561 = vadd.f32 %v4243, %v4539
        %v4562 = vadd.f32 %v4244, %v4501
        %v4563 = vadd.f32 %v4245, %v4542
        %v4564 = vadd.f32 %v4246, %v4504
        %v4565 = vadd.f32 %v4247, %v4545
        %v4566 = vadd.f32 %v4248, %v4507
        %v4567 = vadd.f32 %v4249, %v4548
        %v4568 = vadd.f32 %v4250, %v4510
        %v4569 = vadd.f32 %v4251, %v4551
        %v4570 = vadd.f32 %v4252, %v4513
        %v4571 = vadd.f32 %v4253, %v4554
        %v4572 = vld [vmem:[#allocation2 + $0x280] sm:$0xff]
        %v4573 = vld [vmem:[#allocation2 + $0x288] sm:$0xff]
        %v4574 = vld [vmem:[#allocation2 + $0x290] sm:$0xff]
        %v4575 = vld [vmem:[#allocation2 + $0x298] sm:$0xff]
        %v4576 = vld [vmem:[#allocation2 + $0x2a0] sm:$0xff]
        %v4577 = vld [vmem:[#allocation2 + $0x2a8] sm:$0xff]
        %v4578 = vld [vmem:[#allocation2 + $0x2b0] sm:$0xff]
        %v4579 = vld [vmem:[#allocation2 + $0x2b8] sm:$0xff]
        %s4580 = scalar_lea.vmem [#allocation3], 640
        %v4581 = vld [vmem:[%s4580] sm:$0xff]
        %v4582 = vld [vmem:[%s4580 + $0x8] sm:$0xff]
        %v4583 = vld [vmem:[%s4580 + $0x10] sm:$0xff]
        %v4584 = vld [vmem:[%s4580 + $0x18] sm:$0xff]
        %v4585 = vld [vmem:[%s4580 + $0x20] sm:$0xff]
        %v4586 = vld [vmem:[%s4580 + $0x28] sm:$0xff]
        %v4587 = vld [vmem:[%s4580 + $0x30] sm:$0xff]
        %v4588 = vld [vmem:[%s4580 + $0x38] sm:$0xff]
        %s4589 = scalar_lea.vmem %s3, 640
        %v4590 = vld [vmem:[%s4589] sm:$0xff]
        %v4591 = vld [vmem:[%s4589 + $0x8] sm:$0xff]
        %v4592 = vld [vmem:[%s4589 + $0x10] sm:$0xff]
        %v4593 = vld [vmem:[%s4589 + $0x18] sm:$0xff]
        %v4594 = vld [vmem:[%s4589 + $0x20] sm:$0xff]
        %v4595 = vld [vmem:[%s4589 + $0x28] sm:$0xff]
        %v4596 = vld [vmem:[%s4589 + $0x30] sm:$0xff]
        %v4597 = vld [vmem:[%s4589 + $0x38] sm:$0xff]
        %4599 = vset.pattern.permute.xlu0 0
        %4600 = vperm.xlu0 %4599, %v4590
        %v4601 = vpop.permute.xlu0 %4600
        %4604 = vset.pattern.permute.xlu0 0
        %4605 = vperm.xlu0 %4604, %v4591
        %v4606 = vpop.permute.xlu0 %4605
        %4609 = vset.pattern.permute.xlu0 0
        %4610 = vperm.xlu0 %4609, %v4592
        %v4611 = vpop.permute.xlu0 %4610
        %4614 = vset.pattern.permute.xlu0 0
        %4615 = vperm.xlu0 %4614, %v4593
        %v4616 = vpop.permute.xlu0 %4615
        %4619 = vset.pattern.permute.xlu0 0
        %4620 = vperm.xlu0 %4619, %v4594
        %v4621 = vpop.permute.xlu0 %4620
        %4624 = vset.pattern.permute.xlu0 0
        %4625 = vperm.xlu0 %4624, %v4595
        %v4626 = vpop.permute.xlu0 %4625
        %4629 = vset.pattern.permute.xlu0 0
        %4630 = vperm.xlu0 %4629, %v4596
        %v4631 = vpop.permute.xlu0 %4630
        %4634 = vset.pattern.permute.xlu0 0
        %4635 = vperm.xlu0 %4634, %v4597
        %v4636 = vpop.permute.xlu0 %4635
        %v4639 = vsel %vm1298, %v4572, 0
        %v4642 = vsel %vm1298, %v4573, 0
        %v4645 = vsel %vm1298, %v4574, 0
        %v4648 = vsel %vm1298, %v4575, 0
        %v4651 = vsel %vm1298, %v4576, 0
        %v4654 = vsel %vm1298, %v4577, 0
        %v4657 = vsel %vm1298, %v4578, 0
        %v4660 = vsel %vm1298, %v4579, 0
        %4662 = vmatpush.msra.mxu0 0.0
        %4663 = vmatpush.msra.mxu0 0.0
        %4664 = vmatpush.msra.mxu0 0.0
        %4665 = vmatpush.msra.mxu0 0.0
        %4666 = vmatpush.msra.mxu0 0.0
        %4667 = vmatpush.msra.mxu0 0.0
        %4668 = vmatpush.msra.mxu0 0.0
        %4669 = vmatpush.msra.mxu0 0.0
        %4670 = vmatpush.msra.mxu0 %v4588
        %4671 = vmatpush.msra.mxu0 %v4587
        %4672 = vmatpush.msra.mxu0 %v4586
        %4673 = vmatpush.msra.mxu0 %v4585
        %4674 = vmatpush.msra.mxu0 %v4584
        %4675 = vmatpush.msra.mxu0 %v4583
        %4676 = vmatpush.msra.mxu0 %v4582
        %4677 = vmatpush.msra.mxu0 %v4581
        %4678 = vmatmul.f32.gmra.mxu0 %v4639
        %v4679 = vpop.f32.mrf.mxu0
        %v4680 = vadd.f32 %v4601, %v4679
        %4681 = vmatmul.f32.gmra.mxu0 %v4642
        %v4682 = vpop.f32.mrf.mxu0
        %v4683 = vadd.f32 %v4606, %v4682
        %4684 = vmatmul.f32.gmra.mxu0 %v4645
        %v4685 = vpop.f32.mrf.mxu0
        %v4686 = vadd.f32 %v4611, %v4685
        %4687 = vmatmul.f32.gmra.mxu0 %v4648
        %v4688 = vpop.f32.mrf.mxu0
        %v4689 = vadd.f32 %v4616, %v4688
        %4690 = vmatmul.f32.gmra.mxu0 %v4651
        %v4691 = vpop.f32.mrf.mxu0
        %v4692 = vadd.f32 %v4621, %v4691
        %4693 = vmatmul.f32.gmra.mxu0 %v4654
        %v4694 = vpop.f32.mrf.mxu0
        %v4695 = vadd.f32 %v4626, %v4694
        %4696 = vmatmul.f32.gmra.mxu0 %v4657
        %v4697 = vpop.f32.mrf.mxu0
        %v4698 = vadd.f32 %v4631, %v4697
        %4699 = vmatmul.f32.gmra.mxu0 %v4660
        %v4700 = vpop.f32.mrf.mxu0
        %v4701 = vadd.f32 %v4636, %v4700
        %4702 = vdwg.mxu0
        %vm4703 = vcmp.gt.f32.partialorder %v4680, 0.0
        %vm4704 = vcmp.gt.f32.partialorder %v4683, 0.0
        %vm4705 = vcmp.gt.f32.partialorder %v4686, 0.0
        %vm4706 = vcmp.gt.f32.partialorder %v4689, 0.0
        %vm4707 = vcmp.gt.f32.partialorder %v4692, 0.0
        %vm4708 = vcmp.gt.f32.partialorder %v4695, 0.0
        %vm4709 = vcmp.gt.f32.partialorder %v4698, 0.0
        %vm4710 = vcmp.gt.f32.partialorder %v4701, 0.0
        %v4711 = vmin.f32 %v4680, 0.0
        %v4712 = vmin.f32 %v4683, 0.0
        %v4713 = vmin.f32 %v4686, 0.0
        %v4714 = vmin.f32 %v4689, 0.0
        %v4715 = vmin.f32 %v4692, 0.0
        %v4716 = vmin.f32 %v4695, 0.0
        %v4717 = vmin.f32 %v4698, 0.0
        %v4718 = vmin.f32 %v4701, 0.0
        %v4719 = vmul.f32 %v4711, 1.442695
        %v4720 = vpow.pop %v4719
        %v4721 = vmul.f32 %v4712, 1.442695
        %v4722 = vpow.pop %v4721
        %v4723 = vmul.f32 %v4713, 1.442695
        %v4724 = vpow.pop %v4723
        %v4725 = vmul.f32 %v4714, 1.442695
        %v4726 = vpow.pop %v4725
        %v4727 = vmul.f32 %v4715, 1.442695
        %v4728 = vpow.pop %v4727
        %v4729 = vmul.f32 %v4716, 1.442695
        %v4730 = vpow.pop %v4729
        %v4731 = vmul.f32 %v4717, 1.442695
        %v4732 = vpow.pop %v4731
        %v4733 = vmul.f32 %v4718, 1.442695
        %v4734 = vpow.pop %v4733
        %v4735 = vsub.f32 %v4720, 1.0
        %v4736 = vsub.f32 %v4722, 1.0
        %v4737 = vsub.f32 %v4724, 1.0
        %v4738 = vsub.f32 %v4726, 1.0
        %v4739 = vsub.f32 %v4728, 1.0
        %v4740 = vsub.f32 %v4730, 1.0
        %v4741 = vsub.f32 %v4732, 1.0
        %v4742 = vsub.f32 %v4734, 1.0
        %v4743 = vsel %vm4703, %v4680, %v4735
        %v4744 = vsel %vm4704, %v4683, %v4736
        %v4745 = vsel %vm4705, %v4686, %v4737
        %v4746 = vsel %vm4706, %v4689, %v4738
        %v4747 = vsel %vm4707, %v4692, %v4739
        %v4748 = vsel %vm4708, %v4695, %v4740
        %v4749 = vsel %vm4709, %v4698, %v4741
        %v4750 = vsel %vm4710, %v4701, %v4742
        %s4751 = scalar_lea.vmem [#allocation6], 1280
        %v4752 = vld [vmem:[%s4751] sm:$0xff]
        %v4753 = vld [vmem:[%s4751 + $0x8] sm:$0xff]
        %v4754 = vld [vmem:[%s4751 + $0x10] sm:$0xff]
        %v4755 = vld [vmem:[%s4751 + $0x18] sm:$0xff]
        %v4756 = vld [vmem:[%s4751 + $0x20] sm:$0xff]
        %v4757 = vld [vmem:[%s4751 + $0x28] sm:$0xff]
        %v4758 = vld [vmem:[%s4751 + $0x30] sm:$0xff]
        %v4759 = vld [vmem:[%s4751 + $0x38] sm:$0xff]
        %v4760 = vld [vmem:[%s4751 + $0x40] sm:$0xff]
        %v4761 = vld [vmem:[%s4751 + $0x48] sm:$0xff]
        %v4762 = vld [vmem:[%s4751 + $0x50] sm:$0xff]
        %v4763 = vld [vmem:[%s4751 + $0x58] sm:$0xff]
        %v4764 = vld [vmem:[%s4751 + $0x60] sm:$0xff]
        %v4765 = vld [vmem:[%s4751 + $0x68] sm:$0xff]
        %v4766 = vld [vmem:[%s4751 + $0x70] sm:$0xff]
        %v4767 = vld [vmem:[%s4751 + $0x78] sm:$0xff]
        %v4769 = vsel %vm1298, %v4743, 0
        %v4772 = vsel %vm1298, %v4744, 0
        %v4775 = vsel %vm1298, %v4745, 0
        %v4778 = vsel %vm1298, %v4746, 0
        %v4781 = vsel %vm1298, %v4747, 0
        %v4784 = vsel %vm1298, %v4748, 0
        %v4787 = vsel %vm1298, %v4749, 0
        %v4790 = vsel %vm1298, %v4750, 0
        %4792 = vmatpush.msra.mxu0 0.0
        %4793 = vmatpush.msra.mxu0 0.0
        %4794 = vmatpush.msra.mxu0 0.0
        %4795 = vmatpush.msra.mxu0 0.0
        %4796 = vmatpush.msra.mxu0 0.0
        %4797 = vmatpush.msra.mxu0 0.0
        %4798 = vmatpush.msra.mxu0 0.0
        %4799 = vmatpush.msra.mxu0 0.0
        %4800 = vmatpush.msra.mxu0 %v4766
        %4801 = vmatpush.msra.mxu0 %v4764
        %4802 = vmatpush.msra.mxu0 %v4762
        %4803 = vmatpush.msra.mxu0 %v4760
        %4804 = vmatpush.msra.mxu0 %v4758
        %4805 = vmatpush.msra.mxu0 %v4756
        %4806 = vmatpush.msra.mxu0 %v4754
        %4807 = vmatpush.msra.mxu0 %v4752
        %4808 = vmatmul.f32.gmra.mxu0 %v4769
        %v4809 = vpop.f32.mrf.mxu0
        %v4810 = vadd.f32 0.0, %v4809
        %4811 = vmatmul.f32.gmra.mxu0 %v4772
        %v4812 = vpop.f32.mrf.mxu0
        %v4813 = vadd.f32 0.0, %v4812
        %4814 = vmatmul.f32.gmra.mxu0 %v4775
        %v4815 = vpop.f32.mrf.mxu0
        %v4816 = vadd.f32 0.0, %v4815
        %4817 = vmatmul.f32.gmra.mxu0 %v4778
        %v4818 = vpop.f32.mrf.mxu0
        %v4819 = vadd.f32 0.0, %v4818
        %4820 = vmatmul.f32.gmra.mxu0 %v4781
        %v4821 = vpop.f32.mrf.mxu0
        %v4822 = vadd.f32 0.0, %v4821
        %4823 = vmatmul.f32.gmra.mxu0 %v4784
        %v4824 = vpop.f32.mrf.mxu0
        %v4825 = vadd.f32 0.0, %v4824
        %4826 = vmatmul.f32.gmra.mxu0 %v4787
        %v4827 = vpop.f32.mrf.mxu0
        %v4828 = vadd.f32 0.0, %v4827
        %4829 = vmatmul.f32.gmra.mxu0 %v4790
        %v4830 = vpop.f32.mrf.mxu0
        %v4831 = vadd.f32 0.0, %v4830
        %4832 = vdwg.mxu0
        %4833 = vmatpush.msra.mxu0 0.0
        %4834 = vmatpush.msra.mxu0 0.0
        %4835 = vmatpush.msra.mxu0 0.0
        %4836 = vmatpush.msra.mxu0 0.0
        %4837 = vmatpush.msra.mxu0 0.0
        %4838 = vmatpush.msra.mxu0 0.0
        %4839 = vmatpush.msra.mxu0 0.0
        %4840 = vmatpush.msra.mxu0 0.0
        %4841 = vmatpush.msra.mxu0 %v4767
        %4842 = vmatpush.msra.mxu0 %v4765
        %4843 = vmatpush.msra.mxu0 %v4763
        %4844 = vmatpush.msra.mxu0 %v4761
        %4845 = vmatpush.msra.mxu0 %v4759
        %4846 = vmatpush.msra.mxu0 %v4757
        %4847 = vmatpush.msra.mxu0 %v4755
        %4848 = vmatpush.msra.mxu0 %v4753
        %4849 = vmatmul.f32.gmra.mxu0 %v4769
        %v4850 = vpop.f32.mrf.mxu0
        %v4851 = vadd.f32 0.0, %v4850
        %4852 = vmatmul.f32.gmra.mxu0 %v4772
        %v4853 = vpop.f32.mrf.mxu0
        %v4854 = vadd.f32 0.0, %v4853
        %4855 = vmatmul.f32.gmra.mxu0 %v4775
        %v4856 = vpop.f32.mrf.mxu0
        %v4857 = vadd.f32 0.0, %v4856
        %4858 = vmatmul.f32.gmra.mxu0 %v4778
        %v4859 = vpop.f32.mrf.mxu0
        %v4860 = vadd.f32 0.0, %v4859
        %4861 = vmatmul.f32.gmra.mxu0 %v4781
        %v4862 = vpop.f32.mrf.mxu0
        %v4863 = vadd.f32 0.0, %v4862
        %4864 = vmatmul.f32.gmra.mxu0 %v4784
        %v4865 = vpop.f32.mrf.mxu0
        %v4866 = vadd.f32 0.0, %v4865
        %4867 = vmatmul.f32.gmra.mxu0 %v4787
        %v4868 = vpop.f32.mrf.mxu0
        %v4869 = vadd.f32 0.0, %v4868
        %4870 = vmatmul.f32.gmra.mxu0 %v4790
        %v4871 = vpop.f32.mrf.mxu0
        %v4872 = vadd.f32 0.0, %v4871
        %4873 = vdwg.mxu0
        %v4874 = vadd.f32 %v4556, %v4810
        %v4875 = vadd.f32 %v4557, %v4851
        %v4876 = vadd.f32 %v4558, %v4813
        %v4877 = vadd.f32 %v4559, %v4854
        %v4878 = vadd.f32 %v4560, %v4816
        %v4879 = vadd.f32 %v4561, %v4857
        %v4880 = vadd.f32 %v4562, %v4819
        %v4881 = vadd.f32 %v4563, %v4860
        %v4882 = vadd.f32 %v4564, %v4822
        %v4883 = vadd.f32 %v4565, %v4863
        %v4884 = vadd.f32 %v4566, %v4825
        %v4885 = vadd.f32 %v4567, %v4866
        %v4886 = vadd.f32 %v4568, %v4828
        %v4887 = vadd.f32 %v4569, %v4869
        %v4888 = vadd.f32 %v4570, %v4831
        %v4889 = vadd.f32 %v4571, %v4872
        %v4890 = vld [vmem:[#allocation2 + $0x2c0] sm:$0xff]
        %v4891 = vld [vmem:[#allocation2 + $0x2c8] sm:$0xff]
        %v4892 = vld [vmem:[#allocation2 + $0x2d0] sm:$0xff]
        %v4893 = vld [vmem:[#allocation2 + $0x2d8] sm:$0xff]
        %v4894 = vld [vmem:[#allocation2 + $0x2e0] sm:$0xff]
        %v4895 = vld [vmem:[#allocation2 + $0x2e8] sm:$0xff]
        %v4896 = vld [vmem:[#allocation2 + $0x2f0] sm:$0xff]
        %v4897 = vld [vmem:[#allocation2 + $0x2f8] sm:$0xff]
        %s4898 = scalar_lea.vmem [#allocation3], 704
        %v4899 = vld [vmem:[%s4898] sm:$0xff]
        %v4900 = vld [vmem:[%s4898 + $0x8] sm:$0xff]
        %v4901 = vld [vmem:[%s4898 + $0x10] sm:$0xff]
        %v4902 = vld [vmem:[%s4898 + $0x18] sm:$0xff]
        %v4903 = vld [vmem:[%s4898 + $0x20] sm:$0xff]
        %v4904 = vld [vmem:[%s4898 + $0x28] sm:$0xff]
        %v4905 = vld [vmem:[%s4898 + $0x30] sm:$0xff]
        %v4906 = vld [vmem:[%s4898 + $0x38] sm:$0xff]
        %s4907 = scalar_lea.vmem %s3, 704
        %v4908 = vld [vmem:[%s4907] sm:$0xff]
        %v4909 = vld [vmem:[%s4907 + $0x8] sm:$0xff]
        %v4910 = vld [vmem:[%s4907 + $0x10] sm:$0xff]
        %v4911 = vld [vmem:[%s4907 + $0x18] sm:$0xff]
        %v4912 = vld [vmem:[%s4907 + $0x20] sm:$0xff]
        %v4913 = vld [vmem:[%s4907 + $0x28] sm:$0xff]
        %v4914 = vld [vmem:[%s4907 + $0x30] sm:$0xff]
        %v4915 = vld [vmem:[%s4907 + $0x38] sm:$0xff]
        %4917 = vset.pattern.permute.xlu0 0
        %4918 = vperm.xlu0 %4917, %v4908
        %v4919 = vpop.permute.xlu0 %4918
        %4922 = vset.pattern.permute.xlu0 0
        %4923 = vperm.xlu0 %4922, %v4909
        %v4924 = vpop.permute.xlu0 %4923
        %4927 = vset.pattern.permute.xlu0 0
        %4928 = vperm.xlu0 %4927, %v4910
        %v4929 = vpop.permute.xlu0 %4928
        %4932 = vset.pattern.permute.xlu0 0
        %4933 = vperm.xlu0 %4932, %v4911
        %v4934 = vpop.permute.xlu0 %4933
        %4937 = vset.pattern.permute.xlu0 0
        %4938 = vperm.xlu0 %4937, %v4912
        %v4939 = vpop.permute.xlu0 %4938
        %4942 = vset.pattern.permute.xlu0 0
        %4943 = vperm.xlu0 %4942, %v4913
        %v4944 = vpop.permute.xlu0 %4943
        %4947 = vset.pattern.permute.xlu0 0
        %4948 = vperm.xlu0 %4947, %v4914
        %v4949 = vpop.permute.xlu0 %4948
        %4952 = vset.pattern.permute.xlu0 0
        %4953 = vperm.xlu0 %4952, %v4915
        %v4954 = vpop.permute.xlu0 %4953
        %v4957 = vsel %vm1298, %v4890, 0
        %v4960 = vsel %vm1298, %v4891, 0
        %v4963 = vsel %vm1298, %v4892, 0
        %v4966 = vsel %vm1298, %v4893, 0
        %v4969 = vsel %vm1298, %v4894, 0
        %v4972 = vsel %vm1298, %v4895, 0
        %v4975 = vsel %vm1298, %v4896, 0
        %v4978 = vsel %vm1298, %v4897, 0
        %4980 = vmatpush.msra.mxu0 0.0
        %4981 = vmatpush.msra.mxu0 0.0
        %4982 = vmatpush.msra.mxu0 0.0
        %4983 = vmatpush.msra.mxu0 0.0
        %4984 = vmatpush.msra.mxu0 0.0
        %4985 = vmatpush.msra.mxu0 0.0
        %4986 = vmatpush.msra.mxu0 0.0
        %4987 = vmatpush.msra.mxu0 0.0
        %4988 = vmatpush.msra.mxu0 %v4906
        %4989 = vmatpush.msra.mxu0 %v4905
        %4990 = vmatpush.msra.mxu0 %v4904
        %4991 = vmatpush.msra.mxu0 %v4903
        %4992 = vmatpush.msra.mxu0 %v4902
        %4993 = vmatpush.msra.mxu0 %v4901
        %4994 = vmatpush.msra.mxu0 %v4900
        %4995 = vmatpush.msra.mxu0 %v4899
        %4996 = vmatmul.f32.gmra.mxu0 %v4957
        %v4997 = vpop.f32.mrf.mxu0
        %v4998 = vadd.f32 %v4919, %v4997
        %4999 = vmatmul.f32.gmra.mxu0 %v4960
        %v5000 = vpop.f32.mrf.mxu0
        %v5001 = vadd.f32 %v4924, %v5000
        %5002 = vmatmul.f32.gmra.mxu0 %v4963
        %v5003 = vpop.f32.mrf.mxu0
        %v5004 = vadd.f32 %v4929, %v5003
        %5005 = vmatmul.f32.gmra.mxu0 %v4966
        %v5006 = vpop.f32.mrf.mxu0
        %v5007 = vadd.f32 %v4934, %v5006
        %5008 = vmatmul.f32.gmra.mxu0 %v4969
        %v5009 = vpop.f32.mrf.mxu0
        %v5010 = vadd.f32 %v4939, %v5009
        %5011 = vmatmul.f32.gmra.mxu0 %v4972
        %v5012 = vpop.f32.mrf.mxu0
        %v5013 = vadd.f32 %v4944, %v5012
        %5014 = vmatmul.f32.gmra.mxu0 %v4975
        %v5015 = vpop.f32.mrf.mxu0
        %v5016 = vadd.f32 %v4949, %v5015
        %5017 = vmatmul.f32.gmra.mxu0 %v4978
        %v5018 = vpop.f32.mrf.mxu0
        %v5019 = vadd.f32 %v4954, %v5018
        %5020 = vdwg.mxu0
        %vm5021 = vcmp.gt.f32.partialorder %v4998, 0.0
        %vm5022 = vcmp.gt.f32.partialorder %v5001, 0.0
        %vm5023 = vcmp.gt.f32.partialorder %v5004, 0.0
        %vm5024 = vcmp.gt.f32.partialorder %v5007, 0.0
        %vm5025 = vcmp.gt.f32.partialorder %v5010, 0.0
        %vm5026 = vcmp.gt.f32.partialorder %v5013, 0.0
        %vm5027 = vcmp.gt.f32.partialorder %v5016, 0.0
        %vm5028 = vcmp.gt.f32.partialorder %v5019, 0.0
        %v5029 = vmin.f32 %v4998, 0.0
        %v5030 = vmin.f32 %v5001, 0.0
        %v5031 = vmin.f32 %v5004, 0.0
        %v5032 = vmin.f32 %v5007, 0.0
        %v5033 = vmin.f32 %v5010, 0.0
        %v5034 = vmin.f32 %v5013, 0.0
        %v5035 = vmin.f32 %v5016, 0.0
        %v5036 = vmin.f32 %v5019, 0.0
        %v5037 = vmul.f32 %v5029, 1.442695
        %v5038 = vpow.pop %v5037
        %v5039 = vmul.f32 %v5030, 1.442695
        %v5040 = vpow.pop %v5039
        %v5041 = vmul.f32 %v5031, 1.442695
        %v5042 = vpow.pop %v5041
        %v5043 = vmul.f32 %v5032, 1.442695
        %v5044 = vpow.pop %v5043
        %v5045 = vmul.f32 %v5033, 1.442695
        %v5046 = vpow.pop %v5045
        %v5047 = vmul.f32 %v5034, 1.442695
        %v5048 = vpow.pop %v5047
        %v5049 = vmul.f32 %v5035, 1.442695
        %v5050 = vpow.pop %v5049
        %v5051 = vmul.f32 %v5036, 1.442695
        %v5052 = vpow.pop %v5051
        %v5053 = vsub.f32 %v5038, 1.0
        %v5054 = vsub.f32 %v5040, 1.0
        %v5055 = vsub.f32 %v5042, 1.0
        %v5056 = vsub.f32 %v5044, 1.0
        %v5057 = vsub.f32 %v5046, 1.0
        %v5058 = vsub.f32 %v5048, 1.0
        %v5059 = vsub.f32 %v5050, 1.0
        %v5060 = vsub.f32 %v5052, 1.0
        %v5061 = vsel %vm5021, %v4998, %v5053
        %v5062 = vsel %vm5022, %v5001, %v5054
        %v5063 = vsel %vm5023, %v5004, %v5055
        %v5064 = vsel %vm5024, %v5007, %v5056
        %v5065 = vsel %vm5025, %v5010, %v5057
        %v5066 = vsel %vm5026, %v5013, %v5058
        %v5067 = vsel %vm5027, %v5016, %v5059
        %v5068 = vsel %vm5028, %v5019, %v5060
        %s5069 = scalar_lea.vmem [#allocation6], 1408
        %v5070 = vld [vmem:[%s5069] sm:$0xff]
        %v5071 = vld [vmem:[%s5069 + $0x8] sm:$0xff]
        %v5072 = vld [vmem:[%s5069 + $0x10] sm:$0xff]
        %v5073 = vld [vmem:[%s5069 + $0x18] sm:$0xff]
        %v5074 = vld [vmem:[%s5069 + $0x20] sm:$0xff]
        %v5075 = vld [vmem:[%s5069 + $0x28] sm:$0xff]
        %v5076 = vld [vmem:[%s5069 + $0x30] sm:$0xff]
        %v5077 = vld [vmem:[%s5069 + $0x38] sm:$0xff]
        %v5078 = vld [vmem:[%s5069 + $0x40] sm:$0xff]
        %v5079 = vld [vmem:[%s5069 + $0x48] sm:$0xff]
        %v5080 = vld [vmem:[%s5069 + $0x50] sm:$0xff]
        %v5081 = vld [vmem:[%s5069 + $0x58] sm:$0xff]
        %v5082 = vld [vmem:[%s5069 + $0x60] sm:$0xff]
        %v5083 = vld [vmem:[%s5069 + $0x68] sm:$0xff]
        %v5084 = vld [vmem:[%s5069 + $0x70] sm:$0xff]
        %v5085 = vld [vmem:[%s5069 + $0x78] sm:$0xff]
        %v5087 = vsel %vm1298, %v5061, 0
        %v5090 = vsel %vm1298, %v5062, 0
        %v5093 = vsel %vm1298, %v5063, 0
        %v5096 = vsel %vm1298, %v5064, 0
        %v5099 = vsel %vm1298, %v5065, 0
        %v5102 = vsel %vm1298, %v5066, 0
        %v5105 = vsel %vm1298, %v5067, 0
        %v5108 = vsel %vm1298, %v5068, 0
        %5110 = vmatpush.msra.mxu0 0.0
        %5111 = vmatpush.msra.mxu0 0.0
        %5112 = vmatpush.msra.mxu0 0.0
        %5113 = vmatpush.msra.mxu0 0.0
        %5114 = vmatpush.msra.mxu0 0.0
        %5115 = vmatpush.msra.mxu0 0.0
        %5116 = vmatpush.msra.mxu0 0.0
        %5117 = vmatpush.msra.mxu0 0.0
        %5118 = vmatpush.msra.mxu0 %v5084
        %5119 = vmatpush.msra.mxu0 %v5082
        %5120 = vmatpush.msra.mxu0 %v5080
        %5121 = vmatpush.msra.mxu0 %v5078
        %5122 = vmatpush.msra.mxu0 %v5076
        %5123 = vmatpush.msra.mxu0 %v5074
        %5124 = vmatpush.msra.mxu0 %v5072
        %5125 = vmatpush.msra.mxu0 %v5070
        %5126 = vmatmul.f32.gmra.mxu0 %v5087
        %v5127 = vpop.f32.mrf.mxu0
        %v5128 = vadd.f32 0.0, %v5127
        %5129 = vmatmul.f32.gmra.mxu0 %v5090
        %v5130 = vpop.f32.mrf.mxu0
        %v5131 = vadd.f32 0.0, %v5130
        %5132 = vmatmul.f32.gmra.mxu0 %v5093
        %v5133 = vpop.f32.mrf.mxu0
        %v5134 = vadd.f32 0.0, %v5133
        %5135 = vmatmul.f32.gmra.mxu0 %v5096
        %v5136 = vpop.f32.mrf.mxu0
        %v5137 = vadd.f32 0.0, %v5136
        %5138 = vmatmul.f32.gmra.mxu0 %v5099
        %v5139 = vpop.f32.mrf.mxu0
        %v5140 = vadd.f32 0.0, %v5139
        %5141 = vmatmul.f32.gmra.mxu0 %v5102
        %v5142 = vpop.f32.mrf.mxu0
        %v5143 = vadd.f32 0.0, %v5142
        %5144 = vmatmul.f32.gmra.mxu0 %v5105
        %v5145 = vpop.f32.mrf.mxu0
        %v5146 = vadd.f32 0.0, %v5145
        %5147 = vmatmul.f32.gmra.mxu0 %v5108
        %v5148 = vpop.f32.mrf.mxu0
        %v5149 = vadd.f32 0.0, %v5148
        %5150 = vdwg.mxu0
        %5151 = vmatpush.msra.mxu0 0.0
        %5152 = vmatpush.msra.mxu0 0.0
        %5153 = vmatpush.msra.mxu0 0.0
        %5154 = vmatpush.msra.mxu0 0.0
        %5155 = vmatpush.msra.mxu0 0.0
        %5156 = vmatpush.msra.mxu0 0.0
        %5157 = vmatpush.msra.mxu0 0.0
        %5158 = vmatpush.msra.mxu0 0.0
        %5159 = vmatpush.msra.mxu0 %v5085
        %5160 = vmatpush.msra.mxu0 %v5083
        %5161 = vmatpush.msra.mxu0 %v5081
        %5162 = vmatpush.msra.mxu0 %v5079
        %5163 = vmatpush.msra.mxu0 %v5077
        %5164 = vmatpush.msra.mxu0 %v5075
        %5165 = vmatpush.msra.mxu0 %v5073
        %5166 = vmatpush.msra.mxu0 %v5071
        %5167 = vmatmul.f32.gmra.mxu0 %v5087
        %v5168 = vpop.f32.mrf.mxu0
        %v5169 = vadd.f32 0.0, %v5168
        %5170 = vmatmul.f32.gmra.mxu0 %v5090
        %v5171 = vpop.f32.mrf.mxu0
        %v5172 = vadd.f32 0.0, %v5171
        %5173 = vmatmul.f32.gmra.mxu0 %v5093
        %v5174 = vpop.f32.mrf.mxu0
        %v5175 = vadd.f32 0.0, %v5174
        %5176 = vmatmul.f32.gmra.mxu0 %v5096
        %v5177 = vpop.f32.mrf.mxu0
        %v5178 = vadd.f32 0.0, %v5177
        %5179 = vmatmul.f32.gmra.mxu0 %v5099
        %v5180 = vpop.f32.mrf.mxu0
        %v5181 = vadd.f32 0.0, %v5180
        %5182 = vmatmul.f32.gmra.mxu0 %v5102
        %v5183 = vpop.f32.mrf.mxu0
        %v5184 = vadd.f32 0.0, %v5183
        %5185 = vmatmul.f32.gmra.mxu0 %v5105
        %v5186 = vpop.f32.mrf.mxu0
        %v5187 = vadd.f32 0.0, %v5186
        %5188 = vmatmul.f32.gmra.mxu0 %v5108
        %v5189 = vpop.f32.mrf.mxu0
        %v5190 = vadd.f32 0.0, %v5189
        %5191 = vdwg.mxu0
        %v5192 = vadd.f32 %v4874, %v5128
        %v5193 = vadd.f32 %v4875, %v5169
        %v5194 = vadd.f32 %v4876, %v5131
        %v5195 = vadd.f32 %v4877, %v5172
        %v5196 = vadd.f32 %v4878, %v5134
        %v5197 = vadd.f32 %v4879, %v5175
        %v5198 = vadd.f32 %v4880, %v5137
        %v5199 = vadd.f32 %v4881, %v5178
        %v5200 = vadd.f32 %v4882, %v5140
        %v5201 = vadd.f32 %v4883, %v5181
        %v5202 = vadd.f32 %v4884, %v5143
        %v5203 = vadd.f32 %v4885, %v5184
        %v5204 = vadd.f32 %v4886, %v5146
        %v5205 = vadd.f32 %v4887, %v5187
        %v5206 = vadd.f32 %v4888, %v5149
        %v5207 = vadd.f32 %v4889, %v5190
        %v5208 = vld [vmem:[#allocation2 + $0x300] sm:$0xff]
        %v5209 = vld [vmem:[#allocation2 + $0x308] sm:$0xff]
        %v5210 = vld [vmem:[#allocation2 + $0x310] sm:$0xff]
        %v5211 = vld [vmem:[#allocation2 + $0x318] sm:$0xff]
        %v5212 = vld [vmem:[#allocation2 + $0x320] sm:$0xff]
        %v5213 = vld [vmem:[#allocation2 + $0x328] sm:$0xff]
        %v5214 = vld [vmem:[#allocation2 + $0x330] sm:$0xff]
        %v5215 = vld [vmem:[#allocation2 + $0x338] sm:$0xff]
        %s5216 = scalar_lea.vmem [#allocation3], 768
        %v5217 = vld [vmem:[%s5216] sm:$0xff]
        %v5218 = vld [vmem:[%s5216 + $0x8] sm:$0xff]
        %v5219 = vld [vmem:[%s5216 + $0x10] sm:$0xff]
        %v5220 = vld [vmem:[%s5216 + $0x18] sm:$0xff]
        %v5221 = vld [vmem:[%s5216 + $0x20] sm:$0xff]
        %v5222 = vld [vmem:[%s5216 + $0x28] sm:$0xff]
        %v5223 = vld [vmem:[%s5216 + $0x30] sm:$0xff]
        %v5224 = vld [vmem:[%s5216 + $0x38] sm:$0xff]
        %s5225 = scalar_lea.vmem %s3, 768
        %v5226 = vld [vmem:[%s5225] sm:$0xff]
        %v5227 = vld [vmem:[%s5225 + $0x8] sm:$0xff]
        %v5228 = vld [vmem:[%s5225 + $0x10] sm:$0xff]
        %v5229 = vld [vmem:[%s5225 + $0x18] sm:$0xff]
        %v5230 = vld [vmem:[%s5225 + $0x20] sm:$0xff]
        %v5231 = vld [vmem:[%s5225 + $0x28] sm:$0xff]
        %v5232 = vld [vmem:[%s5225 + $0x30] sm:$0xff]
        %v5233 = vld [vmem:[%s5225 + $0x38] sm:$0xff]
        %5235 = vset.pattern.permute.xlu0 0
        %5236 = vperm.xlu0 %5235, %v5226
        %v5237 = vpop.permute.xlu0 %5236
        %5240 = vset.pattern.permute.xlu0 0
        %5241 = vperm.xlu0 %5240, %v5227
        %v5242 = vpop.permute.xlu0 %5241
        %5245 = vset.pattern.permute.xlu0 0
        %5246 = vperm.xlu0 %5245, %v5228
        %v5247 = vpop.permute.xlu0 %5246
        %5250 = vset.pattern.permute.xlu0 0
        %5251 = vperm.xlu0 %5250, %v5229
        %v5252 = vpop.permute.xlu0 %5251
        %5255 = vset.pattern.permute.xlu0 0
        %5256 = vperm.xlu0 %5255, %v5230
        %v5257 = vpop.permute.xlu0 %5256
        %5260 = vset.pattern.permute.xlu0 0
        %5261 = vperm.xlu0 %5260, %v5231
        %v5262 = vpop.permute.xlu0 %5261
        %5265 = vset.pattern.permute.xlu0 0
        %5266 = vperm.xlu0 %5265, %v5232
        %v5267 = vpop.permute.xlu0 %5266
        %5270 = vset.pattern.permute.xlu0 0
        %5271 = vperm.xlu0 %5270, %v5233
        %v5272 = vpop.permute.xlu0 %5271
        %v5275 = vsel %vm1298, %v5208, 0
        %v5278 = vsel %vm1298, %v5209, 0
        %v5281 = vsel %vm1298, %v5210, 0
        %v5284 = vsel %vm1298, %v5211, 0
        %v5287 = vsel %vm1298, %v5212, 0
        %v5290 = vsel %vm1298, %v5213, 0
        %v5293 = vsel %vm1298, %v5214, 0
        %v5296 = vsel %vm1298, %v5215, 0
        %5298 = vmatpush.msra.mxu0 0.0
        %5299 = vmatpush.msra.mxu0 0.0
        %5300 = vmatpush.msra.mxu0 0.0
        %5301 = vmatpush.msra.mxu0 0.0
        %5302 = vmatpush.msra.mxu0 0.0
        %5303 = vmatpush.msra.mxu0 0.0
        %5304 = vmatpush.msra.mxu0 0.0
        %5305 = vmatpush.msra.mxu0 0.0
        %5306 = vmatpush.msra.mxu0 %v5224
        %5307 = vmatpush.msra.mxu0 %v5223
        %5308 = vmatpush.msra.mxu0 %v5222
        %5309 = vmatpush.msra.mxu0 %v5221
        %5310 = vmatpush.msra.mxu0 %v5220
        %5311 = vmatpush.msra.mxu0 %v5219
        %5312 = vmatpush.msra.mxu0 %v5218
        %5313 = vmatpush.msra.mxu0 %v5217
        %5314 = vmatmul.f32.gmra.mxu0 %v5275
        %v5315 = vpop.f32.mrf.mxu0
        %v5316 = vadd.f32 %v5237, %v5315
        %5317 = vmatmul.f32.gmra.mxu0 %v5278
        %v5318 = vpop.f32.mrf.mxu0
        %v5319 = vadd.f32 %v5242, %v5318
        %5320 = vmatmul.f32.gmra.mxu0 %v5281
        %v5321 = vpop.f32.mrf.mxu0
        %v5322 = vadd.f32 %v5247, %v5321
        %5323 = vmatmul.f32.gmra.mxu0 %v5284
        %v5324 = vpop.f32.mrf.mxu0
        %v5325 = vadd.f32 %v5252, %v5324
        %5326 = vmatmul.f32.gmra.mxu0 %v5287
        %v5327 = vpop.f32.mrf.mxu0
        %v5328 = vadd.f32 %v5257, %v5327
        %5329 = vmatmul.f32.gmra.mxu0 %v5290
        %v5330 = vpop.f32.mrf.mxu0
        %v5331 = vadd.f32 %v5262, %v5330
        %5332 = vmatmul.f32.gmra.mxu0 %v5293
        %v5333 = vpop.f32.mrf.mxu0
        %v5334 = vadd.f32 %v5267, %v5333
        %5335 = vmatmul.f32.gmra.mxu0 %v5296
        %v5336 = vpop.f32.mrf.mxu0
        %v5337 = vadd.f32 %v5272, %v5336
        %5338 = vdwg.mxu0
        %vm5339 = vcmp.gt.f32.partialorder %v5316, 0.0
        %vm5340 = vcmp.gt.f32.partialorder %v5319, 0.0
        %vm5341 = vcmp.gt.f32.partialorder %v5322, 0.0
        %vm5342 = vcmp.gt.f32.partialorder %v5325, 0.0
        %vm5343 = vcmp.gt.f32.partialorder %v5328, 0.0
        %vm5344 = vcmp.gt.f32.partialorder %v5331, 0.0
        %vm5345 = vcmp.gt.f32.partialorder %v5334, 0.0
        %vm5346 = vcmp.gt.f32.partialorder %v5337, 0.0
        %v5347 = vmin.f32 %v5316, 0.0
        %v5348 = vmin.f32 %v5319, 0.0
        %v5349 = vmin.f32 %v5322, 0.0
        %v5350 = vmin.f32 %v5325, 0.0
        %v5351 = vmin.f32 %v5328, 0.0
        %v5352 = vmin.f32 %v5331, 0.0
        %v5353 = vmin.f32 %v5334, 0.0
        %v5354 = vmin.f32 %v5337, 0.0
        %v5355 = vmul.f32 %v5347, 1.442695
        %v5356 = vpow.pop %v5355
        %v5357 = vmul.f32 %v5348, 1.442695
        %v5358 = vpow.pop %v5357
        %v5359 = vmul.f32 %v5349, 1.442695
        %v5360 = vpow.pop %v5359
        %v5361 = vmul.f32 %v5350, 1.442695
        %v5362 = vpow.pop %v5361
        %v5363 = vmul.f32 %v5351, 1.442695
        %v5364 = vpow.pop %v5363
        %v5365 = vmul.f32 %v5352, 1.442695
        %v5366 = vpow.pop %v5365
        %v5367 = vmul.f32 %v5353, 1.442695
        %v5368 = vpow.pop %v5367
        %v5369 = vmul.f32 %v5354, 1.442695
        %v5370 = vpow.pop %v5369
        %v5371 = vsub.f32 %v5356, 1.0
        %v5372 = vsub.f32 %v5358, 1.0
        %v5373 = vsub.f32 %v5360, 1.0
        %v5374 = vsub.f32 %v5362, 1.0
        %v5375 = vsub.f32 %v5364, 1.0
        %v5376 = vsub.f32 %v5366, 1.0
        %v5377 = vsub.f32 %v5368, 1.0
        %v5378 = vsub.f32 %v5370, 1.0
        %v5379 = vsel %vm5339, %v5316, %v5371
        %v5380 = vsel %vm5340, %v5319, %v5372
        %v5381 = vsel %vm5341, %v5322, %v5373
        %v5382 = vsel %vm5342, %v5325, %v5374
        %v5383 = vsel %vm5343, %v5328, %v5375
        %v5384 = vsel %vm5344, %v5331, %v5376
        %v5385 = vsel %vm5345, %v5334, %v5377
        %v5386 = vsel %vm5346, %v5337, %v5378
        %s5387 = scalar_lea.vmem [#allocation6], 1536
        %v5388 = vld [vmem:[%s5387] sm:$0xff]
        %v5389 = vld [vmem:[%s5387 + $0x8] sm:$0xff]
        %v5390 = vld [vmem:[%s5387 + $0x10] sm:$0xff]
        %v5391 = vld [vmem:[%s5387 + $0x18] sm:$0xff]
        %v5392 = vld [vmem:[%s5387 + $0x20] sm:$0xff]
        %v5393 = vld [vmem:[%s5387 + $0x28] sm:$0xff]
        %v5394 = vld [vmem:[%s5387 + $0x30] sm:$0xff]
        %v5395 = vld [vmem:[%s5387 + $0x38] sm:$0xff]
        %v5396 = vld [vmem:[%s5387 + $0x40] sm:$0xff]
        %v5397 = vld [vmem:[%s5387 + $0x48] sm:$0xff]
        %v5398 = vld [vmem:[%s5387 + $0x50] sm:$0xff]
        %v5399 = vld [vmem:[%s5387 + $0x58] sm:$0xff]
        %v5400 = vld [vmem:[%s5387 + $0x60] sm:$0xff]
        %v5401 = vld [vmem:[%s5387 + $0x68] sm:$0xff]
        %v5402 = vld [vmem:[%s5387 + $0x70] sm:$0xff]
        %v5403 = vld [vmem:[%s5387 + $0x78] sm:$0xff]
        %v5405 = vsel %vm1298, %v5379, 0
        %v5408 = vsel %vm1298, %v5380, 0
        %v5411 = vsel %vm1298, %v5381, 0
        %v5414 = vsel %vm1298, %v5382, 0
        %v5417 = vsel %vm1298, %v5383, 0
        %v5420 = vsel %vm1298, %v5384, 0
        %v5423 = vsel %vm1298, %v5385, 0
        %v5426 = vsel %vm1298, %v5386, 0
        %5428 = vmatpush.msra.mxu0 0.0
        %5429 = vmatpush.msra.mxu0 0.0
        %5430 = vmatpush.msra.mxu0 0.0
        %5431 = vmatpush.msra.mxu0 0.0
        %5432 = vmatpush.msra.mxu0 0.0
        %5433 = vmatpush.msra.mxu0 0.0
        %5434 = vmatpush.msra.mxu0 0.0
        %5435 = vmatpush.msra.mxu0 0.0
        %5436 = vmatpush.msra.mxu0 %v5402
        %5437 = vmatpush.msra.mxu0 %v5400
        %5438 = vmatpush.msra.mxu0 %v5398
        %5439 = vmatpush.msra.mxu0 %v5396
        %5440 = vmatpush.msra.mxu0 %v5394
        %5441 = vmatpush.msra.mxu0 %v5392
        %5442 = vmatpush.msra.mxu0 %v5390
        %5443 = vmatpush.msra.mxu0 %v5388
        %5444 = vmatmul.f32.gmra.mxu0 %v5405
        %v5445 = vpop.f32.mrf.mxu0
        %v5446 = vadd.f32 0.0, %v5445
        %5447 = vmatmul.f32.gmra.mxu0 %v5408
        %v5448 = vpop.f32.mrf.mxu0
        %v5449 = vadd.f32 0.0, %v5448
        %5450 = vmatmul.f32.gmra.mxu0 %v5411
        %v5451 = vpop.f32.mrf.mxu0
        %v5452 = vadd.f32 0.0, %v5451
        %5453 = vmatmul.f32.gmra.mxu0 %v5414
        %v5454 = vpop.f32.mrf.mxu0
        %v5455 = vadd.f32 0.0, %v5454
        %5456 = vmatmul.f32.gmra.mxu0 %v5417
        %v5457 = vpop.f32.mrf.mxu0
        %v5458 = vadd.f32 0.0, %v5457
        %5459 = vmatmul.f32.gmra.mxu0 %v5420
        %v5460 = vpop.f32.mrf.mxu0
        %v5461 = vadd.f32 0.0, %v5460
        %5462 = vmatmul.f32.gmra.mxu0 %v5423
        %v5463 = vpop.f32.mrf.mxu0
        %v5464 = vadd.f32 0.0, %v5463
        %5465 = vmatmul.f32.gmra.mxu0 %v5426
        %v5466 = vpop.f32.mrf.mxu0
        %v5467 = vadd.f32 0.0, %v5466
        %5468 = vdwg.mxu0
        %5469 = vmatpush.msra.mxu0 0.0
        %5470 = vmatpush.msra.mxu0 0.0
        %5471 = vmatpush.msra.mxu0 0.0
        %5472 = vmatpush.msra.mxu0 0.0
        %5473 = vmatpush.msra.mxu0 0.0
        %5474 = vmatpush.msra.mxu0 0.0
        %5475 = vmatpush.msra.mxu0 0.0
        %5476 = vmatpush.msra.mxu0 0.0
        %5477 = vmatpush.msra.mxu0 %v5403
        %5478 = vmatpush.msra.mxu0 %v5401
        %5479 = vmatpush.msra.mxu0 %v5399
        %5480 = vmatpush.msra.mxu0 %v5397
        %5481 = vmatpush.msra.mxu0 %v5395
        %5482 = vmatpush.msra.mxu0 %v5393
        %5483 = vmatpush.msra.mxu0 %v5391
        %5484 = vmatpush.msra.mxu0 %v5389
        %5485 = vmatmul.f32.gmra.mxu0 %v5405
        %v5486 = vpop.f32.mrf.mxu0
        %v5487 = vadd.f32 0.0, %v5486
        %5488 = vmatmul.f32.gmra.mxu0 %v5408
        %v5489 = vpop.f32.mrf.mxu0
        %v5490 = vadd.f32 0.0, %v5489
        %5491 = vmatmul.f32.gmra.mxu0 %v5411
        %v5492 = vpop.f32.mrf.mxu0
        %v5493 = vadd.f32 0.0, %v5492
        %5494 = vmatmul.f32.gmra.mxu0 %v5414
        %v5495 = vpop.f32.mrf.mxu0
        %v5496 = vadd.f32 0.0, %v5495
        %5497 = vmatmul.f32.gmra.mxu0 %v5417
        %v5498 = vpop.f32.mrf.mxu0
        %v5499 = vadd.f32 0.0, %v5498
        %5500 = vmatmul.f32.gmra.mxu0 %v5420
        %v5501 = vpop.f32.mrf.mxu0
        %v5502 = vadd.f32 0.0, %v5501
        %5503 = vmatmul.f32.gmra.mxu0 %v5423
        %v5504 = vpop.f32.mrf.mxu0
        %v5505 = vadd.f32 0.0, %v5504
        %5506 = vmatmul.f32.gmra.mxu0 %v5426
        %v5507 = vpop.f32.mrf.mxu0
        %v5508 = vadd.f32 0.0, %v5507
        %5509 = vdwg.mxu0
        %v5510 = vadd.f32 %v5192, %v5446
        %v5511 = vadd.f32 %v5193, %v5487
        %v5512 = vadd.f32 %v5194, %v5449
        %v5513 = vadd.f32 %v5195, %v5490
        %v5514 = vadd.f32 %v5196, %v5452
        %v5515 = vadd.f32 %v5197, %v5493
        %v5516 = vadd.f32 %v5198, %v5455
        %v5517 = vadd.f32 %v5199, %v5496
        %v5518 = vadd.f32 %v5200, %v5458
        %v5519 = vadd.f32 %v5201, %v5499
        %v5520 = vadd.f32 %v5202, %v5461
        %v5521 = vadd.f32 %v5203, %v5502
        %v5522 = vadd.f32 %v5204, %v5464
        %v5523 = vadd.f32 %v5205, %v5505
        %v5524 = vadd.f32 %v5206, %v5467
        %v5525 = vadd.f32 %v5207, %v5508
        %v5526 = vld [vmem:[#allocation2 + $0x340] sm:$0xff]
        %v5527 = vld [vmem:[#allocation2 + $0x348] sm:$0xff]
        %v5528 = vld [vmem:[#allocation2 + $0x350] sm:$0xff]
        %v5529 = vld [vmem:[#allocation2 + $0x358] sm:$0xff]
        %v5530 = vld [vmem:[#allocation2 + $0x360] sm:$0xff]
        %v5531 = vld [vmem:[#allocation2 + $0x368] sm:$0xff]
        %v5532 = vld [vmem:[#allocation2 + $0x370] sm:$0xff]
        %v5533 = vld [vmem:[#allocation2 + $0x378] sm:$0xff]
        %s5534 = scalar_lea.vmem [#allocation3], 832
        %v5535 = vld [vmem:[%s5534] sm:$0xff]
        %v5536 = vld [vmem:[%s5534 + $0x8] sm:$0xff]
        %v5537 = vld [vmem:[%s5534 + $0x10] sm:$0xff]
        %v5538 = vld [vmem:[%s5534 + $0x18] sm:$0xff]
        %v5539 = vld [vmem:[%s5534 + $0x20] sm:$0xff]
        %v5540 = vld [vmem:[%s5534 + $0x28] sm:$0xff]
        %v5541 = vld [vmem:[%s5534 + $0x30] sm:$0xff]
        %v5542 = vld [vmem:[%s5534 + $0x38] sm:$0xff]
        %s5543 = scalar_lea.vmem %s3, 832
        %v5544 = vld [vmem:[%s5543] sm:$0xff]
        %v5545 = vld [vmem:[%s5543 + $0x8] sm:$0xff]
        %v5546 = vld [vmem:[%s5543 + $0x10] sm:$0xff]
        %v5547 = vld [vmem:[%s5543 + $0x18] sm:$0xff]
        %v5548 = vld [vmem:[%s5543 + $0x20] sm:$0xff]
        %v5549 = vld [vmem:[%s5543 + $0x28] sm:$0xff]
        %v5550 = vld [vmem:[%s5543 + $0x30] sm:$0xff]
        %v5551 = vld [vmem:[%s5543 + $0x38] sm:$0xff]
        %5553 = vset.pattern.permute.xlu0 0
        %5554 = vperm.xlu0 %5553, %v5544
        %v5555 = vpop.permute.xlu0 %5554
        %5558 = vset.pattern.permute.xlu0 0
        %5559 = vperm.xlu0 %5558, %v5545
        %v5560 = vpop.permute.xlu0 %5559
        %5563 = vset.pattern.permute.xlu0 0
        %5564 = vperm.xlu0 %5563, %v5546
        %v5565 = vpop.permute.xlu0 %5564
        %5568 = vset.pattern.permute.xlu0 0
        %5569 = vperm.xlu0 %5568, %v5547
        %v5570 = vpop.permute.xlu0 %5569
        %5573 = vset.pattern.permute.xlu0 0
        %5574 = vperm.xlu0 %5573, %v5548
        %v5575 = vpop.permute.xlu0 %5574
        %5578 = vset.pattern.permute.xlu0 0
        %5579 = vperm.xlu0 %5578, %v5549
        %v5580 = vpop.permute.xlu0 %5579
        %5583 = vset.pattern.permute.xlu0 0
        %5584 = vperm.xlu0 %5583, %v5550
        %v5585 = vpop.permute.xlu0 %5584
        %5588 = vset.pattern.permute.xlu0 0
        %5589 = vperm.xlu0 %5588, %v5551
        %v5590 = vpop.permute.xlu0 %5589
        %v5593 = vsel %vm1298, %v5526, 0
        %v5596 = vsel %vm1298, %v5527, 0
        %v5599 = vsel %vm1298, %v5528, 0
        %v5602 = vsel %vm1298, %v5529, 0
        %v5605 = vsel %vm1298, %v5530, 0
        %v5608 = vsel %vm1298, %v5531, 0
        %v5611 = vsel %vm1298, %v5532, 0
        %v5614 = vsel %vm1298, %v5533, 0
        %5616 = vmatpush.msra.mxu0 0.0
        %5617 = vmatpush.msra.mxu0 0.0
        %5618 = vmatpush.msra.mxu0 0.0
        %5619 = vmatpush.msra.mxu0 0.0
        %5620 = vmatpush.msra.mxu0 0.0
        %5621 = vmatpush.msra.mxu0 0.0
        %5622 = vmatpush.msra.mxu0 0.0
        %5623 = vmatpush.msra.mxu0 0.0
        %5624 = vmatpush.msra.mxu0 %v5542
        %5625 = vmatpush.msra.mxu0 %v5541
        %5626 = vmatpush.msra.mxu0 %v5540
        %5627 = vmatpush.msra.mxu0 %v5539
        %5628 = vmatpush.msra.mxu0 %v5538
        %5629 = vmatpush.msra.mxu0 %v5537
        %5630 = vmatpush.msra.mxu0 %v5536
        %5631 = vmatpush.msra.mxu0 %v5535
        %5632 = vmatmul.f32.gmra.mxu0 %v5593
        %v5633 = vpop.f32.mrf.mxu0
        %v5634 = vadd.f32 %v5555, %v5633
        %5635 = vmatmul.f32.gmra.mxu0 %v5596
        %v5636 = vpop.f32.mrf.mxu0
        %v5637 = vadd.f32 %v5560, %v5636
        %5638 = vmatmul.f32.gmra.mxu0 %v5599
        %v5639 = vpop.f32.mrf.mxu0
        %v5640 = vadd.f32 %v5565, %v5639
        %5641 = vmatmul.f32.gmra.mxu0 %v5602
        %v5642 = vpop.f32.mrf.mxu0
        %v5643 = vadd.f32 %v5570, %v5642
        %5644 = vmatmul.f32.gmra.mxu0 %v5605
        %v5645 = vpop.f32.mrf.mxu0
        %v5646 = vadd.f32 %v5575, %v5645
        %5647 = vmatmul.f32.gmra.mxu0 %v5608
        %v5648 = vpop.f32.mrf.mxu0
        %v5649 = vadd.f32 %v5580, %v5648
        %5650 = vmatmul.f32.gmra.mxu0 %v5611
        %v5651 = vpop.f32.mrf.mxu0
        %v5652 = vadd.f32 %v5585, %v5651
        %5653 = vmatmul.f32.gmra.mxu0 %v5614
        %v5654 = vpop.f32.mrf.mxu0
        %v5655 = vadd.f32 %v5590, %v5654
        %5656 = vdwg.mxu0
        %vm5657 = vcmp.gt.f32.partialorder %v5634, 0.0
        %vm5658 = vcmp.gt.f32.partialorder %v5637, 0.0
        %vm5659 = vcmp.gt.f32.partialorder %v5640, 0.0
        %vm5660 = vcmp.gt.f32.partialorder %v5643, 0.0
        %vm5661 = vcmp.gt.f32.partialorder %v5646, 0.0
        %vm5662 = vcmp.gt.f32.partialorder %v5649, 0.0
        %vm5663 = vcmp.gt.f32.partialorder %v5652, 0.0
        %vm5664 = vcmp.gt.f32.partialorder %v5655, 0.0
        %v5665 = vmin.f32 %v5634, 0.0
        %v5666 = vmin.f32 %v5637, 0.0
        %v5667 = vmin.f32 %v5640, 0.0
        %v5668 = vmin.f32 %v5643, 0.0
        %v5669 = vmin.f32 %v5646, 0.0
        %v5670 = vmin.f32 %v5649, 0.0
        %v5671 = vmin.f32 %v5652, 0.0
        %v5672 = vmin.f32 %v5655, 0.0
        %v5673 = vmul.f32 %v5665, 1.442695
        %v5674 = vpow.pop %v5673
        %v5675 = vmul.f32 %v5666, 1.442695
        %v5676 = vpow.pop %v5675
        %v5677 = vmul.f32 %v5667, 1.442695
        %v5678 = vpow.pop %v5677
        %v5679 = vmul.f32 %v5668, 1.442695
        %v5680 = vpow.pop %v5679
        %v5681 = vmul.f32 %v5669, 1.442695
        %v5682 = vpow.pop %v5681
        %v5683 = vmul.f32 %v5670, 1.442695
        %v5684 = vpow.pop %v5683
        %v5685 = vmul.f32 %v5671, 1.442695
        %v5686 = vpow.pop %v5685
        %v5687 = vmul.f32 %v5672, 1.442695
        %v5688 = vpow.pop %v5687
        %v5689 = vsub.f32 %v5674, 1.0
        %v5690 = vsub.f32 %v5676, 1.0
        %v5691 = vsub.f32 %v5678, 1.0
        %v5692 = vsub.f32 %v5680, 1.0
        %v5693 = vsub.f32 %v5682, 1.0
        %v5694 = vsub.f32 %v5684, 1.0
        %v5695 = vsub.f32 %v5686, 1.0
        %v5696 = vsub.f32 %v5688, 1.0
        %v5697 = vsel %vm5657, %v5634, %v5689
        %v5698 = vsel %vm5658, %v5637, %v5690
        %v5699 = vsel %vm5659, %v5640, %v5691
        %v5700 = vsel %vm5660, %v5643, %v5692
        %v5701 = vsel %vm5661, %v5646, %v5693
        %v5702 = vsel %vm5662, %v5649, %v5694
        %v5703 = vsel %vm5663, %v5652, %v5695
        %v5704 = vsel %vm5664, %v5655, %v5696
        %s5705 = scalar_lea.vmem [#allocation6], 1664
        %v5706 = vld [vmem:[%s5705] sm:$0xff]
        %v5707 = vld [vmem:[%s5705 + $0x8] sm:$0xff]
        %v5708 = vld [vmem:[%s5705 + $0x10] sm:$0xff]
        %v5709 = vld [vmem:[%s5705 + $0x18] sm:$0xff]
        %v5710 = vld [vmem:[%s5705 + $0x20] sm:$0xff]
        %v5711 = vld [vmem:[%s5705 + $0x28] sm:$0xff]
        %v5712 = vld [vmem:[%s5705 + $0x30] sm:$0xff]
        %v5713 = vld [vmem:[%s5705 + $0x38] sm:$0xff]
        %v5714 = vld [vmem:[%s5705 + $0x40] sm:$0xff]
        %v5715 = vld [vmem:[%s5705 + $0x48] sm:$0xff]
        %v5716 = vld [vmem:[%s5705 + $0x50] sm:$0xff]
        %v5717 = vld [vmem:[%s5705 + $0x58] sm:$0xff]
        %v5718 = vld [vmem:[%s5705 + $0x60] sm:$0xff]
        %v5719 = vld [vmem:[%s5705 + $0x68] sm:$0xff]
        %v5720 = vld [vmem:[%s5705 + $0x70] sm:$0xff]
        %v5721 = vld [vmem:[%s5705 + $0x78] sm:$0xff]
        %v5723 = vsel %vm1298, %v5697, 0
        %v5726 = vsel %vm1298, %v5698, 0
        %v5729 = vsel %vm1298, %v5699, 0
        %v5732 = vsel %vm1298, %v5700, 0
        %v5735 = vsel %vm1298, %v5701, 0
        %v5738 = vsel %vm1298, %v5702, 0
        %v5741 = vsel %vm1298, %v5703, 0
        %v5744 = vsel %vm1298, %v5704, 0
        %5746 = vmatpush.msra.mxu0 0.0
        %5747 = vmatpush.msra.mxu0 0.0
        %5748 = vmatpush.msra.mxu0 0.0
        %5749 = vmatpush.msra.mxu0 0.0
        %5750 = vmatpush.msra.mxu0 0.0
        %5751 = vmatpush.msra.mxu0 0.0
        %5752 = vmatpush.msra.mxu0 0.0
        %5753 = vmatpush.msra.mxu0 0.0
        %5754 = vmatpush.msra.mxu0 %v5720
        %5755 = vmatpush.msra.mxu0 %v5718
        %5756 = vmatpush.msra.mxu0 %v5716
        %5757 = vmatpush.msra.mxu0 %v5714
        %5758 = vmatpush.msra.mxu0 %v5712
        %5759 = vmatpush.msra.mxu0 %v5710
        %5760 = vmatpush.msra.mxu0 %v5708
        %5761 = vmatpush.msra.mxu0 %v5706
        %5762 = vmatmul.f32.gmra.mxu0 %v5723
        %v5763 = vpop.f32.mrf.mxu0
        %v5764 = vadd.f32 0.0, %v5763
        %5765 = vmatmul.f32.gmra.mxu0 %v5726
        %v5766 = vpop.f32.mrf.mxu0
        %v5767 = vadd.f32 0.0, %v5766
        %5768 = vmatmul.f32.gmra.mxu0 %v5729
        %v5769 = vpop.f32.mrf.mxu0
        %v5770 = vadd.f32 0.0, %v5769
        %5771 = vmatmul.f32.gmra.mxu0 %v5732
        %v5772 = vpop.f32.mrf.mxu0
        %v5773 = vadd.f32 0.0, %v5772
        %5774 = vmatmul.f32.gmra.mxu0 %v5735
        %v5775 = vpop.f32.mrf.mxu0
        %v5776 = vadd.f32 0.0, %v5775
        %5777 = vmatmul.f32.gmra.mxu0 %v5738
        %v5778 = vpop.f32.mrf.mxu0
        %v5779 = vadd.f32 0.0, %v5778
        %5780 = vmatmul.f32.gmra.mxu0 %v5741
        %v5781 = vpop.f32.mrf.mxu0
        %v5782 = vadd.f32 0.0, %v5781
        %5783 = vmatmul.f32.gmra.mxu0 %v5744
        %v5784 = vpop.f32.mrf.mxu0
        %v5785 = vadd.f32 0.0, %v5784
        %5786 = vdwg.mxu0
        %5787 = vmatpush.msra.mxu0 0.0
        %5788 = vmatpush.msra.mxu0 0.0
        %5789 = vmatpush.msra.mxu0 0.0
        %5790 = vmatpush.msra.mxu0 0.0
        %5791 = vmatpush.msra.mxu0 0.0
        %5792 = vmatpush.msra.mxu0 0.0
        %5793 = vmatpush.msra.mxu0 0.0
        %5794 = vmatpush.msra.mxu0 0.0
        %5795 = vmatpush.msra.mxu0 %v5721
        %5796 = vmatpush.msra.mxu0 %v5719
        %5797 = vmatpush.msra.mxu0 %v5717
        %5798 = vmatpush.msra.mxu0 %v5715
        %5799 = vmatpush.msra.mxu0 %v5713
        %5800 = vmatpush.msra.mxu0 %v5711
        %5801 = vmatpush.msra.mxu0 %v5709
        %5802 = vmatpush.msra.mxu0 %v5707
        %5803 = vmatmul.f32.gmra.mxu0 %v5723
        %v5804 = vpop.f32.mrf.mxu0
        %v5805 = vadd.f32 0.0, %v5804
        %5806 = vmatmul.f32.gmra.mxu0 %v5726
        %v5807 = vpop.f32.mrf.mxu0
        %v5808 = vadd.f32 0.0, %v5807
        %5809 = vmatmul.f32.gmra.mxu0 %v5729
        %v5810 = vpop.f32.mrf.mxu0
        %v5811 = vadd.f32 0.0, %v5810
        %5812 = vmatmul.f32.gmra.mxu0 %v5732
        %v5813 = vpop.f32.mrf.mxu0
        %v5814 = vadd.f32 0.0, %v5813
        %5815 = vmatmul.f32.gmra.mxu0 %v5735
        %v5816 = vpop.f32.mrf.mxu0
        %v5817 = vadd.f32 0.0, %v5816
        %5818 = vmatmul.f32.gmra.mxu0 %v5738
        %v5819 = vpop.f32.mrf.mxu0
        %v5820 = vadd.f32 0.0, %v5819
        %5821 = vmatmul.f32.gmra.mxu0 %v5741
        %v5822 = vpop.f32.mrf.mxu0
        %v5823 = vadd.f32 0.0, %v5822
        %5824 = vmatmul.f32.gmra.mxu0 %v5744
        %v5825 = vpop.f32.mrf.mxu0
        %v5826 = vadd.f32 0.0, %v5825
        %5827 = vdwg.mxu0
        %v5828 = vadd.f32 %v5510, %v5764
        %v5829 = vadd.f32 %v5511, %v5805
        %v5830 = vadd.f32 %v5512, %v5767
        %v5831 = vadd.f32 %v5513, %v5808
        %v5832 = vadd.f32 %v5514, %v5770
        %v5833 = vadd.f32 %v5515, %v5811
        %v5834 = vadd.f32 %v5516, %v5773
        %v5835 = vadd.f32 %v5517, %v5814
        %v5836 = vadd.f32 %v5518, %v5776
        %v5837 = vadd.f32 %v5519, %v5817
        %v5838 = vadd.f32 %v5520, %v5779
        %v5839 = vadd.f32 %v5521, %v5820
        %v5840 = vadd.f32 %v5522, %v5782
        %v5841 = vadd.f32 %v5523, %v5823
        %v5842 = vadd.f32 %v5524, %v5785
        %v5843 = vadd.f32 %v5525, %v5826
        %v5844 = vld [vmem:[#allocation2 + $0x380] sm:$0xff]
        %v5845 = vld [vmem:[#allocation2 + $0x388] sm:$0xff]
        %v5846 = vld [vmem:[#allocation2 + $0x390] sm:$0xff]
        %v5847 = vld [vmem:[#allocation2 + $0x398] sm:$0xff]
        %v5848 = vld [vmem:[#allocation2 + $0x3a0] sm:$0xff]
        %v5849 = vld [vmem:[#allocation2 + $0x3a8] sm:$0xff]
        %v5850 = vld [vmem:[#allocation2 + $0x3b0] sm:$0xff]
        %v5851 = vld [vmem:[#allocation2 + $0x3b8] sm:$0xff]
        %s5852 = scalar_lea.vmem [#allocation3], 896
        %v5853 = vld [vmem:[%s5852] sm:$0xff]
        %v5854 = vld [vmem:[%s5852 + $0x8] sm:$0xff]
        %v5855 = vld [vmem:[%s5852 + $0x10] sm:$0xff]
        %v5856 = vld [vmem:[%s5852 + $0x18] sm:$0xff]
        %v5857 = vld [vmem:[%s5852 + $0x20] sm:$0xff]
        %v5858 = vld [vmem:[%s5852 + $0x28] sm:$0xff]
        %v5859 = vld [vmem:[%s5852 + $0x30] sm:$0xff]
        %v5860 = vld [vmem:[%s5852 + $0x38] sm:$0xff]
        %s5861 = scalar_lea.vmem %s3, 896
        %v5862 = vld [vmem:[%s5861] sm:$0xff]
        %v5863 = vld [vmem:[%s5861 + $0x8] sm:$0xff]
        %v5864 = vld [vmem:[%s5861 + $0x10] sm:$0xff]
        %v5865 = vld [vmem:[%s5861 + $0x18] sm:$0xff]
        %v5866 = vld [vmem:[%s5861 + $0x20] sm:$0xff]
        %v5867 = vld [vmem:[%s5861 + $0x28] sm:$0xff]
        %v5868 = vld [vmem:[%s5861 + $0x30] sm:$0xff]
        %v5869 = vld [vmem:[%s5861 + $0x38] sm:$0xff]
        %5871 = vset.pattern.permute.xlu0 0
        %5872 = vperm.xlu0 %5871, %v5862
        %v5873 = vpop.permute.xlu0 %5872
        %5876 = vset.pattern.permute.xlu0 0
        %5877 = vperm.xlu0 %5876, %v5863
        %v5878 = vpop.permute.xlu0 %5877
        %5881 = vset.pattern.permute.xlu0 0
        %5882 = vperm.xlu0 %5881, %v5864
        %v5883 = vpop.permute.xlu0 %5882
        %5886 = vset.pattern.permute.xlu0 0
        %5887 = vperm.xlu0 %5886, %v5865
        %v5888 = vpop.permute.xlu0 %5887
        %5891 = vset.pattern.permute.xlu0 0
        %5892 = vperm.xlu0 %5891, %v5866
        %v5893 = vpop.permute.xlu0 %5892
        %5896 = vset.pattern.permute.xlu0 0
        %5897 = vperm.xlu0 %5896, %v5867
        %v5898 = vpop.permute.xlu0 %5897
        %5901 = vset.pattern.permute.xlu0 0
        %5902 = vperm.xlu0 %5901, %v5868
        %v5903 = vpop.permute.xlu0 %5902
        %5906 = vset.pattern.permute.xlu0 0
        %5907 = vperm.xlu0 %5906, %v5869
        %v5908 = vpop.permute.xlu0 %5907
        %v5911 = vsel %vm1298, %v5844, 0
        %v5914 = vsel %vm1298, %v5845, 0
        %v5917 = vsel %vm1298, %v5846, 0
        %v5920 = vsel %vm1298, %v5847, 0
        %v5923 = vsel %vm1298, %v5848, 0
        %v5926 = vsel %vm1298, %v5849, 0
        %v5929 = vsel %vm1298, %v5850, 0
        %v5932 = vsel %vm1298, %v5851, 0
        %5934 = vmatpush.msra.mxu0 0.0
        %5935 = vmatpush.msra.mxu0 0.0
        %5936 = vmatpush.msra.mxu0 0.0
        %5937 = vmatpush.msra.mxu0 0.0
        %5938 = vmatpush.msra.mxu0 0.0
        %5939 = vmatpush.msra.mxu0 0.0
        %5940 = vmatpush.msra.mxu0 0.0
        %5941 = vmatpush.msra.mxu0 0.0
        %5942 = vmatpush.msra.mxu0 %v5860
        %5943 = vmatpush.msra.mxu0 %v5859
        %5944 = vmatpush.msra.mxu0 %v5858
        %5945 = vmatpush.msra.mxu0 %v5857
        %5946 = vmatpush.msra.mxu0 %v5856
        %5947 = vmatpush.msra.mxu0 %v5855
        %5948 = vmatpush.msra.mxu0 %v5854
        %5949 = vmatpush.msra.mxu0 %v5853
        %5950 = vmatmul.f32.gmra.mxu0 %v5911
        %v5951 = vpop.f32.mrf.mxu0
        %v5952 = vadd.f32 %v5873, %v5951
        %5953 = vmatmul.f32.gmra.mxu0 %v5914
        %v5954 = vpop.f32.mrf.mxu0
        %v5955 = vadd.f32 %v5878, %v5954
        %5956 = vmatmul.f32.gmra.mxu0 %v5917
        %v5957 = vpop.f32.mrf.mxu0
        %v5958 = vadd.f32 %v5883, %v5957
        %5959 = vmatmul.f32.gmra.mxu0 %v5920
        %v5960 = vpop.f32.mrf.mxu0
        %v5961 = vadd.f32 %v5888, %v5960
        %5962 = vmatmul.f32.gmra.mxu0 %v5923
        %v5963 = vpop.f32.mrf.mxu0
        %v5964 = vadd.f32 %v5893, %v5963
        %5965 = vmatmul.f32.gmra.mxu0 %v5926
        %v5966 = vpop.f32.mrf.mxu0
        %v5967 = vadd.f32 %v5898, %v5966
        %5968 = vmatmul.f32.gmra.mxu0 %v5929
        %v5969 = vpop.f32.mrf.mxu0
        %v5970 = vadd.f32 %v5903, %v5969
        %5971 = vmatmul.f32.gmra.mxu0 %v5932
        %v5972 = vpop.f32.mrf.mxu0
        %v5973 = vadd.f32 %v5908, %v5972
        %5974 = vdwg.mxu0
        %vm5975 = vcmp.gt.f32.partialorder %v5952, 0.0
        %vm5976 = vcmp.gt.f32.partialorder %v5955, 0.0
        %vm5977 = vcmp.gt.f32.partialorder %v5958, 0.0
        %vm5978 = vcmp.gt.f32.partialorder %v5961, 0.0
        %vm5979 = vcmp.gt.f32.partialorder %v5964, 0.0
        %vm5980 = vcmp.gt.f32.partialorder %v5967, 0.0
        %vm5981 = vcmp.gt.f32.partialorder %v5970, 0.0
        %vm5982 = vcmp.gt.f32.partialorder %v5973, 0.0
        %v5983 = vmin.f32 %v5952, 0.0
        %v5984 = vmin.f32 %v5955, 0.0
        %v5985 = vmin.f32 %v5958, 0.0
        %v5986 = vmin.f32 %v5961, 0.0
        %v5987 = vmin.f32 %v5964, 0.0
        %v5988 = vmin.f32 %v5967, 0.0
        %v5989 = vmin.f32 %v5970, 0.0
        %v5990 = vmin.f32 %v5973, 0.0
        %v5991 = vmul.f32 %v5983, 1.442695
        %v5992 = vpow.pop %v5991
        %v5993 = vmul.f32 %v5984, 1.442695
        %v5994 = vpow.pop %v5993
        %v5995 = vmul.f32 %v5985, 1.442695
        %v5996 = vpow.pop %v5995
        %v5997 = vmul.f32 %v5986, 1.442695
        %v5998 = vpow.pop %v5997
        %v5999 = vmul.f32 %v5987, 1.442695
        %v6000 = vpow.pop %v5999
        %v6001 = vmul.f32 %v5988, 1.442695
        %v6002 = vpow.pop %v6001
        %v6003 = vmul.f32 %v5989, 1.442695
        %v6004 = vpow.pop %v6003
        %v6005 = vmul.f32 %v5990, 1.442695
        %v6006 = vpow.pop %v6005
        %v6007 = vsub.f32 %v5992, 1.0
        %v6008 = vsub.f32 %v5994, 1.0
        %v6009 = vsub.f32 %v5996, 1.0
        %v6010 = vsub.f32 %v5998, 1.0
        %v6011 = vsub.f32 %v6000, 1.0
        %v6012 = vsub.f32 %v6002, 1.0
        %v6013 = vsub.f32 %v6004, 1.0
        %v6014 = vsub.f32 %v6006, 1.0
        %v6015 = vsel %vm5975, %v5952, %v6007
        %v6016 = vsel %vm5976, %v5955, %v6008
        %v6017 = vsel %vm5977, %v5958, %v6009
        %v6018 = vsel %vm5978, %v5961, %v6010
        %v6019 = vsel %vm5979, %v5964, %v6011
        %v6020 = vsel %vm5980, %v5967, %v6012
        %v6021 = vsel %vm5981, %v5970, %v6013
        %v6022 = vsel %vm5982, %v5973, %v6014
        %s6023 = scalar_lea.vmem [#allocation6], 1792
        %v6024 = vld [vmem:[%s6023] sm:$0xff]
        %v6025 = vld [vmem:[%s6023 + $0x8] sm:$0xff]
        %v6026 = vld [vmem:[%s6023 + $0x10] sm:$0xff]
        %v6027 = vld [vmem:[%s6023 + $0x18] sm:$0xff]
        %v6028 = vld [vmem:[%s6023 + $0x20] sm:$0xff]
        %v6029 = vld [vmem:[%s6023 + $0x28] sm:$0xff]
        %v6030 = vld [vmem:[%s6023 + $0x30] sm:$0xff]
        %v6031 = vld [vmem:[%s6023 + $0x38] sm:$0xff]
        %v6032 = vld [vmem:[%s6023 + $0x40] sm:$0xff]
        %v6033 = vld [vmem:[%s6023 + $0x48] sm:$0xff]
        %v6034 = vld [vmem:[%s6023 + $0x50] sm:$0xff]
        %v6035 = vld [vmem:[%s6023 + $0x58] sm:$0xff]
        %v6036 = vld [vmem:[%s6023 + $0x60] sm:$0xff]
        %v6037 = vld [vmem:[%s6023 + $0x68] sm:$0xff]
        %v6038 = vld [vmem:[%s6023 + $0x70] sm:$0xff]
        %v6039 = vld [vmem:[%s6023 + $0x78] sm:$0xff]
        %v6041 = vsel %vm1298, %v6015, 0
        %v6044 = vsel %vm1298, %v6016, 0
        %v6047 = vsel %vm1298, %v6017, 0
        %v6050 = vsel %vm1298, %v6018, 0
        %v6053 = vsel %vm1298, %v6019, 0
        %v6056 = vsel %vm1298, %v6020, 0
        %v6059 = vsel %vm1298, %v6021, 0
        %v6062 = vsel %vm1298, %v6022, 0
        %6064 = vmatpush.msra.mxu0 0.0
        %6065 = vmatpush.msra.mxu0 0.0
        %6066 = vmatpush.msra.mxu0 0.0
        %6067 = vmatpush.msra.mxu0 0.0
        %6068 = vmatpush.msra.mxu0 0.0
        %6069 = vmatpush.msra.mxu0 0.0
        %6070 = vmatpush.msra.mxu0 0.0
        %6071 = vmatpush.msra.mxu0 0.0
        %6072 = vmatpush.msra.mxu0 %v6038
        %6073 = vmatpush.msra.mxu0 %v6036
        %6074 = vmatpush.msra.mxu0 %v6034
        %6075 = vmatpush.msra.mxu0 %v6032
        %6076 = vmatpush.msra.mxu0 %v6030
        %6077 = vmatpush.msra.mxu0 %v6028
        %6078 = vmatpush.msra.mxu0 %v6026
        %6079 = vmatpush.msra.mxu0 %v6024
        %6080 = vmatmul.f32.gmra.mxu0 %v6041
        %v6081 = vpop.f32.mrf.mxu0
        %v6082 = vadd.f32 0.0, %v6081
        %6083 = vmatmul.f32.gmra.mxu0 %v6044
        %v6084 = vpop.f32.mrf.mxu0
        %v6085 = vadd.f32 0.0, %v6084
        %6086 = vmatmul.f32.gmra.mxu0 %v6047
        %v6087 = vpop.f32.mrf.mxu0
        %v6088 = vadd.f32 0.0, %v6087
        %6089 = vmatmul.f32.gmra.mxu0 %v6050
        %v6090 = vpop.f32.mrf.mxu0
        %v6091 = vadd.f32 0.0, %v6090
        %6092 = vmatmul.f32.gmra.mxu0 %v6053
        %v6093 = vpop.f32.mrf.mxu0
        %v6094 = vadd.f32 0.0, %v6093
        %6095 = vmatmul.f32.gmra.mxu0 %v6056
        %v6096 = vpop.f32.mrf.mxu0
        %v6097 = vadd.f32 0.0, %v6096
        %6098 = vmatmul.f32.gmra.mxu0 %v6059
        %v6099 = vpop.f32.mrf.mxu0
        %v6100 = vadd.f32 0.0, %v6099
        %6101 = vmatmul.f32.gmra.mxu0 %v6062
        %v6102 = vpop.f32.mrf.mxu0
        %v6103 = vadd.f32 0.0, %v6102
        %6104 = vdwg.mxu0
        %6105 = vmatpush.msra.mxu0 0.0
        %6106 = vmatpush.msra.mxu0 0.0
        %6107 = vmatpush.msra.mxu0 0.0
        %6108 = vmatpush.msra.mxu0 0.0
        %6109 = vmatpush.msra.mxu0 0.0
        %6110 = vmatpush.msra.mxu0 0.0
        %6111 = vmatpush.msra.mxu0 0.0
        %6112 = vmatpush.msra.mxu0 0.0
        %6113 = vmatpush.msra.mxu0 %v6039
        %6114 = vmatpush.msra.mxu0 %v6037
        %6115 = vmatpush.msra.mxu0 %v6035
        %6116 = vmatpush.msra.mxu0 %v6033
        %6117 = vmatpush.msra.mxu0 %v6031
        %6118 = vmatpush.msra.mxu0 %v6029
        %6119 = vmatpush.msra.mxu0 %v6027
        %6120 = vmatpush.msra.mxu0 %v6025
        %6121 = vmatmul.f32.gmra.mxu0 %v6041
        %v6122 = vpop.f32.mrf.mxu0
        %v6123 = vadd.f32 0.0, %v6122
        %6124 = vmatmul.f32.gmra.mxu0 %v6044
        %v6125 = vpop.f32.mrf.mxu0
        %v6126 = vadd.f32 0.0, %v6125
        %6127 = vmatmul.f32.gmra.mxu0 %v6047
        %v6128 = vpop.f32.mrf.mxu0
        %v6129 = vadd.f32 0.0, %v6128
        %6130 = vmatmul.f32.gmra.mxu0 %v6050
        %v6131 = vpop.f32.mrf.mxu0
        %v6132 = vadd.f32 0.0, %v6131
        %6133 = vmatmul.f32.gmra.mxu0 %v6053
        %v6134 = vpop.f32.mrf.mxu0
        %v6135 = vadd.f32 0.0, %v6134
        %6136 = vmatmul.f32.gmra.mxu0 %v6056
        %v6137 = vpop.f32.mrf.mxu0
        %v6138 = vadd.f32 0.0, %v6137
        %6139 = vmatmul.f32.gmra.mxu0 %v6059
        %v6140 = vpop.f32.mrf.mxu0
        %v6141 = vadd.f32 0.0, %v6140
        %6142 = vmatmul.f32.gmra.mxu0 %v6062
        %v6143 = vpop.f32.mrf.mxu0
        %v6144 = vadd.f32 0.0, %v6143
        %6145 = vdwg.mxu0
        %v6146 = vadd.f32 %v5828, %v6082
        %v6147 = vadd.f32 %v5829, %v6123
        %v6148 = vadd.f32 %v5830, %v6085
        %v6149 = vadd.f32 %v5831, %v6126
        %v6150 = vadd.f32 %v5832, %v6088
        %v6151 = vadd.f32 %v5833, %v6129
        %v6152 = vadd.f32 %v5834, %v6091
        %v6153 = vadd.f32 %v5835, %v6132
        %v6154 = vadd.f32 %v5836, %v6094
        %v6155 = vadd.f32 %v5837, %v6135
        %v6156 = vadd.f32 %v5838, %v6097
        %v6157 = vadd.f32 %v5839, %v6138
        %v6158 = vadd.f32 %v5840, %v6100
        %v6159 = vadd.f32 %v5841, %v6141
        %v6160 = vadd.f32 %v5842, %v6103
        %v6161 = vadd.f32 %v5843, %v6144
        %v6162 = vld [vmem:[#allocation2 + $0x3c0] sm:$0xff]
        %v6163 = vld [vmem:[#allocation2 + $0x3c8] sm:$0xff]
        %v6164 = vld [vmem:[#allocation2 + $0x3d0] sm:$0xff]
        %v6165 = vld [vmem:[#allocation2 + $0x3d8] sm:$0xff]
        %v6166 = vld [vmem:[#allocation2 + $0x3e0] sm:$0xff]
        %v6167 = vld [vmem:[#allocation2 + $0x3e8] sm:$0xff]
        %v6168 = vld [vmem:[#allocation2 + $0x3f0] sm:$0xff]
        %v6169 = vld [vmem:[#allocation2 + $0x3f8] sm:$0xff]
        %s6170 = scalar_lea.vmem [#allocation3], 960
        %v6171 = vld [vmem:[%s6170] sm:$0xff]
        %v6172 = vld [vmem:[%s6170 + $0x8] sm:$0xff]
        %v6173 = vld [vmem:[%s6170 + $0x10] sm:$0xff]
        %v6174 = vld [vmem:[%s6170 + $0x18] sm:$0xff]
        %v6175 = vld [vmem:[%s6170 + $0x20] sm:$0xff]
        %v6176 = vld [vmem:[%s6170 + $0x28] sm:$0xff]
        %v6177 = vld [vmem:[%s6170 + $0x30] sm:$0xff]
        %v6178 = vld [vmem:[%s6170 + $0x38] sm:$0xff]
        %s6179 = scalar_lea.vmem %s3, 960
        %v6180 = vld [vmem:[%s6179] sm:$0xff]
        %v6181 = vld [vmem:[%s6179 + $0x8] sm:$0xff]
        %v6182 = vld [vmem:[%s6179 + $0x10] sm:$0xff]
        %v6183 = vld [vmem:[%s6179 + $0x18] sm:$0xff]
        %v6184 = vld [vmem:[%s6179 + $0x20] sm:$0xff]
        %v6185 = vld [vmem:[%s6179 + $0x28] sm:$0xff]
        %v6186 = vld [vmem:[%s6179 + $0x30] sm:$0xff]
        %v6187 = vld [vmem:[%s6179 + $0x38] sm:$0xff]
        %6189 = vset.pattern.permute.xlu0 0
        %6190 = vperm.xlu0 %6189, %v6180
        %v6191 = vpop.permute.xlu0 %6190
        %6194 = vset.pattern.permute.xlu0 0
        %6195 = vperm.xlu0 %6194, %v6181
        %v6196 = vpop.permute.xlu0 %6195
        %6199 = vset.pattern.permute.xlu0 0
        %6200 = vperm.xlu0 %6199, %v6182
        %v6201 = vpop.permute.xlu0 %6200
        %6204 = vset.pattern.permute.xlu0 0
        %6205 = vperm.xlu0 %6204, %v6183
        %v6206 = vpop.permute.xlu0 %6205
        %6209 = vset.pattern.permute.xlu0 0
        %6210 = vperm.xlu0 %6209, %v6184
        %v6211 = vpop.permute.xlu0 %6210
        %6214 = vset.pattern.permute.xlu0 0
        %6215 = vperm.xlu0 %6214, %v6185
        %v6216 = vpop.permute.xlu0 %6215
        %6219 = vset.pattern.permute.xlu0 0
        %6220 = vperm.xlu0 %6219, %v6186
        %v6221 = vpop.permute.xlu0 %6220
        %6224 = vset.pattern.permute.xlu0 0
        %6225 = vperm.xlu0 %6224, %v6187
        %v6226 = vpop.permute.xlu0 %6225
        %v6229 = vsel %vm1298, %v6162, 0
        %v6232 = vsel %vm1298, %v6163, 0
        %v6235 = vsel %vm1298, %v6164, 0
        %v6238 = vsel %vm1298, %v6165, 0
        %v6241 = vsel %vm1298, %v6166, 0
        %v6244 = vsel %vm1298, %v6167, 0
        %v6247 = vsel %vm1298, %v6168, 0
        %v6250 = vsel %vm1298, %v6169, 0
        %6252 = vmatpush.msra.mxu0 0.0
        %6253 = vmatpush.msra.mxu0 0.0
        %6254 = vmatpush.msra.mxu0 0.0
        %6255 = vmatpush.msra.mxu0 0.0
        %6256 = vmatpush.msra.mxu0 0.0
        %6257 = vmatpush.msra.mxu0 0.0
        %6258 = vmatpush.msra.mxu0 0.0
        %6259 = vmatpush.msra.mxu0 0.0
        %6260 = vmatpush.msra.mxu0 %v6178
        %6261 = vmatpush.msra.mxu0 %v6177
        %6262 = vmatpush.msra.mxu0 %v6176
        %6263 = vmatpush.msra.mxu0 %v6175
        %6264 = vmatpush.msra.mxu0 %v6174
        %6265 = vmatpush.msra.mxu0 %v6173
        %6266 = vmatpush.msra.mxu0 %v6172
        %6267 = vmatpush.msra.mxu0 %v6171
        %6268 = vmatmul.f32.gmra.mxu0 %v6229
        %v6269 = vpop.f32.mrf.mxu0
        %v6270 = vadd.f32 %v6191, %v6269
        %6271 = vmatmul.f32.gmra.mxu0 %v6232
        %v6272 = vpop.f32.mrf.mxu0
        %v6273 = vadd.f32 %v6196, %v6272
        %6274 = vmatmul.f32.gmra.mxu0 %v6235
        %v6275 = vpop.f32.mrf.mxu0
        %v6276 = vadd.f32 %v6201, %v6275
        %6277 = vmatmul.f32.gmra.mxu0 %v6238
        %v6278 = vpop.f32.mrf.mxu0
        %v6279 = vadd.f32 %v6206, %v6278
        %6280 = vmatmul.f32.gmra.mxu0 %v6241
        %v6281 = vpop.f32.mrf.mxu0
        %v6282 = vadd.f32 %v6211, %v6281
        %6283 = vmatmul.f32.gmra.mxu0 %v6244
        %v6284 = vpop.f32.mrf.mxu0
        %v6285 = vadd.f32 %v6216, %v6284
        %6286 = vmatmul.f32.gmra.mxu0 %v6247
        %v6287 = vpop.f32.mrf.mxu0
        %v6288 = vadd.f32 %v6221, %v6287
        %6289 = vmatmul.f32.gmra.mxu0 %v6250
        %v6290 = vpop.f32.mrf.mxu0
        %v6291 = vadd.f32 %v6226, %v6290
        %6292 = vdwg.mxu0
        %vm6293 = vcmp.gt.f32.partialorder %v6270, 0.0
        %vm6294 = vcmp.gt.f32.partialorder %v6273, 0.0
        %vm6295 = vcmp.gt.f32.partialorder %v6276, 0.0
        %vm6296 = vcmp.gt.f32.partialorder %v6279, 0.0
        %vm6297 = vcmp.gt.f32.partialorder %v6282, 0.0
        %vm6298 = vcmp.gt.f32.partialorder %v6285, 0.0
        %vm6299 = vcmp.gt.f32.partialorder %v6288, 0.0
        %vm6300 = vcmp.gt.f32.partialorder %v6291, 0.0
        %v6301 = vmin.f32 %v6270, 0.0
        %v6302 = vmin.f32 %v6273, 0.0
        %v6303 = vmin.f32 %v6276, 0.0
        %v6304 = vmin.f32 %v6279, 0.0
        %v6305 = vmin.f32 %v6282, 0.0
        %v6306 = vmin.f32 %v6285, 0.0
        %v6307 = vmin.f32 %v6288, 0.0
        %v6308 = vmin.f32 %v6291, 0.0
        %v6309 = vmul.f32 %v6301, 1.442695
        %v6310 = vpow.pop %v6309
        %v6311 = vmul.f32 %v6302, 1.442695
        %v6312 = vpow.pop %v6311
        %v6313 = vmul.f32 %v6303, 1.442695
        %v6314 = vpow.pop %v6313
        %v6315 = vmul.f32 %v6304, 1.442695
        %v6316 = vpow.pop %v6315
        %v6317 = vmul.f32 %v6305, 1.442695
        %v6318 = vpow.pop %v6317
        %v6319 = vmul.f32 %v6306, 1.442695
        %v6320 = vpow.pop %v6319
        %v6321 = vmul.f32 %v6307, 1.442695
        %v6322 = vpow.pop %v6321
        %v6323 = vmul.f32 %v6308, 1.442695
        %v6324 = vpow.pop %v6323
        %v6325 = vsub.f32 %v6310, 1.0
        %v6326 = vsub.f32 %v6312, 1.0
        %v6327 = vsub.f32 %v6314, 1.0
        %v6328 = vsub.f32 %v6316, 1.0
        %v6329 = vsub.f32 %v6318, 1.0
        %v6330 = vsub.f32 %v6320, 1.0
        %v6331 = vsub.f32 %v6322, 1.0
        %v6332 = vsub.f32 %v6324, 1.0
        %v6333 = vsel %vm6293, %v6270, %v6325
        %v6334 = vsel %vm6294, %v6273, %v6326
        %v6335 = vsel %vm6295, %v6276, %v6327
        %v6336 = vsel %vm6296, %v6279, %v6328
        %v6337 = vsel %vm6297, %v6282, %v6329
        %v6338 = vsel %vm6298, %v6285, %v6330
        %v6339 = vsel %vm6299, %v6288, %v6331
        %v6340 = vsel %vm6300, %v6291, %v6332
        %s6341 = scalar_lea.vmem [#allocation6], 1920
        %v6342 = vld [vmem:[%s6341] sm:$0xff]
        %v6343 = vld [vmem:[%s6341 + $0x8] sm:$0xff]
        %v6344 = vld [vmem:[%s6341 + $0x10] sm:$0xff]
        %v6345 = vld [vmem:[%s6341 + $0x18] sm:$0xff]
        %v6346 = vld [vmem:[%s6341 + $0x20] sm:$0xff]
        %v6347 = vld [vmem:[%s6341 + $0x28] sm:$0xff]
        %v6348 = vld [vmem:[%s6341 + $0x30] sm:$0xff]
        %v6349 = vld [vmem:[%s6341 + $0x38] sm:$0xff]
        %v6350 = vld [vmem:[%s6341 + $0x40] sm:$0xff]
        %v6351 = vld [vmem:[%s6341 + $0x48] sm:$0xff]
        %v6352 = vld [vmem:[%s6341 + $0x50] sm:$0xff]
        %v6353 = vld [vmem:[%s6341 + $0x58] sm:$0xff]
        %v6354 = vld [vmem:[%s6341 + $0x60] sm:$0xff]
        %v6355 = vld [vmem:[%s6341 + $0x68] sm:$0xff]
        %v6356 = vld [vmem:[%s6341 + $0x70] sm:$0xff]
        %v6357 = vld [vmem:[%s6341 + $0x78] sm:$0xff]
        %v6359 = vsel %vm1298, %v6333, 0
        %v6362 = vsel %vm1298, %v6334, 0
        %v6365 = vsel %vm1298, %v6335, 0
        %v6368 = vsel %vm1298, %v6336, 0
        %v6371 = vsel %vm1298, %v6337, 0
        %v6374 = vsel %vm1298, %v6338, 0
        %v6377 = vsel %vm1298, %v6339, 0
        %v6380 = vsel %vm1298, %v6340, 0
        %6382 = vmatpush.msra.mxu0 0.0
        %6383 = vmatpush.msra.mxu0 0.0
        %6384 = vmatpush.msra.mxu0 0.0
        %6385 = vmatpush.msra.mxu0 0.0
        %6386 = vmatpush.msra.mxu0 0.0
        %6387 = vmatpush.msra.mxu0 0.0
        %6388 = vmatpush.msra.mxu0 0.0
        %6389 = vmatpush.msra.mxu0 0.0
        %6390 = vmatpush.msra.mxu0 %v6356
        %6391 = vmatpush.msra.mxu0 %v6354
        %6392 = vmatpush.msra.mxu0 %v6352
        %6393 = vmatpush.msra.mxu0 %v6350
        %6394 = vmatpush.msra.mxu0 %v6348
        %6395 = vmatpush.msra.mxu0 %v6346
        %6396 = vmatpush.msra.mxu0 %v6344
        %6397 = vmatpush.msra.mxu0 %v6342
        %6398 = vmatmul.f32.gmra.mxu0 %v6359
        %v6399 = vpop.f32.mrf.mxu0
        %v6400 = vadd.f32 0.0, %v6399
        %6401 = vmatmul.f32.gmra.mxu0 %v6362
        %v6402 = vpop.f32.mrf.mxu0
        %v6403 = vadd.f32 0.0, %v6402
        %6404 = vmatmul.f32.gmra.mxu0 %v6365
        %v6405 = vpop.f32.mrf.mxu0
        %v6406 = vadd.f32 0.0, %v6405
        %6407 = vmatmul.f32.gmra.mxu0 %v6368
        %v6408 = vpop.f32.mrf.mxu0
        %v6409 = vadd.f32 0.0, %v6408
        %6410 = vmatmul.f32.gmra.mxu0 %v6371
        %v6411 = vpop.f32.mrf.mxu0
        %v6412 = vadd.f32 0.0, %v6411
        %6413 = vmatmul.f32.gmra.mxu0 %v6374
        %v6414 = vpop.f32.mrf.mxu0
        %v6415 = vadd.f32 0.0, %v6414
        %6416 = vmatmul.f32.gmra.mxu0 %v6377
        %v6417 = vpop.f32.mrf.mxu0
        %v6418 = vadd.f32 0.0, %v6417
        %6419 = vmatmul.f32.gmra.mxu0 %v6380
        %v6420 = vpop.f32.mrf.mxu0
        %v6421 = vadd.f32 0.0, %v6420
        %6422 = vdwg.mxu0
        %6423 = vmatpush.msra.mxu0 0.0
        %6424 = vmatpush.msra.mxu0 0.0
        %6425 = vmatpush.msra.mxu0 0.0
        %6426 = vmatpush.msra.mxu0 0.0
        %6427 = vmatpush.msra.mxu0 0.0
        %6428 = vmatpush.msra.mxu0 0.0
        %6429 = vmatpush.msra.mxu0 0.0
        %6430 = vmatpush.msra.mxu0 0.0
        %6431 = vmatpush.msra.mxu0 %v6357
        %6432 = vmatpush.msra.mxu0 %v6355
        %6433 = vmatpush.msra.mxu0 %v6353
        %6434 = vmatpush.msra.mxu0 %v6351
        %6435 = vmatpush.msra.mxu0 %v6349
        %6436 = vmatpush.msra.mxu0 %v6347
        %6437 = vmatpush.msra.mxu0 %v6345
        %6438 = vmatpush.msra.mxu0 %v6343
        %6439 = vmatmul.f32.gmra.mxu0 %v6359
        %v6440 = vpop.f32.mrf.mxu0
        %v6441 = vadd.f32 0.0, %v6440
        %6442 = vmatmul.f32.gmra.mxu0 %v6362
        %v6443 = vpop.f32.mrf.mxu0
        %v6444 = vadd.f32 0.0, %v6443
        %6445 = vmatmul.f32.gmra.mxu0 %v6365
        %v6446 = vpop.f32.mrf.mxu0
        %v6447 = vadd.f32 0.0, %v6446
        %6448 = vmatmul.f32.gmra.mxu0 %v6368
        %v6449 = vpop.f32.mrf.mxu0
        %v6450 = vadd.f32 0.0, %v6449
        %6451 = vmatmul.f32.gmra.mxu0 %v6371
        %v6452 = vpop.f32.mrf.mxu0
        %v6453 = vadd.f32 0.0, %v6452
        %6454 = vmatmul.f32.gmra.mxu0 %v6374
        %v6455 = vpop.f32.mrf.mxu0
        %v6456 = vadd.f32 0.0, %v6455
        %6457 = vmatmul.f32.gmra.mxu0 %v6377
        %v6458 = vpop.f32.mrf.mxu0
        %v6459 = vadd.f32 0.0, %v6458
        %6460 = vmatmul.f32.gmra.mxu0 %v6380
        %v6461 = vpop.f32.mrf.mxu0
        %v6462 = vadd.f32 0.0, %v6461
        %6463 = vdwg.mxu0
        %v6464 = vadd.f32 %v6146, %v6400
        %v6465 = vadd.f32 %v6147, %v6441
        %v6466 = vadd.f32 %v6148, %v6403
        %v6467 = vadd.f32 %v6149, %v6444
        %v6468 = vadd.f32 %v6150, %v6406
        %v6469 = vadd.f32 %v6151, %v6447
        %v6470 = vadd.f32 %v6152, %v6409
        %v6471 = vadd.f32 %v6153, %v6450
        %v6472 = vadd.f32 %v6154, %v6412
        %v6473 = vadd.f32 %v6155, %v6453
        %v6474 = vadd.f32 %v6156, %v6415
        %v6475 = vadd.f32 %v6157, %v6456
        %v6476 = vadd.f32 %v6158, %v6418
        %v6477 = vadd.f32 %v6159, %v6459
        %v6478 = vadd.f32 %v6160, %v6421
        %v6479 = vadd.f32 %v6161, %v6462
        %v6480 = vld [vmem:[%s5] sm:$0x3]
        %v6482 = vperm.slane %v6480, 0
        %v6483 = vperm.slane %v6480, 1
        %v6486 = vadd.f32 %v6464, %v6482
        %v6487 = vadd.f32 %v6465, %v6483
        %v6488 = vadd.f32 %v6466, %v6482
        %v6489 = vadd.f32 %v6467, %v6483
        %v6490 = vadd.f32 %v6468, %v6482
        %v6491 = vadd.f32 %v6469, %v6483
        %v6492 = vadd.f32 %v6470, %v6482
        %v6493 = vadd.f32 %v6471, %v6483
        %v6494 = vadd.f32 %v6472, %v6482
        %v6495 = vadd.f32 %v6473, %v6483
        %v6496 = vadd.f32 %v6474, %v6482
        %v6497 = vadd.f32 %v6475, %v6483
        %v6498 = vadd.f32 %v6476, %v6482
        %v6499 = vadd.f32 %v6477, %v6483
        %v6500 = vadd.f32 %v6478, %v6482
        %v6501 = vadd.f32 %v6479, %v6483
        %vm6502 = vcmp.gt.f32.partialorder %v6486, 0.0
        %vm6503 = vcmp.gt.f32.partialorder %v6487, 0.0
        %vm6504 = vcmp.gt.f32.partialorder %v6488, 0.0
        %vm6505 = vcmp.gt.f32.partialorder %v6489, 0.0
        %vm6506 = vcmp.gt.f32.partialorder %v6490, 0.0
        %vm6507 = vcmp.gt.f32.partialorder %v6491, 0.0
        %vm6508 = vcmp.gt.f32.partialorder %v6492, 0.0
        %vm6509 = vcmp.gt.f32.partialorder %v6493, 0.0
        %vm6510 = vcmp.gt.f32.partialorder %v6494, 0.0
        %vm6511 = vcmp.gt.f32.partialorder %v6495, 0.0
        %vm6512 = vcmp.gt.f32.partialorder %v6496, 0.0
        %vm6513 = vcmp.gt.f32.partialorder %v6497, 0.0
        %vm6514 = vcmp.gt.f32.partialorder %v6498, 0.0
        %vm6515 = vcmp.gt.f32.partialorder %v6499, 0.0
        %vm6516 = vcmp.gt.f32.partialorder %v6500, 0.0
        %vm6517 = vcmp.gt.f32.partialorder %v6501, 0.0
        %v6518 = vmin.f32 %v6486, 0.0
        %v6519 = vmin.f32 %v6487, 0.0
        %v6520 = vmin.f32 %v6488, 0.0
        %v6521 = vmin.f32 %v6489, 0.0
        %v6522 = vmin.f32 %v6490, 0.0
        %v6523 = vmin.f32 %v6491, 0.0
        %v6524 = vmin.f32 %v6492, 0.0
        %v6525 = vmin.f32 %v6493, 0.0
        %v6526 = vmin.f32 %v6494, 0.0
        %v6527 = vmin.f32 %v6495, 0.0
        %v6528 = vmin.f32 %v6496, 0.0
        %v6529 = vmin.f32 %v6497, 0.0
        %v6530 = vmin.f32 %v6498, 0.0
        %v6531 = vmin.f32 %v6499, 0.0
        %v6532 = vmin.f32 %v6500, 0.0
        %v6533 = vmin.f32 %v6501, 0.0
        %v6534 = vmul.f32 %v6518, 1.442695
        %v6535 = vpow.pop %v6534
        %v6536 = vmul.f32 %v6519, 1.442695
        %v6537 = vpow.pop %v6536
        %v6538 = vmul.f32 %v6520, 1.442695
        %v6539 = vpow.pop %v6538
        %v6540 = vmul.f32 %v6521, 1.442695
        %v6541 = vpow.pop %v6540
        %v6542 = vmul.f32 %v6522, 1.442695
        %v6543 = vpow.pop %v6542
        %v6544 = vmul.f32 %v6523, 1.442695
        %v6545 = vpow.pop %v6544
        %v6546 = vmul.f32 %v6524, 1.442695
        %v6547 = vpow.pop %v6546
        %v6548 = vmul.f32 %v6525, 1.442695
        %v6549 = vpow.pop %v6548
        %v6550 = vmul.f32 %v6526, 1.442695
        %v6551 = vpow.pop %v6550
        %v6552 = vmul.f32 %v6527, 1.442695
        %v6553 = vpow.pop %v6552
        %v6554 = vmul.f32 %v6528, 1.442695
        %v6555 = vpow.pop %v6554
        %v6556 = vmul.f32 %v6529, 1.442695
        %v6557 = vpow.pop %v6556
        %v6558 = vmul.f32 %v6530, 1.442695
        %v6559 = vpow.pop %v6558
        %v6560 = vmul.f32 %v6531, 1.442695
        %v6561 = vpow.pop %v6560
        %v6562 = vmul.f32 %v6532, 1.442695
        %v6563 = vpow.pop %v6562
        %v6564 = vmul.f32 %v6533, 1.442695
        %v6565 = vpow.pop %v6564
        %v6566 = vsub.f32 %v6535, 1.0
        %v6567 = vsub.f32 %v6537, 1.0
        %v6568 = vsub.f32 %v6539, 1.0
        %v6569 = vsub.f32 %v6541, 1.0
        %v6570 = vsub.f32 %v6543, 1.0
        %v6571 = vsub.f32 %v6545, 1.0
        %v6572 = vsub.f32 %v6547, 1.0
        %v6573 = vsub.f32 %v6549, 1.0
        %v6574 = vsub.f32 %v6551, 1.0
        %v6575 = vsub.f32 %v6553, 1.0
        %v6576 = vsub.f32 %v6555, 1.0
        %v6577 = vsub.f32 %v6557, 1.0
        %v6578 = vsub.f32 %v6559, 1.0
        %v6579 = vsub.f32 %v6561, 1.0
        %v6580 = vsub.f32 %v6563, 1.0
        %v6581 = vsub.f32 %v6565, 1.0
        %v6582 = vsel %vm6502, %v6486, %v6566
        %v6583 = vsel %vm6503, %v6487, %v6567
        %v6584 = vsel %vm6504, %v6488, %v6568
        %v6585 = vsel %vm6505, %v6489, %v6569
        %v6586 = vsel %vm6506, %v6490, %v6570
        %v6587 = vsel %vm6507, %v6491, %v6571
        %v6588 = vsel %vm6508, %v6492, %v6572
        %v6589 = vsel %vm6509, %v6493, %v6573
        %v6590 = vsel %vm6510, %v6494, %v6574
        %v6591 = vsel %vm6511, %v6495, %v6575
        %v6592 = vsel %vm6512, %v6496, %v6576
        %v6593 = vsel %vm6513, %v6497, %v6577
        %v6594 = vsel %vm6514, %v6498, %v6578
        %v6595 = vsel %vm6515, %v6499, %v6579
        %v6596 = vsel %vm6516, %v6500, %v6580
        %v6597 = vsel %vm6517, %v6501, %v6581
        %v6598 = vld [vmem:[%s6] sm:$0xff]
        %v6599 = vld [vmem:[%s6 + $0x8] sm:$0xff]
        %v6600 = vld [vmem:[%s6 + $0x10] sm:$0xff]
        %v6601 = vld [vmem:[%s6 + $0x18] sm:$0xff]
        %v6602 = vld [vmem:[%s6 + $0x20] sm:$0xff]
        %v6603 = vld [vmem:[%s6 + $0x28] sm:$0xff]
        %v6604 = vld [vmem:[%s6 + $0x30] sm:$0xff]
        %v6605 = vld [vmem:[%s6 + $0x38] sm:$0xff]
        %v6606 = vld [vmem:[%s6 + $0x40] sm:$0xff]
        %v6607 = vld [vmem:[%s6 + $0x48] sm:$0xff]
        %v6608 = vld [vmem:[%s6 + $0x50] sm:$0xff]
        %v6609 = vld [vmem:[%s6 + $0x58] sm:$0xff]
        %v6610 = vld [vmem:[%s6 + $0x60] sm:$0xff]
        %v6611 = vld [vmem:[%s6 + $0x68] sm:$0xff]
        %v6612 = vld [vmem:[%s6 + $0x70] sm:$0xff]
        %v6613 = vld [vmem:[%s6 + $0x78] sm:$0xff]
        %v6614 = vld [vmem:[%s6 + $0x80] sm:$0xff]
        %v6615 = vld [vmem:[%s6 + $0x88] sm:$0xff]
        %v6616 = vld [vmem:[%s6 + $0x90] sm:$0xff]
        %v6617 = vld [vmem:[%s6 + $0x98] sm:$0xff]
        %v6618 = vld [vmem:[%s6 + $0xa0] sm:$0xff]
        %v6619 = vld [vmem:[%s6 + $0xa8] sm:$0xff]
        %v6620 = vld [vmem:[%s6 + $0xb0] sm:$0xff]
        %v6621 = vld [vmem:[%s6 + $0xb8] sm:$0xff]
        %v6622 = vld [vmem:[%s6 + $0xc0] sm:$0xff]
        %v6623 = vld [vmem:[%s6 + $0xc8] sm:$0xff]
        %v6624 = vld [vmem:[%s6 + $0xd0] sm:$0xff]
        %v6625 = vld [vmem:[%s6 + $0xd8] sm:$0xff]
        %v6626 = vld [vmem:[%s6 + $0xe0] sm:$0xff]
        %v6627 = vld [vmem:[%s6 + $0xe8] sm:$0xff]
        %v6628 = vld [vmem:[%s6 + $0xf0] sm:$0xff]
        %v6629 = vld [vmem:[%s6 + $0xf8] sm:$0xff]
        %6630 = vmatpush.msra.mxu0 %v6613
        %6631 = vmatpush.msra.mxu0 %v6612
        %6632 = vmatpush.msra.mxu0 %v6611
        %6633 = vmatpush.msra.mxu0 %v6610
        %6634 = vmatpush.msra.mxu0 %v6609
        %6635 = vmatpush.msra.mxu0 %v6608
        %6636 = vmatpush.msra.mxu0 %v6607
        %6637 = vmatpush.msra.mxu0 %v6606
        %6638 = vmatpush.msra.mxu0 %v6605
        %6639 = vmatpush.msra.mxu0 %v6604
        %6640 = vmatpush.msra.mxu0 %v6603
        %6641 = vmatpush.msra.mxu0 %v6602
        %6642 = vmatpush.msra.mxu0 %v6601
        %6643 = vmatpush.msra.mxu0 %v6600
        %6644 = vmatpush.msra.mxu0 %v6599
        %6645 = vmatpush.msra.mxu0 %v6598
        %6646 = vmatmul.f32.gmra.mxu0 %v6582
        %v6647 = vpop.f32.mrf.mxu0
        %v6648 = vadd.f32 0.0, %v6647
        %6649 = vmatmul.f32.gmra.mxu0 %v6584
        %v6650 = vpop.f32.mrf.mxu0
        %v6651 = vadd.f32 0.0, %v6650
        %6652 = vmatmul.f32.gmra.mxu0 %v6586
        %v6653 = vpop.f32.mrf.mxu0
        %v6654 = vadd.f32 0.0, %v6653
        %6655 = vmatmul.f32.gmra.mxu0 %v6588
        %v6656 = vpop.f32.mrf.mxu0
        %v6657 = vadd.f32 0.0, %v6656
        %6658 = vmatmul.f32.gmra.mxu0 %v6590
        %v6659 = vpop.f32.mrf.mxu0
        %v6660 = vadd.f32 0.0, %v6659
        %6661 = vmatmul.f32.gmra.mxu0 %v6592
        %v6662 = vpop.f32.mrf.mxu0
        %v6663 = vadd.f32 0.0, %v6662
        %6664 = vmatmul.f32.gmra.mxu0 %v6594
        %v6665 = vpop.f32.mrf.mxu0
        %v6666 = vadd.f32 0.0, %v6665
        %6667 = vmatmul.f32.gmra.mxu0 %v6596
        %v6668 = vpop.f32.mrf.mxu0
        %v6669 = vadd.f32 0.0, %v6668
        %6670 = vdwg.mxu0
        %6671 = vmatpush.msra.mxu0 %v6629
        %6672 = vmatpush.msra.mxu0 %v6628
        %6673 = vmatpush.msra.mxu0 %v6627
        %6674 = vmatpush.msra.mxu0 %v6626
        %6675 = vmatpush.msra.mxu0 %v6625
        %6676 = vmatpush.msra.mxu0 %v6624
        %6677 = vmatpush.msra.mxu0 %v6623
        %6678 = vmatpush.msra.mxu0 %v6622
        %6679 = vmatpush.msra.mxu0 %v6621
        %6680 = vmatpush.msra.mxu0 %v6620
        %6681 = vmatpush.msra.mxu0 %v6619
        %6682 = vmatpush.msra.mxu0 %v6618
        %6683 = vmatpush.msra.mxu0 %v6617
        %6684 = vmatpush.msra.mxu0 %v6616
        %6685 = vmatpush.msra.mxu0 %v6615
        %6686 = vmatpush.msra.mxu0 %v6614
        %6687 = vmatmul.f32.gmra.mxu0 %v6583
        %v6688 = vpop.f32.mrf.mxu0
        %v6689 = vadd.f32 %v6648, %v6688
        %6690 = vmatmul.f32.gmra.mxu0 %v6585
        %v6691 = vpop.f32.mrf.mxu0
        %v6692 = vadd.f32 %v6651, %v6691
        %6693 = vmatmul.f32.gmra.mxu0 %v6587
        %v6694 = vpop.f32.mrf.mxu0
        %v6695 = vadd.f32 %v6654, %v6694
        %6696 = vmatmul.f32.gmra.mxu0 %v6589
        %v6697 = vpop.f32.mrf.mxu0
        %v6698 = vadd.f32 %v6657, %v6697
        %6699 = vmatmul.f32.gmra.mxu0 %v6591
        %v6700 = vpop.f32.mrf.mxu0
        %v6701 = vadd.f32 %v6660, %v6700
        %6702 = vmatmul.f32.gmra.mxu0 %v6593
        %v6703 = vpop.f32.mrf.mxu0
        %v6704 = vadd.f32 %v6663, %v6703
        %6705 = vmatmul.f32.gmra.mxu0 %v6595
        %v6706 = vpop.f32.mrf.mxu0
        %v6707 = vadd.f32 %v6666, %v6706
        %6708 = vmatmul.f32.gmra.mxu0 %v6597
        %v6709 = vpop.f32.mrf.mxu0
        %v6710 = vadd.f32 %v6669, %v6709
        %6711 = vdwg.mxu0
        %v6712 = vld [vmem:[%s7] sm:$0xff]
        %v6713 = vld [vmem:[%s7 + $0x8] sm:$0xff]
        %v6714 = vld [vmem:[%s7 + $0x10] sm:$0xff]
        %v6715 = vld [vmem:[%s7 + $0x18] sm:$0xff]
        %v6716 = vld [vmem:[%s7 + $0x20] sm:$0xff]
        %v6717 = vld [vmem:[%s7 + $0x28] sm:$0xff]
        %v6718 = vld [vmem:[%s7 + $0x30] sm:$0xff]
        %v6719 = vld [vmem:[%s7 + $0x38] sm:$0xff]
        %v6720 = vld [vmem:[%s7 + $0x40] sm:$0xff]
        %v6721 = vld [vmem:[%s7 + $0x48] sm:$0xff]
        %v6722 = vld [vmem:[%s7 + $0x50] sm:$0xff]
        %v6723 = vld [vmem:[%s7 + $0x58] sm:$0xff]
        %v6724 = vld [vmem:[%s7 + $0x60] sm:$0xff]
        %v6725 = vld [vmem:[%s7 + $0x68] sm:$0xff]
        %v6726 = vld [vmem:[%s7 + $0x70] sm:$0xff]
        %v6727 = vld [vmem:[%s7 + $0x78] sm:$0xff]
        %v6728 = vld [vmem:[%s7 + $0x80] sm:$0xff]
        %v6729 = vld [vmem:[%s7 + $0x88] sm:$0xff]
        %v6730 = vld [vmem:[%s7 + $0x90] sm:$0xff]
        %v6731 = vld [vmem:[%s7 + $0x98] sm:$0xff]
        %v6732 = vld [vmem:[%s7 + $0xa0] sm:$0xff]
        %v6733 = vld [vmem:[%s7 + $0xa8] sm:$0xff]
        %v6734 = vld [vmem:[%s7 + $0xb0] sm:$0xff]
        %v6735 = vld [vmem:[%s7 + $0xb8] sm:$0xff]
        %v6736 = vmul.f32 %v6689, %v6712
        %v6737 = vmul.f32 %v6692, %v6713
        %v6738 = vmul.f32 %v6695, %v6714
        %v6739 = vmul.f32 %v6698, %v6715
        %v6740 = vmul.f32 %v6701, %v6716
        %v6741 = vmul.f32 %v6704, %v6717
        %v6742 = vmul.f32 %v6707, %v6718
        %v6743 = vmul.f32 %v6710, %v6719
        %v6744 = vmul.f32 %v6689, %v6720
        %v6745 = vmul.f32 %v6692, %v6721
        %v6746 = vmul.f32 %v6695, %v6722
        %v6747 = vmul.f32 %v6698, %v6723
        %v6748 = vmul.f32 %v6701, %v6724
        %v6749 = vmul.f32 %v6704, %v6725
        %v6750 = vmul.f32 %v6707, %v6726
        %v6751 = vmul.f32 %v6710, %v6727
        %v6752 = vmul.f32 %v6689, %v6728
        %v6753 = vmul.f32 %v6692, %v6729
        %v6754 = vmul.f32 %v6695, %v6730
        %v6755 = vmul.f32 %v6698, %v6731
        %v6756 = vmul.f32 %v6701, %v6732
        %v6757 = vmul.f32 %v6704, %v6733
        %v6758 = vmul.f32 %v6707, %v6734
        %v6759 = vmul.f32 %v6710, %v6735
        %vm6760 = vcmask 261120
        %v6761 = vsel %vm6760, %v6736, 0.0
        %6762 = vadd.xlane.f32.xlu0 %v6761
        %v6763 = vpop.xlane.xlu0 %6762
        %v6764 = vsel %vm6760, %v6737, 0.0
        %6765 = vadd.xlane.f32.xlu0 %v6764
        %v6766 = vpop.xlane.xlu0 %6765
        %v6767 = vsel %vm6760, %v6738, 0.0
        %6768 = vadd.xlane.f32.xlu0 %v6767
        %v6769 = vpop.xlane.xlu0 %6768
        %v6770 = vsel %vm6760, %v6739, 0.0
        %6771 = vadd.xlane.f32.xlu0 %v6770
        %v6772 = vpop.xlane.xlu0 %6771
        %v6773 = vsel %vm6760, %v6740, 0.0
        %6774 = vadd.xlane.f32.xlu0 %v6773
        %v6775 = vpop.xlane.xlu0 %6774
        %v6776 = vsel %vm6760, %v6741, 0.0
        %6777 = vadd.xlane.f32.xlu0 %v6776
        %v6778 = vpop.xlane.xlu0 %6777
        %v6779 = vsel %vm6760, %v6742, 0.0
        %6780 = vadd.xlane.f32.xlu0 %v6779
        %v6781 = vpop.xlane.xlu0 %6780
        %v6782 = vsel %vm6760, %v6743, 0.0
        %6783 = vadd.xlane.f32.xlu0 %v6782
        %v6784 = vpop.xlane.xlu0 %6783
        %v6785 = vsel %vm6760, %v6744, 0.0
        %6786 = vadd.xlane.f32.xlu0 %v6785
        %v6787 = vpop.xlane.xlu0 %6786
        %v6788 = vsel %vm6760, %v6745, 0.0
        %6789 = vadd.xlane.f32.xlu0 %v6788
        %v6790 = vpop.xlane.xlu0 %6789
        %v6791 = vsel %vm6760, %v6746, 0.0
        %6792 = vadd.xlane.f32.xlu0 %v6791
        %v6793 = vpop.xlane.xlu0 %6792
        %v6794 = vsel %vm6760, %v6747, 0.0
        %6795 = vadd.xlane.f32.xlu0 %v6794
        %v6796 = vpop.xlane.xlu0 %6795
        %v6797 = vsel %vm6760, %v6748, 0.0
        %6798 = vadd.xlane.f32.xlu0 %v6797
        %v6799 = vpop.xlane.xlu0 %6798
        %v6800 = vsel %vm6760, %v6749, 0.0
        %6801 = vadd.xlane.f32.xlu0 %v6800
        %v6802 = vpop.xlane.xlu0 %6801
        %v6803 = vsel %vm6760, %v6750, 0.0
        %6804 = vadd.xlane.f32.xlu0 %v6803
        %v6805 = vpop.xlane.xlu0 %6804
        %v6806 = vsel %vm6760, %v6751, 0.0
        %6807 = vadd.xlane.f32.xlu0 %v6806
        %v6808 = vpop.xlane.xlu0 %6807
        %v6809 = vsel %vm6760, %v6752, 0.0
        %6810 = vadd.xlane.f32.xlu0 %v6809
        %v6811 = vpop.xlane.xlu0 %6810
        %v6812 = vsel %vm6760, %v6753, 0.0
        %6813 = vadd.xlane.f32.xlu0 %v6812
        %v6814 = vpop.xlane.xlu0 %6813
        %v6815 = vsel %vm6760, %v6754, 0.0
        %6816 = vadd.xlane.f32.xlu0 %v6815
        %v6817 = vpop.xlane.xlu0 %6816
        %v6818 = vsel %vm6760, %v6755, 0.0
        %6819 = vadd.xlane.f32.xlu0 %v6818
        %v6820 = vpop.xlane.xlu0 %6819
        %v6821 = vsel %vm6760, %v6756, 0.0
        %6822 = vadd.xlane.f32.xlu0 %v6821
        %v6823 = vpop.xlane.xlu0 %6822
        %v6824 = vsel %vm6760, %v6757, 0.0
        %6825 = vadd.xlane.f32.xlu0 %v6824
        %v6826 = vpop.xlane.xlu0 %6825
        %v6827 = vsel %vm6760, %v6758, 0.0
        %6828 = vadd.xlane.f32.xlu0 %v6827
        %v6829 = vpop.xlane.xlu0 %6828
        %v6830 = vsel %vm6760, %v6759, 0.0
        %6831 = vadd.xlane.f32.xlu0 %v6830
        %v6832 = vpop.xlane.xlu0 %6831
        %v6857 = vlaneseq
        %v6858 = vand.u32 %v6857, 127
        %v6859 = vperm.slane %v6763, %v6858
        %v6860 = vadd.s32 %v6858, 4294967288
        %v6861 = vperm.slane %v6766, %v6860
        %vm6862 = vcmask 130112
        %v6863 = vsel %vm6862, %v6861, %v6859
        %v6864 = vadd.s32 %v6858, 4294967280
        %v6865 = vperm.slane %v6769, %v6864
        %vm6866 = vcmask 195712
        %v6867 = vsel %vm6866, %v6865, %v6863
        %v6868 = vadd.s32 %v6858, 4294967272
        %v6869 = vperm.slane %v6772, %v6868
        %vm6870 = vcmask 261312
        %v6871 = vsel %vm6870, %v6869, %v6867
        %v6872 = vadd.s32 %v6858, 4294967264
        %v6873 = vperm.slane %v6775, %v6872
        %vm6874 = vcmask 326912
        %v6875 = vsel %vm6874, %v6873, %v6871
        %v6876 = vadd.s32 %v6858, 4294967256
        %v6877 = vperm.slane %v6778, %v6876
        %vm6878 = vcmask 392512
        %v6879 = vsel %vm6878, %v6877, %v6875
        %v6880 = vadd.s32 %v6858, 4294967248
        %v6881 = vperm.slane %v6781, %v6880
        %vm6882 = vcmask 458112
        %v6883 = vsel %vm6882, %v6881, %v6879
        %v6884 = vadd.s32 %v6858, 4294967240
        %v6885 = vperm.slane %v6784, %v6884
        %vm6886 = vcmask 523712
        %v6887 = vsel %vm6886, %v6885, %v6883
        %v6888 = vperm.slane %v6787, %v6858
        %v6889 = vperm.slane %v6790, %v6860
        %v6890 = vsel %vm6862, %v6889, %v6888
        %v6891 = vperm.slane %v6793, %v6864
        %v6892 = vsel %vm6866, %v6891, %v6890
        %v6893 = vperm.slane %v6796, %v6868
        %v6894 = vsel %vm6870, %v6893, %v6892
        %v6895 = vperm.slane %v6799, %v6872
        %v6896 = vsel %vm6874, %v6895, %v6894
        %v6897 = vperm.slane %v6802, %v6876
        %v6898 = vsel %vm6878, %v6897, %v6896
        %v6899 = vperm.slane %v6805, %v6880
        %v6900 = vsel %vm6882, %v6899, %v6898
        %v6901 = vperm.slane %v6808, %v6884
        %v6902 = vsel %vm6886, %v6901, %v6900
        %v6903 = vperm.slane %v6811, %v6858
        %v6904 = vperm.slane %v6814, %v6860
        %v6905 = vsel %vm6862, %v6904, %v6903
        %v6906 = vperm.slane %v6817, %v6864
        %v6907 = vsel %vm6866, %v6906, %v6905
        %v6908 = vperm.slane %v6820, %v6868
        %v6909 = vsel %vm6870, %v6908, %v6907
        %v6910 = vperm.slane %v6823, %v6872
        %v6911 = vsel %vm6874, %v6910, %v6909
        %v6912 = vperm.slane %v6826, %v6876
        %v6913 = vsel %vm6878, %v6912, %v6911
        %v6914 = vperm.slane %v6829, %v6880
        %v6915 = vsel %vm6882, %v6914, %v6913
        %v6916 = vperm.slane %v6832, %v6884
        %v6917 = vsel %vm6886, %v6916, %v6915
        %vm6918 = vcmask 1041409
        %v6919 = vsel %vm6918, %v6902, %v6887
        %vm6920 = vcmask 1042434
        %v6921 = vsel %vm6920, %v6917, %v6919
        %vm6923 = vcmask 518144
        %v6924 = vsel %vm6923, %v6921, 0.0
        %6925 = vadd.xlane.f32.xlu0 %v6924
        %v6926 = vpop.xlane.xlu0 %6925
        %v6927 = vld [vmem:[%s8] sm:$0x1]
        %v6929 = vperm.slane %v6927, 0
        %v6930 = vlaneseq
        %v6931 = vshrl.u32 %v6930, 7
        %6933 = vset.pattern.permute.xlu0 %v6931
        %6934 = vperm.xlu0 %6933, %v6929
        %v6935 = vpop.permute.xlu0 %6934
        %v6937 = vadd.f32 %v6926, %v6935
        %6939 = vset.pattern.permute.xlu0 0
        %6940 = vperm.xlu0 %6939, %v6937
        %v6941 = vpop.permute.xlu0 %6940
        %v6942 = vperm.slane %v6941, %v6858
        %vm6944 = vcmask 16384
        %6945 = vst.msk [vmem:[%s358] sm:$0x1] %vm6944, %v6942
        %s6946 = sand.u32 %s227, 1
        %s6947 = scalar_lea.sflag [#allocation5], %s6946
        %s6948 = sand.u32 %s227, 1
        %s6949 = scalar_lea.vmem [#allocation8], %s6948
        // Predicated region
        $region65: #{eegnet_forward.1} parent=55 // pred_check
          %p6950 = pneg %p237
        $region66: #{eegnet_forward.1} parent=55 // pred_check_branch
          %6952 = sbr.rel (%p6950) target = $region68
        $region67: #{eegnet_forward.1} parent=55 // pred_region
          %6954 = vsyncadd %s6947, 0
          %s6955 = scalar_lea.hbm %s9, %s25
          %s6957 = sshll.u32 %s6949, 4
          %s6958 = int_to_ptr.vmem [resolvable:$true] %s6957
          %s6959 = sshll.u32 %s6955, 4
          %s6960 = int_to_ptr.hbm [resolvable:$true] %s6959
          %6962 = dma.vmem_to_hbm [thread:$0]  %s6958, 16, %s6960, %s6947
        $region68: #{eegnet_forward.1} parent=55 // pred_fallthru
          _
      $region56: #{eegnet_forward.1} parent=5 // pred_fallthru
        _
      %p6963 = scmp.le.s32.totalorder 2, %s20
      // Predicated region
      $region69: #{eegnet_forward.1} parent=5 // pred_check
        %p6964 = pneg %p6963
      $region70: #{eegnet_forward.1} parent=5 // pred_check_branch
        %6966 = sbr.rel (%p6964) target = $region72
      $region71: #{eegnet_forward.1} parent=5 // pred_region
        %s6967 = ssub.s32 %s20, 2
        // Predicated region
        $region73: #{eegnet_forward.1} parent=71 // pred_check
          %p6968 = pneg %p243
        $region74: #{eegnet_forward.1} parent=71 // pred_check_branch
          %6970 = sbr.rel (%p6968) target = $region76
        $region75: #{eegnet_forward.1} parent=71 // pred_region
          %s6971 = sand.u32 %s228, 1
          %s6972 = scalar_lea.sflag [#allocation5], %s6971
          %s6973 = sand.u32 %s228, 1
          %s6974 = scalar_lea.vmem [#allocation8], %s6973
          %6976 = dma.done %s6972, 16
        $region76: #{eegnet_forward.1} parent=71 // pred_fallthru
          _
      $region72: #{eegnet_forward.1} parent=5 // pred_fallthru
        _
    $region6: #{eegnet_forward.1} parent=1 // loop_footer
      %s24 = sadd.s32 1, %s20
    $region7: #{eegnet_forward.1} parent=1 // loop_footer_branch
      %19 = sbr.rel target = $region3
    $region8: #{eegnet_forward.1} parent=1 // loop_exit
      _
    %6977 = vsyncpa [#allocation4], 1
    %s6978 = scalar_lea.sflag [#allocation4], 1
    %6979 = vsyncpa %s6978, 1
    %6980 = vsyncpa [#allocation7], 1
    %6981 = vsyncpa [#allocation5], 1
    %s6982 = scalar_lea.sflag [#allocation5], 1
    %6983 = vsyncpa %s6982, 1

</llo_original>
